<compile_context>
chip_gen: v7x
topology: tpu7x:2x2x1
jax: 0.10.0
libtpu: 0.0.40
codegen_flags: <defaults>
</compile_context>

<pallas_src>
import math

import jax
import jax.numpy as jnp
from jax.experimental import pallas as pl
from jax.experimental.pallas import tpu as pltpu

# ----------------------------------------------------------------------------
# Model hyper-parameters (hard-coded in the torch module) + small test config.
# ----------------------------------------------------------------------------
KERNELS = [5, 3]
CHANNELS = [16, 32]
HIDDEN = 64
DEC_LEN = sum(KERNELS) - len(KERNELS) + 1          # 7

NUM_NODES = 4
BATCH = 2
WINDOW = 16                                        # lags
HORIZON = 2
TOPK = 2
EMBED_DIM = 8
T_ENC = WINDOW - DEC_LEN                           # 9
BN = BATCH * NUM_NODES                             # 8   (batch * nodes)
NT = BN * T_ENC                                    # 72  (temporally-batched graph nodes)
PRED_PAD = 128                                     # lane-dense head / output width
K0, K1 = KERNELS
C0, C1 = CHANNELS
N_DEC_T = DEC_LEN - K0 + 1                         # 3   decoder conv-1 output length


def _vmem():
    return pl.BlockSpec(memory_space=pltpu.MemorySpace.VMEM)


# ----------------------------------------------------------------------------
# Kernel 1: fused 3-layer STConv encoder.
# ----------------------------------------------------------------------------
def _encoder_kernel(enc_ref, adj_ref, pe_out_ref, *rest):
    n_layer_refs = 3 * 7
    layer_refs = rest[:n_layer_refs]
    out_ref = rest[n_layer_refs]
    hs_ref = rest[n_layer_refs + 1]          # (NT, HIDDEN)     scrambled-row scratch
    yf_ref = rest[n_layer_refs + 2]          # (BN, HIDDEN*T)   flat scratch

    adj = adj_ref[...]                       # (NT, NT) row-permuted temporal-batched graph
    xf = enc_ref[...]                        # (BN, c_in*T); layer 1 has c_in == 1

    for l in range(3):
        mab, bab, pef, mres, bresf, wv, ba = layer_refs[7 * l:7 * (l + 1)]
        ct9 = mab.shape[1] // 2
        c_t = ct9 // T_ENC
        cs9 = mres.shape[1]
        c_s = cs9 // T_ENC

        # temporal conv (+ folded eval-BN), both GLU halves in ONE matmul, then GLU + PE.
        h2 = jnp.dot(xf, mab[...], preferred_element_type=jnp.float32) + bab[...]
        hf = h2[:, :ct9] * jax.nn.sigmoid(h2[:, ct9:]) + pef[...]        # (BN, c_t*T)

        # 1x1 residual conv in the flat layout.
        rf = jnp.dot(xf, mres[...], preferred_element_type=jnp.float32) + bresf[...]

        # torch `x.view(-1, C)`: chop each sample's flat vector into T rows of width c_t.
        # Rows are stored time-chunk-major (row s*BN+b); the adjacency was permuted to
        # match at init, so no XLA relayout is needed.
        for s in range(T_ENC):
            hs_ref[s * BN:(s + 1) * BN, :c_t] = hf[:, s * c_t:(s + 1) * c_t]
        hs = hs_ref[:, :c_t]                                              # (NT, c_t)

        # ARMA graph conv (1 stack / 1 layer) with W|V concatenated along N, + GELU.
        # TODO(synk): torch nn.GELU is exact erf; the tanh approximation is used here.
        xwv = jnp.dot(hs, wv[...], preferred_element_type=jnp.float32)    # (NT, 2*c_s)
        agg = jnp.dot(adj, xwv[:, :c_s], preferred_element_type=jnp.float32)
        ys = jax.nn.gelu(agg + xwv[:, c_s:] + ba[...], approximate=True)  # (NT, c_s)

        # torch `x.view(BN, -1, T)`: back to the per-sample flat layout, + residual.
        for s in range(T_ENC):
            yf_ref[:, s * c_s:(s + 1) * c_s] = ys[s * BN:(s + 1) * BN, :]
        z = yf_ref[:, :cs9] + rf                                          # (BN, c_s*T)

        # F.layer_norm over each sample's (c_s, T) elements == row LN in the flat layout.
        mu = jnp.mean(z, axis=-1, keepdims=True)
        var = jnp.mean(jnp.square(z - mu), axis=-1, keepdims=True)
        xf = (z - mu) * jax.lax.rsqrt(var + 1e-5)

    # encoder-output positional embedding (loop-invariant, hoisted out of the decoder).
    out_ref[...] = xf + pe_out_ref[...]


def encoder_call(enc, params):
    ins = [enc, params['adj_t'], params['pe_out']]
    for lp in params['enc']:
        ins += [lp['mab'], lp['bab'], lp['pef'], lp['mres'], lp['bresf'],
                lp['wv'], lp['ba']]
    return pl.pallas_call(
        _encoder_kernel,
        out_shape=jax.ShapeDtypeStruct((BN, HIDDEN * T_ENC), jnp.float32),
        in_specs=[_vmem()] * len(ins),
        out_specs=_vmem(),
        scratch_shapes=[pltpu.VMEM((NT, HIDDEN), jnp.float32),
                        pltpu.VMEM((BN, HIDDEN * T_ENC), jnp.float32)],
    )(*ins)


# ----------------------------------------------------------------------------
# Kernel 2: fused decoder — the whole horizon loop runs in-kernel.
# ----------------------------------------------------------------------------
def _decoder_kernel(dec_ref, henc_ref, adj_ref, alw_ref, alb_ref,
                    w1_ref, b1_ref, w2_ref, b2_ref, wv_ref, ba_ref,
                    lng_ref, lnb_ref, wp_ref, bp_ref, out_ref):
    adj = adj_ref[...]                                   # (BN, BN)
    dw = dec_ref[...]                                    # (BN, DEC_LEN)
    # encoder rows are time-major: rows [t*BN:(t+1)*BN] hold h_enc[:, :, t] (lanes = H).
    henc_t = [henc_ref[t * BN:(t + 1) * BN, :] for t in range(T_ENC)]

    preds = []
    for _ in range(HORIZON):
        # decoder conv stack: conv1(k=5)+BN+GLU at its 3 valid offsets, then the K-
        # concatenated conv2(k=3)+BN+GLU (both GLU halves share each matmul).
        h1 = []
        for t in range(N_DEC_T):
            g1 = jnp.dot(dw[:, t:t + K0], w1_ref[...],
                         preferred_element_type=jnp.float32) + b1_ref[...]
            h1.append(g1[:, :C0] * jax.nn.sigmoid(g1[:, C0:]))
        h1cat = jnp.concatenate(h1, axis=1)                               # (BN, 3*C0)
        g2 = jnp.dot(h1cat, w2_ref[...], preferred_element_type=jnp.float32) + b2_ref[...]
        h2 = g2[:, :C1] * jax.nn.sigmoid(g2[:, C1:])                      # (BN, C1)

        # ARMA graph conv on the batched graph + GELU (W|V concatenated along N).
        # TODO(synk): tanh-approximate GELU (torch default is exact erf).
        xwv = jnp.dot(h2, wv_ref[...], preferred_element_type=jnp.float32)   # (BN, 2H)
        agg = jnp.dot(adj, xwv[:, :HIDDEN], preferred_element_type=jnp.float32)
        h3 = jax.nn.gelu(agg + xwv[:, HIDDEN:] + ba_ref[...], approximate=True)

        # LayerNorm(hidden) with affine parameters.
        mu = jnp.mean(h3, axis=-1, keepdims=True)
        var = jnp.mean(jnp.square(h3 - mu), axis=-1, keepdims=True)
        hdec = (h3 - mu) * jax.lax.rsqrt(var + 1e-5) * lng_ref[...] + lnb_ref[...]

        # attention: score / softmax over T / context.  score = (hdec @ W) . h_enc + hdec.b
        # (identical to alignment_W(h_enc) contracted with hdec); every reduction runs
        # over the 64-lane feature axis.
        q = jnp.dot(hdec, alw_ref[...], preferred_element_type=jnp.float32)   # (BN, H)
        sb = jnp.sum(hdec * alb_ref[...], axis=-1, keepdims=True)             # (BN, 1)
        score = jnp.concatenate(
            [jnp.sum(q * h_t, axis=-1, keepdims=True) for h_t in henc_t],
            axis=1) + sb                                                      # (BN, T)
        m = jnp.max(score, axis=-1, keepdims=True)
        e = jnp.exp(score - m)
        alpha = e / jnp.sum(e, axis=-1, keepdims=True)
        ctx = jnp.zeros((BN, HIDDEN), jnp.float32)
        for t in range(T_ENC):
            ctx = ctx + alpha[:, t:t + 1] * henc_t[t]                         # (BN, H)

        # F.layer_norm over concat([ctx, hdec]) + one lane-dense 128-wide head matmul.
        cat = jnp.concatenate([ctx, hdec], axis=1)                            # (BN, 2H)
        mu2 = jnp.mean(cat, axis=-1, keepdims=True)
        var2 = jnp.mean(jnp.square(cat - mu2), axis=-1, keepdims=True)
        catn = (cat - mu2) * jax.lax.rsqrt(var2 + 1e-5)
        yfull = jnp.dot(catn, wp_ref[...], preferred_element_type=jnp.float32) + bp_ref[...]
        y = yfull[:, :1]                                                      # (BN, 1)

        preds.append(y)
        dw = jnp.concatenate([dw[:, 1:], y], axis=1)        # in-kernel shift + append

    pad = jnp.zeros((BN, PRED_PAD - HORIZON), jnp.float32)
    out_ref[...] = jnp.concatenate(preds + [pad], axis=1)   # single lane-dense store


def decoder_call(dec_win, henc_rows, params):
    d = params['dec']
    ins = [dec_win, henc_rows, params['adj_b'], d['alw'], d['alb'],
           d['w1'], d['b1'], d['w2'], d['b2'], d['wv'], d['ba'],
           d['lng'], d['lnb'], d['wp'], d['bp']]
    return pl.pallas_call(
        _decoder_kernel,
        out_shape=jax.ShapeDtypeStruct((BN, PRED_PAD), jnp.float32),
        in_specs=[_vmem()] * len(ins),
        out_specs=_vmem(),
    )(*ins)


# ----------------------------------------------------------------------------
# Plain-JAX glue: PE / graph construction / flat-operator builders / parameters.
# ----------------------------------------------------------------------------
def make_pe(channels, length, divisor):
    pos = jnp.arange(length, dtype=jnp.float32)[:, None]
    div = jnp.exp(jnp.arange(0, channels, 2, dtype=jnp.float32)
                  * (-math.log(100000.0) / channels))
    s = jnp.sin(pos * div) / divisor
    c = jnp.cos(pos * div) / divisor
    return jnp.stack([s, c], axis=-1).reshape(length, channels)   # (length, channels)


def build_graph(key, num_nodes, topk, embed_dim):
    # TODO(synk): DoubleEmbedding stand-in (deterministic top-k cosine-similarity graph).
    emb = jax.random.normal(key, (num_nodes, embed_dim), jnp.float32)
    embn = emb / jnp.linalg.norm(emb, axis=1, keepdims=True)
    sim = embn @ embn.T - 10.0 * jnp.eye(num_nodes)
    vals, idx = jax.lax.top_k(sim, topk)
    dst = jnp.repeat(jnp.arange(num_nodes), topk)
    src = idx.reshape(-1)
    attr = jax.nn.softmax(vals, axis=-1).reshape(-1)
    return src, dst, attr


def batch_edges(src, dst, attr, num_nodes, copies):
    offs = (jnp.arange(copies) * num_nodes)[:, None]
    return ((src[None, :] + offs).reshape(-1),
            (dst[None, :] + offs).reshape(-1),
            jnp.tile(attr, (copies,)))


def dense_norm_adj(src, dst, attr, num_nodes):
    # gcn_norm (no self loops) -> dense adjacency A[dst, src].
    deg = jnp.zeros((num_nodes,), jnp.float32).at[dst].add(attr)
    dinv = jnp.where(deg > 0, jax.lax.rsqrt(deg), 0.0)
    norm = dinv[src] * attr * dinv[dst]
    return jnp.zeros((num_nodes, num_nodes), jnp.float32).at[dst, src].add(norm)


def conv_flat_matrix(w, T):
    """Causal (left-padded) Conv1d as a matmul on the per-sample channel-major flat
    vector (flat[c*T + t] == x[c, t]).  w: (k, c_in, c_out) -> M: (c_in*T, c_out*T)."""
    k, c_in, c_out = w.shape
    m = jnp.zeros((c_in, T, c_out, T), jnp.float32)
    for tap in range(k):
        for t in range(T):
            tau = t + tap - (k - 1)
            if tau >= 0:
                m = m.at[:, tau, :, t].add(w[tap])
    return m.reshape(c_in * T, c_out * T)


def res_flat_matrix(w, T):
    """1x1 Conv1d (residual path) as a matmul on the flat layout.  w: (c_in, c_out)."""
    eye = jnp.eye(T, dtype=jnp.float32)
    return jnp.einsum('ic,xt->ixct', w, eye).reshape(w.shape[0] * T, w.shape[1] * T)


def init_params(key_param, key_graph):
    keys = iter(jax.random.split(key_param, 64))

    def nrm(shape, scale):
        return scale * jax.random.normal(next(keys), shape, dtype=jnp.float32)

    bn_s = 1.0 / math.sqrt(1.0 + 1e-5)   # eval BatchNorm1d with default running stats

    # learned-graph stand-in + batched / temporally-batched dense adjacencies
    src, dst, attr = build_graph(key_graph, NUM_NODES, TOPK, EMBED_DIM)
    bsrc, bdst, battr = batch_edges(src, dst, attr, NUM_NODES, BATCH)
    adj_b = dense_norm_adj(bsrc, bdst, battr, BN)
    tsrc, tdst, tattr = batch_edges(bsrc, bdst, battr, BN, T_ENC)
    adj_t = dense_norm_adj(tsrc, tdst, tattr, NT)
    # in-kernel scrambled rows are time-chunk-major (row s*BN + b); the torch view is
    # sample-major (row b*T + s) -> permute the constant adjacency to match.
    rp = jnp.arange(NT)
    perm = (rp % BN) * T_ENC + rp // BN
    adj_t = adj_t[perm][:, perm]

    cfgs = [(1, CHANNELS[0], CHANNELS[0], KERNELS[0]),
            (CHANNELS[0], CHANNELS[1], CHANNELS[1], KERNELS[1]),
            (CHANNELS[1], HIDDEN, HIDDEN, KERNELS[1])]
    enc_layers = []
    for c_in, c_t, c_s, k in cfgs:
        wa = nrm((k, c_in, c_t), 1.0 / math.sqrt(c_in * k)) * bn_s
        wb = nrm((k, c_in, c_t), 1.0 / math.sqrt(c_in * k)) * bn_s
        ba = nrm((c_t,), 0.05) * bn_s
        bb = nrm((c_t,), 0.05) * bn_s
        wres = nrm((c_in, c_s), 1.0 / math.sqrt(c_in))
        bres = nrm((c_s,), 0.05)
        arma_w = nrm((c_t, c_s), 1.0 / math.sqrt(c_t))
        arma_v = nrm((c_t, c_s), 1.0 / math.sqrt(c_t))
        arma_b = nrm((c_s,), 0.05)
        pe = make_pe(c_t, T_ENC, 100.0)                         # (T, c_t)

        enc_layers.append(dict(
            mab=jnp.concatenate([conv_flat_matrix(wa, T_ENC),
                                 conv_flat_matrix(wb, T_ENC)], axis=1),
            bab=jnp.concatenate([jnp.repeat(ba, T_ENC),
                                 jnp.repeat(bb, T_ENC)])[None, :],
            pef=pe.T.reshape(1, c_t * T_ENC),
            mres=res_flat_matrix(wres, T_ENC),
            bresf=jnp.repeat(bres, T_ENC)[None, :],
            wv=jnp.concatenate([arma_w, arma_v], axis=1),
            ba=arma_b[None, :],
        ))

    # ------------------------------------------------------------------ decoder
    w1a = nrm((K0, C0), 1.0 / math.sqrt(K0)) * bn_s
    w1b = nrm((K0, C0), 1.0 / math.sqrt(K0)) * bn_s
    b1 = jnp.concatenate([nrm((C0,), 0.05), nrm((C0,), 0.05)])[None, :] * bn_s
    w2a = nrm((K1, C0, C1), 1.0 / math.sqrt(C0 * K1)) * bn_s
    w2b = nrm((K1, C0, C1), 1.0 / math.sqrt(C0 * K1)) * bn_s
    b2 = jnp.concatenate([nrm((C1,), 0.05), nrm((C1,), 0.05)])[None, :] * bn_s
    dec = dict(
        alw=nrm((HIDDEN, HIDDEN), 1.0 / math.sqrt(HIDDEN)),
        alb=nrm((1, HIDDEN), 0.05),
        w1=jnp.concatenate([w1a, w1b], axis=1),
        b1=b1,
        w2=jnp.concatenate([w2a.reshape(K1 * C0, C1),
                            w2b.reshape(K1 * C0, C1)], axis=1),
        b2=b2,
        wv=jnp.concatenate([nrm((C1, HIDDEN), 1.0 / math.sqrt(C1)),
                            nrm((C1, HIDDEN), 1.0 / math.sqrt(C1))], axis=1),
        ba=nrm((1, HIDDEN), 0.05),
        lng=jnp.ones((1, HIDDEN), jnp.float32),
        lnb=jnp.zeros((1, HIDDEN), jnp.float32),
        wp=jnp.zeros((2 * HIDDEN, PRED_PAD), jnp.float32)
            .at[:, :1].set(nrm((2 * HIDDEN, 1), 1.0 / math.sqrt(2 * HIDDEN))),
        bp=jnp.zeros((1, PRED_PAD), jnp.float32).at[:, :1].set(nrm((1, 1), 0.05)),
    )

    return dict(
        enc=enc_layers, dec=dec, adj_t=adj_t, adj_b=adj_b,
        pe_out=make_pe(HIDDEN, T_ENC, 1e9).T.reshape(1, HIDDEN * T_ENC),
    )


# ----------------------------------------------------------------------------
# Model forward: 2 pallas_calls + one unavoidable per-sample transpose in XLA.
# ----------------------------------------------------------------------------
def model_forward(window, params):
    enc = window[:, :T_ENC]                        # (BN, T_enc)   encoder window
    dec0 = window[:, T_ENC:]                       # (BN, DEC_LEN) decoder window

    henc_flat = encoder_call(enc, params)          # (BN, HIDDEN*T) channel-major flat

    # torch NCT encoder output -> time-major feature rows for the attention kernel.
    henc_rows = (henc_flat.reshape(BN, HIDDEN, T_ENC)
                 .transpose(2, 0, 1).reshape(NT, HIDDEN))          # rows (t, b)

    out = decoder_call(dec0, henc_rows, params)    # (BN, PRED_PAD)
    return out[:, :HORIZON]


# ----------------------------------------------------------------------------
if __name__ == "__main__":
    key = jax.random.PRNGKey(0)
    k_graph, k_param, k_in = jax.random.split(key, 3)

    params = init_params(k_param, k_graph)
    window = jax.random.normal(k_in, (BN, WINDOW), jnp.float32)

    fwd = jax.jit(lambda w: model_forward(w, params))
    pred = fwd(window)
    jax.block_until_ready(pred)

    assert pred.shape == (BN, HORIZON), pred.shape
    assert bool(jnp.all(jnp.isfinite(pred)))
    print("KERNEL_OK")
</pallas_src>

<mosaic_0001>
module attributes {stable_mosaic.version = 11 : i64} {
  func.func @_encoder_kernel(%arg0: memref<8x9xf32, #tpu.memory_space<vmem>>, %arg1: memref<72x72xf32, #tpu.memory_space<vmem>>, %arg2: memref<1x576xf32, #tpu.memory_space<vmem>>, %arg3: memref<9x288xf32, #tpu.memory_space<vmem>>, %arg4: memref<1x288xf32, #tpu.memory_space<vmem>>, %arg5: memref<1x144xf32, #tpu.memory_space<vmem>>, %arg6: memref<9x144xf32, #tpu.memory_space<vmem>>, %arg7: memref<1x144xf32, #tpu.memory_space<vmem>>, %arg8: memref<16x32xf32, #tpu.memory_space<vmem>>, %arg9: memref<1x16xf32, #tpu.memory_space<vmem>>, %arg10: memref<144x576xf32, #tpu.memory_space<vmem>>, %arg11: memref<1x576xf32, #tpu.memory_space<vmem>>, %arg12: memref<1x288xf32, #tpu.memory_space<vmem>>, %arg13: memref<144x288xf32, #tpu.memory_space<vmem>>, %arg14: memref<1x288xf32, #tpu.memory_space<vmem>>, %arg15: memref<32x64xf32, #tpu.memory_space<vmem>>, %arg16: memref<1x32xf32, #tpu.memory_space<vmem>>, %arg17: memref<288x1152xf32, #tpu.memory_space<vmem>>, %arg18: memref<1x1152xf32, #tpu.memory_space<vmem>>, %arg19: memref<1x576xf32, #tpu.memory_space<vmem>>, %arg20: memref<288x576xf32, #tpu.memory_space<vmem>>, %arg21: memref<1x576xf32, #tpu.memory_space<vmem>>, %arg22: memref<64x128xf32, #tpu.memory_space<vmem>>, %arg23: memref<1x64xf32, #tpu.memory_space<vmem>>, %arg24: memref<8x576xf32, #tpu.memory_space<vmem>>, %arg25: memref<72x64xf32, #tpu.memory_space<vmem>>, %arg26: memref<8x576xf32, #tpu.memory_space<vmem>>) attributes {dimension_semantics = [], scalar_prefetch = 0 : i64, scratch_operands = 2 : i64, tpu.core_type = #tpu.core_type<tc>} {
    %c0 = arith.constant 0 : index
    %c0_0 = arith.constant 0 : index
    %0 = vector.load %arg1[%c0, %c0_0] : memref<72x72xf32, #tpu.memory_space<vmem>>, vector<72x72xf32>
    %c0_1 = arith.constant 0 : index
    %c0_2 = arith.constant 0 : index
    %1 = vector.load %arg0[%c0_1, %c0_2] : memref<8x9xf32, #tpu.memory_space<vmem>>, vector<8x9xf32>
    %c0_3 = arith.constant 0 : index
    %c0_4 = arith.constant 0 : index
    %2 = vector.load %arg3[%c0_3, %c0_4] : memref<9x288xf32, #tpu.memory_space<vmem>>, vector<9x288xf32>
    %cst = arith.constant dense<0.000000e+00> : vector<8x288xf32>
    %3 = tpu.matmul %1, %2, %cst {dimension_numbers = #tpu.dot_dimension_numbers<[1], [0], [0], [1], [0, 0, 1, 1], [], []>} : vector<8x9xf32>, vector<9x288xf32>, vector<8x288xf32> -> vector<8x288xf32>
    %c0_5 = arith.constant 0 : index
    %c0_6 = arith.constant 0 : index
    %4 = vector.load %arg4[%c0_5, %c0_6] : memref<1x288xf32, #tpu.memory_space<vmem>>, vector<1x288xf32>
    %5 = vector.broadcast %4 : vector<1x288xf32> to vector<8x288xf32>
    %6 = arith.addf %3, %5 : vector<8x288xf32>
    %7 = vector.extract_strided_slice %6 {offsets = [0, 0], sizes = [8, 144], strides = [1, 1]} : vector<8x288xf32> to vector<8x144xf32>
    %8 = vector.extract_strided_slice %6 {offsets = [0, 144], sizes = [8, 144], strides = [1, 1]} : vector<8x288xf32> to vector<8x144xf32>
    %9 = arith.negf %8 : vector<8x144xf32>
    %10 = math.exp %9 : vector<8x144xf32>
    %cst_7 = arith.constant 1.000000e+00 : f32
    %11 = vector.broadcast %cst_7 : f32 to vector<8x144xf32>
    %12 = arith.addf %11, %10 : vector<8x144xf32>
    %13 = arith.divf %11, %12 : vector<8x144xf32>
    %14 = arith.mulf %7, %13 : vector<8x144xf32>
    %c0_8 = arith.constant 0 : index
    %c0_9 = arith.constant 0 : index
    %15 = vector.load %arg5[%c0_8, %c0_9] : memref<1x144xf32, #tpu.memory_space<vmem>>, vector<1x144xf32>
    %16 = vector.broadcast %15 : vector<1x144xf32> to vector<8x144xf32>
    %17 = arith.addf %14, %16 : vector<8x144xf32>
    %c0_10 = arith.constant 0 : index
    %c0_11 = arith.constant 0 : index
    %18 = vector.load %arg6[%c0_10, %c0_11] : memref<9x144xf32, #tpu.memory_space<vmem>>, vector<9x144xf32>
    %cst_12 = arith.constant dense<0.000000e+00> : vector<8x144xf32>
    %19 = tpu.matmul %1, %18, %cst_12 {dimension_numbers = #tpu.dot_dimension_numbers<[1], [0], [0], [1], [0, 0, 1, 1], [], []>} : vector<8x9xf32>, vector<9x144xf32>, vector<8x144xf32> -> vector<8x144xf32>
    %c0_13 = arith.constant 0 : index
    %c0_14 = arith.constant 0 : index
    %20 = vector.load %arg7[%c0_13, %c0_14] : memref<1x144xf32, #tpu.memory_space<vmem>>, vector<1x144xf32>
    %21 = vector.broadcast %20 : vector<1x144xf32> to vector<8x144xf32>
    %22 = arith.addf %19, %21 : vector<8x144xf32>
    %23 = vector.extract_strided_slice %17 {offsets = [0, 0], sizes = [8, 16], strides = [1, 1]} : vector<8x144xf32> to vector<8x16xf32>
    %c0_15 = arith.constant 0 : index
    %c0_16 = arith.constant 0 : index
    %24 = vector.load %arg25[%c0_15, %c0_16] : memref<72x64xf32, #tpu.memory_space<vmem>>, vector<8x16xf32>
    tpu.vector_store %arg25[%c0_15, %c0_16], %23 {strides = array<i32>} : memref<72x64xf32, #tpu.memory_space<vmem>>, vector<8x16xf32>,
    %25 = vector.extract_strided_slice %17 {offsets = [0, 16], sizes = [8, 16], strides = [1, 1]} : vector<8x144xf32> to vector<8x16xf32>
    %c8 = arith.constant 8 : index
    %c0_17 = arith.constant 0 : index
    %26 = vector.load %arg25[%c8, %c0_17] : memref<72x64xf32, #tpu.memory_space<vmem>>, vector<8x16xf32>
    tpu.vector_store %arg25[%c8, %c0_17], %25 {strides = array<i32>} : memref<72x64xf32, #tpu.memory_space<vmem>>, vector<8x16xf32>,
    %27 = vector.extract_strided_slice %17 {offsets = [0, 32], sizes = [8, 16], strides = [1, 1]} : vector<8x144xf32> to vector<8x16xf32>
    %c16 = arith.constant 16 : index
    %c0_18 = arith.constant 0 : index
    %28 = vector.load %arg25[%c16, %c0_18] : memref<72x64xf32, #tpu.memory_space<vmem>>, vector<8x16xf32>
    tpu.vector_store %arg25[%c16, %c0_18], %27 {strides = array<i32>} : memref<72x64xf32, #tpu.memory_space<vmem>>, vector<8x16xf32>,
    %29 = vector.extract_strided_slice %17 {offsets = [0, 48], sizes = [8, 16], strides = [1, 1]} : vector<8x144xf32> to vector<8x16xf32>
    %c24 = arith.constant 24 : index
    %c0_19 = arith.constant 0 : index
    %30 = vector.load %arg25[%c24, %c0_19] : memref<72x64xf32, #tpu.memory_space<vmem>>, vector<8x16xf32>
    tpu.vector_store %arg25[%c24, %c0_19], %29 {strides = array<i32>} : memref<72x64xf32, #tpu.memory_space<vmem>>, vector<8x16xf32>,
    %31 = vector.extract_strided_slice %17 {offsets = [0, 64], sizes = [8, 16], strides = [1, 1]} : vector<8x144xf32> to vector<8x16xf32>
    %c32 = arith.constant 32 : index
    %c0_20 = arith.constant 0 : index
    %32 = vector.load %arg25[%c32, %c0_20] : memref<72x64xf32, #tpu.memory_space<vmem>>, vector<8x16xf32>
    tpu.vector_store %arg25[%c32, %c0_20], %31 {strides = array<i32>} : memref<72x64xf32, #tpu.memory_space<vmem>>, vector<8x16xf32>,
    %33 = vector.extract_strided_slice %17 {offsets = [0, 80], sizes = [8, 16], strides = [1, 1]} : vector<8x144xf32> to vector<8x16xf32>
    %c40 = arith.constant 40 : index
    %c0_21 = arith.constant 0 : index
    %34 = vector.load %arg25[%c40, %c0_21] : memref<72x64xf32, #tpu.memory_space<vmem>>, vector<8x16xf32>
    tpu.vector_store %arg25[%c40, %c0_21], %33 {strides = array<i32>} : memref<72x64xf32, #tpu.memory_space<vmem>>, vector<8x16xf32>,
    %35 = vector.extract_strided_slice %17 {offsets = [0, 96], sizes = [8, 16], strides = [1, 1]} : vector<8x144xf32> to vector<8x16xf32>
    %c48 = arith.constant 48 : index
    %c0_22 = arith.constant 0 : index
    %36 = vector.load %arg25[%c48, %c0_22] : memref<72x64xf32, #tpu.memory_space<vmem>>, vector<8x16xf32>
    tpu.vector_store %arg25[%c48, %c0_22], %35 {strides = array<i32>} : memref<72x64xf32, #tpu.memory_space<vmem>>, vector<8x16xf32>,
    %37 = vector.extract_strided_slice %17 {offsets = [0, 112], sizes = [8, 16], strides = [1, 1]} : vector<8x144xf32> to vector<8x16xf32>
    %c56 = arith.constant 56 : index
    %c0_23 = arith.constant 0 : index
    %38 = vector.load %arg25[%c56, %c0_23] : memref<72x64xf32, #tpu.memory_space<vmem>>, vector<8x16xf32>
    tpu.vector_store %arg25[%c56, %c0_23], %37 {strides = array<i32>} : memref<72x64xf32, #tpu.memory_space<vmem>>, vector<8x16xf32>,
    %39 = vector.extract_strided_slice %17 {offsets = [0, 128], sizes = [8, 16], strides = [1, 1]} : vector<8x144xf32> to vector<8x16xf32>
    %c64 = arith.constant 64 : index
    %c0_24 = arith.constant 0 : index
    %40 = vector.load %arg25[%c64, %c0_24] : memref<72x64xf32, #tpu.memory_space<vmem>>, vector<8x16xf32>
    tpu.vector_store %arg25[%c64, %c0_24], %39 {strides = array<i32>} : memref<72x64xf32, #tpu.memory_space<vmem>>, vector<8x16xf32>,
    %c0_25 = arith.constant 0 : index
    %c0_26 = arith.constant 0 : index
    %41 = vector.load %arg25[%c0_25, %c0_26] : memref<72x64xf32, #tpu.memory_space<vmem>>, vector<72x16xf32>
    %c0_27 = arith.constant 0 : index
    %c0_28 = arith.constant 0 : index
    %42 = vector.load %arg8[%c0_27, %c0_28] : memref<16x32xf32, #tpu.memory_space<vmem>>, vector<16x32xf32>
    %cst_29 = arith.constant dense<0.000000e+00> : vector<72x32xf32>
    %43 = tpu.matmul %41, %42, %cst_29 {dimension_numbers = #tpu.dot_dimension_numbers<[1], [0], [0], [1], [0, 0, 1, 1], [], []>} : vector<72x16xf32>, vector<16x32xf32>, vector<72x32xf32> -> vector<72x32xf32>
    %44 = vector.extract_strided_slice %43 {offsets = [0, 0], sizes = [72, 16], strides = [1, 1]} : vector<72x32xf32> to vector<72x16xf32>
    %cst_30 = arith.constant dense<0.000000e+00> : vector<72x16xf32>
    %45 = tpu.matmul %0, %44, %cst_30 {dimension_numbers = #tpu.dot_dimension_numbers<[1], [0], [0], [1], [0, 0, 1, 1], [], []>} : vector<72x72xf32>, vector<72x16xf32>, vector<72x16xf32> -> vector<72x16xf32>
    %46 = vector.extract_strided_slice %43 {offsets = [0, 16], sizes = [72, 16], strides = [1, 1]} : vector<72x32xf32> to vector<72x16xf32>
    %47 = arith.addf %45, %46 : vector<72x16xf32>
    %c0_31 = arith.constant 0 : index
    %c0_32 = arith.constant 0 : index
    %48 = vector.load %arg9[%c0_31, %c0_32] : memref<1x16xf32, #tpu.memory_space<vmem>>, vector<1x16xf32>
    %49 = vector.broadcast %48 : vector<1x16xf32> to vector<72x16xf32>
    %50 = arith.addf %47, %49 : vector<72x16xf32>
    %51 = arith.mulf %50, %50 : vector<72x16xf32>
    %52 = arith.mulf %50, %51 : vector<72x16xf32>
    %cst_33 = arith.constant 4.471500e-02 : f32
    %53 = vector.broadcast %cst_33 : f32 to vector<72x16xf32>
    %54 = arith.mulf %53, %52 : vector<72x16xf32>
    %55 = arith.addf %50, %54 : vector<72x16xf32>
    %cst_34 = arith.constant 0.797884583 : f32
    %56 = vector.broadcast %cst_34 : f32 to vector<72x16xf32>
    %57 = arith.mulf %56, %55 : vector<72x16xf32>
    %58 = math.tanh %57 : vector<72x16xf32>
    %cst_35 = arith.constant 1.000000e+00 : f32
    %59 = vector.broadcast %cst_35 : f32 to vector<72x16xf32>
    %60 = arith.addf %59, %58 : vector<72x16xf32>
    %cst_36 = arith.constant 5.000000e-01 : f32
    %61 = vector.broadcast %cst_36 : f32 to vector<72x16xf32>
    %62 = arith.mulf %61, %60 : vector<72x16xf32>
    %63 = arith.mulf %50, %62 : vector<72x16xf32>
    %64 = vector.extract_strided_slice %63 {offsets = [0, 0], sizes = [8, 16], strides = [1, 1]} : vector<72x16xf32> to vector<8x16xf32>
    %c0_37 = arith.constant 0 : index
    %c0_38 = arith.constant 0 : index
    %65 = vector.load %arg26[%c0_37, %c0_38] : memref<8x576xf32, #tpu.memory_space<vmem>>, vector<8x16xf32>
    tpu.vector_store %arg26[%c0_37, %c0_38], %64 {strides = array<i32>} : memref<8x576xf32, #tpu.memory_space<vmem>>, vector<8x16xf32>,
    %66 = vector.extract_strided_slice %63 {offsets = [8, 0], sizes = [8, 16], strides = [1, 1]} : vector<72x16xf32> to vector<8x16xf32>
    %c0_39 = arith.constant 0 : index
    %c16_40 = arith.constant 16 : index
    %67 = vector.load %arg26[%c0_39, %c16_40] : memref<8x576xf32, #tpu.memory_space<vmem>>, vector<8x16xf32>
    tpu.vector_store %arg26[%c0_39, %c16_40], %66 {strides = array<i32>} : memref<8x576xf32, #tpu.memory_space<vmem>>, vector<8x16xf32>,
    %68 = vector.extract_strided_slice %63 {offsets = [16, 0], sizes = [8, 16], strides = [1, 1]} : vector<72x16xf32> to vector<8x16xf32>
    %c0_41 = arith.constant 0 : index
    %c32_42 = arith.constant 32 : index
    %69 = vector.load %arg26[%c0_41, %c32_42] : memref<8x576xf32, #tpu.memory_space<vmem>>, vector<8x16xf32>
    tpu.vector_store %arg26[%c0_41, %c32_42], %68 {strides = array<i32>} : memref<8x576xf32, #tpu.memory_space<vmem>>, vector<8x16xf32>,
    %70 = vector.extract_strided_slice %63 {offsets = [24, 0], sizes = [8, 16], strides = [1, 1]} : vector<72x16xf32> to vector<8x16xf32>
    %c0_43 = arith.constant 0 : index
    %c48_44 = arith.constant 48 : index
    %71 = vector.load %arg26[%c0_43, %c48_44] : memref<8x576xf32, #tpu.memory_space<vmem>>, vector<8x16xf32>
    tpu.vector_store %arg26[%c0_43, %c48_44], %70 {strides = array<i32>} : memref<8x576xf32, #tpu.memory_space<vmem>>, vector<8x16xf32>,
    %72 = vector.extract_strided_slice %63 {offsets = [32, 0], sizes = [8, 16], strides = [1, 1]} : vector<72x16xf32> to vector<8x16xf32>
    %c0_45 = arith.constant 0 : index
    %c64_46 = arith.constant 64 : index
    %73 = vector.load %arg26[%c0_45, %c64_46] : memref<8x576xf32, #tpu.memory_space<vmem>>, vector<8x16xf32>
    tpu.vector_store %arg26[%c0_45, %c64_46], %72 {strides = array<i32>} : memref<8x576xf32, #tpu.memory_space<vmem>>, vector<8x16xf32>,
    %74 = vector.extract_strided_slice %63 {offsets = [40, 0], sizes = [8, 16], strides = [1, 1]} : vector<72x16xf32> to vector<8x16xf32>
    %c0_47 = arith.constant 0 : index
    %c80 = arith.constant 80 : index
    %75 = vector.load %arg26[%c0_47, %c80] : memref<8x576xf32, #tpu.memory_space<vmem>>, vector<8x16xf32>
    tpu.vector_store %arg26[%c0_47, %c80], %74 {strides = array<i32>} : memref<8x576xf32, #tpu.memory_space<vmem>>, vector<8x16xf32>,
    %76 = vector.extract_strided_slice %63 {offsets = [48, 0], sizes = [8, 16], strides = [1, 1]} : vector<72x16xf32> to vector<8x16xf32>
    %c0_48 = arith.constant 0 : index
    %c96 = arith.constant 96 : index
    %77 = vector.load %arg26[%c0_48, %c96] : memref<8x576xf32, #tpu.memory_space<vmem>>, vector<8x16xf32>
    tpu.vector_store %arg26[%c0_48, %c96], %76 {strides = array<i32>} : memref<8x576xf32, #tpu.memory_space<vmem>>, vector<8x16xf32>,
    %78 = vector.extract_strided_slice %63 {offsets = [56, 0], sizes = [8, 16], strides = [1, 1]} : vector<72x16xf32> to vector<8x16xf32>
    %c0_49 = arith.constant 0 : index
    %c112 = arith.constant 112 : index
    %79 = vector.load %arg26[%c0_49, %c112] : memref<8x576xf32, #tpu.memory_space<vmem>>, vector<8x16xf32>
    tpu.vector_store %arg26[%c0_49, %c112], %78 {strides = array<i32>} : memref<8x576xf32, #tpu.memory_space<vmem>>, vector<8x16xf32>,
    %80 = vector.extract_strided_slice %63 {offsets = [64, 0], sizes = [8, 16], strides = [1, 1]} : vector<72x16xf32> to vector<8x16xf32>
    %c0_50 = arith.constant 0 : index
    %c128 = arith.constant 128 : index
    %81 = vector.load %arg26[%c0_50, %c128] : memref<8x576xf32, #tpu.memory_space<vmem>>, vector<8x16xf32>
    tpu.vector_store %arg26[%c0_50, %c128], %80 {strides = array<i32>} : memref<8x576xf32, #tpu.memory_space<vmem>>, vector<8x16xf32>,
    %c0_51 = arith.constant 0 : index
    %c0_52 = arith.constant 0 : index
    %82 = vector.load %arg26[%c0_51, %c0_52] : memref<8x576xf32, #tpu.memory_space<vmem>>, vector<8x144xf32>
    %83 = arith.addf %82, %22 : vector<8x144xf32>
    %cst_53 = arith.constant dense<0.000000e+00> : vector<8xf32>
    %84 = vector.multi_reduction <add>, %83, %cst_53 [1] : vector<8x144xf32> to vector<8xf32>
    %85 = vector.shape_cast %84 : vector<8xf32> to vector<8x1xf32>
    %cst_54 = arith.constant 1.440000e+02 : f32
    %86 = vector.broadcast %cst_54 : f32 to vector<8x1xf32>
    %87 = arith.divf %85, %86 : vector<8x1xf32>
    %88 = vector.broadcast %87 : vector<8x1xf32> to vector<8x144xf32>
    %89 = arith.subf %83, %88 : vector<8x144xf32>
    %90 = arith.mulf %89, %89 : vector<8x144xf32>
    %cst_55 = arith.constant dense<0.000000e+00> : vector<8xf32>
    %91 = vector.multi_reduction <add>, %90, %cst_55 [1] : vector<8x144xf32> to vector<8xf32>
    %92 = vector.shape_cast %91 : vector<8xf32> to vector<8x1xf32>
    %cst_56 = arith.constant 1.440000e+02 : f32
    %93 = vector.broadcast %cst_56 : f32 to vector<8x1xf32>
    %94 = arith.divf %92, %93 : vector<8x1xf32>
    %95 = vector.broadcast %87 : vector<8x1xf32> to vector<8x144xf32>
    %96 = arith.subf %83, %95 : vector<8x144xf32>
    %cst_57 = arith.constant 9.99999974E-6 : f32
    %97 = vector.broadcast %cst_57 : f32 to vector<8x1xf32>
    %98 = arith.addf %94, %97 : vector<8x1xf32>
    %99 = math.rsqrt %98 : vector<8x1xf32>
    %100 = vector.broadcast %99 : vector<8x1xf32> to vector<8x144xf32>
    %101 = arith.mulf %96, %100 : vector<8x144xf32>
    %c0_58 = arith.constant 0 : index
    %c0_59 = arith.constant 0 : index
    %102 = vector.load %arg10[%c0_58, %c0_59] : memref<144x576xf32, #tpu.memory_space<vmem>>, vector<144x576xf32>
    %cst_60 = arith.constant dense<0.000000e+00> : vector<8x576xf32>
    %103 = tpu.matmul %101, %102, %cst_60 {dimension_numbers = #tpu.dot_dimension_numbers<[1], [0], [0], [1], [0, 0, 1, 1], [], []>} : vector<8x144xf32>, vector<144x576xf32>, vector<8x576xf32> -> vector<8x576xf32>
    %c0_61 = arith.constant 0 : index
    %c0_62 = arith.constant 0 : index
    %104 = vector.load %arg11[%c0_61, %c0_62] : memref<1x576xf32, #tpu.memory_space<vmem>>, vector<1x576xf32>
    %105 = vector.broadcast %104 : vector<1x576xf32> to vector<8x576xf32>
    %106 = arith.addf %103, %105 : vector<8x576xf32>
    %107 = vector.extract_strided_slice %106 {offsets = [0, 0], sizes = [8, 288], strides = [1, 1]} : vector<8x576xf32> to vector<8x288xf32>
    %108 = vector.extract_strided_slice %106 {offsets = [0, 288], sizes = [8, 288], strides = [1, 1]} : vector<8x576xf32> to vector<8x288xf32>
    %109 = arith.negf %108 : vector<8x288xf32>
    %110 = math.exp %109 : vector<8x288xf32>
    %cst_63 = arith.constant 1.000000e+00 : f32
    %111 = vector.broadcast %cst_63 : f32 to vector<8x288xf32>
    %112 = arith.addf %111, %110 : vector<8x288xf32>
    %113 = arith.divf %111, %112 : vector<8x288xf32>
    %114 = arith.mulf %107, %113 : vector<8x288xf32>
    %c0_64 = arith.constant 0 : index
    %c0_65 = arith.constant 0 : index
    %115 = vector.load %arg12[%c0_64, %c0_65] : memref<1x288xf32, #tpu.memory_space<vmem>>, vector<1x288xf32>
    %116 = vector.broadcast %115 : vector<1x288xf32> to vector<8x288xf32>
    %117 = arith.addf %114, %116 : vector<8x288xf32>
    %c0_66 = arith.constant 0 : index
    %c0_67 = arith.constant 0 : index
    %118 = vector.load %arg13[%c0_66, %c0_67] : memref<144x288xf32, #tpu.memory_space<vmem>>, vector<144x288xf32>
    %cst_68 = arith.constant dense<0.000000e+00> : vector<8x288xf32>
    %119 = tpu.matmul %101, %118, %cst_68 {dimension_numbers = #tpu.dot_dimension_numbers<[1], [0], [0], [1], [0, 0, 1, 1], [], []>} : vector<8x144xf32>, vector<144x288xf32>, vector<8x288xf32> -> vector<8x288xf32>
    %c0_69 = arith.constant 0 : index
    %c0_70 = arith.constant 0 : index
    %120 = vector.load %arg14[%c0_69, %c0_70] : memref<1x288xf32, #tpu.memory_space<vmem>>, vector<1x288xf32>
    %121 = vector.broadcast %120 : vector<1x288xf32> to vector<8x288xf32>
    %122 = arith.addf %119, %121 : vector<8x288xf32>
    %123 = vector.extract_strided_slice %117 {offsets = [0, 0], sizes = [8, 32], strides = [1, 1]} : vector<8x288xf32> to vector<8x32xf32>
    %c0_71 = arith.constant 0 : index
    %c0_72 = arith.constant 0 : index
    %124 = vector.load %arg25[%c0_71, %c0_72] : memref<72x64xf32, #tpu.memory_space<vmem>>, vector<8x32xf32>
    tpu.vector_store %arg25[%c0_71, %c0_72], %123 {strides = array<i32>} : memref<72x64xf32, #tpu.memory_space<vmem>>, vector<8x32xf32>,
    %125 = vector.extract_strided_slice %117 {offsets = [0, 32], sizes = [8, 32], strides = [1, 1]} : vector<8x288xf32> to vector<8x32xf32>
    %c8_73 = arith.constant 8 : index
    %c0_74 = arith.constant 0 : index
    %126 = vector.load %arg25[%c8_73, %c0_74] : memref<72x64xf32, #tpu.memory_space<vmem>>, vector<8x32xf32>
    tpu.vector_store %arg25[%c8_73, %c0_74], %125 {strides = array<i32>} : memref<72x64xf32, #tpu.memory_space<vmem>>, vector<8x32xf32>,
    %127 = vector.extract_strided_slice %117 {offsets = [0, 64], sizes = [8, 32], strides = [1, 1]} : vector<8x288xf32> to vector<8x32xf32>
    %c16_75 = arith.constant 16 : index
    %c0_76 = arith.constant 0 : index
    %128 = vector.load %arg25[%c16_75, %c0_76] : memref<72x64xf32, #tpu.memory_space<vmem>>, vector<8x32xf32>
    tpu.vector_store %arg25[%c16_75, %c0_76], %127 {strides = array<i32>} : memref<72x64xf32, #tpu.memory_space<vmem>>, vector<8x32xf32>,
    %129 = vector.extract_strided_slice %117 {offsets = [0, 96], sizes = [8, 32], strides = [1, 1]} : vector<8x288xf32> to vector<8x32xf32>
    %c24_77 = arith.constant 24 : index
    %c0_78 = arith.constant 0 : index
    %130 = vector.load %arg25[%c24_77, %c0_78] : memref<72x64xf32, #tpu.memory_space<vmem>>, vector<8x32xf32>
    tpu.vector_store %arg25[%c24_77, %c0_78], %129 {strides = array<i32>} : memref<72x64xf32, #tpu.memory_space<vmem>>, vector<8x32xf32>,
    %131 = vector.extract_strided_slice %117 {offsets = [0, 128], sizes = [8, 32], strides = [1, 1]} : vector<8x288xf32> to vector<8x32xf32>
    %c32_79 = arith.constant 32 : index
    %c0_80 = arith.constant 0 : index
    %132 = vector.load %arg25[%c32_79, %c0_80] : memref<72x64xf32, #tpu.memory_space<vmem>>, vector<8x32xf32>
    tpu.vector_store %arg25[%c32_79, %c0_80], %131 {strides = array<i32>} : memref<72x64xf32, #tpu.memory_space<vmem>>, vector<8x32xf32>,
    %133 = vector.extract_strided_slice %117 {offsets = [0, 160], sizes = [8, 32], strides = [1, 1]} : vector<8x288xf32> to vector<8x32xf32>
    %c40_81 = arith.constant 40 : index
    %c0_82 = arith.constant 0 : index
    %134 = vector.load %arg25[%c40_81, %c0_82] : memref<72x64xf32, #tpu.memory_space<vmem>>, vector<8x32xf32>
    tpu.vector_store %arg25[%c40_81, %c0_82], %133 {strides = array<i32>} : memref<72x64xf32, #tpu.memory_space<vmem>>, vector<8x32xf32>,
    %135 = vector.extract_strided_slice %117 {offsets = [0, 192], sizes = [8, 32], strides = [1, 1]} : vector<8x288xf32> to vector<8x32xf32>
    %c48_83 = arith.constant 48 : index
    %c0_84 = arith.constant 0 : index
    %136 = vector.load %arg25[%c48_83, %c0_84] : memref<72x64xf32, #tpu.memory_space<vmem>>, vector<8x32xf32>
    tpu.vector_store %arg25[%c48_83, %c0_84], %135 {strides = array<i32>} : memref<72x64xf32, #tpu.memory_space<vmem>>, vector<8x32xf32>,
    %137 = vector.extract_strided_slice %117 {offsets = [0, 224], sizes = [8, 32], strides = [1, 1]} : vector<8x288xf32> to vector<8x32xf32>
    %c56_85 = arith.constant 56 : index
    %c0_86 = arith.constant 0 : index
    %138 = vector.load %arg25[%c56_85, %c0_86] : memref<72x64xf32, #tpu.memory_space<vmem>>, vector<8x32xf32>
    tpu.vector_store %arg25[%c56_85, %c0_86], %137 {strides = array<i32>} : memref<72x64xf32, #tpu.memory_space<vmem>>, vector<8x32xf32>,
    %139 = vector.extract_strided_slice %117 {offsets = [0, 256], sizes = [8, 32], strides = [1, 1]} : vector<8x288xf32> to vector<8x32xf32>
    %c64_87 = arith.constant 64 : index
    %c0_88 = arith.constant 0 : index
    %140 = vector.load %arg25[%c64_87, %c0_88] : memref<72x64xf32, #tpu.memory_space<vmem>>, vector<8x32xf32>
    tpu.vector_store %arg25[%c64_87, %c0_88], %139 {strides = array<i32>} : memref<72x64xf32, #tpu.memory_space<vmem>>, vector<8x32xf32>,
    %c0_89 = arith.constant 0 : index
    %c0_90 = arith.constant 0 : index
    %141 = vector.load %arg25[%c0_89, %c0_90] : memref<72x64xf32, #tpu.memory_space<vmem>>, vector<72x32xf32>
    %c0_91 = arith.constant 0 : index
    %c0_92 = arith.constant 0 : index
    %142 = vector.load %arg15[%c0_91, %c0_92] : memref<32x64xf32, #tpu.memory_space<vmem>>, vector<32x64xf32>
    %cst_93 = arith.constant dense<0.000000e+00> : vector<72x64xf32>
    %143 = tpu.matmul %141, %142, %cst_93 {dimension_numbers = #tpu.dot_dimension_numbers<[1], [0], [0], [1], [0, 0, 1, 1], [], []>} : vector<72x32xf32>, vector<32x64xf32>, vector<72x64xf32> -> vector<72x64xf32>
    %144 = vector.extract_strided_slice %143 {offsets = [0, 0], sizes = [72, 32], strides = [1, 1]} : vector<72x64xf32> to vector<72x32xf32>
    %cst_94 = arith.constant dense<0.000000e+00> : vector<72x32xf32>
    %145 = tpu.matmul %0, %144, %cst_94 {dimension_numbers = #tpu.dot_dimension_numbers<[1], [0], [0], [1], [0, 0, 1, 1], [], []>} : vector<72x72xf32>, vector<72x32xf32>, vector<72x32xf32> -> vector<72x32xf32>
    %146 = vector.extract_strided_slice %143 {offsets = [0, 32], sizes = [72, 32], strides = [1, 1]} : vector<72x64xf32> to vector<72x32xf32>
    %147 = arith.addf %145, %146 : vector<72x32xf32>
    %c0_95 = arith.constant 0 : index
    %c0_96 = arith.constant 0 : index
    %148 = vector.load %arg16[%c0_95, %c0_96] : memref<1x32xf32, #tpu.memory_space<vmem>>, vector<1x32xf32>
    %149 = vector.broadcast %148 : vector<1x32xf32> to vector<72x32xf32>
    %150 = arith.addf %147, %149 : vector<72x32xf32>
    %151 = arith.mulf %150, %150 : vector<72x32xf32>
    %152 = arith.mulf %150, %151 : vector<72x32xf32>
    %cst_97 = arith.constant 4.471500e-02 : f32
    %153 = vector.broadcast %cst_97 : f32 to vector<72x32xf32>
    %154 = arith.mulf %153, %152 : vector<72x32xf32>
    %155 = arith.addf %150, %154 : vector<72x32xf32>
    %cst_98 = arith.constant 0.797884583 : f32
    %156 = vector.broadcast %cst_98 : f32 to vector<72x32xf32>
    %157 = arith.mulf %156, %155 : vector<72x32xf32>
    %158 = math.tanh %157 : vector<72x32xf32>
    %cst_99 = arith.constant 1.000000e+00 : f32
    %159 = vector.broadcast %cst_99 : f32 to vector<72x32xf32>
    %160 = arith.addf %159, %158 : vector<72x32xf32>
    %cst_100 = arith.constant 5.000000e-01 : f32
    %161 = vector.broadcast %cst_100 : f32 to vector<72x32xf32>
    %162 = arith.mulf %161, %160 : vector<72x32xf32>
    %163 = arith.mulf %150, %162 : vector<72x32xf32>
    %164 = vector.extract_strided_slice %163 {offsets = [0, 0], sizes = [8, 32], strides = [1, 1]} : vector<72x32xf32> to vector<8x32xf32>
    %c0_101 = arith.constant 0 : index
    %c0_102 = arith.constant 0 : index
    %165 = vector.load %arg26[%c0_101, %c0_102] : memref<8x576xf32, #tpu.memory_space<vmem>>, vector<8x32xf32>
    tpu.vector_store %arg26[%c0_101, %c0_102], %164 {strides = array<i32>} : memref<8x576xf32, #tpu.memory_space<vmem>>, vector<8x32xf32>,
    %166 = vector.extract_strided_slice %163 {offsets = [8, 0], sizes = [8, 32], strides = [1, 1]} : vector<72x32xf32> to vector<8x32xf32>
    %c0_103 = arith.constant 0 : index
    %c32_104 = arith.constant 32 : index
    %167 = vector.load %arg26[%c0_103, %c32_104] : memref<8x576xf32, #tpu.memory_space<vmem>>, vector<8x32xf32>
    tpu.vector_store %arg26[%c0_103, %c32_104], %166 {strides = array<i32>} : memref<8x576xf32, #tpu.memory_space<vmem>>, vector<8x32xf32>,
    %168 = vector.extract_strided_slice %163 {offsets = [16, 0], sizes = [8, 32], strides = [1, 1]} : vector<72x32xf32> to vector<8x32xf32>
    %c0_105 = arith.constant 0 : index
    %c64_106 = arith.constant 64 : index
    %169 = vector.load %arg26[%c0_105, %c64_106] : memref<8x576xf32, #tpu.memory_space<vmem>>, vector<8x32xf32>
    tpu.vector_store %arg26[%c0_105, %c64_106], %168 {strides = array<i32>} : memref<8x576xf32, #tpu.memory_space<vmem>>, vector<8x32xf32>,
    %170 = vector.extract_strided_slice %163 {offsets = [24, 0], sizes = [8, 32], strides = [1, 1]} : vector<72x32xf32> to vector<8x32xf32>
    %c0_107 = arith.constant 0 : index
    %c96_108 = arith.constant 96 : index
    %171 = vector.load %arg26[%c0_107, %c96_108] : memref<8x576xf32, #tpu.memory_space<vmem>>, vector<8x32xf32>
    tpu.vector_store %arg26[%c0_107, %c96_108], %170 {strides = array<i32>} : memref<8x576xf32, #tpu.memory_space<vmem>>, vector<8x32xf32>,
    %172 = vector.extract_strided_slice %163 {offsets = [32, 0], sizes = [8, 32], strides = [1, 1]} : vector<72x32xf32> to vector<8x32xf32>
    %c0_109 = arith.constant 0 : index
    %c128_110 = arith.constant 128 : index
    %173 = vector.load %arg26[%c0_109, %c128_110] : memref<8x576xf32, #tpu.memory_space<vmem>>, vector<8x32xf32>
    tpu.vector_store %arg26[%c0_109, %c128_110], %172 {strides = array<i32>} : memref<8x576xf32, #tpu.memory_space<vmem>>, vector<8x32xf32>,
    %174 = vector.extract_strided_slice %163 {offsets = [40, 0], sizes = [8, 32], strides = [1, 1]} : vector<72x32xf32> to vector<8x32xf32>
    %c0_111 = arith.constant 0 : index
    %c160 = arith.constant 160 : index
    %175 = vector.load %arg26[%c0_111, %c160] : memref<8x576xf32, #tpu.memory_space<vmem>>, vector<8x32xf32>
    tpu.vector_store %arg26[%c0_111, %c160], %174 {strides = array<i32>} : memref<8x576xf32, #tpu.memory_space<vmem>>, vector<8x32xf32>,
    %176 = vector.extract_strided_slice %163 {offsets = [48, 0], sizes = [8, 32], strides = [1, 1]} : vector<72x32xf32> to vector<8x32xf32>
    %c0_112 = arith.constant 0 : index
    %c192 = arith.constant 192 : index
    %177 = vector.load %arg26[%c0_112, %c192] : memref<8x576xf32, #tpu.memory_space<vmem>>, vector<8x32xf32>
    tpu.vector_store %arg26[%c0_112, %c192], %176 {strides = array<i32>} : memref<8x576xf32, #tpu.memory_space<vmem>>, vector<8x32xf32>,
    %178 = vector.extract_strided_slice %163 {offsets = [56, 0], sizes = [8, 32], strides = [1, 1]} : vector<72x32xf32> to vector<8x32xf32>
    %c0_113 = arith.constant 0 : index
    %c224 = arith.constant 224 : index
    %179 = vector.load %arg26[%c0_113, %c224] : memref<8x576xf32, #tpu.memory_space<vmem>>, vector<8x32xf32>
    tpu.vector_store %arg26[%c0_113, %c224], %178 {strides = array<i32>} : memref<8x576xf32, #tpu.memory_space<vmem>>, vector<8x32xf32>,
    %180 = vector.extract_strided_slice %163 {offsets = [64, 0], sizes = [8, 32], strides = [1, 1]} : vector<72x32xf32> to vector<8x32xf32>
    %c0_114 = arith.constant 0 : index
    %c256 = arith.constant 256 : index
    %181 = vector.load %arg26[%c0_114, %c256] : memref<8x576xf32, #tpu.memory_space<vmem>>, vector<8x32xf32>
    tpu.vector_store %arg26[%c0_114, %c256], %180 {strides = array<i32>} : memref<8x576xf32, #tpu.memory_space<vmem>>, vector<8x32xf32>,
    %c0_115 = arith.constant 0 : index
    %c0_116 = arith.constant 0 : index
    %182 = vector.load %arg26[%c0_115, %c0_116] : memref<8x576xf32, #tpu.memory_space<vmem>>, vector<8x288xf32>
    %183 = arith.addf %182, %122 : vector<8x288xf32>
    %cst_117 = arith.constant dense<0.000000e+00> : vector<8xf32>
    %184 = vector.multi_reduction <add>, %183, %cst_117 [1] : vector<8x288xf32> to vector<8xf32>
    %185 = vector.shape_cast %184 : vector<8xf32> to vector<8x1xf32>
    %cst_118 = arith.constant 2.880000e+02 : f32
    %186 = vector.broadcast %cst_118 : f32 to vector<8x1xf32>
    %187 = arith.divf %185, %186 : vector<8x1xf32>
    %188 = vector.broadcast %187 : vector<8x1xf32> to vector<8x288xf32>
    %189 = arith.subf %183, %188 : vector<8x288xf32>
    %190 = arith.mulf %189, %189 : vector<8x288xf32>
    %cst_119 = arith.constant dense<0.000000e+00> : vector<8xf32>
    %191 = vector.multi_reduction <add>, %190, %cst_119 [1] : vector<8x288xf32> to vector<8xf32>
    %192 = vector.shape_cast %191 : vector<8xf32> to vector<8x1xf32>
    %cst_120 = arith.constant 2.880000e+02 : f32
    %193 = vector.broadcast %cst_120 : f32 to vector<8x1xf32>
    %194 = arith.divf %192, %193 : vector<8x1xf32>
    %195 = vector.broadcast %187 : vector<8x1xf32> to vector<8x288xf32>
    %196 = arith.subf %183, %195 : vector<8x288xf32>
    %cst_121 = arith.constant 9.99999974E-6 : f32
    %197 = vector.broadcast %cst_121 : f32 to vector<8x1xf32>
    %198 = arith.addf %194, %197 : vector<8x1xf32>
    %199 = math.rsqrt %198 : vector<8x1xf32>
    %200 = vector.broadcast %199 : vector<8x1xf32> to vector<8x288xf32>
    %201 = arith.mulf %196, %200 : vector<8x288xf32>
    %c0_122 = arith.constant 0 : index
    %c0_123 = arith.constant 0 : index
    %202 = vector.load %arg17[%c0_122, %c0_123] : memref<288x1152xf32, #tpu.memory_space<vmem>>, vector<288x1152xf32>
    %cst_124 = arith.constant dense<0.000000e+00> : vector<8x1152xf32>
    %203 = tpu.matmul %201, %202, %cst_124 {dimension_numbers = #tpu.dot_dimension_numbers<[1], [0], [0], [1], [0, 0, 1, 1], [], []>} : vector<8x288xf32>, vector<288x1152xf32>, vector<8x1152xf32> -> vector<8x1152xf32>
    %c0_125 = arith.constant 0 : index
    %c0_126 = arith.constant 0 : index
    %204 = vector.load %arg18[%c0_125, %c0_126] : memref<1x1152xf32, #tpu.memory_space<vmem>>, vector<1x1152xf32>
    %205 = vector.broadcast %204 : vector<1x1152xf32> to vector<8x1152xf32>
    %206 = arith.addf %203, %205 : vector<8x1152xf32>
    %207 = vector.extract_strided_slice %206 {offsets = [0, 0], sizes = [8, 576], strides = [1, 1]} : vector<8x1152xf32> to vector<8x576xf32>
    %208 = vector.extract_strided_slice %206 {offsets = [0, 576], sizes = [8, 576], strides = [1, 1]} : vector<8x1152xf32> to vector<8x576xf32>
    %209 = arith.negf %208 : vector<8x576xf32>
    %210 = math.exp %209 : vector<8x576xf32>
    %cst_127 = arith.constant 1.000000e+00 : f32
    %211 = vector.broadcast %cst_127 : f32 to vector<8x576xf32>
    %212 = arith.addf %211, %210 : vector<8x576xf32>
    %213 = arith.divf %211, %212 : vector<8x576xf32>
    %214 = arith.mulf %207, %213 : vector<8x576xf32>
    %c0_128 = arith.constant 0 : index
    %c0_129 = arith.constant 0 : index
    %215 = vector.load %arg19[%c0_128, %c0_129] : memref<1x576xf32, #tpu.memory_space<vmem>>, vector<1x576xf32>
    %216 = vector.broadcast %215 : vector<1x576xf32> to vector<8x576xf32>
    %217 = arith.addf %214, %216 : vector<8x576xf32>
    %c0_130 = arith.constant 0 : index
    %c0_131 = arith.constant 0 : index
    %218 = vector.load %arg20[%c0_130, %c0_131] : memref<288x576xf32, #tpu.memory_space<vmem>>, vector<288x576xf32>
    %cst_132 = arith.constant dense<0.000000e+00> : vector<8x576xf32>
    %219 = tpu.matmul %201, %218, %cst_132 {dimension_numbers = #tpu.dot_dimension_numbers<[1], [0], [0], [1], [0, 0, 1, 1], [], []>} : vector<8x288xf32>, vector<288x576xf32>, vector<8x576xf32> -> vector<8x576xf32>
    %c0_133 = arith.constant 0 : index
    %c0_134 = arith.constant 0 : index
    %220 = vector.load %arg21[%c0_133, %c0_134] : memref<1x576xf32, #tpu.memory_space<vmem>>, vector<1x576xf32>
    %221 = vector.broadcast %220 : vector<1x576xf32> to vector<8x576xf32>
    %222 = arith.addf %219, %221 : vector<8x576xf32>
    %223 = vector.extract_strided_slice %217 {offsets = [0, 0], sizes = [8, 64], strides = [1, 1]} : vector<8x576xf32> to vector<8x64xf32>
    %c0_135 = arith.constant 0 : index
    %c0_136 = arith.constant 0 : index
    %224 = vector.load %arg25[%c0_135, %c0_136] : memref<72x64xf32, #tpu.memory_space<vmem>>, vector<8x64xf32>
    tpu.vector_store %arg25[%c0_135, %c0_136], %223 {strides = array<i32>} : memref<72x64xf32, #tpu.memory_space<vmem>>, vector<8x64xf32>,
    %225 = vector.extract_strided_slice %217 {offsets = [0, 64], sizes = [8, 64], strides = [1, 1]} : vector<8x576xf32> to vector<8x64xf32>
    %c8_137 = arith.constant 8 : index
    %c0_138 = arith.constant 0 : index
    %226 = vector.load %arg25[%c8_137, %c0_138] : memref<72x64xf32, #tpu.memory_space<vmem>>, vector<8x64xf32>
    tpu.vector_store %arg25[%c8_137, %c0_138], %225 {strides = array<i32>} : memref<72x64xf32, #tpu.memory_space<vmem>>, vector<8x64xf32>,
    %227 = vector.extract_strided_slice %217 {offsets = [0, 128], sizes = [8, 64], strides = [1, 1]} : vector<8x576xf32> to vector<8x64xf32>
    %c16_139 = arith.constant 16 : index
    %c0_140 = arith.constant 0 : index
    %228 = vector.load %arg25[%c16_139, %c0_140] : memref<72x64xf32, #tpu.memory_space<vmem>>, vector<8x64xf32>
    tpu.vector_store %arg25[%c16_139, %c0_140], %227 {strides = array<i32>} : memref<72x64xf32, #tpu.memory_space<vmem>>, vector<8x64xf32>,
    %229 = vector.extract_strided_slice %217 {offsets = [0, 192], sizes = [8, 64], strides = [1, 1]} : vector<8x576xf32> to vector<8x64xf32>
    %c24_141 = arith.constant 24 : index
    %c0_142 = arith.constant 0 : index
    %230 = vector.load %arg25[%c24_141, %c0_142] : memref<72x64xf32, #tpu.memory_space<vmem>>, vector<8x64xf32>
    tpu.vector_store %arg25[%c24_141, %c0_142], %229 {strides = array<i32>} : memref<72x64xf32, #tpu.memory_space<vmem>>, vector<8x64xf32>,
    %231 = vector.extract_strided_slice %217 {offsets = [0, 256], sizes = [8, 64], strides = [1, 1]} : vector<8x576xf32> to vector<8x64xf32>
    %c32_143 = arith.constant 32 : index
    %c0_144 = arith.constant 0 : index
    %232 = vector.load %arg25[%c32_143, %c0_144] : memref<72x64xf32, #tpu.memory_space<vmem>>, vector<8x64xf32>
    tpu.vector_store %arg25[%c32_143, %c0_144], %231 {strides = array<i32>} : memref<72x64xf32, #tpu.memory_space<vmem>>, vector<8x64xf32>,
    %233 = vector.extract_strided_slice %217 {offsets = [0, 320], sizes = [8, 64], strides = [1, 1]} : vector<8x576xf32> to vector<8x64xf32>
    %c40_145 = arith.constant 40 : index
    %c0_146 = arith.constant 0 : index
    %234 = vector.load %arg25[%c40_145, %c0_146] : memref<72x64xf32, #tpu.memory_space<vmem>>, vector<8x64xf32>
    tpu.vector_store %arg25[%c40_145, %c0_146], %233 {strides = array<i32>} : memref<72x64xf32, #tpu.memory_space<vmem>>, vector<8x64xf32>,
    %235 = vector.extract_strided_slice %217 {offsets = [0, 384], sizes = [8, 64], strides = [1, 1]} : vector<8x576xf32> to vector<8x64xf32>
    %c48_147 = arith.constant 48 : index
    %c0_148 = arith.constant 0 : index
    %236 = vector.load %arg25[%c48_147, %c0_148] : memref<72x64xf32, #tpu.memory_space<vmem>>, vector<8x64xf32>
    tpu.vector_store %arg25[%c48_147, %c0_148], %235 {strides = array<i32>} : memref<72x64xf32, #tpu.memory_space<vmem>>, vector<8x64xf32>,
    %237 = vector.extract_strided_slice %217 {offsets = [0, 448], sizes = [8, 64], strides = [1, 1]} : vector<8x576xf32> to vector<8x64xf32>
    %c56_149 = arith.constant 56 : index
    %c0_150 = arith.constant 0 : index
    %238 = vector.load %arg25[%c56_149, %c0_150] : memref<72x64xf32, #tpu.memory_space<vmem>>, vector<8x64xf32>
    tpu.vector_store %arg25[%c56_149, %c0_150], %237 {strides = array<i32>} : memref<72x64xf32, #tpu.memory_space<vmem>>, vector<8x64xf32>,
    %239 = vector.extract_strided_slice %217 {offsets = [0, 512], sizes = [8, 64], strides = [1, 1]} : vector<8x576xf32> to vector<8x64xf32>
    %c64_151 = arith.constant 64 : index
    %c0_152 = arith.constant 0 : index
    %240 = vector.load %arg25[%c64_151, %c0_152] : memref<72x64xf32, #tpu.memory_space<vmem>>, vector<8x64xf32>
    tpu.vector_store %arg25[%c64_151, %c0_152], %239 {strides = array<i32>} : memref<72x64xf32, #tpu.memory_space<vmem>>, vector<8x64xf32>,
    %c0_153 = arith.constant 0 : index
    %c0_154 = arith.constant 0 : index
    %241 = vector.load %arg25[%c0_153, %c0_154] : memref<72x64xf32, #tpu.memory_space<vmem>>, vector<72x64xf32>
    %c0_155 = arith.constant 0 : index
    %c0_156 = arith.constant 0 : index
    %242 = vector.load %arg22[%c0_155, %c0_156] : memref<64x128xf32, #tpu.memory_space<vmem>>, vector<64x128xf32>
    %cst_157 = arith.constant dense<0.000000e+00> : vector<72x128xf32>
    %243 = tpu.matmul %241, %242, %cst_157 {dimension_numbers = #tpu.dot_dimension_numbers<[1], [0], [0], [1], [0, 0, 1, 1], [], []>} : vector<72x64xf32>, vector<64x128xf32>, vector<72x128xf32> -> vector<72x128xf32>
    %244 = vector.extract_strided_slice %243 {offsets = [0, 0], sizes = [72, 64], strides = [1, 1]} : vector<72x128xf32> to vector<72x64xf32>
    %cst_158 = arith.constant dense<0.000000e+00> : vector<72x64xf32>
    %245 = tpu.matmul %0, %244, %cst_158 {dimension_numbers = #tpu.dot_dimension_numbers<[1], [0], [0], [1], [0, 0, 1, 1], [], []>} : vector<72x72xf32>, vector<72x64xf32>, vector<72x64xf32> -> vector<72x64xf32>
    %246 = vector.extract_strided_slice %243 {offsets = [0, 64], sizes = [72, 64], strides = [1, 1]} : vector<72x128xf32> to vector<72x64xf32>
    %247 = arith.addf %245, %246 : vector<72x64xf32>
    %c0_159 = arith.constant 0 : index
    %c0_160 = arith.constant 0 : index
    %248 = vector.load %arg23[%c0_159, %c0_160] : memref<1x64xf32, #tpu.memory_space<vmem>>, vector<1x64xf32>
    %249 = vector.broadcast %248 : vector<1x64xf32> to vector<72x64xf32>
    %250 = arith.addf %247, %249 : vector<72x64xf32>
    %251 = arith.mulf %250, %250 : vector<72x64xf32>
    %252 = arith.mulf %250, %251 : vector<72x64xf32>
    %cst_161 = arith.constant 4.471500e-02 : f32
    %253 = vector.broadcast %cst_161 : f32 to vector<72x64xf32>
    %254 = arith.mulf %253, %252 : vector<72x64xf32>
    %255 = arith.addf %250, %254 : vector<72x64xf32>
    %cst_162 = arith.constant 0.797884583 : f32
    %256 = vector.broadcast %cst_162 : f32 to vector<72x64xf32>
    %257 = arith.mulf %256, %255 : vector<72x64xf32>
    %258 = math.tanh %257 : vector<72x64xf32>
    %cst_163 = arith.constant 1.000000e+00 : f32
    %259 = vector.broadcast %cst_163 : f32 to vector<72x64xf32>
    %260 = arith.addf %259, %258 : vector<72x64xf32>
    %cst_164 = arith.constant 5.000000e-01 : f32
    %261 = vector.broadcast %cst_164 : f32 to vector<72x64xf32>
    %262 = arith.mulf %261, %260 : vector<72x64xf32>
    %263 = arith.mulf %250, %262 : vector<72x64xf32>
    %264 = vector.extract_strided_slice %263 {offsets = [0, 0], sizes = [8, 64], strides = [1, 1]} : vector<72x64xf32> to vector<8x64xf32>
    %c0_165 = arith.constant 0 : index
    %c0_166 = arith.constant 0 : index
    %265 = vector.load %arg26[%c0_165, %c0_166] : memref<8x576xf32, #tpu.memory_space<vmem>>, vector<8x64xf32>
    tpu.vector_store %arg26[%c0_165, %c0_166], %264 {strides = array<i32>} : memref<8x576xf32, #tpu.memory_space<vmem>>, vector<8x64xf32>,
    %266 = vector.extract_strided_slice %263 {offsets = [8, 0], sizes = [8, 64], strides = [1, 1]} : vector<72x64xf32> to vector<8x64xf32>
    %c0_167 = arith.constant 0 : index
    %c64_168 = arith.constant 64 : index
    %267 = vector.load %arg26[%c0_167, %c64_168] : memref<8x576xf32, #tpu.memory_space<vmem>>, vector<8x64xf32>
    tpu.vector_store %arg26[%c0_167, %c64_168], %266 {strides = array<i32>} : memref<8x576xf32, #tpu.memory_space<vmem>>, vector<8x64xf32>,
    %268 = vector.extract_strided_slice %263 {offsets = [16, 0], sizes = [8, 64], strides = [1, 1]} : vector<72x64xf32> to vector<8x64xf32>
    %c0_169 = arith.constant 0 : index
    %c128_170 = arith.constant 128 : index
    %269 = vector.load %arg26[%c0_169, %c128_170] : memref<8x576xf32, #tpu.memory_space<vmem>>, vector<8x64xf32>
    tpu.vector_store %arg26[%c0_169, %c128_170], %268 {strides = array<i32>} : memref<8x576xf32, #tpu.memory_space<vmem>>, vector<8x64xf32>,
    %270 = vector.extract_strided_slice %263 {offsets = [24, 0], sizes = [8, 64], strides = [1, 1]} : vector<72x64xf32> to vector<8x64xf32>
    %c0_171 = arith.constant 0 : index
    %c192_172 = arith.constant 192 : index
    %271 = vector.load %arg26[%c0_171, %c192_172] : memref<8x576xf32, #tpu.memory_space<vmem>>, vector<8x64xf32>
    tpu.vector_store %arg26[%c0_171, %c192_172], %270 {strides = array<i32>} : memref<8x576xf32, #tpu.memory_space<vmem>>, vector<8x64xf32>,
    %272 = vector.extract_strided_slice %263 {offsets = [32, 0], sizes = [8, 64], strides = [1, 1]} : vector<72x64xf32> to vector<8x64xf32>
    %c0_173 = arith.constant 0 : index
    %c256_174 = arith.constant 256 : index
    %273 = vector.load %arg26[%c0_173, %c256_174] : memref<8x576xf32, #tpu.memory_space<vmem>>, vector<8x64xf32>
    tpu.vector_store %arg26[%c0_173, %c256_174], %272 {strides = array<i32>} : memref<8x576xf32, #tpu.memory_space<vmem>>, vector<8x64xf32>,
    %274 = vector.extract_strided_slice %263 {offsets = [40, 0], sizes = [8, 64], strides = [1, 1]} : vector<72x64xf32> to vector<8x64xf32>
    %c0_175 = arith.constant 0 : index
    %c320 = arith.constant 320 : index
    %275 = vector.load %arg26[%c0_175, %c320] : memref<8x576xf32, #tpu.memory_space<vmem>>, vector<8x64xf32>
    tpu.vector_store %arg26[%c0_175, %c320], %274 {strides = array<i32>} : memref<8x576xf32, #tpu.memory_space<vmem>>, vector<8x64xf32>,
    %276 = vector.extract_strided_slice %263 {offsets = [48, 0], sizes = [8, 64], strides = [1, 1]} : vector<72x64xf32> to vector<8x64xf32>
    %c0_176 = arith.constant 0 : index
    %c384 = arith.constant 384 : index
    %277 = vector.load %arg26[%c0_176, %c384] : memref<8x576xf32, #tpu.memory_space<vmem>>, vector<8x64xf32>
    tpu.vector_store %arg26[%c0_176, %c384], %276 {strides = array<i32>} : memref<8x576xf32, #tpu.memory_space<vmem>>, vector<8x64xf32>,
    %278 = vector.extract_strided_slice %263 {offsets = [56, 0], sizes = [8, 64], strides = [1, 1]} : vector<72x64xf32> to vector<8x64xf32>
    %c0_177 = arith.constant 0 : index
    %c448 = arith.constant 448 : index
    %279 = vector.load %arg26[%c0_177, %c448] : memref<8x576xf32, #tpu.memory_space<vmem>>, vector<8x64xf32>
    tpu.vector_store %arg26[%c0_177, %c448], %278 {strides = array<i32>} : memref<8x576xf32, #tpu.memory_space<vmem>>, vector<8x64xf32>,
    %280 = vector.extract_strided_slice %263 {offsets = [64, 0], sizes = [8, 64], strides = [1, 1]} : vector<72x64xf32> to vector<8x64xf32>
    %c0_178 = arith.constant 0 : index
    %c512 = arith.constant 512 : index
    %281 = vector.load %arg26[%c0_178, %c512] : memref<8x576xf32, #tpu.memory_space<vmem>>, vector<8x64xf32>
    tpu.vector_store %arg26[%c0_178, %c512], %280 {strides = array<i32>} : memref<8x576xf32, #tpu.memory_space<vmem>>, vector<8x64xf32>,
    %c0_179 = arith.constant 0 : index
    %c0_180 = arith.constant 0 : index
    %282 = vector.load %arg26[%c0_179, %c0_180] : memref<8x576xf32, #tpu.memory_space<vmem>>, vector<8x576xf32>
    %283 = arith.addf %282, %222 : vector<8x576xf32>
    %cst_181 = arith.constant dense<0.000000e+00> : vector<8xf32>
    %284 = vector.multi_reduction <add>, %283, %cst_181 [1] : vector<8x576xf32> to vector<8xf32>
    %285 = vector.shape_cast %284 : vector<8xf32> to vector<8x1xf32>
    %cst_182 = arith.constant 5.760000e+02 : f32
    %286 = vector.broadcast %cst_182 : f32 to vector<8x1xf32>
    %287 = arith.divf %285, %286 : vector<8x1xf32>
    %288 = vector.broadcast %287 : vector<8x1xf32> to vector<8x576xf32>
    %289 = arith.subf %283, %288 : vector<8x576xf32>
    %290 = arith.mulf %289, %289 : vector<8x576xf32>
    %cst_183 = arith.constant dense<0.000000e+00> : vector<8xf32>
    %291 = vector.multi_reduction <add>, %290, %cst_183 [1] : vector<8x576xf32> to vector<8xf32>
    %292 = vector.shape_cast %291 : vector<8xf32> to vector<8x1xf32>
    %cst_184 = arith.constant 5.760000e+02 : f32
    %293 = vector.broadcast %cst_184 : f32 to vector<8x1xf32>
    %294 = arith.divf %292, %293 : vector<8x1xf32>
    %295 = vector.broadcast %287 : vector<8x1xf32> to vector<8x576xf32>
    %296 = arith.subf %283, %295 : vector<8x576xf32>
    %cst_185 = arith.constant 9.99999974E-6 : f32
    %297 = vector.broadcast %cst_185 : f32 to vector<8x1xf32>
    %298 = arith.addf %294, %297 : vector<8x1xf32>
    %299 = math.rsqrt %298 : vector<8x1xf32>
    %300 = vector.broadcast %299 : vector<8x1xf32> to vector<8x576xf32>
    %301 = arith.mulf %296, %300 : vector<8x576xf32>
    %c0_186 = arith.constant 0 : index
    %c0_187 = arith.constant 0 : index
    %302 = vector.load %arg2[%c0_186, %c0_187] : memref<1x576xf32, #tpu.memory_space<vmem>>, vector<1x576xf32>
    %303 = vector.broadcast %302 : vector<1x576xf32> to vector<8x576xf32>
    %304 = arith.addf %301, %303 : vector<8x576xf32>
    %c0_188 = arith.constant 0 : index
    %c0_189 = arith.constant 0 : index
    %305 = vector.load %arg24[%c0_188, %c0_189] : memref<8x576xf32, #tpu.memory_space<vmem>>, vector<8x576xf32>
    tpu.vector_store %arg24[%c0_188, %c0_189], %304 {strides = array<i32>} : memref<8x576xf32, #tpu.memory_space<vmem>>, vector<8x576xf32>,
    return
  }
}

module attributes {stable_mosaic.version = 11 : i64} {
  func.func @_decoder_kernel(%arg0: memref<8x7xf32, #tpu.memory_space<vmem>>, %arg1: memref<72x64xf32, #tpu.memory_space<vmem>>, %arg2: memref<8x8xf32, #tpu.memory_space<vmem>>, %arg3: memref<64x64xf32, #tpu.memory_space<vmem>>, %arg4: memref<1x64xf32, #tpu.memory_space<vmem>>, %arg5: memref<5x32xf32, #tpu.memory_space<vmem>>, %arg6: memref<1x32xf32, #tpu.memory_space<vmem>>, %arg7: memref<48x64xf32, #tpu.memory_space<vmem>>, %arg8: memref<1x64xf32, #tpu.memory_space<vmem>>, %arg9: memref<32x128xf32, #tpu.memory_space<vmem>>, %arg10: memref<1x64xf32, #tpu.memory_space<vmem>>, %arg11: memref<1x64xf32, #tpu.memory_space<vmem>>, %arg12: memref<1x64xf32, #tpu.memory_space<vmem>>, %arg13: memref<128x128xf32, #tpu.memory_space<vmem>>, %arg14: memref<1x128xf32, #tpu.memory_space<vmem>>, %arg15: memref<8x128xf32, #tpu.memory_space<vmem>>) attributes {dimension_semantics = [], scalar_prefetch = 0 : i64, scratch_operands = 0 : i64, tpu.core_type = #tpu.core_type<tc>} {
    %c0 = arith.constant 0 : index
    %c0_0 = arith.constant 0 : index
    %0 = vector.load %arg2[%c0, %c0_0] : memref<8x8xf32, #tpu.memory_space<vmem>>, vector<8x8xf32>
    %c0_1 = arith.constant 0 : index
    %c0_2 = arith.constant 0 : index
    %1 = vector.load %arg0[%c0_1, %c0_2] : memref<8x7xf32, #tpu.memory_space<vmem>>, vector<8x7xf32>
    %c0_3 = arith.constant 0 : index
    %c0_4 = arith.constant 0 : index
    %2 = vector.load %arg1[%c0_3, %c0_4] : memref<72x64xf32, #tpu.memory_space<vmem>>, vector<8x64xf32>
    %c8 = arith.constant 8 : index
    %c0_5 = arith.constant 0 : index
    %3 = vector.load %arg1[%c8, %c0_5] : memref<72x64xf32, #tpu.memory_space<vmem>>, vector<8x64xf32>
    %c16 = arith.constant 16 : index
    %c0_6 = arith.constant 0 : index
    %4 = vector.load %arg1[%c16, %c0_6] : memref<72x64xf32, #tpu.memory_space<vmem>>, vector<8x64xf32>
    %c24 = arith.constant 24 : index
    %c0_7 = arith.constant 0 : index
    %5 = vector.load %arg1[%c24, %c0_7] : memref<72x64xf32, #tpu.memory_space<vmem>>, vector<8x64xf32>
    %c32 = arith.constant 32 : index
    %c0_8 = arith.constant 0 : index
    %6 = vector.load %arg1[%c32, %c0_8] : memref<72x64xf32, #tpu.memory_space<vmem>>, vector<8x64xf32>
    %c40 = arith.constant 40 : index
    %c0_9 = arith.constant 0 : index
    %7 = vector.load %arg1[%c40, %c0_9] : memref<72x64xf32, #tpu.memory_space<vmem>>, vector<8x64xf32>
    %c48 = arith.constant 48 : index
    %c0_10 = arith.constant 0 : index
    %8 = vector.load %arg1[%c48, %c0_10] : memref<72x64xf32, #tpu.memory_space<vmem>>, vector<8x64xf32>
    %c56 = arith.constant 56 : index
    %c0_11 = arith.constant 0 : index
    %9 = vector.load %arg1[%c56, %c0_11] : memref<72x64xf32, #tpu.memory_space<vmem>>, vector<8x64xf32>
    %c64 = arith.constant 64 : index
    %c0_12 = arith.constant 0 : index
    %10 = vector.load %arg1[%c64, %c0_12] : memref<72x64xf32, #tpu.memory_space<vmem>>, vector<8x64xf32>
    %11 = vector.extract_strided_slice %1 {offsets = [0, 0], sizes = [8, 5], strides = [1, 1]} : vector<8x7xf32> to vector<8x5xf32>
    %c0_13 = arith.constant 0 : index
    %c0_14 = arith.constant 0 : index
    %12 = vector.load %arg5[%c0_13, %c0_14] : memref<5x32xf32, #tpu.memory_space<vmem>>, vector<5x32xf32>
    %cst = arith.constant dense<0.000000e+00> : vector<8x32xf32>
    %13 = tpu.matmul %11, %12, %cst {dimension_numbers = #tpu.dot_dimension_numbers<[1], [0], [0], [1], [0, 0, 1, 1], [], []>} : vector<8x5xf32>, vector<5x32xf32>, vector<8x32xf32> -> vector<8x32xf32>
    %c0_15 = arith.constant 0 : index
    %c0_16 = arith.constant 0 : index
    %14 = vector.load %arg6[%c0_15, %c0_16] : memref<1x32xf32, #tpu.memory_space<vmem>>, vector<1x32xf32>
    %15 = vector.broadcast %14 : vector<1x32xf32> to vector<8x32xf32>
    %16 = arith.addf %13, %15 : vector<8x32xf32>
    %17 = vector.extract_strided_slice %16 {offsets = [0, 0], sizes = [8, 16], strides = [1, 1]} : vector<8x32xf32> to vector<8x16xf32>
    %18 = vector.extract_strided_slice %16 {offsets = [0, 16], sizes = [8, 16], strides = [1, 1]} : vector<8x32xf32> to vector<8x16xf32>
    %19 = arith.negf %18 : vector<8x16xf32>
    %20 = math.exp %19 : vector<8x16xf32>
    %cst_17 = arith.constant 1.000000e+00 : f32
    %21 = vector.broadcast %cst_17 : f32 to vector<8x16xf32>
    %22 = arith.addf %21, %20 : vector<8x16xf32>
    %23 = arith.divf %21, %22 : vector<8x16xf32>
    %24 = arith.mulf %17, %23 : vector<8x16xf32>
    %25 = vector.extract_strided_slice %1 {offsets = [0, 1], sizes = [8, 5], strides = [1, 1]} : vector<8x7xf32> to vector<8x5xf32>
    %c0_18 = arith.constant 0 : index
    %c0_19 = arith.constant 0 : index
    %26 = vector.load %arg5[%c0_18, %c0_19] : memref<5x32xf32, #tpu.memory_space<vmem>>, vector<5x32xf32>
    %cst_20 = arith.constant dense<0.000000e+00> : vector<8x32xf32>
    %27 = tpu.matmul %25, %26, %cst_20 {dimension_numbers = #tpu.dot_dimension_numbers<[1], [0], [0], [1], [0, 0, 1, 1], [], []>} : vector<8x5xf32>, vector<5x32xf32>, vector<8x32xf32> -> vector<8x32xf32>
    %c0_21 = arith.constant 0 : index
    %c0_22 = arith.constant 0 : index
    %28 = vector.load %arg6[%c0_21, %c0_22] : memref<1x32xf32, #tpu.memory_space<vmem>>, vector<1x32xf32>
    %29 = vector.broadcast %28 : vector<1x32xf32> to vector<8x32xf32>
    %30 = arith.addf %27, %29 : vector<8x32xf32>
    %31 = vector.extract_strided_slice %30 {offsets = [0, 0], sizes = [8, 16], strides = [1, 1]} : vector<8x32xf32> to vector<8x16xf32>
    %32 = vector.extract_strided_slice %30 {offsets = [0, 16], sizes = [8, 16], strides = [1, 1]} : vector<8x32xf32> to vector<8x16xf32>
    %33 = arith.negf %32 : vector<8x16xf32>
    %34 = math.exp %33 : vector<8x16xf32>
    %cst_23 = arith.constant 1.000000e+00 : f32
    %35 = vector.broadcast %cst_23 : f32 to vector<8x16xf32>
    %36 = arith.addf %35, %34 : vector<8x16xf32>
    %37 = arith.divf %35, %36 : vector<8x16xf32>
    %38 = arith.mulf %31, %37 : vector<8x16xf32>
    %39 = vector.extract_strided_slice %1 {offsets = [0, 2], sizes = [8, 5], strides = [1, 1]} : vector<8x7xf32> to vector<8x5xf32>
    %c0_24 = arith.constant 0 : index
    %c0_25 = arith.constant 0 : index
    %40 = vector.load %arg5[%c0_24, %c0_25] : memref<5x32xf32, #tpu.memory_space<vmem>>, vector<5x32xf32>
    %cst_26 = arith.constant dense<0.000000e+00> : vector<8x32xf32>
    %41 = tpu.matmul %39, %40, %cst_26 {dimension_numbers = #tpu.dot_dimension_numbers<[1], [0], [0], [1], [0, 0, 1, 1], [], []>} : vector<8x5xf32>, vector<5x32xf32>, vector<8x32xf32> -> vector<8x32xf32>
    %c0_27 = arith.constant 0 : index
    %c0_28 = arith.constant 0 : index
    %42 = vector.load %arg6[%c0_27, %c0_28] : memref<1x32xf32, #tpu.memory_space<vmem>>, vector<1x32xf32>
    %43 = vector.broadcast %42 : vector<1x32xf32> to vector<8x32xf32>
    %44 = arith.addf %41, %43 : vector<8x32xf32>
    %45 = vector.extract_strided_slice %44 {offsets = [0, 0], sizes = [8, 16], strides = [1, 1]} : vector<8x32xf32> to vector<8x16xf32>
    %46 = vector.extract_strided_slice %44 {offsets = [0, 16], sizes = [8, 16], strides = [1, 1]} : vector<8x32xf32> to vector<8x16xf32>
    %47 = arith.negf %46 : vector<8x16xf32>
    %48 = math.exp %47 : vector<8x16xf32>
    %cst_29 = arith.constant 1.000000e+00 : f32
    %49 = vector.broadcast %cst_29 : f32 to vector<8x16xf32>
    %50 = arith.addf %49, %48 : vector<8x16xf32>
    %51 = arith.divf %49, %50 : vector<8x16xf32>
    %52 = arith.mulf %45, %51 : vector<8x16xf32>
    %53 = tpu.concatenate %24, %38, %52 in 1 : vector<8x16xf32>, vector<8x16xf32>, vector<8x16xf32> -> vector<8x48xf32>
    %c0_30 = arith.constant 0 : index
    %c0_31 = arith.constant 0 : index
    %54 = vector.load %arg7[%c0_30, %c0_31] : memref<48x64xf32, #tpu.memory_space<vmem>>, vector<48x64xf32>
    %cst_32 = arith.constant dense<0.000000e+00> : vector<8x64xf32>
    %55 = tpu.matmul %53, %54, %cst_32 {dimension_numbers = #tpu.dot_dimension_numbers<[1], [0], [0], [1], [0, 0, 1, 1], [], []>} : vector<8x48xf32>, vector<48x64xf32>, vector<8x64xf32> -> vector<8x64xf32>
    %c0_33 = arith.constant 0 : index
    %c0_34 = arith.constant 0 : index
    %56 = vector.load %arg8[%c0_33, %c0_34] : memref<1x64xf32, #tpu.memory_space<vmem>>, vector<1x64xf32>
    %57 = vector.broadcast %56 : vector<1x64xf32> to vector<8x64xf32>
    %58 = arith.addf %55, %57 : vector<8x64xf32>
    %59 = vector.extract_strided_slice %58 {offsets = [0, 0], sizes = [8, 32], strides = [1, 1]} : vector<8x64xf32> to vector<8x32xf32>
    %60 = vector.extract_strided_slice %58 {offsets = [0, 32], sizes = [8, 32], strides = [1, 1]} : vector<8x64xf32> to vector<8x32xf32>
    %61 = arith.negf %60 : vector<8x32xf32>
    %62 = math.exp %61 : vector<8x32xf32>
    %cst_35 = arith.constant 1.000000e+00 : f32
    %63 = vector.broadcast %cst_35 : f32 to vector<8x32xf32>
    %64 = arith.addf %63, %62 : vector<8x32xf32>
    %65 = arith.divf %63, %64 : vector<8x32xf32>
    %66 = arith.mulf %59, %65 : vector<8x32xf32>
    %c0_36 = arith.constant 0 : index
    %c0_37 = arith.constant 0 : index
    %67 = vector.load %arg9[%c0_36, %c0_37] : memref<32x128xf32, #tpu.memory_space<vmem>>, vector<32x128xf32>
    %cst_38 = arith.constant dense<0.000000e+00> : vector<8x128xf32>
    %68 = tpu.matmul %66, %67, %cst_38 {dimension_numbers = #tpu.dot_dimension_numbers<[1], [0], [0], [1], [0, 0, 1, 1], [], []>} : vector<8x32xf32>, vector<32x128xf32>, vector<8x128xf32> -> vector<8x128xf32>
    %69 = vector.extract_strided_slice %68 {offsets = [0, 0], sizes = [8, 64], strides = [1, 1]} : vector<8x128xf32> to vector<8x64xf32>
    %cst_39 = arith.constant dense<0.000000e+00> : vector<8x64xf32>
    %70 = tpu.matmul %0, %69, %cst_39 {dimension_numbers = #tpu.dot_dimension_numbers<[1], [0], [0], [1], [0, 0, 1, 1], [], []>} : vector<8x8xf32>, vector<8x64xf32>, vector<8x64xf32> -> vector<8x64xf32>
    %71 = vector.extract_strided_slice %68 {offsets = [0, 64], sizes = [8, 64], strides = [1, 1]} : vector<8x128xf32> to vector<8x64xf32>
    %72 = arith.addf %70, %71 : vector<8x64xf32>
    %c0_40 = arith.constant 0 : index
    %c0_41 = arith.constant 0 : index
    %73 = vector.load %arg10[%c0_40, %c0_41] : memref<1x64xf32, #tpu.memory_space<vmem>>, vector<1x64xf32>
    %74 = vector.broadcast %73 : vector<1x64xf32> to vector<8x64xf32>
    %75 = arith.addf %72, %74 : vector<8x64xf32>
    %76 = arith.mulf %75, %75 : vector<8x64xf32>
    %77 = arith.mulf %75, %76 : vector<8x64xf32>
    %cst_42 = arith.constant 4.471500e-02 : f32
    %78 = vector.broadcast %cst_42 : f32 to vector<8x64xf32>
    %79 = arith.mulf %78, %77 : vector<8x64xf32>
    %80 = arith.addf %75, %79 : vector<8x64xf32>
    %cst_43 = arith.constant 0.797884583 : f32
    %81 = vector.broadcast %cst_43 : f32 to vector<8x64xf32>
    %82 = arith.mulf %81, %80 : vector<8x64xf32>
    %83 = math.tanh %82 : vector<8x64xf32>
    %cst_44 = arith.constant 1.000000e+00 : f32
    %84 = vector.broadcast %cst_44 : f32 to vector<8x64xf32>
    %85 = arith.addf %84, %83 : vector<8x64xf32>
    %cst_45 = arith.constant 5.000000e-01 : f32
    %86 = vector.broadcast %cst_45 : f32 to vector<8x64xf32>
    %87 = arith.mulf %86, %85 : vector<8x64xf32>
    %88 = arith.mulf %75, %87 : vector<8x64xf32>
    %cst_46 = arith.constant dense<0.000000e+00> : vector<8xf32>
    %89 = vector.multi_reduction <add>, %88, %cst_46 [1] : vector<8x64xf32> to vector<8xf32>
    %90 = vector.shape_cast %89 : vector<8xf32> to vector<8x1xf32>
    %cst_47 = arith.constant 6.400000e+01 : f32
    %91 = vector.broadcast %cst_47 : f32 to vector<8x1xf32>
    %92 = arith.divf %90, %91 : vector<8x1xf32>
    %93 = vector.broadcast %92 : vector<8x1xf32> to vector<8x64xf32>
    %94 = arith.subf %88, %93 : vector<8x64xf32>
    %95 = arith.mulf %94, %94 : vector<8x64xf32>
    %cst_48 = arith.constant dense<0.000000e+00> : vector<8xf32>
    %96 = vector.multi_reduction <add>, %95, %cst_48 [1] : vector<8x64xf32> to vector<8xf32>
    %97 = vector.shape_cast %96 : vector<8xf32> to vector<8x1xf32>
    %cst_49 = arith.constant 6.400000e+01 : f32
    %98 = vector.broadcast %cst_49 : f32 to vector<8x1xf32>
    %99 = arith.divf %97, %98 : vector<8x1xf32>
    %100 = vector.broadcast %92 : vector<8x1xf32> to vector<8x64xf32>
    %101 = arith.subf %88, %100 : vector<8x64xf32>
    %cst_50 = arith.constant 9.99999974E-6 : f32
    %102 = vector.broadcast %cst_50 : f32 to vector<8x1xf32>
    %103 = arith.addf %99, %102 : vector<8x1xf32>
    %104 = math.rsqrt %103 : vector<8x1xf32>
    %105 = vector.broadcast %104 : vector<8x1xf32> to vector<8x64xf32>
    %106 = arith.mulf %101, %105 : vector<8x64xf32>
    %c0_51 = arith.constant 0 : index
    %c0_52 = arith.constant 0 : index
    %107 = vector.load %arg11[%c0_51, %c0_52] : memref<1x64xf32, #tpu.memory_space<vmem>>, vector<1x64xf32>
    %108 = vector.broadcast %107 : vector<1x64xf32> to vector<8x64xf32>
    %109 = arith.mulf %106, %108 : vector<8x64xf32>
    %c0_53 = arith.constant 0 : index
    %c0_54 = arith.constant 0 : index
    %110 = vector.load %arg12[%c0_53, %c0_54] : memref<1x64xf32, #tpu.memory_space<vmem>>, vector<1x64xf32>
    %111 = vector.broadcast %110 : vector<1x64xf32> to vector<8x64xf32>
    %112 = arith.addf %109, %111 : vector<8x64xf32>
    %c0_55 = arith.constant 0 : index
    %c0_56 = arith.constant 0 : index
    %113 = vector.load %arg3[%c0_55, %c0_56] : memref<64x64xf32, #tpu.memory_space<vmem>>, vector<64x64xf32>
    %cst_57 = arith.constant dense<0.000000e+00> : vector<8x64xf32>
    %114 = tpu.matmul %112, %113, %cst_57 {dimension_numbers = #tpu.dot_dimension_numbers<[1], [0], [0], [1], [0, 0, 1, 1], [], []>} : vector<8x64xf32>, vector<64x64xf32>, vector<8x64xf32> -> vector<8x64xf32>
    %c0_58 = arith.constant 0 : index
    %c0_59 = arith.constant 0 : index
    %115 = vector.load %arg4[%c0_58, %c0_59] : memref<1x64xf32, #tpu.memory_space<vmem>>, vector<1x64xf32>
    %116 = vector.broadcast %115 : vector<1x64xf32> to vector<8x64xf32>
    %117 = arith.mulf %112, %116 : vector<8x64xf32>
    %cst_60 = arith.constant dense<0.000000e+00> : vector<8xf32>
    %118 = vector.multi_reduction <add>, %117, %cst_60 [1] : vector<8x64xf32> to vector<8xf32>
    %119 = vector.shape_cast %118 : vector<8xf32> to vector<8x1xf32>
    %120 = arith.mulf %114, %2 : vector<8x64xf32>
    %cst_61 = arith.constant dense<0.000000e+00> : vector<8xf32>
    %121 = vector.multi_reduction <add>, %120, %cst_61 [1] : vector<8x64xf32> to vector<8xf32>
    %122 = vector.shape_cast %121 : vector<8xf32> to vector<8x1xf32>
    %123 = arith.mulf %114, %3 : vector<8x64xf32>
    %cst_62 = arith.constant dense<0.000000e+00> : vector<8xf32>
    %124 = vector.multi_reduction <add>, %123, %cst_62 [1] : vector<8x64xf32> to vector<8xf32>
    %125 = vector.shape_cast %124 : vector<8xf32> to vector<8x1xf32>
    %126 = arith.mulf %114, %4 : vector<8x64xf32>
    %cst_63 = arith.constant dense<0.000000e+00> : vector<8xf32>
    %127 = vector.multi_reduction <add>, %126, %cst_63 [1] : vector<8x64xf32> to vector<8xf32>
    %128 = vector.shape_cast %127 : vector<8xf32> to vector<8x1xf32>
    %129 = arith.mulf %114, %5 : vector<8x64xf32>
    %cst_64 = arith.constant dense<0.000000e+00> : vector<8xf32>
    %130 = vector.multi_reduction <add>, %129, %cst_64 [1] : vector<8x64xf32> to vector<8xf32>
    %131 = vector.shape_cast %130 : vector<8xf32> to vector<8x1xf32>
    %132 = arith.mulf %114, %6 : vector<8x64xf32>
    %cst_65 = arith.constant dense<0.000000e+00> : vector<8xf32>
    %133 = vector.multi_reduction <add>, %132, %cst_65 [1] : vector<8x64xf32> to vector<8xf32>
    %134 = vector.shape_cast %133 : vector<8xf32> to vector<8x1xf32>
    %135 = arith.mulf %114, %7 : vector<8x64xf32>
    %cst_66 = arith.constant dense<0.000000e+00> : vector<8xf32>
    %136 = vector.multi_reduction <add>, %135, %cst_66 [1] : vector<8x64xf32> to vector<8xf32>
    %137 = vector.shape_cast %136 : vector<8xf32> to vector<8x1xf32>
    %138 = arith.mulf %114, %8 : vector<8x64xf32>
    %cst_67 = arith.constant dense<0.000000e+00> : vector<8xf32>
    %139 = vector.multi_reduction <add>, %138, %cst_67 [1] : vector<8x64xf32> to vector<8xf32>
    %140 = vector.shape_cast %139 : vector<8xf32> to vector<8x1xf32>
    %141 = arith.mulf %114, %9 : vector<8x64xf32>
    %cst_68 = arith.constant dense<0.000000e+00> : vector<8xf32>
    %142 = vector.multi_reduction <add>, %141, %cst_68 [1] : vector<8x64xf32> to vector<8xf32>
    %143 = vector.shape_cast %142 : vector<8xf32> to vector<8x1xf32>
    %144 = arith.mulf %114, %10 : vector<8x64xf32>
    %cst_69 = arith.constant dense<0.000000e+00> : vector<8xf32>
    %145 = vector.multi_reduction <add>, %144, %cst_69 [1] : vector<8x64xf32> to vector<8xf32>
    %146 = vector.shape_cast %145 : vector<8xf32> to vector<8x1xf32>
    %147 = tpu.concatenate %122, %125, %128, %131, %134, %137, %140, %143, %146 in 1 : vector<8x1xf32>, vector<8x1xf32>, vector<8x1xf32>, vector<8x1xf32>, vector<8x1xf32>, vector<8x1xf32>, vector<8x1xf32>, vector<8x1xf32>, vector<8x1xf32> -> vector<8x9xf32>
    %148 = vector.broadcast %119 : vector<8x1xf32> to vector<8x9xf32>
    %149 = arith.addf %147, %148 : vector<8x9xf32>
    %cst_70 = arith.constant dense<0xFF800000> : vector<8xf32>
    %150 = vector.multi_reduction <maximumf>, %149, %cst_70 [1] : vector<8x9xf32> to vector<8xf32>
    %151 = vector.shape_cast %150 : vector<8xf32> to vector<8x1xf32>
    %152 = vector.broadcast %151 : vector<8x1xf32> to vector<8x9xf32>
    %153 = arith.subf %149, %152 : vector<8x9xf32>
    %154 = math.exp %153 : vector<8x9xf32>
    %cst_71 = arith.constant dense<0.000000e+00> : vector<8xf32>
    %155 = vector.multi_reduction <add>, %154, %cst_71 [1] : vector<8x9xf32> to vector<8xf32>
    %156 = vector.shape_cast %155 : vector<8xf32> to vector<8x1xf32>
    %157 = vector.broadcast %156 : vector<8x1xf32> to vector<8x9xf32>
    %158 = arith.divf %154, %157 : vector<8x9xf32>
    %cst_72 = arith.constant 0.000000e+00 : f32
    %159 = vector.broadcast %cst_72 : f32 to vector<8x64xf32>
    %160 = vector.extract_strided_slice %158 {offsets = [0, 0], sizes = [8, 1], strides = [1, 1]} : vector<8x9xf32> to vector<8x1xf32>
    %161 = vector.broadcast %160 : vector<8x1xf32> to vector<8x64xf32>
    %162 = arith.mulf %161, %2 : vector<8x64xf32>
    %163 = arith.addf %159, %162 : vector<8x64xf32>
    %164 = vector.extract_strided_slice %158 {offsets = [0, 1], sizes = [8, 1], strides = [1, 1]} : vector<8x9xf32> to vector<8x1xf32>
    %165 = vector.broadcast %164 : vector<8x1xf32> to vector<8x64xf32>
    %166 = arith.mulf %165, %3 : vector<8x64xf32>
    %167 = arith.addf %163, %166 : vector<8x64xf32>
    %168 = vector.extract_strided_slice %158 {offsets = [0, 2], sizes = [8, 1], strides = [1, 1]} : vector<8x9xf32> to vector<8x1xf32>
    %169 = vector.broadcast %168 : vector<8x1xf32> to vector<8x64xf32>
    %170 = arith.mulf %169, %4 : vector<8x64xf32>
    %171 = arith.addf %167, %170 : vector<8x64xf32>
    %172 = vector.extract_strided_slice %158 {offsets = [0, 3], sizes = [8, 1], strides = [1, 1]} : vector<8x9xf32> to vector<8x1xf32>
    %173 = vector.broadcast %172 : vector<8x1xf32> to vector<8x64xf32>
    %174 = arith.mulf %173, %5 : vector<8x64xf32>
    %175 = arith.addf %171, %174 : vector<8x64xf32>
    %176 = vector.extract_strided_slice %158 {offsets = [0, 4], sizes = [8, 1], strides = [1, 1]} : vector<8x9xf32> to vector<8x1xf32>
    %177 = vector.broadcast %176 : vector<8x1xf32> to vector<8x64xf32>
    %178 = arith.mulf %177, %6 : vector<8x64xf32>
    %179 = arith.addf %175, %178 : vector<8x64xf32>
    %180 = vector.extract_strided_slice %158 {offsets = [0, 5], sizes = [8, 1], strides = [1, 1]} : vector<8x9xf32> to vector<8x1xf32>
    %181 = vector.broadcast %180 : vector<8x1xf32> to vector<8x64xf32>
    %182 = arith.mulf %181, %7 : vector<8x64xf32>
    %183 = arith.addf %179, %182 : vector<8x64xf32>
    %184 = vector.extract_strided_slice %158 {offsets = [0, 6], sizes = [8, 1], strides = [1, 1]} : vector<8x9xf32> to vector<8x1xf32>
    %185 = vector.broadcast %184 : vector<8x1xf32> to vector<8x64xf32>
    %186 = arith.mulf %185, %8 : vector<8x64xf32>
    %187 = arith.addf %183, %186 : vector<8x64xf32>
    %188 = vector.extract_strided_slice %158 {offsets = [0, 7], sizes = [8, 1], strides = [1, 1]} : vector<8x9xf32> to vector<8x1xf32>
    %189 = vector.broadcast %188 : vector<8x1xf32> to vector<8x64xf32>
    %190 = arith.mulf %189, %9 : vector<8x64xf32>
    %191 = arith.addf %187, %190 : vector<8x64xf32>
    %192 = vector.extract_strided_slice %158 {offsets = [0, 8], sizes = [8, 1], strides = [1, 1]} : vector<8x9xf32> to vector<8x1xf32>
    %193 = vector.broadcast %192 : vector<8x1xf32> to vector<8x64xf32>
    %194 = arith.mulf %193, %10 : vector<8x64xf32>
    %195 = arith.addf %191, %194 : vector<8x64xf32>
    %196 = tpu.concatenate %195, %112 in 1 : vector<8x64xf32>, vector<8x64xf32> -> vector<8x128xf32>
    %cst_73 = arith.constant dense<0.000000e+00> : vector<8xf32>
    %197 = vector.multi_reduction <add>, %196, %cst_73 [1] : vector<8x128xf32> to vector<8xf32>
    %198 = vector.shape_cast %197 : vector<8xf32> to vector<8x1xf32>
    %cst_74 = arith.constant 1.280000e+02 : f32
    %199 = vector.broadcast %cst_74 : f32 to vector<8x1xf32>
    %200 = arith.divf %198, %199 : vector<8x1xf32>
    %201 = vector.broadcast %200 : vector<8x1xf32> to vector<8x128xf32>
    %202 = arith.subf %196, %201 : vector<8x128xf32>
    %203 = arith.mulf %202, %202 : vector<8x128xf32>
    %cst_75 = arith.constant dense<0.000000e+00> : vector<8xf32>
    %204 = vector.multi_reduction <add>, %203, %cst_75 [1] : vector<8x128xf32> to vector<8xf32>
    %205 = vector.shape_cast %204 : vector<8xf32> to vector<8x1xf32>
    %cst_76 = arith.constant 1.280000e+02 : f32
    %206 = vector.broadcast %cst_76 : f32 to vector<8x1xf32>
    %207 = arith.divf %205, %206 : vector<8x1xf32>
    %208 = vector.broadcast %200 : vector<8x1xf32> to vector<8x128xf32>
    %209 = arith.subf %196, %208 : vector<8x128xf32>
    %cst_77 = arith.constant 9.99999974E-6 : f32
    %210 = vector.broadcast %cst_77 : f32 to vector<8x1xf32>
    %211 = arith.addf %207, %210 : vector<8x1xf32>
    %212 = math.rsqrt %211 : vector<8x1xf32>
    %213 = vector.broadcast %212 : vector<8x1xf32> to vector<8x128xf32>
    %214 = arith.mulf %209, %213 : vector<8x128xf32>
    %c0_78 = arith.constant 0 : index
    %c0_79 = arith.constant 0 : index
    %215 = vector.load %arg13[%c0_78, %c0_79] : memref<128x128xf32, #tpu.memory_space<vmem>>, vector<128x128xf32>
    %cst_80 = arith.constant dense<0.000000e+00> : vector<8x128xf32>
    %216 = tpu.matmul %214, %215, %cst_80 {dimension_numbers = #tpu.dot_dimension_numbers<[1], [0], [0], [1], [0, 0, 1, 1], [], []>} : vector<8x128xf32>, vector<128x128xf32>, vector<8x128xf32> -> vector<8x128xf32>
    %c0_81 = arith.constant 0 : index
    %c0_82 = arith.constant 0 : index
    %217 = vector.load %arg14[%c0_81, %c0_82] : memref<1x128xf32, #tpu.memory_space<vmem>>, vector<1x128xf32>
    %218 = vector.broadcast %217 : vector<1x128xf32> to vector<8x128xf32>
    %219 = arith.addf %216, %218 : vector<8x128xf32>
    %220 = vector.extract_strided_slice %219 {offsets = [0, 0], sizes = [8, 1], strides = [1, 1]} : vector<8x128xf32> to vector<8x1xf32>
    %221 = vector.extract_strided_slice %1 {offsets = [0, 1], sizes = [8, 6], strides = [1, 1]} : vector<8x7xf32> to vector<8x6xf32>
    %222 = tpu.concatenate %221, %220 in 1 : vector<8x6xf32>, vector<8x1xf32> -> vector<8x7xf32>
    %223 = vector.extract_strided_slice %222 {offsets = [0, 0], sizes = [8, 5], strides = [1, 1]} : vector<8x7xf32> to vector<8x5xf32>
    %c0_83 = arith.constant 0 : index
    %c0_84 = arith.constant 0 : index
    %224 = vector.load %arg5[%c0_83, %c0_84] : memref<5x32xf32, #tpu.memory_space<vmem>>, vector<5x32xf32>
    %cst_85 = arith.constant dense<0.000000e+00> : vector<8x32xf32>
    %225 = tpu.matmul %223, %224, %cst_85 {dimension_numbers = #tpu.dot_dimension_numbers<[1], [0], [0], [1], [0, 0, 1, 1], [], []>} : vector<8x5xf32>, vector<5x32xf32>, vector<8x32xf32> -> vector<8x32xf32>
    %c0_86 = arith.constant 0 : index
    %c0_87 = arith.constant 0 : index
    %226 = vector.load %arg6[%c0_86, %c0_87] : memref<1x32xf32, #tpu.memory_space<vmem>>, vector<1x32xf32>
    %227 = vector.broadcast %226 : vector<1x32xf32> to vector<8x32xf32>
    %228 = arith.addf %225, %227 : vector<8x32xf32>
    %229 = vector.extract_strided_slice %228 {offsets = [0, 0], sizes = [8, 16], strides = [1, 1]} : vector<8x32xf32> to vector<8x16xf32>
    %230 = vector.extract_strided_slice %228 {offsets = [0, 16], sizes = [8, 16], strides = [1, 1]} : vector<8x32xf32> to vector<8x16xf32>
    %231 = arith.negf %230 : vector<8x16xf32>
    %232 = math.exp %231 : vector<8x16xf32>
    %cst_88 = arith.constant 1.000000e+00 : f32
    %233 = vector.broadcast %cst_88 : f32 to vector<8x16xf32>
    %234 = arith.addf %233, %232 : vector<8x16xf32>
    %235 = arith.divf %233, %234 : vector<8x16xf32>
    %236 = arith.mulf %229, %235 : vector<8x16xf32>
    %237 = vector.extract_strided_slice %222 {offsets = [0, 1], sizes = [8, 5], strides = [1, 1]} : vector<8x7xf32> to vector<8x5xf32>
    %c0_89 = arith.constant 0 : index
    %c0_90 = arith.constant 0 : index
    %238 = vector.load %arg5[%c0_89, %c0_90] : memref<5x32xf32, #tpu.memory_space<vmem>>, vector<5x32xf32>
    %cst_91 = arith.constant dense<0.000000e+00> : vector<8x32xf32>
    %239 = tpu.matmul %237, %238, %cst_91 {dimension_numbers = #tpu.dot_dimension_numbers<[1], [0], [0], [1], [0, 0, 1, 1], [], []>} : vector<8x5xf32>, vector<5x32xf32>, vector<8x32xf32> -> vector<8x32xf32>
    %c0_92 = arith.constant 0 : index
    %c0_93 = arith.constant 0 : index
    %240 = vector.load %arg6[%c0_92, %c0_93] : memref<1x32xf32, #tpu.memory_space<vmem>>, vector<1x32xf32>
    %241 = vector.broadcast %240 : vector<1x32xf32> to vector<8x32xf32>
    %242 = arith.addf %239, %241 : vector<8x32xf32>
    %243 = vector.extract_strided_slice %242 {offsets = [0, 0], sizes = [8, 16], strides = [1, 1]} : vector<8x32xf32> to vector<8x16xf32>
    %244 = vector.extract_strided_slice %242 {offsets = [0, 16], sizes = [8, 16], strides = [1, 1]} : vector<8x32xf32> to vector<8x16xf32>
    %245 = arith.negf %244 : vector<8x16xf32>
    %246 = math.exp %245 : vector<8x16xf32>
    %cst_94 = arith.constant 1.000000e+00 : f32
    %247 = vector.broadcast %cst_94 : f32 to vector<8x16xf32>
    %248 = arith.addf %247, %246 : vector<8x16xf32>
    %249 = arith.divf %247, %248 : vector<8x16xf32>
    %250 = arith.mulf %243, %249 : vector<8x16xf32>
    %251 = vector.extract_strided_slice %222 {offsets = [0, 2], sizes = [8, 5], strides = [1, 1]} : vector<8x7xf32> to vector<8x5xf32>
    %c0_95 = arith.constant 0 : index
    %c0_96 = arith.constant 0 : index
    %252 = vector.load %arg5[%c0_95, %c0_96] : memref<5x32xf32, #tpu.memory_space<vmem>>, vector<5x32xf32>
    %cst_97 = arith.constant dense<0.000000e+00> : vector<8x32xf32>
    %253 = tpu.matmul %251, %252, %cst_97 {dimension_numbers = #tpu.dot_dimension_numbers<[1], [0], [0], [1], [0, 0, 1, 1], [], []>} : vector<8x5xf32>, vector<5x32xf32>, vector<8x32xf32> -> vector<8x32xf32>
    %c0_98 = arith.constant 0 : index
    %c0_99 = arith.constant 0 : index
    %254 = vector.load %arg6[%c0_98, %c0_99] : memref<1x32xf32, #tpu.memory_space<vmem>>, vector<1x32xf32>
    %255 = vector.broadcast %254 : vector<1x32xf32> to vector<8x32xf32>
    %256 = arith.addf %253, %255 : vector<8x32xf32>
    %257 = vector.extract_strided_slice %256 {offsets = [0, 0], sizes = [8, 16], strides = [1, 1]} : vector<8x32xf32> to vector<8x16xf32>
    %258 = vector.extract_strided_slice %256 {offsets = [0, 16], sizes = [8, 16], strides = [1, 1]} : vector<8x32xf32> to vector<8x16xf32>
    %259 = arith.negf %258 : vector<8x16xf32>
    %260 = math.exp %259 : vector<8x16xf32>
    %cst_100 = arith.constant 1.000000e+00 : f32
    %261 = vector.broadcast %cst_100 : f32 to vector<8x16xf32>
    %262 = arith.addf %261, %260 : vector<8x16xf32>
    %263 = arith.divf %261, %262 : vector<8x16xf32>
    %264 = arith.mulf %257, %263 : vector<8x16xf32>
    %265 = tpu.concatenate %236, %250, %264 in 1 : vector<8x16xf32>, vector<8x16xf32>, vector<8x16xf32> -> vector<8x48xf32>
    %c0_101 = arith.constant 0 : index
    %c0_102 = arith.constant 0 : index
    %266 = vector.load %arg7[%c0_101, %c0_102] : memref<48x64xf32, #tpu.memory_space<vmem>>, vector<48x64xf32>
    %cst_103 = arith.constant dense<0.000000e+00> : vector<8x64xf32>
    %267 = tpu.matmul %265, %266, %cst_103 {dimension_numbers = #tpu.dot_dimension_numbers<[1], [0], [0], [1], [0, 0, 1, 1], [], []>} : vector<8x48xf32>, vector<48x64xf32>, vector<8x64xf32> -> vector<8x64xf32>
    %c0_104 = arith.constant 0 : index
    %c0_105 = arith.constant 0 : index
    %268 = vector.load %arg8[%c0_104, %c0_105] : memref<1x64xf32, #tpu.memory_space<vmem>>, vector<1x64xf32>
    %269 = vector.broadcast %268 : vector<1x64xf32> to vector<8x64xf32>
    %270 = arith.addf %267, %269 : vector<8x64xf32>
    %271 = vector.extract_strided_slice %270 {offsets = [0, 0], sizes = [8, 32], strides = [1, 1]} : vector<8x64xf32> to vector<8x32xf32>
    %272 = vector.extract_strided_slice %270 {offsets = [0, 32], sizes = [8, 32], strides = [1, 1]} : vector<8x64xf32> to vector<8x32xf32>
    %273 = arith.negf %272 : vector<8x32xf32>
    %274 = math.exp %273 : vector<8x32xf32>
    %cst_106 = arith.constant 1.000000e+00 : f32
    %275 = vector.broadcast %cst_106 : f32 to vector<8x32xf32>
    %276 = arith.addf %275, %274 : vector<8x32xf32>
    %277 = arith.divf %275, %276 : vector<8x32xf32>
    %278 = arith.mulf %271, %277 : vector<8x32xf32>
    %c0_107 = arith.constant 0 : index
    %c0_108 = arith.constant 0 : index
    %279 = vector.load %arg9[%c0_107, %c0_108] : memref<32x128xf32, #tpu.memory_space<vmem>>, vector<32x128xf32>
    %cst_109 = arith.constant dense<0.000000e+00> : vector<8x128xf32>
    %280 = tpu.matmul %278, %279, %cst_109 {dimension_numbers = #tpu.dot_dimension_numbers<[1], [0], [0], [1], [0, 0, 1, 1], [], []>} : vector<8x32xf32>, vector<32x128xf32>, vector<8x128xf32> -> vector<8x128xf32>
    %281 = vector.extract_strided_slice %280 {offsets = [0, 0], sizes = [8, 64], strides = [1, 1]} : vector<8x128xf32> to vector<8x64xf32>
    %cst_110 = arith.constant dense<0.000000e+00> : vector<8x64xf32>
    %282 = tpu.matmul %0, %281, %cst_110 {dimension_numbers = #tpu.dot_dimension_numbers<[1], [0], [0], [1], [0, 0, 1, 1], [], []>} : vector<8x8xf32>, vector<8x64xf32>, vector<8x64xf32> -> vector<8x64xf32>
    %283 = vector.extract_strided_slice %280 {offsets = [0, 64], sizes = [8, 64], strides = [1, 1]} : vector<8x128xf32> to vector<8x64xf32>
    %284 = arith.addf %282, %283 : vector<8x64xf32>
    %c0_111 = arith.constant 0 : index
    %c0_112 = arith.constant 0 : index
    %285 = vector.load %arg10[%c0_111, %c0_112] : memref<1x64xf32, #tpu.memory_space<vmem>>, vector<1x64xf32>
    %286 = vector.broadcast %285 : vector<1x64xf32> to vector<8x64xf32>
    %287 = arith.addf %284, %286 : vector<8x64xf32>
    %288 = arith.mulf %287, %287 : vector<8x64xf32>
    %289 = arith.mulf %287, %288 : vector<8x64xf32>
    %cst_113 = arith.constant 4.471500e-02 : f32
    %290 = vector.broadcast %cst_113 : f32 to vector<8x64xf32>
    %291 = arith.mulf %290, %289 : vector<8x64xf32>
    %292 = arith.addf %287, %291 : vector<8x64xf32>
    %cst_114 = arith.constant 0.797884583 : f32
    %293 = vector.broadcast %cst_114 : f32 to vector<8x64xf32>
    %294 = arith.mulf %293, %292 : vector<8x64xf32>
    %295 = math.tanh %294 : vector<8x64xf32>
    %cst_115 = arith.constant 1.000000e+00 : f32
    %296 = vector.broadcast %cst_115 : f32 to vector<8x64xf32>
    %297 = arith.addf %296, %295 : vector<8x64xf32>
    %cst_116 = arith.constant 5.000000e-01 : f32
    %298 = vector.broadcast %cst_116 : f32 to vector<8x64xf32>
    %299 = arith.mulf %298, %297 : vector<8x64xf32>
    %300 = arith.mulf %287, %299 : vector<8x64xf32>
    %cst_117 = arith.constant dense<0.000000e+00> : vector<8xf32>
    %301 = vector.multi_reduction <add>, %300, %cst_117 [1] : vector<8x64xf32> to vector<8xf32>
    %302 = vector.shape_cast %301 : vector<8xf32> to vector<8x1xf32>
    %cst_118 = arith.constant 6.400000e+01 : f32
    %303 = vector.broadcast %cst_118 : f32 to vector<8x1xf32>
    %304 = arith.divf %302, %303 : vector<8x1xf32>
    %305 = vector.broadcast %304 : vector<8x1xf32> to vector<8x64xf32>
    %306 = arith.subf %300, %305 : vector<8x64xf32>
    %307 = arith.mulf %306, %306 : vector<8x64xf32>
    %cst_119 = arith.constant dense<0.000000e+00> : vector<8xf32>
    %308 = vector.multi_reduction <add>, %307, %cst_119 [1] : vector<8x64xf32> to vector<8xf32>
    %309 = vector.shape_cast %308 : vector<8xf32> to vector<8x1xf32>
    %cst_120 = arith.constant 6.400000e+01 : f32
    %310 = vector.broadcast %cst_120 : f32 to vector<8x1xf32>
    %311 = arith.divf %309, %310 : vector<8x1xf32>
    %312 = vector.broadcast %304 : vector<8x1xf32> to vector<8x64xf32>
    %313 = arith.subf %300, %312 : vector<8x64xf32>
    %cst_121 = arith.constant 9.99999974E-6 : f32
    %314 = vector.broadcast %cst_121 : f32 to vector<8x1xf32>
    %315 = arith.addf %311, %314 : vector<8x1xf32>
    %316 = math.rsqrt %315 : vector<8x1xf32>
    %317 = vector.broadcast %316 : vector<8x1xf32> to vector<8x64xf32>
    %318 = arith.mulf %313, %317 : vector<8x64xf32>
    %c0_122 = arith.constant 0 : index
    %c0_123 = arith.constant 0 : index
    %319 = vector.load %arg11[%c0_122, %c0_123] : memref<1x64xf32, #tpu.memory_space<vmem>>, vector<1x64xf32>
    %320 = vector.broadcast %319 : vector<1x64xf32> to vector<8x64xf32>
    %321 = arith.mulf %318, %320 : vector<8x64xf32>
    %c0_124 = arith.constant 0 : index
    %c0_125 = arith.constant 0 : index
    %322 = vector.load %arg12[%c0_124, %c0_125] : memref<1x64xf32, #tpu.memory_space<vmem>>, vector<1x64xf32>
    %323 = vector.broadcast %322 : vector<1x64xf32> to vector<8x64xf32>
    %324 = arith.addf %321, %323 : vector<8x64xf32>
    %c0_126 = arith.constant 0 : index
    %c0_127 = arith.constant 0 : index
    %325 = vector.load %arg3[%c0_126, %c0_127] : memref<64x64xf32, #tpu.memory_space<vmem>>, vector<64x64xf32>
    %cst_128 = arith.constant dense<0.000000e+00> : vector<8x64xf32>
    %326 = tpu.matmul %324, %325, %cst_128 {dimension_numbers = #tpu.dot_dimension_numbers<[1], [0], [0], [1], [0, 0, 1, 1], [], []>} : vector<8x64xf32>, vector<64x64xf32>, vector<8x64xf32> -> vector<8x64xf32>
    %c0_129 = arith.constant 0 : index
    %c0_130 = arith.constant 0 : index
    %327 = vector.load %arg4[%c0_129, %c0_130] : memref<1x64xf32, #tpu.memory_space<vmem>>, vector<1x64xf32>
    %328 = vector.broadcast %327 : vector<1x64xf32> to vector<8x64xf32>
    %329 = arith.mulf %324, %328 : vector<8x64xf32>
    %cst_131 = arith.constant dense<0.000000e+00> : vector<8xf32>
    %330 = vector.multi_reduction <add>, %329, %cst_131 [1] : vector<8x64xf32> to vector<8xf32>
    %331 = vector.shape_cast %330 : vector<8xf32> to vector<8x1xf32>
    %332 = arith.mulf %326, %2 : vector<8x64xf32>
    %cst_132 = arith.constant dense<0.000000e+00> : vector<8xf32>
    %333 = vector.multi_reduction <add>, %332, %cst_132 [1] : vector<8x64xf32> to vector<8xf32>
    %334 = vector.shape_cast %333 : vector<8xf32> to vector<8x1xf32>
    %335 = arith.mulf %326, %3 : vector<8x64xf32>
    %cst_133 = arith.constant dense<0.000000e+00> : vector<8xf32>
    %336 = vector.multi_reduction <add>, %335, %cst_133 [1] : vector<8x64xf32> to vector<8xf32>
    %337 = vector.shape_cast %336 : vector<8xf32> to vector<8x1xf32>
    %338 = arith.mulf %326, %4 : vector<8x64xf32>
    %cst_134 = arith.constant dense<0.000000e+00> : vector<8xf32>
    %339 = vector.multi_reduction <add>, %338, %cst_134 [1] : vector<8x64xf32> to vector<8xf32>
    %340 = vector.shape_cast %339 : vector<8xf32> to vector<8x1xf32>
    %341 = arith.mulf %326, %5 : vector<8x64xf32>
    %cst_135 = arith.constant dense<0.000000e+00> : vector<8xf32>
    %342 = vector.multi_reduction <add>, %341, %cst_135 [1] : vector<8x64xf32> to vector<8xf32>
    %343 = vector.shape_cast %342 : vector<8xf32> to vector<8x1xf32>
    %344 = arith.mulf %326, %6 : vector<8x64xf32>
    %cst_136 = arith.constant dense<0.000000e+00> : vector<8xf32>
    %345 = vector.multi_reduction <add>, %344, %cst_136 [1] : vector<8x64xf32> to vector<8xf32>
    %346 = vector.shape_cast %345 : vector<8xf32> to vector<8x1xf32>
    %347 = arith.mulf %326, %7 : vector<8x64xf32>
    %cst_137 = arith.constant dense<0.000000e+00> : vector<8xf32>
    %348 = vector.multi_reduction <add>, %347, %cst_137 [1] : vector<8x64xf32> to vector<8xf32>
    %349 = vector.shape_cast %348 : vector<8xf32> to vector<8x1xf32>
    %350 = arith.mulf %326, %8 : vector<8x64xf32>
    %cst_138 = arith.constant dense<0.000000e+00> : vector<8xf32>
    %351 = vector.multi_reduction <add>, %350, %cst_138 [1] : vector<8x64xf32> to vector<8xf32>
    %352 = vector.shape_cast %351 : vector<8xf32> to vector<8x1xf32>
    %353 = arith.mulf %326, %9 : vector<8x64xf32>
    %cst_139 = arith.constant dense<0.000000e+00> : vector<8xf32>
    %354 = vector.multi_reduction <add>, %353, %cst_139 [1] : vector<8x64xf32> to vector<8xf32>
    %355 = vector.shape_cast %354 : vector<8xf32> to vector<8x1xf32>
    %356 = arith.mulf %326, %10 : vector<8x64xf32>
    %cst_140 = arith.constant dense<0.000000e+00> : vector<8xf32>
    %357 = vector.multi_reduction <add>, %356, %cst_140 [1] : vector<8x64xf32> to vector<8xf32>
    %358 = vector.shape_cast %357 : vector<8xf32> to vector<8x1xf32>
    %359 = tpu.concatenate %334, %337, %340, %343, %346, %349, %352, %355, %358 in 1 : vector<8x1xf32>, vector<8x1xf32>, vector<8x1xf32>, vector<8x1xf32>, vector<8x1xf32>, vector<8x1xf32>, vector<8x1xf32>, vector<8x1xf32>, vector<8x1xf32> -> vector<8x9xf32>
    %360 = vector.broadcast %331 : vector<8x1xf32> to vector<8x9xf32>
    %361 = arith.addf %359, %360 : vector<8x9xf32>
    %cst_141 = arith.constant dense<0xFF800000> : vector<8xf32>
    %362 = vector.multi_reduction <maximumf>, %361, %cst_141 [1] : vector<8x9xf32> to vector<8xf32>
    %363 = vector.shape_cast %362 : vector<8xf32> to vector<8x1xf32>
    %364 = vector.broadcast %363 : vector<8x1xf32> to vector<8x9xf32>
    %365 = arith.subf %361, %364 : vector<8x9xf32>
    %366 = math.exp %365 : vector<8x9xf32>
    %cst_142 = arith.constant dense<0.000000e+00> : vector<8xf32>
    %367 = vector.multi_reduction <add>, %366, %cst_142 [1] : vector<8x9xf32> to vector<8xf32>
    %368 = vector.shape_cast %367 : vector<8xf32> to vector<8x1xf32>
    %369 = vector.broadcast %368 : vector<8x1xf32> to vector<8x9xf32>
    %370 = arith.divf %366, %369 : vector<8x9xf32>
    %cst_143 = arith.constant 0.000000e+00 : f32
    %371 = vector.broadcast %cst_143 : f32 to vector<8x64xf32>
    %372 = vector.extract_strided_slice %370 {offsets = [0, 0], sizes = [8, 1], strides = [1, 1]} : vector<8x9xf32> to vector<8x1xf32>
    %373 = vector.broadcast %372 : vector<8x1xf32> to vector<8x64xf32>
    %374 = arith.mulf %373, %2 : vector<8x64xf32>
    %375 = arith.addf %371, %374 : vector<8x64xf32>
    %376 = vector.extract_strided_slice %370 {offsets = [0, 1], sizes = [8, 1], strides = [1, 1]} : vector<8x9xf32> to vector<8x1xf32>
    %377 = vector.broadcast %376 : vector<8x1xf32> to vector<8x64xf32>
    %378 = arith.mulf %377, %3 : vector<8x64xf32>
    %379 = arith.addf %375, %378 : vector<8x64xf32>
    %380 = vector.extract_strided_slice %370 {offsets = [0, 2], sizes = [8, 1], strides = [1, 1]} : vector<8x9xf32> to vector<8x1xf32>
    %381 = vector.broadcast %380 : vector<8x1xf32> to vector<8x64xf32>
    %382 = arith.mulf %381, %4 : vector<8x64xf32>
    %383 = arith.addf %379, %382 : vector<8x64xf32>
    %384 = vector.extract_strided_slice %370 {offsets = [0, 3], sizes = [8, 1], strides = [1, 1]} : vector<8x9xf32> to vector<8x1xf32>
    %385 = vector.broadcast %384 : vector<8x1xf32> to vector<8x64xf32>
    %386 = arith.mulf %385, %5 : vector<8x64xf32>
    %387 = arith.addf %383, %386 : vector<8x64xf32>
    %388 = vector.extract_strided_slice %370 {offsets = [0, 4], sizes = [8, 1], strides = [1, 1]} : vector<8x9xf32> to vector<8x1xf32>
    %389 = vector.broadcast %388 : vector<8x1xf32> to vector<8x64xf32>
    %390 = arith.mulf %389, %6 : vector<8x64xf32>
    %391 = arith.addf %387, %390 : vector<8x64xf32>
    %392 = vector.extract_strided_slice %370 {offsets = [0, 5], sizes = [8, 1], strides = [1, 1]} : vector<8x9xf32> to vector<8x1xf32>
    %393 = vector.broadcast %392 : vector<8x1xf32> to vector<8x64xf32>
    %394 = arith.mulf %393, %7 : vector<8x64xf32>
    %395 = arith.addf %391, %394 : vector<8x64xf32>
    %396 = vector.extract_strided_slice %370 {offsets = [0, 6], sizes = [8, 1], strides = [1, 1]} : vector<8x9xf32> to vector<8x1xf32>
    %397 = vector.broadcast %396 : vector<8x1xf32> to vector<8x64xf32>
    %398 = arith.mulf %397, %8 : vector<8x64xf32>
    %399 = arith.addf %395, %398 : vector<8x64xf32>
    %400 = vector.extract_strided_slice %370 {offsets = [0, 7], sizes = [8, 1], strides = [1, 1]} : vector<8x9xf32> to vector<8x1xf32>
    %401 = vector.broadcast %400 : vector<8x1xf32> to vector<8x64xf32>
    %402 = arith.mulf %401, %9 : vector<8x64xf32>
    %403 = arith.addf %399, %402 : vector<8x64xf32>
    %404 = vector.extract_strided_slice %370 {offsets = [0, 8], sizes = [8, 1], strides = [1, 1]} : vector<8x9xf32> to vector<8x1xf32>
    %405 = vector.broadcast %404 : vector<8x1xf32> to vector<8x64xf32>
    %406 = arith.mulf %405, %10 : vector<8x64xf32>
    %407 = arith.addf %403, %406 : vector<8x64xf32>
    %408 = tpu.concatenate %407, %324 in 1 : vector<8x64xf32>, vector<8x64xf32> -> vector<8x128xf32>
    %cst_144 = arith.constant dense<0.000000e+00> : vector<8xf32>
    %409 = vector.multi_reduction <add>, %408, %cst_144 [1] : vector<8x128xf32> to vector<8xf32>
    %410 = vector.shape_cast %409 : vector<8xf32> to vector<8x1xf32>
    %cst_145 = arith.constant 1.280000e+02 : f32
    %411 = vector.broadcast %cst_145 : f32 to vector<8x1xf32>
    %412 = arith.divf %410, %411 : vector<8x1xf32>
    %413 = vector.broadcast %412 : vector<8x1xf32> to vector<8x128xf32>
    %414 = arith.subf %408, %413 : vector<8x128xf32>
    %415 = arith.mulf %414, %414 : vector<8x128xf32>
    %cst_146 = arith.constant dense<0.000000e+00> : vector<8xf32>
    %416 = vector.multi_reduction <add>, %415, %cst_146 [1] : vector<8x128xf32> to vector<8xf32>
    %417 = vector.shape_cast %416 : vector<8xf32> to vector<8x1xf32>
    %cst_147 = arith.constant 1.280000e+02 : f32
    %418 = vector.broadcast %cst_147 : f32 to vector<8x1xf32>
    %419 = arith.divf %417, %418 : vector<8x1xf32>
    %420 = vector.broadcast %412 : vector<8x1xf32> to vector<8x128xf32>
    %421 = arith.subf %408, %420 : vector<8x128xf32>
    %cst_148 = arith.constant 9.99999974E-6 : f32
    %422 = vector.broadcast %cst_148 : f32 to vector<8x1xf32>
    %423 = arith.addf %419, %422 : vector<8x1xf32>
    %424 = math.rsqrt %423 : vector<8x1xf32>
    %425 = vector.broadcast %424 : vector<8x1xf32> to vector<8x128xf32>
    %426 = arith.mulf %421, %425 : vector<8x128xf32>
    %c0_149 = arith.constant 0 : index
    %c0_150 = arith.constant 0 : index
    %427 = vector.load %arg13[%c0_149, %c0_150] : memref<128x128xf32, #tpu.memory_space<vmem>>, vector<128x128xf32>
    %cst_151 = arith.constant dense<0.000000e+00> : vector<8x128xf32>
    %428 = tpu.matmul %426, %427, %cst_151 {dimension_numbers = #tpu.dot_dimension_numbers<[1], [0], [0], [1], [0, 0, 1, 1], [], []>} : vector<8x128xf32>, vector<128x128xf32>, vector<8x128xf32> -> vector<8x128xf32>
    %c0_152 = arith.constant 0 : index
    %c0_153 = arith.constant 0 : index
    %429 = vector.load %arg14[%c0_152, %c0_153] : memref<1x128xf32, #tpu.memory_space<vmem>>, vector<1x128xf32>
    %430 = vector.broadcast %429 : vector<1x128xf32> to vector<8x128xf32>
    %431 = arith.addf %428, %430 : vector<8x128xf32>
    %432 = vector.extract_strided_slice %431 {offsets = [0, 0], sizes = [8, 1], strides = [1, 1]} : vector<8x128xf32> to vector<8x1xf32>
    %cst_154 = arith.constant 0.000000e+00 : f32
    %433 = vector.broadcast %cst_154 : f32 to vector<8x126xf32>
    %434 = tpu.concatenate %220, %432, %433 in 1 : vector<8x1xf32>, vector<8x1xf32>, vector<8x126xf32> -> vector<8x128xf32>
    %c0_155 = arith.constant 0 : index
    %c0_156 = arith.constant 0 : index
    %435 = vector.load %arg15[%c0_155, %c0_156] : memref<8x128xf32, #tpu.memory_space<vmem>>, vector<8x128xf32>
    tpu.vector_store %arg15[%c0_155, %c0_156], %434 {strides = array<i32>} : memref<8x128xf32, #tpu.memory_space<vmem>>, vector<8x128xf32>,
    return
  }
}

</mosaic_0001>

<llo_original>
// kernel: _lambda_.3
$region0: #{_lambda_.3}
  #allocation0 [shape = 'u32[]', space=smem, size = 0x4, offset = 0x4, fixed_abs, tag = 'smem constant byte address 0x4 - core index']
  #allocation1 [shape = 'u32[144,128]{1,0:T(1,128)}', space=vmem, size = 0x12000, scoped, tag = 'internal scratch']
  %s0 = inlined_call_operand.vmem [shape: f32[8,7], index: 0, kind: input, shape index: {}]
  %s1 = inlined_call_operand.vmem [shape: f32[72,64], index: 1, kind: input, shape index: {}]
  %s2 = inlined_call_operand.vmem [shape: f32[8,8], index: 2, kind: input, shape index: {}]
  %s3 = inlined_call_operand.vmem [shape: f32[64,64], index: 3, kind: input, shape index: {}]
  %s4 = inlined_call_operand.vmem [shape: f32[1,64], index: 4, kind: input, shape index: {}]
  %s5 = inlined_call_operand.vmem [shape: f32[5,32], index: 5, kind: input, shape index: {}]
  %s6 = inlined_call_operand.vmem [shape: f32[1,32], index: 6, kind: input, shape index: {}]
  %s7 = inlined_call_operand.vmem [shape: f32[48,64], index: 7, kind: input, shape index: {}]
  %s8 = inlined_call_operand.vmem [shape: f32[1,64], index: 8, kind: input, shape index: {}]
  %s9 = inlined_call_operand.vmem [shape: f32[32,128], index: 9, kind: input, shape index: {}]
  %s10 = inlined_call_operand.vmem [shape: f32[1,64], index: 10, kind: input, shape index: {}]
  %s11 = inlined_call_operand.vmem [shape: f32[1,64], index: 11, kind: input, shape index: {}]
  %s12 = inlined_call_operand.vmem [shape: f32[1,64], index: 12, kind: input, shape index: {}]
  %s13 = inlined_call_operand.vmem [shape: f32[128,128], index: 13, kind: input, shape index: {}]
  %s14 = inlined_call_operand.vmem [shape: f32[1,128], index: 14, kind: input, shape index: {}]
  %s15 = inlined_call_operand.vmem [shape: f32[8,128], index: 15, kind: output, shape index: {}]
  %s16 = sld [smem:[#allocation0]]
  $region70: #{_lambda_.3} parent=0
    _
  %s18 = ssub.s32 1, %s16
  %s19 = scalar_select 0, %s18, %s16
  // Predicated region
  $region2: #{_lambda_.3} parent=0 // pred_check
    _
  $region3: #{_lambda_.3} parent=0 // pred_check_branch
    %21 = sbr.rel (0) target = $region5
  $region4: #{_lambda_.3} parent=0 // pred_region
    _
  $region5: #{_lambda_.3} parent=0 // pred_fallthru
    _
  // Predicated region
  $region6: #{_lambda_.3} parent=0 // pred_check
    _
  $region7: #{_lambda_.3} parent=0 // pred_check_branch
    %23 = sbr.rel (0) target = $region9
  $region8: #{_lambda_.3} parent=0 // pred_region
    _
  $region9: #{_lambda_.3} parent=0 // pred_fallthru
    _
  // Predicated region
  $region10: #{_lambda_.3} parent=0 // pred_check
    _
  $region11: #{_lambda_.3} parent=0 // pred_check_branch
    %25 = sbr.rel (0) target = $region13
  $region12: #{_lambda_.3} parent=0 // pred_region
    _
  $region13: #{_lambda_.3} parent=0 // pred_fallthru
    _
  // Predicated region
  $region14: #{_lambda_.3} parent=0 // pred_check
    _
  $region15: #{_lambda_.3} parent=0 // pred_check_branch
    %27 = sbr.rel (0) target = $region17
  $region16: #{_lambda_.3} parent=0 // pred_region
    _
  $region17: #{_lambda_.3} parent=0 // pred_fallthru
    _
  // Predicated region
  $region18: #{_lambda_.3} parent=0 // pred_check
    _
  $region19: #{_lambda_.3} parent=0 // pred_check_branch
    %29 = sbr.rel (0) target = $region21
  $region20: #{_lambda_.3} parent=0 // pred_region
    _
  $region21: #{_lambda_.3} parent=0 // pred_fallthru
    _
  // Predicated region
  $region22: #{_lambda_.3} parent=0 // pred_check
    _
  $region23: #{_lambda_.3} parent=0 // pred_check_branch
    %31 = sbr.rel (0) target = $region25
  $region24: #{_lambda_.3} parent=0 // pred_region
    _
  $region25: #{_lambda_.3} parent=0 // pred_fallthru
    _
  // Predicated region
  $region26: #{_lambda_.3} parent=0 // pred_check
    _
  $region27: #{_lambda_.3} parent=0 // pred_check_branch
    %33 = sbr.rel (0) target = $region29
  $region28: #{_lambda_.3} parent=0 // pred_region
    _
  $region29: #{_lambda_.3} parent=0 // pred_fallthru
    _
  // Predicated region
  $region30: #{_lambda_.3} parent=0 // pred_check
    _
  $region31: #{_lambda_.3} parent=0 // pred_check_branch
    %35 = sbr.rel (0) target = $region33
  $region32: #{_lambda_.3} parent=0 // pred_region
    _
  $region33: #{_lambda_.3} parent=0 // pred_fallthru
    _
  // Predicated region
  $region34: #{_lambda_.3} parent=0 // pred_check
    _
  $region35: #{_lambda_.3} parent=0 // pred_check_branch
    %37 = sbr.rel (0) target = $region37
  $region36: #{_lambda_.3} parent=0 // pred_region
    _
  $region37: #{_lambda_.3} parent=0 // pred_fallthru
    _
  // Predicated region
  $region38: #{_lambda_.3} parent=0 // pred_check
    _
  $region39: #{_lambda_.3} parent=0 // pred_check_branch
    %39 = sbr.rel (0) target = $region41
  $region40: #{_lambda_.3} parent=0 // pred_region
    _
  $region41: #{_lambda_.3} parent=0 // pred_fallthru
    _
  // Predicated region
  $region42: #{_lambda_.3} parent=0 // pred_check
    _
  $region43: #{_lambda_.3} parent=0 // pred_check_branch
    %41 = sbr.rel (0) target = $region45
  $region44: #{_lambda_.3} parent=0 // pred_region
    _
  $region45: #{_lambda_.3} parent=0 // pred_fallthru
    _
  // Predicated region
  $region46: #{_lambda_.3} parent=0 // pred_check
    _
  $region47: #{_lambda_.3} parent=0 // pred_check_branch
    %43 = sbr.rel (0) target = $region49
  $region48: #{_lambda_.3} parent=0 // pred_region
    _
  $region49: #{_lambda_.3} parent=0 // pred_fallthru
    _
  // Predicated region
  $region50: #{_lambda_.3} parent=0 // pred_check
    _
  $region51: #{_lambda_.3} parent=0 // pred_check_branch
    %45 = sbr.rel (0) target = $region53
  $region52: #{_lambda_.3} parent=0 // pred_region
    _
  $region53: #{_lambda_.3} parent=0 // pred_fallthru
    _
  // Predicated region
  $region54: #{_lambda_.3} parent=0 // pred_check
    _
  $region55: #{_lambda_.3} parent=0 // pred_check_branch
    %47 = sbr.rel (0) target = $region57
  $region56: #{_lambda_.3} parent=0 // pred_region
    _
  $region57: #{_lambda_.3} parent=0 // pred_fallthru
    _
  // Predicated region
  $region58: #{_lambda_.3} parent=0 // pred_check
    _
  $region59: #{_lambda_.3} parent=0 // pred_check_branch
    %49 = sbr.rel (0) target = $region61
  $region60: #{_lambda_.3} parent=0 // pred_region
    _
  $region61: #{_lambda_.3} parent=0 // pred_fallthru
    _
  %v50 = vld [vmem:[%s2] sm:$0xff]
  %v51 = vld [vmem:[%s0] sm:$0xff]
  %v52 = vld [vmem:[%s1] sm:$0xff]
  %v53 = vld [vmem:[%s1 + $0x8] sm:$0xff]
  %v54 = vld [vmem:[%s1 + $0x10] sm:$0xff]
  %v55 = vld [vmem:[%s1 + $0x18] sm:$0xff]
  %v56 = vld [vmem:[%s1 + $0x20] sm:$0xff]
  %v57 = vld [vmem:[%s1 + $0x28] sm:$0xff]
  %v58 = vld [vmem:[%s1 + $0x30] sm:$0xff]
  %v59 = vld [vmem:[%s1 + $0x38] sm:$0xff]
  %v60 = vld [vmem:[%s1 + $0x40] sm:$0xff]
  %v61 = vld [vmem:[%s5] sm:$0x1f]
  %v62 = vld [vmem:[%s6] sm:$0x1]
  %v64 = vlaneseq
  %v65 = vshrl.u32 %v64, 7
  %v66 = vsub.s32 0, %v65
  %v67 = vrot.slane %v62, %v66
  %vm69 = vcmask 39936
  %v71 = vsel %vm69, %v51, 0
  %vm73 = vcmask 1044480
  %v75 = vsel %vm73, %v61, 0
  %77 = vmatprep.subr.mxu0 0.0
  %78 = vmatpush1.msra.mxu0 %v75
  %79 = vmatprep.subr.mxu0 0.0
  %80 = vmatpush1.msra.mxu0 0.0
  %81 = vmatprep.subr.mxu0 0.0
  %82 = vmatpush1.msra.mxu0 0.0
  %83 = vmatprep.subr.mxu0 0.0
  %84 = vmatpush1.msra.mxu0 0.0
  %85 = vmatprep.subr.mxu0 0.0
  %86 = vmatpush1.msra.mxu0 0.0
  %87 = vmatprep.subr.mxu0 0.0
  %88 = vmatpush1.msra.mxu0 0.0
  %89 = vmatprep.subr.mxu0 0.0
  %90 = vmatpush1.msra.mxu0 0.0
  %91 = vmatprep.subr.mxu0 0.0
  %92 = vmatpush1.msra.mxu0 0.0
  %93 = vmatprep.subr.mxu0 0.0
  %94 = vmatpush1.msra.mxu0 0.0
  %95 = vmatprep.subr.mxu0 0.0
  %96 = vmatpush1.msra.mxu0 0.0
  %97 = vmatprep.subr.mxu0 0.0
  %98 = vmatpush1.msra.mxu0 0.0
  %99 = vmatprep.subr.mxu0 0.0
  %100 = vmatpush1.msra.mxu0 0.0
  %101 = vmatprep.subr.mxu0 0.0
  %102 = vmatpush1.msra.mxu0 0.0
  %103 = vmatprep.subr.mxu0 0.0
  %104 = vmatpush1.msra.mxu0 0.0
  %105 = vmatprep.subr.mxu0 0.0
  %106 = vmatpush1.msra.mxu0 0.0
  %107 = vmatprep.subr.mxu0 0.0
  %108 = vmatpush1.msra.mxu0 0.0
  %109 = vmatprep.subr.mxu0 0.0
  %110 = vmatpush1.msra.mxu0 0.0
  %111 = vmatprep.subr.mxu0 0.0
  %112 = vmatpush1.msra.mxu0 0.0
  %113 = vmatprep.subr.mxu0 0.0
  %114 = vmatpush1.msra.mxu0 0.0
  %115 = vmatprep.subr.mxu0 0.0
  %116 = vmatpush1.msra.mxu0 0.0
  %117 = vmatprep.subr.mxu0 0.0
  %118 = vmatpush1.msra.mxu0 0.0
  %119 = vmatprep.subr.mxu0 0.0
  %120 = vmatpush1.msra.mxu0 0.0
  %121 = vmatprep.subr.mxu0 0.0
  %122 = vmatpush1.msra.mxu0 0.0
  %123 = vmatprep.subr.mxu0 0.0
  %124 = vmatpush1.msra.mxu0 0.0
  %125 = vmatprep.subr.mxu0 0.0
  %126 = vmatpush1.msra.mxu0 0.0
  %127 = vmatprep.subr.mxu0 0.0
  %128 = vmatpush1.msra.mxu0 0.0
  %129 = vmatprep.subr.mxu0 0.0
  %130 = vmatpush1.msra.mxu0 0.0
  %131 = vmatprep.subr.mxu0 0.0
  %132 = vmatpush1.msra.mxu0 0.0
  %133 = vmatprep.subr.mxu0 0.0
  %134 = vmatpush1.msra.mxu0 0.0
  %135 = vmatprep.subr.mxu0 0.0
  %136 = vmatpush1.msra.mxu0 0.0
  %137 = vmatprep.subr.mxu0 0.0
  %138 = vmatpush1.msra.mxu0 0.0
  %139 = vmatprep.subr.mxu0 0.0
  %140 = vmatpush1.msra.mxu0 0.0
  %141 = vmatprep.mubr.f32.mxu0 0.0
  %142 = vmatmul.mubr.f32.gmra.mrb[0].mxu0 %v71
  %v143 = vpop.f32.mrb[0].mxu0
  %v144 = vadd.f32 %v67, %v143
  %v145 = vpop.f32.mrb[0].mxu0
  %146 = vdwg.mxu0
  %v147 = vxor.u32 %v144, 2147483648
  %v148 = vmul.f32 %v147, 1.442695
  %v149 = vpow.pop %v148
  %v150 = vadd.f32 %v149, 1.0
  %v151 = vrcp.pop %v150
  %v152 = vmul.f32 1.0, %v151
  %154 = vrot.lane.b32.xlu0 %v152, 112
  %v155 = vpop.permute.xlu0 %154
  %v157 = vmul.f32 %v144, %v155
  %158 = vrot.lane.b32.xlu0 %v51, 127
  %v159 = vpop.permute.xlu0 %158
  %v160 = vsel %vm69, %v159, 0
  %162 = vmatprep.subr.mxu0 0.0
  %163 = vmatpush1.msra.mxu0 %v75
  %164 = vmatprep.subr.mxu0 0.0
  %165 = vmatpush1.msra.mxu0 0.0
  %166 = vmatprep.subr.mxu0 0.0
  %167 = vmatpush1.msra.mxu0 0.0
  %168 = vmatprep.subr.mxu0 0.0
  %169 = vmatpush1.msra.mxu0 0.0
  %170 = vmatprep.subr.mxu0 0.0
  %171 = vmatpush1.msra.mxu0 0.0
  %172 = vmatprep.subr.mxu0 0.0
  %173 = vmatpush1.msra.mxu0 0.0
  %174 = vmatprep.subr.mxu0 0.0
  %175 = vmatpush1.msra.mxu0 0.0
  %176 = vmatprep.subr.mxu0 0.0
  %177 = vmatpush1.msra.mxu0 0.0
  %178 = vmatprep.subr.mxu0 0.0
  %179 = vmatpush1.msra.mxu0 0.0
  %180 = vmatprep.subr.mxu0 0.0
  %181 = vmatpush1.msra.mxu0 0.0
  %182 = vmatprep.subr.mxu0 0.0
  %183 = vmatpush1.msra.mxu0 0.0
  %184 = vmatprep.subr.mxu0 0.0
  %185 = vmatpush1.msra.mxu0 0.0
  %186 = vmatprep.subr.mxu0 0.0
  %187 = vmatpush1.msra.mxu0 0.0
  %188 = vmatprep.subr.mxu0 0.0
  %189 = vmatpush1.msra.mxu0 0.0
  %190 = vmatprep.subr.mxu0 0.0
  %191 = vmatpush1.msra.mxu0 0.0
  %192 = vmatprep.subr.mxu0 0.0
  %193 = vmatpush1.msra.mxu0 0.0
  %194 = vmatprep.subr.mxu0 0.0
  %195 = vmatpush1.msra.mxu0 0.0
  %196 = vmatprep.subr.mxu0 0.0
  %197 = vmatpush1.msra.mxu0 0.0
  %198 = vmatprep.subr.mxu0 0.0
  %199 = vmatpush1.msra.mxu0 0.0
  %200 = vmatprep.subr.mxu0 0.0
  %201 = vmatpush1.msra.mxu0 0.0
  %202 = vmatprep.subr.mxu0 0.0
  %203 = vmatpush1.msra.mxu0 0.0
  %204 = vmatprep.subr.mxu0 0.0
  %205 = vmatpush1.msra.mxu0 0.0
  %206 = vmatprep.subr.mxu0 0.0
  %207 = vmatpush1.msra.mxu0 0.0
  %208 = vmatprep.subr.mxu0 0.0
  %209 = vmatpush1.msra.mxu0 0.0
  %210 = vmatprep.subr.mxu0 0.0
  %211 = vmatpush1.msra.mxu0 0.0
  %212 = vmatprep.subr.mxu0 0.0
  %213 = vmatpush1.msra.mxu0 0.0
  %214 = vmatprep.subr.mxu0 0.0
  %215 = vmatpush1.msra.mxu0 0.0
  %216 = vmatprep.subr.mxu0 0.0
  %217 = vmatpush1.msra.mxu0 0.0
  %218 = vmatprep.subr.mxu0 0.0
  %219 = vmatpush1.msra.mxu0 0.0
  %220 = vmatprep.subr.mxu0 0.0
  %221 = vmatpush1.msra.mxu0 0.0
  %222 = vmatprep.subr.mxu0 0.0
  %223 = vmatpush1.msra.mxu0 0.0
  %224 = vmatprep.subr.mxu0 0.0
  %225 = vmatpush1.msra.mxu0 0.0
  %226 = vmatprep.mubr.f32.mxu0 0.0
  %227 = vmatmul.mubr.f32.gmra.mrb[0].mxu0 %v160
  %v228 = vpop.f32.mrb[0].mxu0
  %v229 = vadd.f32 %v67, %v228
  %v230 = vpop.f32.mrb[0].mxu0
  %231 = vdwg.mxu0
  %v232 = vxor.u32 %v229, 2147483648
  %v233 = vmul.f32 %v232, 1.442695
  %v234 = vpow.pop %v233
  %v235 = vadd.f32 %v234, 1.0
  %v236 = vrcp.pop %v235
  %v237 = vmul.f32 1.0, %v236
  %239 = vrot.lane.b32.xlu0 %v237, 112
  %v240 = vpop.permute.xlu0 %239
  %v242 = vmul.f32 %v229, %v240
  %243 = vrot.lane.b32.xlu0 %v51, 126
  %v244 = vpop.permute.xlu0 %243
  %v245 = vsel %vm69, %v244, 0
  %247 = vmatprep.subr.mxu0 0.0
  %248 = vmatpush1.msra.mxu0 %v75
  %249 = vmatprep.subr.mxu0 0.0
  %250 = vmatpush1.msra.mxu0 0.0
  %251 = vmatprep.subr.mxu0 0.0
  %252 = vmatpush1.msra.mxu0 0.0
  %253 = vmatprep.subr.mxu0 0.0
  %254 = vmatpush1.msra.mxu0 0.0
  %255 = vmatprep.subr.mxu0 0.0
  %256 = vmatpush1.msra.mxu0 0.0
  %257 = vmatprep.subr.mxu0 0.0
  %258 = vmatpush1.msra.mxu0 0.0
  %259 = vmatprep.subr.mxu0 0.0
  %260 = vmatpush1.msra.mxu0 0.0
  %261 = vmatprep.subr.mxu0 0.0
  %262 = vmatpush1.msra.mxu0 0.0
  %263 = vmatprep.subr.mxu0 0.0
  %264 = vmatpush1.msra.mxu0 0.0
  %265 = vmatprep.subr.mxu0 0.0
  %266 = vmatpush1.msra.mxu0 0.0
  %267 = vmatprep.subr.mxu0 0.0
  %268 = vmatpush1.msra.mxu0 0.0
  %269 = vmatprep.subr.mxu0 0.0
  %270 = vmatpush1.msra.mxu0 0.0
  %271 = vmatprep.subr.mxu0 0.0
  %272 = vmatpush1.msra.mxu0 0.0
  %273 = vmatprep.subr.mxu0 0.0
  %274 = vmatpush1.msra.mxu0 0.0
  %275 = vmatprep.subr.mxu0 0.0
  %276 = vmatpush1.msra.mxu0 0.0
  %277 = vmatprep.subr.mxu0 0.0
  %278 = vmatpush1.msra.mxu0 0.0
  %279 = vmatprep.subr.mxu0 0.0
  %280 = vmatpush1.msra.mxu0 0.0
  %281 = vmatprep.subr.mxu0 0.0
  %282 = vmatpush1.msra.mxu0 0.0
  %283 = vmatprep.subr.mxu0 0.0
  %284 = vmatpush1.msra.mxu0 0.0
  %285 = vmatprep.subr.mxu0 0.0
  %286 = vmatpush1.msra.mxu0 0.0
  %287 = vmatprep.subr.mxu0 0.0
  %288 = vmatpush1.msra.mxu0 0.0
  %289 = vmatprep.subr.mxu0 0.0
  %290 = vmatpush1.msra.mxu0 0.0
  %291 = vmatprep.subr.mxu0 0.0
  %292 = vmatpush1.msra.mxu0 0.0
  %293 = vmatprep.subr.mxu0 0.0
  %294 = vmatpush1.msra.mxu0 0.0
  %295 = vmatprep.subr.mxu0 0.0
  %296 = vmatpush1.msra.mxu0 0.0
  %297 = vmatprep.subr.mxu0 0.0
  %298 = vmatpush1.msra.mxu0 0.0
  %299 = vmatprep.subr.mxu0 0.0
  %300 = vmatpush1.msra.mxu0 0.0
  %301 = vmatprep.subr.mxu0 0.0
  %302 = vmatpush1.msra.mxu0 0.0
  %303 = vmatprep.subr.mxu0 0.0
  %304 = vmatpush1.msra.mxu0 0.0
  %305 = vmatprep.subr.mxu0 0.0
  %306 = vmatpush1.msra.mxu0 0.0
  %307 = vmatprep.subr.mxu0 0.0
  %308 = vmatpush1.msra.mxu0 0.0
  %309 = vmatprep.subr.mxu0 0.0
  %310 = vmatpush1.msra.mxu0 0.0
  %311 = vmatprep.mubr.f32.mxu0 0.0
  %312 = vmatmul.mubr.f32.gmra.mrb[0].mxu0 %v245
  %v313 = vpop.f32.mrb[0].mxu0
  %v314 = vadd.f32 %v67, %v313
  %v315 = vpop.f32.mrb[0].mxu0
  %316 = vdwg.mxu0
  %v317 = vxor.u32 %v314, 2147483648
  %v318 = vmul.f32 %v317, 1.442695
  %v319 = vpow.pop %v318
  %v320 = vadd.f32 %v319, 1.0
  %v321 = vrcp.pop %v320
  %v322 = vmul.f32 1.0, %v321
  %324 = vrot.lane.b32.xlu0 %v322, 112
  %v325 = vpop.permute.xlu0 %324
  %v327 = vmul.f32 %v314, %v325
  %329 = vrot.lane.b32.xlu0 %v242, 16
  %v330 = vpop.permute.xlu0 %329
  %333 = vrot.lane.b32.xlu0 %v327, 32
  %v334 = vpop.permute.xlu0 %333
  %vm336 = vcmask 130048
  %v337 = vsel %vm336, %v157, %v330
  %vm338 = vcmask 261120
  %v339 = vsel %vm338, %v337, %v334
  %v340 = vld [vmem:[%s7] sm:$0xff]
  %v341 = vld [vmem:[%s7 + $0x8] sm:$0xff]
  %v342 = vld [vmem:[%s7 + $0x10] sm:$0xff]
  %v343 = vld [vmem:[%s7 + $0x18] sm:$0xff]
  %v344 = vld [vmem:[%s7 + $0x20] sm:$0xff]
  %v345 = vld [vmem:[%s7 + $0x28] sm:$0xff]
  %v346 = vld [vmem:[%s8] sm:$0x1]
  %v348 = vlaneseq
  %v349 = vshrl.u32 %v348, 7
  %v350 = vsub.s32 0, %v349
  %v351 = vrot.slane %v346, %v350
  %vm353 = vcmask 392192
  %v355 = vsel %vm353, %v339, 0
  %357 = vmatprep.subr.mxu0 0.0
  %358 = vmatpush1.msra.mxu0 %v340
  %359 = vmatprep.subr.mxu0 0.0
  %360 = vmatpush1.msra.mxu0 %v341
  %361 = vmatprep.subr.mxu0 0.0
  %362 = vmatpush1.msra.mxu0 %v342
  %363 = vmatprep.subr.mxu0 0.0
  %364 = vmatpush1.msra.mxu0 %v343
  %365 = vmatprep.subr.mxu0 0.0
  %366 = vmatpush1.msra.mxu0 %v344
  %367 = vmatprep.subr.mxu0 0.0
  %368 = vmatpush1.msra.mxu0 %v345
  %369 = vmatprep.subr.mxu0 0.0
  %370 = vmatpush1.msra.mxu0 0.0
  %371 = vmatprep.subr.mxu0 0.0
  %372 = vmatpush1.msra.mxu0 0.0
  %373 = vmatprep.subr.mxu0 0.0
  %374 = vmatpush1.msra.mxu0 0.0
  %375 = vmatprep.subr.mxu0 0.0
  %376 = vmatpush1.msra.mxu0 0.0
  %377 = vmatprep.subr.mxu0 0.0
  %378 = vmatpush1.msra.mxu0 0.0
  %379 = vmatprep.subr.mxu0 0.0
  %380 = vmatpush1.msra.mxu0 0.0
  %381 = vmatprep.subr.mxu0 0.0
  %382 = vmatpush1.msra.mxu0 0.0
  %383 = vmatprep.subr.mxu0 0.0
  %384 = vmatpush1.msra.mxu0 0.0
  %385 = vmatprep.subr.mxu0 0.0
  %386 = vmatpush1.msra.mxu0 0.0
  %387 = vmatprep.subr.mxu0 0.0
  %388 = vmatpush1.msra.mxu0 0.0
  %389 = vmatprep.subr.mxu0 0.0
  %390 = vmatpush1.msra.mxu0 0.0
  %391 = vmatprep.subr.mxu0 0.0
  %392 = vmatpush1.msra.mxu0 0.0
  %393 = vmatprep.subr.mxu0 0.0
  %394 = vmatpush1.msra.mxu0 0.0
  %395 = vmatprep.subr.mxu0 0.0
  %396 = vmatpush1.msra.mxu0 0.0
  %397 = vmatprep.subr.mxu0 0.0
  %398 = vmatpush1.msra.mxu0 0.0
  %399 = vmatprep.subr.mxu0 0.0
  %400 = vmatpush1.msra.mxu0 0.0
  %401 = vmatprep.subr.mxu0 0.0
  %402 = vmatpush1.msra.mxu0 0.0
  %403 = vmatprep.subr.mxu0 0.0
  %404 = vmatpush1.msra.mxu0 0.0
  %405 = vmatprep.subr.mxu0 0.0
  %406 = vmatpush1.msra.mxu0 0.0
  %407 = vmatprep.subr.mxu0 0.0
  %408 = vmatpush1.msra.mxu0 0.0
  %409 = vmatprep.subr.mxu0 0.0
  %410 = vmatpush1.msra.mxu0 0.0
  %411 = vmatprep.subr.mxu0 0.0
  %412 = vmatpush1.msra.mxu0 0.0
  %413 = vmatprep.subr.mxu0 0.0
  %414 = vmatpush1.msra.mxu0 0.0
  %415 = vmatprep.subr.mxu0 0.0
  %416 = vmatpush1.msra.mxu0 0.0
  %417 = vmatprep.subr.mxu0 0.0
  %418 = vmatpush1.msra.mxu0 0.0
  %419 = vmatprep.subr.mxu0 0.0
  %420 = vmatpush1.msra.mxu0 0.0
  %421 = vmatprep.mubr.f32.mxu0 0.0
  %422 = vmatmul.mubr.f32.gmra.mrb[0].mxu0 %v355
  %v423 = vpop.f32.mrb[0].mxu0
  %v424 = vadd.f32 %v351, %v423
  %v425 = vpop.f32.mrb[0].mxu0
  %426 = vdwg.mxu0
  %v427 = vxor.u32 %v424, 2147483648
  %v428 = vmul.f32 %v427, 1.442695
  %v429 = vpow.pop %v428
  %v430 = vadd.f32 %v429, 1.0
  %v431 = vrcp.pop %v430
  %v432 = vmul.f32 1.0, %v431
  %434 = vrot.lane.b32.xlu0 %v432, 96
  %v435 = vpop.permute.xlu0 %434
  %v437 = vmul.f32 %v424, %v435
  %v438 = vld [vmem:[%s9] sm:$0xff]
  %v439 = vld [vmem:[%s9 + $0x8] sm:$0xff]
  %v440 = vld [vmem:[%s9 + $0x10] sm:$0xff]
  %v441 = vld [vmem:[%s9 + $0x18] sm:$0xff]
  %v443 = vsel %vm338, %v437, 0
  %445 = vmatprep.subr.mxu0 0.0
  %446 = vmatpush1.msra.mxu0 %v438
  %447 = vmatprep.subr.mxu0 0.0
  %448 = vmatpush1.msra.mxu0 %v439
  %449 = vmatprep.subr.mxu0 0.0
  %450 = vmatpush1.msra.mxu0 %v440
  %451 = vmatprep.subr.mxu0 0.0
  %452 = vmatpush1.msra.mxu0 %v441
  %453 = vmatprep.subr.mxu0 0.0
  %454 = vmatpush1.msra.mxu0 0.0
  %455 = vmatprep.subr.mxu0 0.0
  %456 = vmatpush1.msra.mxu0 0.0
  %457 = vmatprep.subr.mxu0 0.0
  %458 = vmatpush1.msra.mxu0 0.0
  %459 = vmatprep.subr.mxu0 0.0
  %460 = vmatpush1.msra.mxu0 0.0
  %461 = vmatprep.subr.mxu0 0.0
  %462 = vmatpush1.msra.mxu0 0.0
  %463 = vmatprep.subr.mxu0 0.0
  %464 = vmatpush1.msra.mxu0 0.0
  %465 = vmatprep.subr.mxu0 0.0
  %466 = vmatpush1.msra.mxu0 0.0
  %467 = vmatprep.subr.mxu0 0.0
  %468 = vmatpush1.msra.mxu0 0.0
  %469 = vmatprep.subr.mxu0 0.0
  %470 = vmatpush1.msra.mxu0 0.0
  %471 = vmatprep.subr.mxu0 0.0
  %472 = vmatpush1.msra.mxu0 0.0
  %473 = vmatprep.subr.mxu0 0.0
  %474 = vmatpush1.msra.mxu0 0.0
  %475 = vmatprep.subr.mxu0 0.0
  %476 = vmatpush1.msra.mxu0 0.0
  %477 = vmatprep.subr.mxu0 0.0
  %478 = vmatpush1.msra.mxu0 0.0
  %479 = vmatprep.subr.mxu0 0.0
  %480 = vmatpush1.msra.mxu0 0.0
  %481 = vmatprep.subr.mxu0 0.0
  %482 = vmatpush1.msra.mxu0 0.0
  %483 = vmatprep.subr.mxu0 0.0
  %484 = vmatpush1.msra.mxu0 0.0
  %485 = vmatprep.subr.mxu0 0.0
  %486 = vmatpush1.msra.mxu0 0.0
  %487 = vmatprep.subr.mxu0 0.0
  %488 = vmatpush1.msra.mxu0 0.0
  %489 = vmatprep.subr.mxu0 0.0
  %490 = vmatpush1.msra.mxu0 0.0
  %491 = vmatprep.subr.mxu0 0.0
  %492 = vmatpush1.msra.mxu0 0.0
  %493 = vmatprep.subr.mxu0 0.0
  %494 = vmatpush1.msra.mxu0 0.0
  %495 = vmatprep.subr.mxu0 0.0
  %496 = vmatpush1.msra.mxu0 0.0
  %497 = vmatprep.subr.mxu0 0.0
  %498 = vmatpush1.msra.mxu0 0.0
  %499 = vmatprep.subr.mxu0 0.0
  %500 = vmatpush1.msra.mxu0 0.0
  %501 = vmatprep.subr.mxu0 0.0
  %502 = vmatpush1.msra.mxu0 0.0
  %503 = vmatprep.subr.mxu0 0.0
  %504 = vmatpush1.msra.mxu0 0.0
  %505 = vmatprep.subr.mxu0 0.0
  %506 = vmatpush1.msra.mxu0 0.0
  %507 = vmatprep.subr.mxu0 0.0
  %508 = vmatpush1.msra.mxu0 0.0
  %509 = vmatprep.mubr.f32.mxu0 0.0
  %510 = vmatmul.mubr.f32.gmra.mrb[0].mxu0 %v443
  %v511 = vpop.f32.mrb[0].mxu0
  %v512 = vadd.f32 0.0, %v511
  %v513 = vpop.f32.mrb[0].mxu0
  %514 = vdwg.mxu0
  %516 = vrot.lane.b32.xlu0 %v512, 64
  %v517 = vpop.permute.xlu0 %516
  %vm519 = vcmask 64512
  %v521 = vsel %vm519, %v50, 0
  %523 = vmatprep.subr.mxu0 0.0
  %524 = vmatpush1.msra.mxu0 %v512
  %525 = vmatprep.subr.mxu0 0.0
  %526 = vmatpush1.msra.mxu0 0.0
  %527 = vmatprep.subr.mxu0 0.0
  %528 = vmatpush1.msra.mxu0 0.0
  %529 = vmatprep.subr.mxu0 0.0
  %530 = vmatpush1.msra.mxu0 0.0
  %531 = vmatprep.subr.mxu0 0.0
  %532 = vmatpush1.msra.mxu0 0.0
  %533 = vmatprep.subr.mxu0 0.0
  %534 = vmatpush1.msra.mxu0 0.0
  %535 = vmatprep.subr.mxu0 0.0
  %536 = vmatpush1.msra.mxu0 0.0
  %537 = vmatprep.subr.mxu0 0.0
  %538 = vmatpush1.msra.mxu0 0.0
  %539 = vmatprep.subr.mxu0 0.0
  %540 = vmatpush1.msra.mxu0 0.0
  %541 = vmatprep.subr.mxu0 0.0
  %542 = vmatpush1.msra.mxu0 0.0
  %543 = vmatprep.subr.mxu0 0.0
  %544 = vmatpush1.msra.mxu0 0.0
  %545 = vmatprep.subr.mxu0 0.0
  %546 = vmatpush1.msra.mxu0 0.0
  %547 = vmatprep.subr.mxu0 0.0
  %548 = vmatpush1.msra.mxu0 0.0
  %549 = vmatprep.subr.mxu0 0.0
  %550 = vmatpush1.msra.mxu0 0.0
  %551 = vmatprep.subr.mxu0 0.0
  %552 = vmatpush1.msra.mxu0 0.0
  %553 = vmatprep.subr.mxu0 0.0
  %554 = vmatpush1.msra.mxu0 0.0
  %555 = vmatprep.subr.mxu0 0.0
  %556 = vmatpush1.msra.mxu0 0.0
  %557 = vmatprep.subr.mxu0 0.0
  %558 = vmatpush1.msra.mxu0 0.0
  %559 = vmatprep.subr.mxu0 0.0
  %560 = vmatpush1.msra.mxu0 0.0
  %561 = vmatprep.subr.mxu0 0.0
  %562 = vmatpush1.msra.mxu0 0.0
  %563 = vmatprep.subr.mxu0 0.0
  %564 = vmatpush1.msra.mxu0 0.0
  %565 = vmatprep.subr.mxu0 0.0
  %566 = vmatpush1.msra.mxu0 0.0
  %567 = vmatprep.subr.mxu0 0.0
  %568 = vmatpush1.msra.mxu0 0.0
  %569 = vmatprep.subr.mxu0 0.0
  %570 = vmatpush1.msra.mxu0 0.0
  %571 = vmatprep.subr.mxu0 0.0
  %572 = vmatpush1.msra.mxu0 0.0
  %573 = vmatprep.subr.mxu0 0.0
  %574 = vmatpush1.msra.mxu0 0.0
  %575 = vmatprep.subr.mxu0 0.0
  %576 = vmatpush1.msra.mxu0 0.0
  %577 = vmatprep.subr.mxu0 0.0
  %578 = vmatpush1.msra.mxu0 0.0
  %579 = vmatprep.subr.mxu0 0.0
  %580 = vmatpush1.msra.mxu0 0.0
  %581 = vmatprep.subr.mxu0 0.0
  %582 = vmatpush1.msra.mxu0 0.0
  %583 = vmatprep.subr.mxu0 0.0
  %584 = vmatpush1.msra.mxu0 0.0
  %585 = vmatprep.subr.mxu0 0.0
  %586 = vmatpush1.msra.mxu0 0.0
  %587 = vmatprep.mubr.f32.mxu0 0.0
  %588 = vmatmul.mubr.f32.gmra.mrb[0].mxu0 %v521
  %v589 = vpop.f32.mrb[0].mxu0
  %v590 = vadd.f32 %v517, %v589
  %v591 = vpop.f32.mrb[0].mxu0
  %592 = vdwg.mxu0
  %v593 = vld [vmem:[%s10] sm:$0x1]
  %v595 = vlaneseq
  %v596 = vshrl.u32 %v595, 7
  %v597 = vsub.s32 0, %v596
  %v598 = vrot.slane %v593, %v597
  %v600 = vadd.f32 %v590, %v598
  %v601 = vmul.f32 %v600, %v600
  %v602 = vmul.f32 %v600, %v601
  %v603 = vmul.f32 %v602, 0.044715
  %v604 = vadd.f32 %v600, %v603
  %v605 = vmul.f32 %v604, 0.7978846
  %v606 = vtanh.pop %v605
  %v607 = vadd.f32 %v606, 1.0
  %v608 = vmul.f32 %v607, 0.5
  %v609 = vmul.f32 %v600, %v608
  %vm610 = vcmask 523264
  %v611 = vsel %vm610, %v609, 0.0
  %612 = vadd.xlane.f32.xlu0 %v611
  %v613 = vpop.xlane.xlu0 %612
  %v614 = vrcp.pop 64.0
  %v615 = vmul.f32 %v613, %v614
  %v616 = vsub.f32 %v609, %v615
  %v617 = vmul.f32 %v616, %v616
  %v618 = vsel %vm610, %v617, 0.0
  %619 = vadd.xlane.f32.xlu0 %v618
  %v620 = vpop.xlane.xlu0 %619
  %v621 = vmul.f32 %v620, %v614
  %v622 = vadd.f32 %v621, 1e-05
  %v623 = vrsqrt.pop %v622
  %v624 = vmul.f32 %v616, %v623
  %v625 = vld [vmem:[%s11] sm:$0x1]
  %v627 = vlaneseq
  %v628 = vshrl.u32 %v627, 7
  %v629 = vsub.s32 0, %v628
  %v630 = vrot.slane %v625, %v629
  %v632 = vmul.f32 %v624, %v630
  %v633 = vld [vmem:[%s12] sm:$0x1]
  %v635 = vlaneseq
  %v636 = vshrl.u32 %v635, 7
  %v637 = vsub.s32 0, %v636
  %v638 = vrot.slane %v633, %v637
  %v640 = vadd.f32 %v632, %v638
  %v641 = vld [vmem:[%s3] sm:$0xff]
  %v642 = vld [vmem:[%s3 + $0x8] sm:$0xff]
  %v643 = vld [vmem:[%s3 + $0x10] sm:$0xff]
  %v644 = vld [vmem:[%s3 + $0x18] sm:$0xff]
  %v645 = vld [vmem:[%s3 + $0x20] sm:$0xff]
  %v646 = vld [vmem:[%s3 + $0x28] sm:$0xff]
  %v647 = vld [vmem:[%s3 + $0x30] sm:$0xff]
  %v648 = vld [vmem:[%s3 + $0x38] sm:$0xff]
  %v650 = vsel %vm610, %v640, 0
  %652 = vmatprep.subr.mxu0 0.0
  %653 = vmatpush1.msra.mxu0 %v641
  %654 = vmatprep.subr.mxu0 0.0
  %655 = vmatpush1.msra.mxu0 %v642
  %656 = vmatprep.subr.mxu0 0.0
  %657 = vmatpush1.msra.mxu0 %v643
  %658 = vmatprep.subr.mxu0 0.0
  %659 = vmatpush1.msra.mxu0 %v644
  %660 = vmatprep.subr.mxu0 0.0
  %661 = vmatpush1.msra.mxu0 %v645
  %662 = vmatprep.subr.mxu0 0.0
  %663 = vmatpush1.msra.mxu0 %v646
  %664 = vmatprep.subr.mxu0 0.0
  %665 = vmatpush1.msra.mxu0 %v647
  %666 = vmatprep.subr.mxu0 0.0
  %667 = vmatpush1.msra.mxu0 %v648
  %668 = vmatprep.subr.mxu0 0.0
  %669 = vmatpush1.msra.mxu0 0.0
  %670 = vmatprep.subr.mxu0 0.0
  %671 = vmatpush1.msra.mxu0 0.0
  %672 = vmatprep.subr.mxu0 0.0
  %673 = vmatpush1.msra.mxu0 0.0
  %674 = vmatprep.subr.mxu0 0.0
  %675 = vmatpush1.msra.mxu0 0.0
  %676 = vmatprep.subr.mxu0 0.0
  %677 = vmatpush1.msra.mxu0 0.0
  %678 = vmatprep.subr.mxu0 0.0
  %679 = vmatpush1.msra.mxu0 0.0
  %680 = vmatprep.subr.mxu0 0.0
  %681 = vmatpush1.msra.mxu0 0.0
  %682 = vmatprep.subr.mxu0 0.0
  %683 = vmatpush1.msra.mxu0 0.0
  %684 = vmatprep.subr.mxu0 0.0
  %685 = vmatpush1.msra.mxu0 0.0
  %686 = vmatprep.subr.mxu0 0.0
  %687 = vmatpush1.msra.mxu0 0.0
  %688 = vmatprep.subr.mxu0 0.0
  %689 = vmatpush1.msra.mxu0 0.0
  %690 = vmatprep.subr.mxu0 0.0
  %691 = vmatpush1.msra.mxu0 0.0
  %692 = vmatprep.subr.mxu0 0.0
  %693 = vmatpush1.msra.mxu0 0.0
  %694 = vmatprep.subr.mxu0 0.0
  %695 = vmatpush1.msra.mxu0 0.0
  %696 = vmatprep.subr.mxu0 0.0
  %697 = vmatpush1.msra.mxu0 0.0
  %698 = vmatprep.subr.mxu0 0.0
  %699 = vmatpush1.msra.mxu0 0.0
  %700 = vmatprep.subr.mxu0 0.0
  %701 = vmatpush1.msra.mxu0 0.0
  %702 = vmatprep.subr.mxu0 0.0
  %703 = vmatpush1.msra.mxu0 0.0
  %704 = vmatprep.subr.mxu0 0.0
  %705 = vmatpush1.msra.mxu0 0.0
  %706 = vmatprep.subr.mxu0 0.0
  %707 = vmatpush1.msra.mxu0 0.0
  %708 = vmatprep.subr.mxu0 0.0
  %709 = vmatpush1.msra.mxu0 0.0
  %710 = vmatprep.subr.mxu0 0.0
  %711 = vmatpush1.msra.mxu0 0.0
  %712 = vmatprep.subr.mxu0 0.0
  %713 = vmatpush1.msra.mxu0 0.0
  %714 = vmatprep.subr.mxu0 0.0
  %715 = vmatpush1.msra.mxu0 0.0
  %716 = vmatprep.mubr.f32.mxu0 0.0
  %717 = vmatmul.mubr.f32.gmra.mrb[0].mxu0 %v650
  %v718 = vpop.f32.mrb[0].mxu0
  %v719 = vadd.f32 0.0, %v718
  %v720 = vpop.f32.mrb[0].mxu0
  %721 = vdwg.mxu0
  %v722 = vld [vmem:[%s4] sm:$0x1]
  %v724 = vlaneseq
  %v725 = vshrl.u32 %v724, 7
  %v726 = vsub.s32 0, %v725
  %v727 = vrot.slane %v722, %v726
  %v729 = vmul.f32 %v640, %v727
  %v730 = vsel %vm610, %v729, 0.0
  %731 = vadd.xlane.f32.xlu0 %v730
  %v732 = vpop.xlane.xlu0 %731
  %v733 = vmul.f32 %v719, %v52
  %v734 = vsel %vm610, %v733, 0.0
  %735 = vadd.xlane.f32.xlu0 %v734
  %v736 = vpop.xlane.xlu0 %735
  %v737 = vmul.f32 %v719, %v53
  %v738 = vsel %vm610, %v737, 0.0
  %739 = vadd.xlane.f32.xlu0 %v738
  %v740 = vpop.xlane.xlu0 %739
  %v741 = vmul.f32 %v719, %v54
  %v742 = vsel %vm610, %v741, 0.0
  %743 = vadd.xlane.f32.xlu0 %v742
  %v744 = vpop.xlane.xlu0 %743
  %v745 = vmul.f32 %v719, %v55
  %v746 = vsel %vm610, %v745, 0.0
  %747 = vadd.xlane.f32.xlu0 %v746
  %v748 = vpop.xlane.xlu0 %747
  %v749 = vmul.f32 %v719, %v56
  %v750 = vsel %vm610, %v749, 0.0
  %751 = vadd.xlane.f32.xlu0 %v750
  %v752 = vpop.xlane.xlu0 %751
  %v753 = vmul.f32 %v719, %v57
  %v754 = vsel %vm610, %v753, 0.0
  %755 = vadd.xlane.f32.xlu0 %v754
  %v756 = vpop.xlane.xlu0 %755
  %v757 = vmul.f32 %v719, %v58
  %v758 = vsel %vm610, %v757, 0.0
  %759 = vadd.xlane.f32.xlu0 %v758
  %v760 = vpop.xlane.xlu0 %759
  %v761 = vmul.f32 %v719, %v59
  %v762 = vsel %vm610, %v761, 0.0
  %763 = vadd.xlane.f32.xlu0 %v762
  %v764 = vpop.xlane.xlu0 %763
  %v765 = vmul.f32 %v719, %v60
  %v766 = vsel %vm610, %v765, 0.0
  %767 = vadd.xlane.f32.xlu0 %v766
  %v768 = vpop.xlane.xlu0 %767
  %vm769 = vcmask 7168
  %v770 = vsel %vm769, %v736, %v740
  %vm771 = vcmask 15360
  %v772 = vsel %vm771, %v770, %v744
  %vm773 = vcmask 23552
  %v774 = vsel %vm773, %v772, %v748
  %vm775 = vcmask 31744
  %v776 = vsel %vm775, %v774, %v752
  %v777 = vsel %vm69, %v776, %v756
  %vm778 = vcmask 48128
  %v779 = vsel %vm778, %v777, %v760
  %vm780 = vcmask 56320
  %v781 = vsel %vm780, %v779, %v764
  %v782 = vsel %vm519, %v781, %v768
  %v783 = vadd.f32 %v782, %v732
  %vm784 = vcmask 72704
  %v785 = vsel %vm784, %v783, -inf
  %786 = vmax.xlane.f32.xlu0 %v785
  %v787 = vpop.xlane.xlu0 %786
  %v788 = vsub.f32 %v783, %v787
  %v789 = vmul.f32 %v788, 1.442695
  %v790 = vpow.pop %v789
  %v791 = vsel %vm784, %v790, 0.0
  %792 = vadd.xlane.f32.xlu0 %v791
  %v793 = vpop.xlane.xlu0 %792
  %v794 = vrcp.pop %v793
  %v795 = vmul.f32 %v790, %v794
  %797 = vset.pattern.permute.xlu0 0
  %798 = vperm.xlu0 %797, %v795
  %v799 = vpop.permute.xlu0 %798
  %v801 = vmul.f32 %v799, %v52
  %v802 = vadd.f32 %v801, 0.0
  %803 = vset.pattern.permute.xlu0 1
  %804 = vperm.xlu0 %803, %v795
  %v805 = vpop.permute.xlu0 %804
  %v807 = vmul.f32 %v805, %v53
  %v808 = vadd.f32 %v802, %v807
  %809 = vset.pattern.permute.xlu0 2
  %810 = vperm.xlu0 %809, %v795
  %v811 = vpop.permute.xlu0 %810
  %v813 = vmul.f32 %v811, %v54
  %v814 = vadd.f32 %v808, %v813
  %815 = vset.pattern.permute.xlu0 3
  %816 = vperm.xlu0 %815, %v795
  %v817 = vpop.permute.xlu0 %816
  %v819 = vmul.f32 %v817, %v55
  %v820 = vadd.f32 %v814, %v819
  %821 = vset.pattern.permute.xlu0 4
  %822 = vperm.xlu0 %821, %v795
  %v823 = vpop.permute.xlu0 %822
  %v825 = vmul.f32 %v823, %v56
  %v826 = vadd.f32 %v820, %v825
  %827 = vset.pattern.permute.xlu0 5
  %828 = vperm.xlu0 %827, %v795
  %v829 = vpop.permute.xlu0 %828
  %v831 = vmul.f32 %v829, %v57
  %v832 = vadd.f32 %v826, %v831
  %833 = vset.pattern.permute.xlu0 6
  %834 = vperm.xlu0 %833, %v795
  %v835 = vpop.permute.xlu0 %834
  %v837 = vmul.f32 %v835, %v58
  %v838 = vadd.f32 %v832, %v837
  %839 = vset.pattern.permute.xlu0 7
  %840 = vperm.xlu0 %839, %v795
  %v841 = vpop.permute.xlu0 %840
  %v843 = vmul.f32 %v841, %v59
  %v844 = vadd.f32 %v838, %v843
  %845 = vset.pattern.permute.xlu0 8
  %846 = vperm.xlu0 %845, %v795
  %v847 = vpop.permute.xlu0 %846
  %v849 = vmul.f32 %v847, %v60
  %v850 = vadd.f32 %v844, %v849
  %851 = vrot.lane.b32.xlu0 %v640, 64
  %v852 = vpop.permute.xlu0 %851
  %v854 = vsel %vm610, %v850, %v852
  %855 = vadd.xlane.f32.xlu0 %v854
  %v856 = vpop.xlane.xlu0 %855
  %v857 = vrcp.pop 128.0
  %v858 = vmul.f32 %v856, %v857
  %v859 = vsub.f32 %v854, %v858
  %v860 = vmul.f32 %v859, %v859
  %861 = vadd.xlane.f32.xlu0 %v860
  %v862 = vpop.xlane.xlu0 %861
  %v863 = vmul.f32 %v862, %v857
  %v864 = vadd.f32 %v863, 1e-05
  %v865 = vrsqrt.pop %v864
  %v866 = vmul.f32 %v859, %v865
  %v867 = vld [vmem:[%s13] sm:$0xff]
  %v868 = vld [vmem:[%s13 + $0x8] sm:$0xff]
  %v869 = vld [vmem:[%s13 + $0x10] sm:$0xff]
  %v870 = vld [vmem:[%s13 + $0x18] sm:$0xff]
  %v871 = vld [vmem:[%s13 + $0x20] sm:$0xff]
  %v872 = vld [vmem:[%s13 + $0x28] sm:$0xff]
  %v873 = vld [vmem:[%s13 + $0x30] sm:$0xff]
  %v874 = vld [vmem:[%s13 + $0x38] sm:$0xff]
  %v875 = vld [vmem:[%s13 + $0x40] sm:$0xff]
  %v876 = vld [vmem:[%s13 + $0x48] sm:$0xff]
  %v877 = vld [vmem:[%s13 + $0x50] sm:$0xff]
  %v878 = vld [vmem:[%s13 + $0x58] sm:$0xff]
  %v879 = vld [vmem:[%s13 + $0x60] sm:$0xff]
  %v880 = vld [vmem:[%s13 + $0x68] sm:$0xff]
  %v881 = vld [vmem:[%s13 + $0x70] sm:$0xff]
  %v882 = vld [vmem:[%s13 + $0x78] sm:$0xff]
  %v883 = vld [vmem:[%s14] sm:$0x1]
  %v885 = vlaneseq
  %v886 = vshrl.u32 %v885, 7
  %v887 = vsub.s32 0, %v886
  %v888 = vrot.slane %v883, %v887
  %890 = vmatprep.subr.mxu0 0.0
  %891 = vmatpush1.msra.mxu0 %v867
  %892 = vmatprep.subr.mxu0 0.0
  %893 = vmatpush1.msra.mxu0 %v868
  %894 = vmatprep.subr.mxu0 0.0
  %895 = vmatpush1.msra.mxu0 %v869
  %896 = vmatprep.subr.mxu0 0.0
  %897 = vmatpush1.msra.mxu0 %v870
  %898 = vmatprep.subr.mxu0 0.0
  %899 = vmatpush1.msra.mxu0 %v871
  %900 = vmatprep.subr.mxu0 0.0
  %901 = vmatpush1.msra.mxu0 %v872
  %902 = vmatprep.subr.mxu0 0.0
  %903 = vmatpush1.msra.mxu0 %v873
  %904 = vmatprep.subr.mxu0 0.0
  %905 = vmatpush1.msra.mxu0 %v874
  %906 = vmatprep.subr.mxu0 0.0
  %907 = vmatpush1.msra.mxu0 %v875
  %908 = vmatprep.subr.mxu0 0.0
  %909 = vmatpush1.msra.mxu0 %v876
  %910 = vmatprep.subr.mxu0 0.0
  %911 = vmatpush1.msra.mxu0 %v877
  %912 = vmatprep.subr.mxu0 0.0
  %913 = vmatpush1.msra.mxu0 %v878
  %914 = vmatprep.subr.mxu0 0.0
  %915 = vmatpush1.msra.mxu0 %v879
  %916 = vmatprep.subr.mxu0 0.0
  %917 = vmatpush1.msra.mxu0 %v880
  %918 = vmatprep.subr.mxu0 0.0
  %919 = vmatpush1.msra.mxu0 %v881
  %920 = vmatprep.subr.mxu0 0.0
  %921 = vmatpush1.msra.mxu0 %v882
  %922 = vmatprep.subr.mxu0 0.0
  %923 = vmatpush1.msra.mxu0 0.0
  %924 = vmatprep.subr.mxu0 0.0
  %925 = vmatpush1.msra.mxu0 0.0
  %926 = vmatprep.subr.mxu0 0.0
  %927 = vmatpush1.msra.mxu0 0.0
  %928 = vmatprep.subr.mxu0 0.0
  %929 = vmatpush1.msra.mxu0 0.0
  %930 = vmatprep.subr.mxu0 0.0
  %931 = vmatpush1.msra.mxu0 0.0
  %932 = vmatprep.subr.mxu0 0.0
  %933 = vmatpush1.msra.mxu0 0.0
  %934 = vmatprep.subr.mxu0 0.0
  %935 = vmatpush1.msra.mxu0 0.0
  %936 = vmatprep.subr.mxu0 0.0
  %937 = vmatpush1.msra.mxu0 0.0
  %938 = vmatprep.subr.mxu0 0.0
  %939 = vmatpush1.msra.mxu0 0.0
  %940 = vmatprep.subr.mxu0 0.0
  %941 = vmatpush1.msra.mxu0 0.0
  %942 = vmatprep.subr.mxu0 0.0
  %943 = vmatpush1.msra.mxu0 0.0
  %944 = vmatprep.subr.mxu0 0.0
  %945 = vmatpush1.msra.mxu0 0.0
  %946 = vmatprep.subr.mxu0 0.0
  %947 = vmatpush1.msra.mxu0 0.0
  %948 = vmatprep.subr.mxu0 0.0
  %949 = vmatpush1.msra.mxu0 0.0
  %950 = vmatprep.subr.mxu0 0.0
  %951 = vmatpush1.msra.mxu0 0.0
  %952 = vmatprep.subr.mxu0 0.0
  %953 = vmatpush1.msra.mxu0 0.0
  %954 = vmatprep.mubr.f32.mxu0 0.0
  %955 = vmatmul.mubr.f32.gmra.mrb[0].mxu0 %v866
  %v956 = vpop.f32.mrb[0].mxu0
  %v957 = vadd.f32 %v888, %v956
  %v958 = vpop.f32.mrb[0].mxu0
  %959 = vdwg.mxu0
  %962 = vrot.lane.b32.xlu0 %v957, 6
  %v963 = vpop.permute.xlu0 %962
  %v965 = vsel %vm778, %v159, %v963
  %v967 = vsel %vm69, %v965, 0
  %969 = vmatprep.subr.mxu0 0.0
  %970 = vmatpush1.msra.mxu0 %v75
  %971 = vmatprep.subr.mxu0 0.0
  %972 = vmatpush1.msra.mxu0 0.0
  %973 = vmatprep.subr.mxu0 0.0
  %974 = vmatpush1.msra.mxu0 0.0
  %975 = vmatprep.subr.mxu0 0.0
  %976 = vmatpush1.msra.mxu0 0.0
  %977 = vmatprep.subr.mxu0 0.0
  %978 = vmatpush1.msra.mxu0 0.0
  %979 = vmatprep.subr.mxu0 0.0
  %980 = vmatpush1.msra.mxu0 0.0
  %981 = vmatprep.subr.mxu0 0.0
  %982 = vmatpush1.msra.mxu0 0.0
  %983 = vmatprep.subr.mxu0 0.0
  %984 = vmatpush1.msra.mxu0 0.0
  %985 = vmatprep.subr.mxu0 0.0
  %986 = vmatpush1.msra.mxu0 0.0
  %987 = vmatprep.subr.mxu0 0.0
  %988 = vmatpush1.msra.mxu0 0.0
  %989 = vmatprep.subr.mxu0 0.0
  %990 = vmatpush1.msra.mxu0 0.0
  %991 = vmatprep.subr.mxu0 0.0
  %992 = vmatpush1.msra.mxu0 0.0
  %993 = vmatprep.subr.mxu0 0.0
  %994 = vmatpush1.msra.mxu0 0.0
  %995 = vmatprep.subr.mxu0 0.0
  %996 = vmatpush1.msra.mxu0 0.0
  %997 = vmatprep.subr.mxu0 0.0
  %998 = vmatpush1.msra.mxu0 0.0
  %999 = vmatprep.subr.mxu0 0.0
  %1000 = vmatpush1.msra.mxu0 0.0
  %1001 = vmatprep.subr.mxu0 0.0
  %1002 = vmatpush1.msra.mxu0 0.0
  %1003 = vmatprep.subr.mxu0 0.0
  %1004 = vmatpush1.msra.mxu0 0.0
  %1005 = vmatprep.subr.mxu0 0.0
  %1006 = vmatpush1.msra.mxu0 0.0
  %1007 = vmatprep.subr.mxu0 0.0
  %1008 = vmatpush1.msra.mxu0 0.0
  %1009 = vmatprep.subr.mxu0 0.0
  %1010 = vmatpush1.msra.mxu0 0.0
  %1011 = vmatprep.subr.mxu0 0.0
  %1012 = vmatpush1.msra.mxu0 0.0
  %1013 = vmatprep.subr.mxu0 0.0
  %1014 = vmatpush1.msra.mxu0 0.0
  %1015 = vmatprep.subr.mxu0 0.0
  %1016 = vmatpush1.msra.mxu0 0.0
  %1017 = vmatprep.subr.mxu0 0.0
  %1018 = vmatpush1.msra.mxu0 0.0
  %1019 = vmatprep.subr.mxu0 0.0
  %1020 = vmatpush1.msra.mxu0 0.0
  %1021 = vmatprep.subr.mxu0 0.0
  %1022 = vmatpush1.msra.mxu0 0.0
  %1023 = vmatprep.subr.mxu0 0.0
  %1024 = vmatpush1.msra.mxu0 0.0
  %1025 = vmatprep.subr.mxu0 0.0
  %1026 = vmatpush1.msra.mxu0 0.0
  %1027 = vmatprep.subr.mxu0 0.0
  %1028 = vmatpush1.msra.mxu0 0.0
  %1029 = vmatprep.subr.mxu0 0.0
  %1030 = vmatpush1.msra.mxu0 0.0
  %1031 = vmatprep.subr.mxu0 0.0
  %1032 = vmatpush1.msra.mxu0 0.0
  %1033 = vmatprep.mubr.f32.mxu0 0.0
  %1034 = vmatmul.mubr.f32.gmra.mrb[0].mxu0 %v967
  %v1035 = vpop.f32.mrb[0].mxu0
  %v1036 = vadd.f32 %v67, %v1035
  %v1037 = vpop.f32.mrb[0].mxu0
  %1038 = vdwg.mxu0
  %v1039 = vxor.u32 %v1036, 2147483648
  %v1040 = vmul.f32 %v1039, 1.442695
  %v1041 = vpow.pop %v1040
  %v1042 = vadd.f32 %v1041, 1.0
  %v1043 = vrcp.pop %v1042
  %v1044 = vmul.f32 1.0, %v1043
  %1046 = vrot.lane.b32.xlu0 %v1044, 112
  %v1047 = vpop.permute.xlu0 %1046
  %v1049 = vmul.f32 %v1036, %v1047
  %1050 = vrot.lane.b32.xlu0 %v965, 127
  %v1051 = vpop.permute.xlu0 %1050
  %v1052 = vsel %vm69, %v1051, 0
  %1054 = vmatprep.subr.mxu0 0.0
  %1055 = vmatpush1.msra.mxu0 %v75
  %1056 = vmatprep.subr.mxu0 0.0
  %1057 = vmatpush1.msra.mxu0 0.0
  %1058 = vmatprep.subr.mxu0 0.0
  %1059 = vmatpush1.msra.mxu0 0.0
  %1060 = vmatprep.subr.mxu0 0.0
  %1061 = vmatpush1.msra.mxu0 0.0
  %1062 = vmatprep.subr.mxu0 0.0
  %1063 = vmatpush1.msra.mxu0 0.0
  %1064 = vmatprep.subr.mxu0 0.0
  %1065 = vmatpush1.msra.mxu0 0.0
  %1066 = vmatprep.subr.mxu0 0.0
  %1067 = vmatpush1.msra.mxu0 0.0
  %1068 = vmatprep.subr.mxu0 0.0
  %1069 = vmatpush1.msra.mxu0 0.0
  %1070 = vmatprep.subr.mxu0 0.0
  %1071 = vmatpush1.msra.mxu0 0.0
  %1072 = vmatprep.subr.mxu0 0.0
  %1073 = vmatpush1.msra.mxu0 0.0
  %1074 = vmatprep.subr.mxu0 0.0
  %1075 = vmatpush1.msra.mxu0 0.0
  %1076 = vmatprep.subr.mxu0 0.0
  %1077 = vmatpush1.msra.mxu0 0.0
  %1078 = vmatprep.subr.mxu0 0.0
  %1079 = vmatpush1.msra.mxu0 0.0
  %1080 = vmatprep.subr.mxu0 0.0
  %1081 = vmatpush1.msra.mxu0 0.0
  %1082 = vmatprep.subr.mxu0 0.0
  %1083 = vmatpush1.msra.mxu0 0.0
  %1084 = vmatprep.subr.mxu0 0.0
  %1085 = vmatpush1.msra.mxu0 0.0
  %1086 = vmatprep.subr.mxu0 0.0
  %1087 = vmatpush1.msra.mxu0 0.0
  %1088 = vmatprep.subr.mxu0 0.0
  %1089 = vmatpush1.msra.mxu0 0.0
  %1090 = vmatprep.subr.mxu0 0.0
  %1091 = vmatpush1.msra.mxu0 0.0
  %1092 = vmatprep.subr.mxu0 0.0
  %1093 = vmatpush1.msra.mxu0 0.0
  %1094 = vmatprep.subr.mxu0 0.0
  %1095 = vmatpush1.msra.mxu0 0.0
  %1096 = vmatprep.subr.mxu0 0.0
  %1097 = vmatpush1.msra.mxu0 0.0
  %1098 = vmatprep.subr.mxu0 0.0
  %1099 = vmatpush1.msra.mxu0 0.0
  %1100 = vmatprep.subr.mxu0 0.0
  %1101 = vmatpush1.msra.mxu0 0.0
  %1102 = vmatprep.subr.mxu0 0.0
  %1103 = vmatpush1.msra.mxu0 0.0
  %1104 = vmatprep.subr.mxu0 0.0
  %1105 = vmatpush1.msra.mxu0 0.0
  %1106 = vmatprep.subr.mxu0 0.0
  %1107 = vmatpush1.msra.mxu0 0.0
  %1108 = vmatprep.subr.mxu0 0.0
  %1109 = vmatpush1.msra.mxu0 0.0
  %1110 = vmatprep.subr.mxu0 0.0
  %1111 = vmatpush1.msra.mxu0 0.0
  %1112 = vmatprep.subr.mxu0 0.0
  %1113 = vmatpush1.msra.mxu0 0.0
  %1114 = vmatprep.subr.mxu0 0.0
  %1115 = vmatpush1.msra.mxu0 0.0
  %1116 = vmatprep.subr.mxu0 0.0
  %1117 = vmatpush1.msra.mxu0 0.0
  %1118 = vmatprep.mubr.f32.mxu0 0.0
  %1119 = vmatmul.mubr.f32.gmra.mrb[0].mxu0 %v1052
  %v1120 = vpop.f32.mrb[0].mxu0
  %v1121 = vadd.f32 %v67, %v1120
  %v1122 = vpop.f32.mrb[0].mxu0
  %1123 = vdwg.mxu0
  %v1124 = vxor.u32 %v1121, 2147483648
  %v1125 = vmul.f32 %v1124, 1.442695
  %v1126 = vpow.pop %v1125
  %v1127 = vadd.f32 %v1126, 1.0
  %v1128 = vrcp.pop %v1127
  %v1129 = vmul.f32 1.0, %v1128
  %1131 = vrot.lane.b32.xlu0 %v1129, 112
  %v1132 = vpop.permute.xlu0 %1131
  %v1134 = vmul.f32 %v1121, %v1132
  %1135 = vrot.lane.b32.xlu0 %v965, 126
  %v1136 = vpop.permute.xlu0 %1135
  %v1137 = vsel %vm69, %v1136, 0
  %1139 = vmatprep.subr.mxu0 0.0
  %1140 = vmatpush1.msra.mxu0 %v75
  %1141 = vmatprep.subr.mxu0 0.0
  %1142 = vmatpush1.msra.mxu0 0.0
  %1143 = vmatprep.subr.mxu0 0.0
  %1144 = vmatpush1.msra.mxu0 0.0
  %1145 = vmatprep.subr.mxu0 0.0
  %1146 = vmatpush1.msra.mxu0 0.0
  %1147 = vmatprep.subr.mxu0 0.0
  %1148 = vmatpush1.msra.mxu0 0.0
  %1149 = vmatprep.subr.mxu0 0.0
  %1150 = vmatpush1.msra.mxu0 0.0
  %1151 = vmatprep.subr.mxu0 0.0
  %1152 = vmatpush1.msra.mxu0 0.0
  %1153 = vmatprep.subr.mxu0 0.0
  %1154 = vmatpush1.msra.mxu0 0.0
  %1155 = vmatprep.subr.mxu0 0.0
  %1156 = vmatpush1.msra.mxu0 0.0
  %1157 = vmatprep.subr.mxu0 0.0
  %1158 = vmatpush1.msra.mxu0 0.0
  %1159 = vmatprep.subr.mxu0 0.0
  %1160 = vmatpush1.msra.mxu0 0.0
  %1161 = vmatprep.subr.mxu0 0.0
  %1162 = vmatpush1.msra.mxu0 0.0
  %1163 = vmatprep.subr.mxu0 0.0
  %1164 = vmatpush1.msra.mxu0 0.0
  %1165 = vmatprep.subr.mxu0 0.0
  %1166 = vmatpush1.msra.mxu0 0.0
  %1167 = vmatprep.subr.mxu0 0.0
  %1168 = vmatpush1.msra.mxu0 0.0
  %1169 = vmatprep.subr.mxu0 0.0
  %1170 = vmatpush1.msra.mxu0 0.0
  %1171 = vmatprep.subr.mxu0 0.0
  %1172 = vmatpush1.msra.mxu0 0.0
  %1173 = vmatprep.subr.mxu0 0.0
  %1174 = vmatpush1.msra.mxu0 0.0
  %1175 = vmatprep.subr.mxu0 0.0
  %1176 = vmatpush1.msra.mxu0 0.0
  %1177 = vmatprep.subr.mxu0 0.0
  %1178 = vmatpush1.msra.mxu0 0.0
  %1179 = vmatprep.subr.mxu0 0.0
  %1180 = vmatpush1.msra.mxu0 0.0
  %1181 = vmatprep.subr.mxu0 0.0
  %1182 = vmatpush1.msra.mxu0 0.0
  %1183 = vmatprep.subr.mxu0 0.0
  %1184 = vmatpush1.msra.mxu0 0.0
  %1185 = vmatprep.subr.mxu0 0.0
  %1186 = vmatpush1.msra.mxu0 0.0
  %1187 = vmatprep.subr.mxu0 0.0
  %1188 = vmatpush1.msra.mxu0 0.0
  %1189 = vmatprep.subr.mxu0 0.0
  %1190 = vmatpush1.msra.mxu0 0.0
  %1191 = vmatprep.subr.mxu0 0.0
  %1192 = vmatpush1.msra.mxu0 0.0
  %1193 = vmatprep.subr.mxu0 0.0
  %1194 = vmatpush1.msra.mxu0 0.0
  %1195 = vmatprep.subr.mxu0 0.0
  %1196 = vmatpush1.msra.mxu0 0.0
  %1197 = vmatprep.subr.mxu0 0.0
  %1198 = vmatpush1.msra.mxu0 0.0
  %1199 = vmatprep.subr.mxu0 0.0
  %1200 = vmatpush1.msra.mxu0 0.0
  %1201 = vmatprep.subr.mxu0 0.0
  %1202 = vmatpush1.msra.mxu0 0.0
  %1203 = vmatprep.mubr.f32.mxu0 0.0
  %1204 = vmatmul.mubr.f32.gmra.mrb[0].mxu0 %v1137
  %v1205 = vpop.f32.mrb[0].mxu0
  %v1206 = vadd.f32 %v67, %v1205
  %v1207 = vpop.f32.mrb[0].mxu0
  %1208 = vdwg.mxu0
  %v1209 = vxor.u32 %v1206, 2147483648
  %v1210 = vmul.f32 %v1209, 1.442695
  %v1211 = vpow.pop %v1210
  %v1212 = vadd.f32 %v1211, 1.0
  %v1213 = vrcp.pop %v1212
  %v1214 = vmul.f32 1.0, %v1213
  %1216 = vrot.lane.b32.xlu0 %v1214, 112
  %v1217 = vpop.permute.xlu0 %1216
  %v1219 = vmul.f32 %v1206, %v1217
  %1221 = vrot.lane.b32.xlu0 %v1134, 16
  %v1222 = vpop.permute.xlu0 %1221
  %1225 = vrot.lane.b32.xlu0 %v1219, 32
  %v1226 = vpop.permute.xlu0 %1225
  %v1228 = vsel %vm336, %v1049, %v1222
  %v1229 = vsel %vm338, %v1228, %v1226
  %v1231 = vsel %vm353, %v1229, 0
  %1233 = vmatprep.subr.mxu0 0.0
  %1234 = vmatpush1.msra.mxu0 %v340
  %1235 = vmatprep.subr.mxu0 0.0
  %1236 = vmatpush1.msra.mxu0 %v341
  %1237 = vmatprep.subr.mxu0 0.0
  %1238 = vmatpush1.msra.mxu0 %v342
  %1239 = vmatprep.subr.mxu0 0.0
  %1240 = vmatpush1.msra.mxu0 %v343
  %1241 = vmatprep.subr.mxu0 0.0
  %1242 = vmatpush1.msra.mxu0 %v344
  %1243 = vmatprep.subr.mxu0 0.0
  %1244 = vmatpush1.msra.mxu0 %v345
  %1245 = vmatprep.subr.mxu0 0.0
  %1246 = vmatpush1.msra.mxu0 0.0
  %1247 = vmatprep.subr.mxu0 0.0
  %1248 = vmatpush1.msra.mxu0 0.0
  %1249 = vmatprep.subr.mxu0 0.0
  %1250 = vmatpush1.msra.mxu0 0.0
  %1251 = vmatprep.subr.mxu0 0.0
  %1252 = vmatpush1.msra.mxu0 0.0
  %1253 = vmatprep.subr.mxu0 0.0
  %1254 = vmatpush1.msra.mxu0 0.0
  %1255 = vmatprep.subr.mxu0 0.0
  %1256 = vmatpush1.msra.mxu0 0.0
  %1257 = vmatprep.subr.mxu0 0.0
  %1258 = vmatpush1.msra.mxu0 0.0
  %1259 = vmatprep.subr.mxu0 0.0
  %1260 = vmatpush1.msra.mxu0 0.0
  %1261 = vmatprep.subr.mxu0 0.0
  %1262 = vmatpush1.msra.mxu0 0.0
  %1263 = vmatprep.subr.mxu0 0.0
  %1264 = vmatpush1.msra.mxu0 0.0
  %1265 = vmatprep.subr.mxu0 0.0
  %1266 = vmatpush1.msra.mxu0 0.0
  %1267 = vmatprep.subr.mxu0 0.0
  %1268 = vmatpush1.msra.mxu0 0.0
  %1269 = vmatprep.subr.mxu0 0.0
  %1270 = vmatpush1.msra.mxu0 0.0
  %1271 = vmatprep.subr.mxu0 0.0
  %1272 = vmatpush1.msra.mxu0 0.0
  %1273 = vmatprep.subr.mxu0 0.0
  %1274 = vmatpush1.msra.mxu0 0.0
  %1275 = vmatprep.subr.mxu0 0.0
  %1276 = vmatpush1.msra.mxu0 0.0
  %1277 = vmatprep.subr.mxu0 0.0
  %1278 = vmatpush1.msra.mxu0 0.0
  %1279 = vmatprep.subr.mxu0 0.0
  %1280 = vmatpush1.msra.mxu0 0.0
  %1281 = vmatprep.subr.mxu0 0.0
  %1282 = vmatpush1.msra.mxu0 0.0
  %1283 = vmatprep.subr.mxu0 0.0
  %1284 = vmatpush1.msra.mxu0 0.0
  %1285 = vmatprep.subr.mxu0 0.0
  %1286 = vmatpush1.msra.mxu0 0.0
  %1287 = vmatprep.subr.mxu0 0.0
  %1288 = vmatpush1.msra.mxu0 0.0
  %1289 = vmatprep.subr.mxu0 0.0
  %1290 = vmatpush1.msra.mxu0 0.0
  %1291 = vmatprep.subr.mxu0 0.0
  %1292 = vmatpush1.msra.mxu0 0.0
  %1293 = vmatprep.subr.mxu0 0.0
  %1294 = vmatpush1.msra.mxu0 0.0
  %1295 = vmatprep.subr.mxu0 0.0
  %1296 = vmatpush1.msra.mxu0 0.0
  %1297 = vmatprep.mubr.f32.mxu0 0.0
  %1298 = vmatmul.mubr.f32.gmra.mrb[0].mxu0 %v1231
  %v1299 = vpop.f32.mrb[0].mxu0
  %v1300 = vadd.f32 %v351, %v1299
  %v1301 = vpop.f32.mrb[0].mxu0
  %1302 = vdwg.mxu0
  %v1303 = vxor.u32 %v1300, 2147483648
  %v1304 = vmul.f32 %v1303, 1.442695
  %v1305 = vpow.pop %v1304
  %v1306 = vadd.f32 %v1305, 1.0
  %v1307 = vrcp.pop %v1306
  %v1308 = vmul.f32 1.0, %v1307
  %1310 = vrot.lane.b32.xlu0 %v1308, 96
  %v1311 = vpop.permute.xlu0 %1310
  %v1313 = vmul.f32 %v1300, %v1311
  %v1315 = vsel %vm338, %v1313, 0
  %1317 = vmatprep.subr.mxu0 0.0
  %1318 = vmatpush1.msra.mxu0 %v438
  %1319 = vmatprep.subr.mxu0 0.0
  %1320 = vmatpush1.msra.mxu0 %v439
  %1321 = vmatprep.subr.mxu0 0.0
  %1322 = vmatpush1.msra.mxu0 %v440
  %1323 = vmatprep.subr.mxu0 0.0
  %1324 = vmatpush1.msra.mxu0 %v441
  %1325 = vmatprep.subr.mxu0 0.0
  %1326 = vmatpush1.msra.mxu0 0.0
  %1327 = vmatprep.subr.mxu0 0.0
  %1328 = vmatpush1.msra.mxu0 0.0
  %1329 = vmatprep.subr.mxu0 0.0
  %1330 = vmatpush1.msra.mxu0 0.0
  %1331 = vmatprep.subr.mxu0 0.0
  %1332 = vmatpush1.msra.mxu0 0.0
  %1333 = vmatprep.subr.mxu0 0.0
  %1334 = vmatpush1.msra.mxu0 0.0
  %1335 = vmatprep.subr.mxu0 0.0
  %1336 = vmatpush1.msra.mxu0 0.0
  %1337 = vmatprep.subr.mxu0 0.0
  %1338 = vmatpush1.msra.mxu0 0.0
  %1339 = vmatprep.subr.mxu0 0.0
  %1340 = vmatpush1.msra.mxu0 0.0
  %1341 = vmatprep.subr.mxu0 0.0
  %1342 = vmatpush1.msra.mxu0 0.0
  %1343 = vmatprep.subr.mxu0 0.0
  %1344 = vmatpush1.msra.mxu0 0.0
  %1345 = vmatprep.subr.mxu0 0.0
  %1346 = vmatpush1.msra.mxu0 0.0
  %1347 = vmatprep.subr.mxu0 0.0
  %1348 = vmatpush1.msra.mxu0 0.0
  %1349 = vmatprep.subr.mxu0 0.0
  %1350 = vmatpush1.msra.mxu0 0.0
  %1351 = vmatprep.subr.mxu0 0.0
  %1352 = vmatpush1.msra.mxu0 0.0
  %1353 = vmatprep.subr.mxu0 0.0
  %1354 = vmatpush1.msra.mxu0 0.0
  %1355 = vmatprep.subr.mxu0 0.0
  %1356 = vmatpush1.msra.mxu0 0.0
  %1357 = vmatprep.subr.mxu0 0.0
  %1358 = vmatpush1.msra.mxu0 0.0
  %1359 = vmatprep.subr.mxu0 0.0
  %1360 = vmatpush1.msra.mxu0 0.0
  %1361 = vmatprep.subr.mxu0 0.0
  %1362 = vmatpush1.msra.mxu0 0.0
  %1363 = vmatprep.subr.mxu0 0.0
  %1364 = vmatpush1.msra.mxu0 0.0
  %1365 = vmatprep.subr.mxu0 0.0
  %1366 = vmatpush1.msra.mxu0 0.0
  %1367 = vmatprep.subr.mxu0 0.0
  %1368 = vmatpush1.msra.mxu0 0.0
  %1369 = vmatprep.subr.mxu0 0.0
  %1370 = vmatpush1.msra.mxu0 0.0
  %1371 = vmatprep.subr.mxu0 0.0
  %1372 = vmatpush1.msra.mxu0 0.0
  %1373 = vmatprep.subr.mxu0 0.0
  %1374 = vmatpush1.msra.mxu0 0.0
  %1375 = vmatprep.subr.mxu0 0.0
  %1376 = vmatpush1.msra.mxu0 0.0
  %1377 = vmatprep.subr.mxu0 0.0
  %1378 = vmatpush1.msra.mxu0 0.0
  %1379 = vmatprep.subr.mxu0 0.0
  %1380 = vmatpush1.msra.mxu0 0.0
  %1381 = vmatprep.mubr.f32.mxu0 0.0
  %1382 = vmatmul.mubr.f32.gmra.mrb[0].mxu0 %v1315
  %v1383 = vpop.f32.mrb[0].mxu0
  %v1384 = vadd.f32 0.0, %v1383
  %v1385 = vpop.f32.mrb[0].mxu0
  %1386 = vdwg.mxu0
  %1388 = vrot.lane.b32.xlu0 %v1384, 64
  %v1389 = vpop.permute.xlu0 %1388
  %1391 = vmatprep.subr.mxu0 0.0
  %1392 = vmatpush1.msra.mxu0 %v1384
  %1393 = vmatprep.subr.mxu0 0.0
  %1394 = vmatpush1.msra.mxu0 0.0
  %1395 = vmatprep.subr.mxu0 0.0
  %1396 = vmatpush1.msra.mxu0 0.0
  %1397 = vmatprep.subr.mxu0 0.0
  %1398 = vmatpush1.msra.mxu0 0.0
  %1399 = vmatprep.subr.mxu0 0.0
  %1400 = vmatpush1.msra.mxu0 0.0
  %1401 = vmatprep.subr.mxu0 0.0
  %1402 = vmatpush1.msra.mxu0 0.0
  %1403 = vmatprep.subr.mxu0 0.0
  %1404 = vmatpush1.msra.mxu0 0.0
  %1405 = vmatprep.subr.mxu0 0.0
  %1406 = vmatpush1.msra.mxu0 0.0
  %1407 = vmatprep.subr.mxu0 0.0
  %1408 = vmatpush1.msra.mxu0 0.0
  %1409 = vmatprep.subr.mxu0 0.0
  %1410 = vmatpush1.msra.mxu0 0.0
  %1411 = vmatprep.subr.mxu0 0.0
  %1412 = vmatpush1.msra.mxu0 0.0
  %1413 = vmatprep.subr.mxu0 0.0
  %1414 = vmatpush1.msra.mxu0 0.0
  %1415 = vmatprep.subr.mxu0 0.0
  %1416 = vmatpush1.msra.mxu0 0.0
  %1417 = vmatprep.subr.mxu0 0.0
  %1418 = vmatpush1.msra.mxu0 0.0
  %1419 = vmatprep.subr.mxu0 0.0
  %1420 = vmatpush1.msra.mxu0 0.0
  %1421 = vmatprep.subr.mxu0 0.0
  %1422 = vmatpush1.msra.mxu0 0.0
  %1423 = vmatprep.subr.mxu0 0.0
  %1424 = vmatpush1.msra.mxu0 0.0
  %1425 = vmatprep.subr.mxu0 0.0
  %1426 = vmatpush1.msra.mxu0 0.0
  %1427 = vmatprep.subr.mxu0 0.0
  %1428 = vmatpush1.msra.mxu0 0.0
  %1429 = vmatprep.subr.mxu0 0.0
  %1430 = vmatpush1.msra.mxu0 0.0
  %1431 = vmatprep.subr.mxu0 0.0
  %1432 = vmatpush1.msra.mxu0 0.0
  %1433 = vmatprep.subr.mxu0 0.0
  %1434 = vmatpush1.msra.mxu0 0.0
  %1435 = vmatprep.subr.mxu0 0.0
  %1436 = vmatpush1.msra.mxu0 0.0
  %1437 = vmatprep.subr.mxu0 0.0
  %1438 = vmatpush1.msra.mxu0 0.0
  %1439 = vmatprep.subr.mxu0 0.0
  %1440 = vmatpush1.msra.mxu0 0.0
  %1441 = vmatprep.subr.mxu0 0.0
  %1442 = vmatpush1.msra.mxu0 0.0
  %1443 = vmatprep.subr.mxu0 0.0
  %1444 = vmatpush1.msra.mxu0 0.0
  %1445 = vmatprep.subr.mxu0 0.0
  %1446 = vmatpush1.msra.mxu0 0.0
  %1447 = vmatprep.subr.mxu0 0.0
  %1448 = vmatpush1.msra.mxu0 0.0
  %1449 = vmatprep.subr.mxu0 0.0
  %1450 = vmatpush1.msra.mxu0 0.0
  %1451 = vmatprep.subr.mxu0 0.0
  %1452 = vmatpush1.msra.mxu0 0.0
  %1453 = vmatprep.subr.mxu0 0.0
  %1454 = vmatpush1.msra.mxu0 0.0
  %1455 = vmatprep.mubr.f32.mxu0 0.0
  %1456 = vmatmul.mubr.f32.gmra.mrb[0].mxu0 %v521
  %v1457 = vpop.f32.mrb[0].mxu0
  %v1458 = vadd.f32 %v1389, %v1457
  %v1459 = vpop.f32.mrb[0].mxu0
  %1460 = vdwg.mxu0
  %v1461 = vadd.f32 %v1458, %v598
  %v1462 = vmul.f32 %v1461, %v1461
  %v1463 = vmul.f32 %v1461, %v1462
  %v1464 = vmul.f32 %v1463, 0.044715
  %v1465 = vadd.f32 %v1461, %v1464
  %v1466 = vmul.f32 %v1465, 0.7978846
  %v1467 = vtanh.pop %v1466
  %v1468 = vadd.f32 %v1467, 1.0
  %v1469 = vmul.f32 %v1468, 0.5
  %v1470 = vmul.f32 %v1461, %v1469
  %v1471 = vsel %vm610, %v1470, 0.0
  %1472 = vadd.xlane.f32.xlu0 %v1471
  %v1473 = vpop.xlane.xlu0 %1472
  %v1474 = vmul.f32 %v1473, %v614
  %v1475 = vsub.f32 %v1470, %v1474
  %v1476 = vmul.f32 %v1475, %v1475
  %v1477 = vsel %vm610, %v1476, 0.0
  %1478 = vadd.xlane.f32.xlu0 %v1477
  %v1479 = vpop.xlane.xlu0 %1478
  %v1480 = vmul.f32 %v1479, %v614
  %v1481 = vadd.f32 %v1480, 1e-05
  %v1482 = vrsqrt.pop %v1481
  %v1483 = vmul.f32 %v1475, %v1482
  %v1484 = vmul.f32 %v1483, %v630
  %v1485 = vadd.f32 %v1484, %v638
  %v1487 = vsel %vm610, %v1485, 0
  %1489 = vmatprep.subr.mxu0 0.0
  %1490 = vmatpush1.msra.mxu0 %v641
  %1491 = vmatprep.subr.mxu0 0.0
  %1492 = vmatpush1.msra.mxu0 %v642
  %1493 = vmatprep.subr.mxu0 0.0
  %1494 = vmatpush1.msra.mxu0 %v643
  %1495 = vmatprep.subr.mxu0 0.0
  %1496 = vmatpush1.msra.mxu0 %v644
  %1497 = vmatprep.subr.mxu0 0.0
  %1498 = vmatpush1.msra.mxu0 %v645
  %1499 = vmatprep.subr.mxu0 0.0
  %1500 = vmatpush1.msra.mxu0 %v646
  %1501 = vmatprep.subr.mxu0 0.0
  %1502 = vmatpush1.msra.mxu0 %v647
  %1503 = vmatprep.subr.mxu0 0.0
  %1504 = vmatpush1.msra.mxu0 %v648
  %1505 = vmatprep.subr.mxu0 0.0
  %1506 = vmatpush1.msra.mxu0 0.0
  %1507 = vmatprep.subr.mxu0 0.0
  %1508 = vmatpush1.msra.mxu0 0.0
  %1509 = vmatprep.subr.mxu0 0.0
  %1510 = vmatpush1.msra.mxu0 0.0
  %1511 = vmatprep.subr.mxu0 0.0
  %1512 = vmatpush1.msra.mxu0 0.0
  %1513 = vmatprep.subr.mxu0 0.0
  %1514 = vmatpush1.msra.mxu0 0.0
  %1515 = vmatprep.subr.mxu0 0.0
  %1516 = vmatpush1.msra.mxu0 0.0
  %1517 = vmatprep.subr.mxu0 0.0
  %1518 = vmatpush1.msra.mxu0 0.0
  %1519 = vmatprep.subr.mxu0 0.0
  %1520 = vmatpush1.msra.mxu0 0.0
  %1521 = vmatprep.subr.mxu0 0.0
  %1522 = vmatpush1.msra.mxu0 0.0
  %1523 = vmatprep.subr.mxu0 0.0
  %1524 = vmatpush1.msra.mxu0 0.0
  %1525 = vmatprep.subr.mxu0 0.0
  %1526 = vmatpush1.msra.mxu0 0.0
  %1527 = vmatprep.subr.mxu0 0.0
  %1528 = vmatpush1.msra.mxu0 0.0
  %1529 = vmatprep.subr.mxu0 0.0
  %1530 = vmatpush1.msra.mxu0 0.0
  %1531 = vmatprep.subr.mxu0 0.0
  %1532 = vmatpush1.msra.mxu0 0.0
  %1533 = vmatprep.subr.mxu0 0.0
  %1534 = vmatpush1.msra.mxu0 0.0
  %1535 = vmatprep.subr.mxu0 0.0
  %1536 = vmatpush1.msra.mxu0 0.0
  %1537 = vmatprep.subr.mxu0 0.0
  %1538 = vmatpush1.msra.mxu0 0.0
  %1539 = vmatprep.subr.mxu0 0.0
  %1540 = vmatpush1.msra.mxu0 0.0
  %1541 = vmatprep.subr.mxu0 0.0
  %1542 = vmatpush1.msra.mxu0 0.0
  %1543 = vmatprep.subr.mxu0 0.0
  %1544 = vmatpush1.msra.mxu0 0.0
  %1545 = vmatprep.subr.mxu0 0.0
  %1546 = vmatpush1.msra.mxu0 0.0
  %1547 = vmatprep.subr.mxu0 0.0
  %1548 = vmatpush1.msra.mxu0 0.0
  %1549 = vmatprep.subr.mxu0 0.0
  %1550 = vmatpush1.msra.mxu0 0.0
  %1551 = vmatprep.subr.mxu0 0.0
  %1552 = vmatpush1.msra.mxu0 0.0
  %1553 = vmatprep.mubr.f32.mxu0 0.0
  %1554 = vmatmul.mubr.f32.gmra.mrb[0].mxu0 %v1487
  %v1555 = vpop.f32.mrb[0].mxu0
  %v1556 = vadd.f32 0.0, %v1555
  %v1557 = vpop.f32.mrb[0].mxu0
  %1558 = vdwg.mxu0
  %v1559 = vmul.f32 %v1485, %v727
  %v1560 = vsel %vm610, %v1559, 0.0
  %1561 = vadd.xlane.f32.xlu0 %v1560
  %v1562 = vpop.xlane.xlu0 %1561
  %v1563 = vmul.f32 %v1556, %v52
  %v1564 = vsel %vm610, %v1563, 0.0
  %1565 = vadd.xlane.f32.xlu0 %v1564
  %v1566 = vpop.xlane.xlu0 %1565
  %v1567 = vmul.f32 %v1556, %v53
  %v1568 = vsel %vm610, %v1567, 0.0
  %1569 = vadd.xlane.f32.xlu0 %v1568
  %v1570 = vpop.xlane.xlu0 %1569
  %v1571 = vmul.f32 %v1556, %v54
  %v1572 = vsel %vm610, %v1571, 0.0
  %1573 = vadd.xlane.f32.xlu0 %v1572
  %v1574 = vpop.xlane.xlu0 %1573
  %v1575 = vmul.f32 %v1556, %v55
  %v1576 = vsel %vm610, %v1575, 0.0
  %1577 = vadd.xlane.f32.xlu0 %v1576
  %v1578 = vpop.xlane.xlu0 %1577
  %v1579 = vmul.f32 %v1556, %v56
  %v1580 = vsel %vm610, %v1579, 0.0
  %1581 = vadd.xlane.f32.xlu0 %v1580
  %v1582 = vpop.xlane.xlu0 %1581
  %v1583 = vmul.f32 %v1556, %v57
  %v1584 = vsel %vm610, %v1583, 0.0
  %1585 = vadd.xlane.f32.xlu0 %v1584
  %v1586 = vpop.xlane.xlu0 %1585
  %v1587 = vmul.f32 %v1556, %v58
  %v1588 = vsel %vm610, %v1587, 0.0
  %1589 = vadd.xlane.f32.xlu0 %v1588
  %v1590 = vpop.xlane.xlu0 %1589
  %v1591 = vmul.f32 %v1556, %v59
  %v1592 = vsel %vm610, %v1591, 0.0
  %1593 = vadd.xlane.f32.xlu0 %v1592
  %v1594 = vpop.xlane.xlu0 %1593
  %v1595 = vmul.f32 %v1556, %v60
  %v1596 = vsel %vm610, %v1595, 0.0
  %1597 = vadd.xlane.f32.xlu0 %v1596
  %v1598 = vpop.xlane.xlu0 %1597
  %v1599 = vsel %vm769, %v1566, %v1570
  %v1600 = vsel %vm771, %v1599, %v1574
  %v1601 = vsel %vm773, %v1600, %v1578
  %v1602 = vsel %vm775, %v1601, %v1582
  %v1603 = vsel %vm69, %v1602, %v1586
  %v1604 = vsel %vm778, %v1603, %v1590
  %v1605 = vsel %vm780, %v1604, %v1594
  %v1606 = vsel %vm519, %v1605, %v1598
  %v1607 = vadd.f32 %v1606, %v1562
  %v1608 = vsel %vm784, %v1607, -inf
  %1609 = vmax.xlane.f32.xlu0 %v1608
  %v1610 = vpop.xlane.xlu0 %1609
  %v1611 = vsub.f32 %v1607, %v1610
  %v1612 = vmul.f32 %v1611, 1.442695
  %v1613 = vpow.pop %v1612
  %v1614 = vsel %vm784, %v1613, 0.0
  %1615 = vadd.xlane.f32.xlu0 %v1614
  %v1616 = vpop.xlane.xlu0 %1615
  %v1617 = vrcp.pop %v1616
  %v1618 = vmul.f32 %v1613, %v1617
  %1620 = vset.pattern.permute.xlu0 0
  %1621 = vperm.xlu0 %1620, %v1618
  %v1622 = vpop.permute.xlu0 %1621
  %v1624 = vmul.f32 %v1622, %v52
  %v1625 = vadd.f32 %v1624, 0.0
  %1626 = vset.pattern.permute.xlu0 1
  %1627 = vperm.xlu0 %1626, %v1618
  %v1628 = vpop.permute.xlu0 %1627
  %v1630 = vmul.f32 %v1628, %v53
  %v1631 = vadd.f32 %v1625, %v1630
  %1632 = vset.pattern.permute.xlu0 2
  %1633 = vperm.xlu0 %1632, %v1618
  %v1634 = vpop.permute.xlu0 %1633
  %v1636 = vmul.f32 %v1634, %v54
  %v1637 = vadd.f32 %v1631, %v1636
  %1638 = vset.pattern.permute.xlu0 3
  %1639 = vperm.xlu0 %1638, %v1618
  %v1640 = vpop.permute.xlu0 %1639
  %v1642 = vmul.f32 %v1640, %v55
  %v1643 = vadd.f32 %v1637, %v1642
  %1644 = vset.pattern.permute.xlu0 4
  %1645 = vperm.xlu0 %1644, %v1618
  %v1646 = vpop.permute.xlu0 %1645
  %v1648 = vmul.f32 %v1646, %v56
  %v1649 = vadd.f32 %v1643, %v1648
  %1650 = vset.pattern.permute.xlu0 5
  %1651 = vperm.xlu0 %1650, %v1618
  %v1652 = vpop.permute.xlu0 %1651
  %v1654 = vmul.f32 %v1652, %v57
  %v1655 = vadd.f32 %v1649, %v1654
  %1656 = vset.pattern.permute.xlu0 6
  %1657 = vperm.xlu0 %1656, %v1618
  %v1658 = vpop.permute.xlu0 %1657
  %v1660 = vmul.f32 %v1658, %v58
  %v1661 = vadd.f32 %v1655, %v1660
  %1662 = vset.pattern.permute.xlu0 7
  %1663 = vperm.xlu0 %1662, %v1618
  %v1664 = vpop.permute.xlu0 %1663
  %v1666 = vmul.f32 %v1664, %v59
  %v1667 = vadd.f32 %v1661, %v1666
  %1668 = vset.pattern.permute.xlu0 8
  %1669 = vperm.xlu0 %1668, %v1618
  %v1670 = vpop.permute.xlu0 %1669
  %v1672 = vmul.f32 %v1670, %v60
  %v1673 = vadd.f32 %v1667, %v1672
  %1674 = vrot.lane.b32.xlu0 %v1485, 64
  %v1675 = vpop.permute.xlu0 %1674
  %v1677 = vsel %vm610, %v1673, %v1675
  %1678 = vadd.xlane.f32.xlu0 %v1677
  %v1679 = vpop.xlane.xlu0 %1678
  %v1680 = vmul.f32 %v1679, %v857
  %v1681 = vsub.f32 %v1677, %v1680
  %v1682 = vmul.f32 %v1681, %v1681
  %1683 = vadd.xlane.f32.xlu0 %v1682
  %v1684 = vpop.xlane.xlu0 %1683
  %v1685 = vmul.f32 %v1684, %v857
  %v1686 = vadd.f32 %v1685, 1e-05
  %v1687 = vrsqrt.pop %v1686
  %v1688 = vmul.f32 %v1681, %v1687
  %1689 = vmatprep.subr.mxu0 0.0
  %1690 = vmatpush1.msra.mxu0 %v867
  %1691 = vmatprep.subr.mxu0 0.0
  %1692 = vmatpush1.msra.mxu0 %v868
  %1693 = vmatprep.subr.mxu0 0.0
  %1694 = vmatpush1.msra.mxu0 %v869
  %1695 = vmatprep.subr.mxu0 0.0
  %1696 = vmatpush1.msra.mxu0 %v870
  %1697 = vmatprep.subr.mxu0 0.0
  %1698 = vmatpush1.msra.mxu0 %v871
  %1699 = vmatprep.subr.mxu0 0.0
  %1700 = vmatpush1.msra.mxu0 %v872
  %1701 = vmatprep.subr.mxu0 0.0
  %1702 = vmatpush1.msra.mxu0 %v873
  %1703 = vmatprep.subr.mxu0 0.0
  %1704 = vmatpush1.msra.mxu0 %v874
  %1705 = vmatprep.subr.mxu0 0.0
  %1706 = vmatpush1.msra.mxu0 %v875
  %1707 = vmatprep.subr.mxu0 0.0
  %1708 = vmatpush1.msra.mxu0 %v876
  %1709 = vmatprep.subr.mxu0 0.0
  %1710 = vmatpush1.msra.mxu0 %v877
  %1711 = vmatprep.subr.mxu0 0.0
  %1712 = vmatpush1.msra.mxu0 %v878
  %1713 = vmatprep.subr.mxu0 0.0
  %1714 = vmatpush1.msra.mxu0 %v879
  %1715 = vmatprep.subr.mxu0 0.0
  %1716 = vmatpush1.msra.mxu0 %v880
  %1717 = vmatprep.subr.mxu0 0.0
  %1718 = vmatpush1.msra.mxu0 %v881
  %1719 = vmatprep.subr.mxu0 0.0
  %1720 = vmatpush1.msra.mxu0 %v882
  %1721 = vmatprep.subr.mxu0 0.0
  %1722 = vmatpush1.msra.mxu0 0.0
  %1723 = vmatprep.subr.mxu0 0.0
  %1724 = vmatpush1.msra.mxu0 0.0
  %1725 = vmatprep.subr.mxu0 0.0
  %1726 = vmatpush1.msra.mxu0 0.0
  %1727 = vmatprep.subr.mxu0 0.0
  %1728 = vmatpush1.msra.mxu0 0.0
  %1729 = vmatprep.subr.mxu0 0.0
  %1730 = vmatpush1.msra.mxu0 0.0
  %1731 = vmatprep.subr.mxu0 0.0
  %1732 = vmatpush1.msra.mxu0 0.0
  %1733 = vmatprep.subr.mxu0 0.0
  %1734 = vmatpush1.msra.mxu0 0.0
  %1735 = vmatprep.subr.mxu0 0.0
  %1736 = vmatpush1.msra.mxu0 0.0
  %1737 = vmatprep.subr.mxu0 0.0
  %1738 = vmatpush1.msra.mxu0 0.0
  %1739 = vmatprep.subr.mxu0 0.0
  %1740 = vmatpush1.msra.mxu0 0.0
  %1741 = vmatprep.subr.mxu0 0.0
  %1742 = vmatpush1.msra.mxu0 0.0
  %1743 = vmatprep.subr.mxu0 0.0
  %1744 = vmatpush1.msra.mxu0 0.0
  %1745 = vmatprep.subr.mxu0 0.0
  %1746 = vmatpush1.msra.mxu0 0.0
  %1747 = vmatprep.subr.mxu0 0.0
  %1748 = vmatpush1.msra.mxu0 0.0
  %1749 = vmatprep.subr.mxu0 0.0
  %1750 = vmatpush1.msra.mxu0 0.0
  %1751 = vmatprep.subr.mxu0 0.0
  %1752 = vmatpush1.msra.mxu0 0.0
  %1753 = vmatprep.mubr.f32.mxu0 0.0
  %1754 = vmatmul.mubr.f32.gmra.mrb[0].mxu0 %v1688
  %v1755 = vpop.f32.mrb[0].mxu0
  %v1756 = vadd.f32 %v888, %v1755
  %v1757 = vpop.f32.mrb[0].mxu0
  %1758 = vdwg.mxu0
  %1760 = vrot.lane.b32.xlu0 %v1756, 1
  %v1761 = vpop.permute.xlu0 %1760
  %v1763 = vsel %vm769, %v957, %v1761
  %v1764 = vsel %vm771, %v1763, 0.0
  %1765 = vst [vmem:[%s15] sm:$0xff] %v1764
  // Predicated region
  $region62: #{_lambda_.3} parent=0 // pred_check
    _
  $region63: #{_lambda_.3} parent=0 // pred_check_branch
    %1767 = sbr.rel (0) target = $region65
  $region64: #{_lambda_.3} parent=0 // pred_region
    _
  $region65: #{_lambda_.3} parent=0 // pred_fallthru
    _
  // Predicated region
  $region66: #{_lambda_.3} parent=0 // pred_check
    _
  $region67: #{_lambda_.3} parent=0 // pred_check_branch
    %1769 = sbr.rel (0) target = $region69
  $region68: #{_lambda_.3} parent=0 // pred_region
    _
  $region69: #{_lambda_.3} parent=0 // pred_fallthru
    _

// kernel: _lambda_.2
$region0: #{_lambda_.2}
  #allocation0 [shape = 'u32[]', space=smem, size = 0x4, offset = 0x4, fixed_abs, tag = 'smem constant byte address 0x4 - core index']
  #allocation1 [shape = 'u32[144,128]{1,0:T(1,128)}', space=vmem, size = 0x12000, scoped, tag = 'internal scratch']
  #allocation2 [shape = 'f32[72,64]{1,0:T(8,128)}', space=vmem, size = 0x9000, scoped, tag = 'scratch operand']
  #allocation3 [shape = 'f32[8,576]{1,0:T(8,128)}', space=vmem, size = 0x5000, scoped, tag = 'scratch operand']
  %s0 = inlined_call_operand.hbm [shape: f32[8,9], index: 0, kind: input, shape index: {}]
  %s1 = inlined_call_operand.hbm [shape: f32[72,72], index: 1, kind: input, shape index: {}]
  %s2 = inlined_call_operand.hbm [shape: f32[1,576], index: 2, kind: input, shape index: {}]
  %s3 = inlined_call_operand.hbm [shape: f32[9,288], index: 3, kind: input, shape index: {}]
  %s4 = inlined_call_operand.hbm [shape: f32[1,288], index: 4, kind: input, shape index: {}]
  %s5 = inlined_call_operand.hbm [shape: f32[1,144], index: 5, kind: input, shape index: {}]
  %s6 = inlined_call_operand.hbm [shape: f32[9,144], index: 6, kind: input, shape index: {}]
  %s7 = inlined_call_operand.hbm [shape: f32[1,144], index: 7, kind: input, shape index: {}]
  %s8 = inlined_call_operand.hbm [shape: f32[16,32], index: 8, kind: input, shape index: {}]
  %s9 = inlined_call_operand.hbm [shape: f32[1,16], index: 9, kind: input, shape index: {}]
  %s10 = inlined_call_operand.hbm [shape: f32[144,576], index: 10, kind: input, shape index: {}]
  %s11 = inlined_call_operand.hbm [shape: f32[1,576], index: 11, kind: input, shape index: {}]
  %s12 = inlined_call_operand.hbm [shape: f32[1,288], index: 12, kind: input, shape index: {}]
  %s13 = inlined_call_operand.hbm [shape: f32[144,288], index: 13, kind: input, shape index: {}]
  %s14 = inlined_call_operand.hbm [shape: f32[1,288], index: 14, kind: input, shape index: {}]
  %s15 = inlined_call_operand.hbm [shape: f32[32,64], index: 15, kind: input, shape index: {}]
  %s16 = inlined_call_operand.hbm [shape: f32[1,32], index: 16, kind: input, shape index: {}]
  %s17 = inlined_call_operand.hbm [shape: f32[288,1152], index: 17, kind: input, shape index: {}]
  %s18 = inlined_call_operand.hbm [shape: f32[1,1152], index: 18, kind: input, shape index: {}]
  %s19 = inlined_call_operand.hbm [shape: f32[1,576], index: 19, kind: input, shape index: {}]
  %s20 = inlined_call_operand.hbm [shape: f32[288,576], index: 20, kind: input, shape index: {}]
  %s21 = inlined_call_operand.hbm [shape: f32[1,576], index: 21, kind: input, shape index: {}]
  %s22 = inlined_call_operand.hbm [shape: f32[64,128], index: 22, kind: input, shape index: {}]
  %s23 = inlined_call_operand.hbm [shape: f32[1,64], index: 23, kind: input, shape index: {}]
  %s24 = inlined_call_operand.vmem [shape: f32[8,576], index: 24, kind: output, shape index: {}]
  %s25 = sld [smem:[#allocation0]]
  $region202: #{_lambda_.2} parent=0
    _
  %s27 = ssub.s32 1, %s25
  %s28 = scalar_select 0, %s27, %s25
  $region1: #{_lambda_.2} parent=0
    #allocation4 [shape = 'u8[4096]{0}', space=vmem, size = 0x1000, scoped, tag = 'input window, operand 0, single buffered']
    #allocation5 [shape = 's32[1]{0}', space=sflag, size = 0x4, scoped, tag = 'scoped memory for _lambda_.2']
    #allocation6 [shape = 'u8[36864]{0}', space=vmem, size = 0x9000, scoped, tag = 'input window, operand 1, single buffered']
    #allocation7 [shape = 's32[1]{0}', space=sflag, size = 0x4, scoped, tag = 'scoped memory for _lambda_.2']
    #allocation8 [shape = 'u8[2560]{0}', space=vmem, size = 0xc00, scoped, tag = 'input window, operand 2, single buffered']
    #allocation9 [shape = 'u8[24576]{0}', space=vmem, size = 0x6000, scoped, tag = 'input window, operand 3, single buffered']
    #allocation10 [shape = 's32[1]{0}', space=sflag, size = 0x4, scoped, tag = 'scoped memory for _lambda_.2']
    #allocation11 [shape = 'u8[1536]{0}', space=vmem, size = 0x800, scoped, tag = 'input window, operand 4, single buffered']
    #allocation12 [shape = 'u8[1024]{0}', space=vmem, size = 0x400, scoped, tag = 'input window, operand 5, single buffered']
    #allocation13 [shape = 's32[1]{0}', space=sflag, size = 0x4, scoped, tag = 'scoped memory for _lambda_.2']
    #allocation14 [shape = 'u8[16384]{0}', space=vmem, size = 0x4000, scoped, tag = 'input window, operand 6, single buffered']
    #allocation15 [shape = 'u8[1024]{0}', space=vmem, size = 0x400, scoped, tag = 'input window, operand 7, single buffered']
    #allocation16 [shape = 's32[1]{0}', space=sflag, size = 0x4, scoped, tag = 'scoped memory for _lambda_.2']
    #allocation17 [shape = 'u8[8192]{0}', space=vmem, size = 0x2000, scoped, tag = 'input window, operand 8, single buffered']
    #allocation18 [shape = 'u8[512]{0}', space=vmem, size = 0x400, scoped, tag = 'input window, operand 9, single buffered']
    #allocation19 [shape = 's32[1]{0}', space=sflag, size = 0x4, scoped, tag = 'scoped memory for _lambda_.2']
    #allocation20 [shape = 'u8[368640]{0}', space=vmem, size = 0x5a000, scoped, tag = 'input window, operand 10, single buffered']
    #allocation21 [shape = 'u8[2560]{0}', space=vmem, size = 0xc00, scoped, tag = 'input window, operand 11, single buffered']
    #allocation22 [shape = 's32[1]{0}', space=sflag, size = 0x4, scoped, tag = 'scoped memory for _lambda_.2']
    #allocation23 [shape = 'u8[1536]{0}', space=vmem, size = 0x800, scoped, tag = 'input window, operand 12, single buffered']
    #allocation24 [shape = 'u8[221184]{0}', space=vmem, size = 0x36000, scoped, tag = 'input window, operand 13, single buffered']
    #allocation25 [shape = 's32[1]{0}', space=sflag, size = 0x4, scoped, tag = 'scoped memory for _lambda_.2']
    #allocation26 [shape = 'u8[1536]{0}', space=vmem, size = 0x800, scoped, tag = 'input window, operand 14, single buffered']
    #allocation27 [shape = 'u8[16384]{0}', space=vmem, size = 0x4000, scoped, tag = 'input window, operand 15, single buffered']
    #allocation28 [shape = 's32[1]{0}', space=sflag, size = 0x4, scoped, tag = 'scoped memory for _lambda_.2']
    #allocation29 [shape = 'u8[512]{0}', space=vmem, size = 0x400, scoped, tag = 'input window, operand 16, single buffered']
    #allocation30 [shape = 'u8[1327104]{0}', space=vmem, size = 0x144000, scoped, tag = 'input window, operand 17, single buffered']
    #allocation31 [shape = 's32[1]{0}', space=sflag, size = 0x4, scoped, tag = 'scoped memory for _lambda_.2']
    #allocation32 [shape = 'u8[4608]{0}', space=vmem, size = 0x1400, scoped, tag = 'input window, operand 18, single buffered']
    #allocation33 [shape = 'u8[2560]{0}', space=vmem, size = 0xc00, scoped, tag = 'input window, operand 19, single buffered']
    #allocation34 [shape = 's32[1]{0}', space=sflag, size = 0x4, scoped, tag = 'scoped memory for _lambda_.2']
    #allocation35 [shape = 'u8[737280]{0}', space=vmem, size = 0xb4000, scoped, tag = 'input window, operand 20, single buffered']
    #allocation36 [shape = 'u8[2560]{0}', space=vmem, size = 0xc00, scoped, tag = 'input window, operand 21, single buffered']
    #allocation37 [shape = 's32[1]{0}', space=sflag, size = 0x4, scoped, tag = 'scoped memory for _lambda_.2']
    #allocation38 [shape = 'u8[32768]{0}', space=vmem, size = 0x8000, scoped, tag = 'input window, operand 22, single buffered']
    #allocation39 [shape = 'u8[512]{0}', space=vmem, size = 0x400, scoped, tag = 'input window, operand 23, single buffered']
    #allocation40 [shape = 's32[1]{0}', space=sflag, size = 0x4, scoped, tag = 'scoped memory for _lambda_.2']
    %29 = vsyncpa [#allocation5], 0
    %30 = vsyncpa [#allocation7], 0
    %31 = vsyncpa [#allocation10], 0
    %32 = vsyncpa [#allocation13], 0
    %33 = vsyncpa [#allocation16], 0
    %34 = vsyncpa [#allocation19], 0
    %35 = vsyncpa [#allocation22], 0
    %36 = vsyncpa [#allocation25], 0
    %37 = vsyncpa [#allocation28], 0
    %38 = vsyncpa [#allocation31], 0
    %39 = vsyncpa [#allocation34], 0
    %40 = vsyncpa [#allocation37], 0
    %41 = vsyncpa [#allocation40], 0
    // Predicated region
    $region2: #{_lambda_.2} parent=1 // pred_check
      _
    $region3: #{_lambda_.2} parent=1 // pred_check_branch
      %43 = sbr.rel (0) target = $region5
    $region4: #{_lambda_.2} parent=1 // pred_region
      %s45 = ssub.s32 128, 128
      %46 = vsyncadd [#allocation5], %s45
      %s48 = sshll.u32 [#allocation4], 4
      %s49 = int_to_ptr.vmem [resolvable:$true] %s48
      %51 = dma.hbm_to_vmem [thread:$0]  %s0, 128, %s49, [#allocation5]
    $region5: #{_lambda_.2} parent=1 // pred_fallthru
      _
    // Predicated region
    $region6: #{_lambda_.2} parent=1 // pred_check
      _
    $region7: #{_lambda_.2} parent=1 // pred_check_branch
      %53 = sbr.rel (0) target = $region9
    $region8: #{_lambda_.2} parent=1 // pred_region
      %s55 = ssub.s32 1152, 1152
      %56 = vsyncadd [#allocation7], %s55
      %s57 = sshll.u32 [#allocation6], 4
      %s58 = int_to_ptr.vmem [resolvable:$true] %s57
      %63 = dma.hbm_to_vmem [thread:$0]  %s1, 1152, %s58, [#allocation7], 128, 128, 8
    $region9: #{_lambda_.2} parent=1 // pred_fallthru
      _
    // Predicated region
    $region10: #{_lambda_.2} parent=1 // pred_check
      _
    $region11: #{_lambda_.2} parent=1 // pred_check_branch
      %65 = sbr.rel (0) target = $region13
    $region12: #{_lambda_.2} parent=1 // pred_region
      %s67 = ssub.s32 80, 80
      %68 = vsyncadd [#allocation7], %s67
      %s70 = sshll.u32 [#allocation8], 4
      %s71 = int_to_ptr.vmem [resolvable:$true] %s70
      %73 = dma.hbm_to_vmem [thread:$0]  %s2, 80, %s71, [#allocation7]
    $region13: #{_lambda_.2} parent=1 // pred_fallthru
      _
    // Predicated region
    $region14: #{_lambda_.2} parent=1 // pred_check
      _
    $region15: #{_lambda_.2} parent=1 // pred_check_branch
      %75 = sbr.rel (0) target = $region17
    $region16: #{_lambda_.2} parent=1 // pred_region
      %s77 = ssub.s32 768, 768
      %78 = vsyncadd [#allocation10], %s77
      %s79 = sshll.u32 [#allocation9], 4
      %s80 = int_to_ptr.vmem [resolvable:$true] %s79
      %85 = dma.hbm_to_vmem [thread:$0]  %s3, 768, %s80, [#allocation10], 384, 384, 24
    $region17: #{_lambda_.2} parent=1 // pred_fallthru
      _
    // Predicated region
    $region18: #{_lambda_.2} parent=1 // pred_check
      _
    $region19: #{_lambda_.2} parent=1 // pred_check_branch
      %87 = sbr.rel (0) target = $region21
    $region20: #{_lambda_.2} parent=1 // pred_region
      %s89 = ssub.s32 48, 48
      %90 = vsyncadd [#allocation10], %s89
      %s92 = sshll.u32 [#allocation11], 4
      %s93 = int_to_ptr.vmem [resolvable:$true] %s92
      %95 = dma.hbm_to_vmem [thread:$0]  %s4, 48, %s93, [#allocation10]
    $region21: #{_lambda_.2} parent=1 // pred_fallthru
      _
    // Predicated region
    $region22: #{_lambda_.2} parent=1 // pred_check
      _
    $region23: #{_lambda_.2} parent=1 // pred_check_branch
      %97 = sbr.rel (0) target = $region25
    $region24: #{_lambda_.2} parent=1 // pred_region
      %s99 = ssub.s32 32, 32
      %100 = vsyncadd [#allocation13], %s99
      %s102 = sshll.u32 [#allocation12], 4
      %s103 = int_to_ptr.vmem [resolvable:$true] %s102
      %105 = dma.hbm_to_vmem [thread:$0]  %s5, 32, %s103, [#allocation13]
    $region25: #{_lambda_.2} parent=1 // pred_fallthru
      _
    // Predicated region
    $region26: #{_lambda_.2} parent=1 // pred_check
      _
    $region27: #{_lambda_.2} parent=1 // pred_check_branch
      %107 = sbr.rel (0) target = $region29
    $region28: #{_lambda_.2} parent=1 // pred_region
      %s109 = ssub.s32 512, 512
      %110 = vsyncadd [#allocation13], %s109
      %s111 = sshll.u32 [#allocation14], 4
      %s112 = int_to_ptr.vmem [resolvable:$true] %s111
      %117 = dma.hbm_to_vmem [thread:$0]  %s6, 512, %s112, [#allocation13], 256, 256, 16
    $region29: #{_lambda_.2} parent=1 // pred_fallthru
      _
    // Predicated region
    $region30: #{_lambda_.2} parent=1 // pred_check
      _
    $region31: #{_lambda_.2} parent=1 // pred_check_branch
      %119 = sbr.rel (0) target = $region33
    $region32: #{_lambda_.2} parent=1 // pred_region
      %s121 = ssub.s32 32, 32
      %122 = vsyncadd [#allocation16], %s121
      %s124 = sshll.u32 [#allocation15], 4
      %s125 = int_to_ptr.vmem [resolvable:$true] %s124
      %127 = dma.hbm_to_vmem [thread:$0]  %s7, 32, %s125, [#allocation16]
    $region33: #{_lambda_.2} parent=1 // pred_fallthru
      _
    // Predicated region
    $region34: #{_lambda_.2} parent=1 // pred_check
      _
    $region35: #{_lambda_.2} parent=1 // pred_check_branch
      %129 = sbr.rel (0) target = $region37
    $region36: #{_lambda_.2} parent=1 // pred_region
      %s131 = ssub.s32 256, 256
      %132 = vsyncadd [#allocation16], %s131
      %s133 = sshll.u32 [#allocation17], 4
      %s134 = int_to_ptr.vmem [resolvable:$true] %s133
      %139 = dma.hbm_to_vmem [thread:$0]  %s8, 256, %s134, [#allocation16], 128, 128, 8
    $region37: #{_lambda_.2} parent=1 // pred_fallthru
      _
    // Predicated region
    $region38: #{_lambda_.2} parent=1 // pred_check
      _
    $region39: #{_lambda_.2} parent=1 // pred_check_branch
      %141 = sbr.rel (0) target = $region41
    $region40: #{_lambda_.2} parent=1 // pred_region
      %s143 = ssub.s32 16, 16
      %144 = vsyncadd [#allocation19], %s143
      %s146 = sshll.u32 [#allocation18], 4
      %s147 = int_to_ptr.vmem [resolvable:$true] %s146
      %149 = dma.hbm_to_vmem [thread:$0]  %s9, 16, %s147, [#allocation19]
    $region41: #{_lambda_.2} parent=1 // pred_fallthru
      _
    // Predicated region
    $region42: #{_lambda_.2} parent=1 // pred_check
      _
    $region43: #{_lambda_.2} parent=1 // pred_check_branch
      %151 = sbr.rel (0) target = $region45
    $region44: #{_lambda_.2} parent=1 // pred_region
      %s153 = ssub.s32 11520, 11520
      %154 = vsyncadd [#allocation19], %s153
      %s155 = sshll.u32 [#allocation20], 4
      %s156 = int_to_ptr.vmem [resolvable:$true] %s155
      %161 = dma.hbm_to_vmem [thread:$0]  %s10, 11520, %s156, [#allocation19], 640, 640, 40
    $region45: #{_lambda_.2} parent=1 // pred_fallthru
      _
    // Predicated region
    $region46: #{_lambda_.2} parent=1 // pred_check
      _
    $region47: #{_lambda_.2} parent=1 // pred_check_branch
      %163 = sbr.rel (0) target = $region49
    $region48: #{_lambda_.2} parent=1 // pred_region
      %s165 = ssub.s32 80, 80
      %166 = vsyncadd [#allocation22], %s165
      %s168 = sshll.u32 [#allocation21], 4
      %s169 = int_to_ptr.vmem [resolvable:$true] %s168
      %171 = dma.hbm_to_vmem [thread:$0]  %s11, 80, %s169, [#allocation22]
    $region49: #{_lambda_.2} parent=1 // pred_fallthru
      _
    // Predicated region
    $region50: #{_lambda_.2} parent=1 // pred_check
      _
    $region51: #{_lambda_.2} parent=1 // pred_check_branch
      %173 = sbr.rel (0) target = $region53
    $region52: #{_lambda_.2} parent=1 // pred_region
      %s175 = ssub.s32 48, 48
      %176 = vsyncadd [#allocation22], %s175
      %s178 = sshll.u32 [#allocation23], 4
      %s179 = int_to_ptr.vmem [resolvable:$true] %s178
      %181 = dma.hbm_to_vmem [thread:$0]  %s12, 48, %s179, [#allocation22]
    $region53: #{_lambda_.2} parent=1 // pred_fallthru
      _
    // Predicated region
    $region54: #{_lambda_.2} parent=1 // pred_check
      _
    $region55: #{_lambda_.2} parent=1 // pred_check_branch
      %183 = sbr.rel (0) target = $region57
    $region56: #{_lambda_.2} parent=1 // pred_region
      %s185 = ssub.s32 6912, 6912
      %186 = vsyncadd [#allocation25], %s185
      %s187 = sshll.u32 [#allocation24], 4
      %s188 = int_to_ptr.vmem [resolvable:$true] %s187
      %193 = dma.hbm_to_vmem [thread:$0]  %s13, 6912, %s188, [#allocation25], 384, 384, 24
    $region57: #{_lambda_.2} parent=1 // pred_fallthru
      _
    // Predicated region
    $region58: #{_lambda_.2} parent=1 // pred_check
      _
    $region59: #{_lambda_.2} parent=1 // pred_check_branch
      %195 = sbr.rel (0) target = $region61
    $region60: #{_lambda_.2} parent=1 // pred_region
      %s197 = ssub.s32 48, 48
      %198 = vsyncadd [#allocation25], %s197
      %s200 = sshll.u32 [#allocation26], 4
      %s201 = int_to_ptr.vmem [resolvable:$true] %s200
      %203 = dma.hbm_to_vmem [thread:$0]  %s14, 48, %s201, [#allocation25]
    $region61: #{_lambda_.2} parent=1 // pred_fallthru
      _
    // Predicated region
    $region62: #{_lambda_.2} parent=1 // pred_check
      _
    $region63: #{_lambda_.2} parent=1 // pred_check_branch
      %205 = sbr.rel (0) target = $region65
    $region64: #{_lambda_.2} parent=1 // pred_region
      %s207 = ssub.s32 512, 512
      %208 = vsyncadd [#allocation28], %s207
      %s209 = sshll.u32 [#allocation27], 4
      %s210 = int_to_ptr.vmem [resolvable:$true] %s209
      %215 = dma.hbm_to_vmem [thread:$0]  %s15, 512, %s210, [#allocation28], 128, 128, 8
    $region65: #{_lambda_.2} parent=1 // pred_fallthru
      _
    // Predicated region
    $region66: #{_lambda_.2} parent=1 // pred_check
      _
    $region67: #{_lambda_.2} parent=1 // pred_check_branch
      %217 = sbr.rel (0) target = $region69
    $region68: #{_lambda_.2} parent=1 // pred_region
      %s219 = ssub.s32 16, 16
      %220 = vsyncadd [#allocation28], %s219
      %s222 = sshll.u32 [#allocation29], 4
      %s223 = int_to_ptr.vmem [resolvable:$true] %s222
      %225 = dma.hbm_to_vmem [thread:$0]  %s16, 16, %s223, [#allocation28]
    $region69: #{_lambda_.2} parent=1 // pred_fallthru
      _
    // Predicated region
    $region70: #{_lambda_.2} parent=1 // pred_check
      _
    $region71: #{_lambda_.2} parent=1 // pred_check_branch
      %227 = sbr.rel (0) target = $region73
    $region72: #{_lambda_.2} parent=1 // pred_region
      %s229 = ssub.s32 41472, 41472
      %230 = vsyncadd [#allocation31], %s229
      %s231 = sshll.u32 [#allocation30], 4
      %s232 = int_to_ptr.vmem [resolvable:$true] %s231
      %237 = dma.hbm_to_vmem [thread:$0]  %s17, 41472, %s232, [#allocation31], 1152, 1152, 72
    $region73: #{_lambda_.2} parent=1 // pred_fallthru
      _
    // Predicated region
    $region74: #{_lambda_.2} parent=1 // pred_check
      _
    $region75: #{_lambda_.2} parent=1 // pred_check_branch
      %239 = sbr.rel (0) target = $region77
    $region76: #{_lambda_.2} parent=1 // pred_region
      %s241 = ssub.s32 144, 144
      %242 = vsyncadd [#allocation31], %s241
      %s244 = sshll.u32 [#allocation32], 4
      %s245 = int_to_ptr.vmem [resolvable:$true] %s244
      %247 = dma.hbm_to_vmem [thread:$0]  %s18, 144, %s245, [#allocation31]
    $region77: #{_lambda_.2} parent=1 // pred_fallthru
      _
    // Predicated region
    $region78: #{_lambda_.2} parent=1 // pred_check
      _
    $region79: #{_lambda_.2} parent=1 // pred_check_branch
      %249 = sbr.rel (0) target = $region81
    $region80: #{_lambda_.2} parent=1 // pred_region
      %s251 = ssub.s32 80, 80
      %252 = vsyncadd [#allocation34], %s251
      %s254 = sshll.u32 [#allocation33], 4
      %s255 = int_to_ptr.vmem [resolvable:$true] %s254
      %257 = dma.hbm_to_vmem [thread:$0]  %s19, 80, %s255, [#allocation34]
    $region81: #{_lambda_.2} parent=1 // pred_fallthru
      _
    // Predicated region
    $region82: #{_lambda_.2} parent=1 // pred_check
      _
    $region83: #{_lambda_.2} parent=1 // pred_check_branch
      %259 = sbr.rel (0) target = $region85
    $region84: #{_lambda_.2} parent=1 // pred_region
      %s261 = ssub.s32 23040, 23040
      %262 = vsyncadd [#allocation34], %s261
      %s263 = sshll.u32 [#allocation35], 4
      %s264 = int_to_ptr.vmem [resolvable:$true] %s263
      %269 = dma.hbm_to_vmem [thread:$0]  %s20, 23040, %s264, [#allocation34], 640, 640, 40
    $region85: #{_lambda_.2} parent=1 // pred_fallthru
      _
    // Predicated region
    $region86: #{_lambda_.2} parent=1 // pred_check
      _
    $region87: #{_lambda_.2} parent=1 // pred_check_branch
      %271 = sbr.rel (0) target = $region89
    $region88: #{_lambda_.2} parent=1 // pred_region
      %s273 = ssub.s32 80, 80
      %274 = vsyncadd [#allocation37], %s273
      %s276 = sshll.u32 [#allocation36], 4
      %s277 = int_to_ptr.vmem [resolvable:$true] %s276
      %279 = dma.hbm_to_vmem [thread:$0]  %s21, 80, %s277, [#allocation37]
    $region89: #{_lambda_.2} parent=1 // pred_fallthru
      _
    // Predicated region
    $region90: #{_lambda_.2} parent=1 // pred_check
      _
    $region91: #{_lambda_.2} parent=1 // pred_check_branch
      %281 = sbr.rel (0) target = $region93
    $region92: #{_lambda_.2} parent=1 // pred_region
      %s283 = ssub.s32 1024, 1024
      %284 = vsyncadd [#allocation37], %s283
      %s285 = sshll.u32 [#allocation38], 4
      %s286 = int_to_ptr.vmem [resolvable:$true] %s285
      %291 = dma.hbm_to_vmem [thread:$0]  %s22, 1024, %s286, [#allocation37], 128, 128, 8
    $region93: #{_lambda_.2} parent=1 // pred_fallthru
      _
    // Predicated region
    $region94: #{_lambda_.2} parent=1 // pred_check
      _
    $region95: #{_lambda_.2} parent=1 // pred_check_branch
      %293 = sbr.rel (0) target = $region97
    $region96: #{_lambda_.2} parent=1 // pred_region
      %s295 = ssub.s32 16, 16
      %296 = vsyncadd [#allocation40], %s295
      %s298 = sshll.u32 [#allocation39], 4
      %s299 = int_to_ptr.vmem [resolvable:$true] %s298
      %301 = dma.hbm_to_vmem [thread:$0]  %s23, 16, %s299, [#allocation40]
    $region97: #{_lambda_.2} parent=1 // pred_fallthru
      _
    // Predicated region
    $region98: #{_lambda_.2} parent=1 // pred_check
      _
    $region99: #{_lambda_.2} parent=1 // pred_check_branch
      %303 = sbr.rel (0) target = $region101
    $region100: #{_lambda_.2} parent=1 // pred_region
      %304 = dma.done [#allocation5], 128
    $region101: #{_lambda_.2} parent=1 // pred_fallthru
      _
    // Predicated region
    $region102: #{_lambda_.2} parent=1 // pred_check
      _
    $region103: #{_lambda_.2} parent=1 // pred_check_branch
      %306 = sbr.rel (0) target = $region105
    $region104: #{_lambda_.2} parent=1 // pred_region
      %307 = dma.done [#allocation7], 1152
    $region105: #{_lambda_.2} parent=1 // pred_fallthru
      _
    // Predicated region
    $region106: #{_lambda_.2} parent=1 // pred_check
      _
    $region107: #{_lambda_.2} parent=1 // pred_check_branch
      %309 = sbr.rel (0) target = $region109
    $region108: #{_lambda_.2} parent=1 // pred_region
      %310 = dma.done [#allocation7], 80
    $region109: #{_lambda_.2} parent=1 // pred_fallthru
      _
    // Predicated region
    $region110: #{_lambda_.2} parent=1 // pred_check
      _
    $region111: #{_lambda_.2} parent=1 // pred_check_branch
      %312 = sbr.rel (0) target = $region113
    $region112: #{_lambda_.2} parent=1 // pred_region
      %313 = dma.done [#allocation10], 768
    $region113: #{_lambda_.2} parent=1 // pred_fallthru
      _
    // Predicated region
    $region114: #{_lambda_.2} parent=1 // pred_check
      _
    $region115: #{_lambda_.2} parent=1 // pred_check_branch
      %315 = sbr.rel (0) target = $region117
    $region116: #{_lambda_.2} parent=1 // pred_region
      %316 = dma.done [#allocation10], 48
    $region117: #{_lambda_.2} parent=1 // pred_fallthru
      _
    // Predicated region
    $region118: #{_lambda_.2} parent=1 // pred_check
      _
    $region119: #{_lambda_.2} parent=1 // pred_check_branch
      %318 = sbr.rel (0) target = $region121
    $region120: #{_lambda_.2} parent=1 // pred_region
      %319 = dma.done [#allocation13], 32
    $region121: #{_lambda_.2} parent=1 // pred_fallthru
      _
    // Predicated region
    $region122: #{_lambda_.2} parent=1 // pred_check
      _
    $region123: #{_lambda_.2} parent=1 // pred_check_branch
      %321 = sbr.rel (0) target = $region125
    $region124: #{_lambda_.2} parent=1 // pred_region
      %322 = dma.done [#allocation13], 512
    $region125: #{_lambda_.2} parent=1 // pred_fallthru
      _
    // Predicated region
    $region126: #{_lambda_.2} parent=1 // pred_check
      _
    $region127: #{_lambda_.2} parent=1 // pred_check_branch
      %324 = sbr.rel (0) target = $region129
    $region128: #{_lambda_.2} parent=1 // pred_region
      %325 = dma.done [#allocation16], 32
    $region129: #{_lambda_.2} parent=1 // pred_fallthru
      _
    // Predicated region
    $region130: #{_lambda_.2} parent=1 // pred_check
      _
    $region131: #{_lambda_.2} parent=1 // pred_check_branch
      %327 = sbr.rel (0) target = $region133
    $region132: #{_lambda_.2} parent=1 // pred_region
      %328 = dma.done [#allocation16], 256
    $region133: #{_lambda_.2} parent=1 // pred_fallthru
      _
    // Predicated region
    $region134: #{_lambda_.2} parent=1 // pred_check
      _
    $region135: #{_lambda_.2} parent=1 // pred_check_branch
      %330 = sbr.rel (0) target = $region137
    $region136: #{_lambda_.2} parent=1 // pred_region
      %331 = dma.done [#allocation19], 16
    $region137: #{_lambda_.2} parent=1 // pred_fallthru
      _
    // Predicated region
    $region138: #{_lambda_.2} parent=1 // pred_check
      _
    $region139: #{_lambda_.2} parent=1 // pred_check_branch
      %333 = sbr.rel (0) target = $region141
    $region140: #{_lambda_.2} parent=1 // pred_region
      %334 = dma.done [#allocation19], 11520
    $region141: #{_lambda_.2} parent=1 // pred_fallthru
      _
    // Predicated region
    $region142: #{_lambda_.2} parent=1 // pred_check
      _
    $region143: #{_lambda_.2} parent=1 // pred_check_branch
      %336 = sbr.rel (0) target = $region145
    $region144: #{_lambda_.2} parent=1 // pred_region
      %337 = dma.done [#allocation22], 80
    $region145: #{_lambda_.2} parent=1 // pred_fallthru
      _
    // Predicated region
    $region146: #{_lambda_.2} parent=1 // pred_check
      _
    $region147: #{_lambda_.2} parent=1 // pred_check_branch
      %339 = sbr.rel (0) target = $region149
    $region148: #{_lambda_.2} parent=1 // pred_region
      %340 = dma.done [#allocation22], 48
    $region149: #{_lambda_.2} parent=1 // pred_fallthru
      _
    // Predicated region
    $region150: #{_lambda_.2} parent=1 // pred_check
      _
    $region151: #{_lambda_.2} parent=1 // pred_check_branch
      %342 = sbr.rel (0) target = $region153
    $region152: #{_lambda_.2} parent=1 // pred_region
      %343 = dma.done [#allocation25], 6912
    $region153: #{_lambda_.2} parent=1 // pred_fallthru
      _
    // Predicated region
    $region154: #{_lambda_.2} parent=1 // pred_check
      _
    $region155: #{_lambda_.2} parent=1 // pred_check_branch
      %345 = sbr.rel (0) target = $region157
    $region156: #{_lambda_.2} parent=1 // pred_region
      %346 = dma.done [#allocation25], 48
    $region157: #{_lambda_.2} parent=1 // pred_fallthru
      _
    // Predicated region
    $region158: #{_lambda_.2} parent=1 // pred_check
      _
    $region159: #{_lambda_.2} parent=1 // pred_check_branch
      %348 = sbr.rel (0) target = $region161
    $region160: #{_lambda_.2} parent=1 // pred_region
      %349 = dma.done [#allocation28], 512
    $region161: #{_lambda_.2} parent=1 // pred_fallthru
      _
    // Predicated region
    $region162: #{_lambda_.2} parent=1 // pred_check
      _
    $region163: #{_lambda_.2} parent=1 // pred_check_branch
      %351 = sbr.rel (0) target = $region165
    $region164: #{_lambda_.2} parent=1 // pred_region
      %352 = dma.done [#allocation28], 16
    $region165: #{_lambda_.2} parent=1 // pred_fallthru
      _
    // Predicated region
    $region166: #{_lambda_.2} parent=1 // pred_check
      _
    $region167: #{_lambda_.2} parent=1 // pred_check_branch
      %354 = sbr.rel (0) target = $region169
    $region168: #{_lambda_.2} parent=1 // pred_region
      %355 = dma.done [#allocation31], 41472
    $region169: #{_lambda_.2} parent=1 // pred_fallthru
      _
    // Predicated region
    $region170: #{_lambda_.2} parent=1 // pred_check
      _
    $region171: #{_lambda_.2} parent=1 // pred_check_branch
      %357 = sbr.rel (0) target = $region173
    $region172: #{_lambda_.2} parent=1 // pred_region
      %358 = dma.done [#allocation31], 144
    $region173: #{_lambda_.2} parent=1 // pred_fallthru
      _
    // Predicated region
    $region174: #{_lambda_.2} parent=1 // pred_check
      _
    $region175: #{_lambda_.2} parent=1 // pred_check_branch
      %360 = sbr.rel (0) target = $region177
    $region176: #{_lambda_.2} parent=1 // pred_region
      %361 = dma.done [#allocation34], 80
    $region177: #{_lambda_.2} parent=1 // pred_fallthru
      _
    // Predicated region
    $region178: #{_lambda_.2} parent=1 // pred_check
      _
    $region179: #{_lambda_.2} parent=1 // pred_check_branch
      %363 = sbr.rel (0) target = $region181
    $region180: #{_lambda_.2} parent=1 // pred_region
      %364 = dma.done [#allocation34], 23040
    $region181: #{_lambda_.2} parent=1 // pred_fallthru
      _
    // Predicated region
    $region182: #{_lambda_.2} parent=1 // pred_check
      _
    $region183: #{_lambda_.2} parent=1 // pred_check_branch
      %366 = sbr.rel (0) target = $region185
    $region184: #{_lambda_.2} parent=1 // pred_region
      %367 = dma.done [#allocation37], 80
    $region185: #{_lambda_.2} parent=1 // pred_fallthru
      _
    // Predicated region
    $region186: #{_lambda_.2} parent=1 // pred_check
      _
    $region187: #{_lambda_.2} parent=1 // pred_check_branch
      %369 = sbr.rel (0) target = $region189
    $region188: #{_lambda_.2} parent=1 // pred_region
      %370 = dma.done [#allocation37], 1024
    $region189: #{_lambda_.2} parent=1 // pred_fallthru
      _
    // Predicated region
    $region190: #{_lambda_.2} parent=1 // pred_check
      _
    $region191: #{_lambda_.2} parent=1 // pred_check_branch
      %372 = sbr.rel (0) target = $region193
    $region192: #{_lambda_.2} parent=1 // pred_region
      %373 = dma.done [#allocation40], 16
    $region193: #{_lambda_.2} parent=1 // pred_fallthru
      _
    %v374 = vld [vmem:[#allocation6] sm:$0xff]
    %v375 = vld [vmem:[#allocation6 + $0x8] sm:$0xff]
    %v376 = vld [vmem:[#allocation6 + $0x10] sm:$0xff]
    %v377 = vld [vmem:[#allocation6 + $0x18] sm:$0xff]
    %v378 = vld [vmem:[#allocation6 + $0x20] sm:$0xff]
    %v379 = vld [vmem:[#allocation6 + $0x28] sm:$0xff]
    %v380 = vld [vmem:[#allocation6 + $0x30] sm:$0xff]
    %v381 = vld [vmem:[#allocation6 + $0x38] sm:$0xff]
    %v382 = vld [vmem:[#allocation6 + $0x40] sm:$0xff]
    %v383 = vld [vmem:[#allocation4] sm:$0xff]
    %v384 = vld [vmem:[#allocation9] sm:$0xff]
    %v385 = vld [vmem:[#allocation9 + $0x8] sm:$0xff]
    %v386 = vld [vmem:[#allocation9 + $0x10] sm:$0xff]
    %v387 = vld [vmem:[#allocation9 + $0x18] sm:$0x1]
    %v388 = vld [vmem:[#allocation9 + $0x20] sm:$0x1]
    %v389 = vld [vmem:[#allocation9 + $0x28] sm:$0x1]
    %v390 = vld [vmem:[#allocation11] sm:$0x7]
    %v392 = vlaneseq
    %v393 = vshrl.u32 %v392, 7
    %v394 = vsub.s32 0, %v393
    %v395 = vrot.slane %v390, %v394
    %v396 = vlaneseq
    %v397 = vshrl.u32 %v396, 7
    %v398 = vsub.s32 1, %v397
    %v399 = vrot.slane %v390, %v398
    %v400 = vlaneseq
    %v401 = vshrl.u32 %v400, 7
    %v402 = vsub.s32 2, %v401
    %v403 = vrot.slane %v390, %v402
    %vm407 = vcmask 72704
    %v409 = vsel %vm407, %v383, 0
    %vm411 = vcmask 1040384
    %v413 = vsel %vm411, %v387, 0
    %v416 = vsel %vm411, %v388, 0
    %v419 = vsel %vm411, %v389, 0
    %421 = vmatprep.subr.mxu0 %v385
    %422 = vmatpush1.msra.mxu0 %v384
    %423 = vmatprep.subr.mxu0 %v416
    %424 = vmatpush1.msra.mxu0 %v413
    %425 = vmatprep.subr.mxu0 0.0
    %426 = vmatpush1.msra.mxu0 0.0
    %427 = vmatprep.subr.mxu0 0.0
    %428 = vmatpush1.msra.mxu0 0.0
    %429 = vmatprep.subr.mxu0 0.0
    %430 = vmatpush1.msra.mxu0 0.0
    %431 = vmatprep.subr.mxu0 0.0
    %432 = vmatpush1.msra.mxu0 0.0
    %433 = vmatprep.subr.mxu0 0.0
    %434 = vmatpush1.msra.mxu0 0.0
    %435 = vmatprep.subr.mxu0 0.0
    %436 = vmatpush1.msra.mxu0 0.0
    %437 = vmatprep.subr.mxu0 0.0
    %438 = vmatpush1.msra.mxu0 0.0
    %439 = vmatprep.subr.mxu0 0.0
    %440 = vmatpush1.msra.mxu0 0.0
    %441 = vmatprep.subr.mxu0 0.0
    %442 = vmatpush1.msra.mxu0 0.0
    %443 = vmatprep.subr.mxu0 0.0
    %444 = vmatpush1.msra.mxu0 0.0
    %445 = vmatprep.subr.mxu0 0.0
    %446 = vmatpush1.msra.mxu0 0.0
    %447 = vmatprep.subr.mxu0 0.0
    %448 = vmatpush1.msra.mxu0 0.0
    %449 = vmatprep.subr.mxu0 0.0
    %450 = vmatpush1.msra.mxu0 0.0
    %451 = vmatprep.subr.mxu0 0.0
    %452 = vmatpush1.msra.mxu0 0.0
    %453 = vmatprep.subr.mxu0 0.0
    %454 = vmatpush1.msra.mxu0 0.0
    %455 = vmatprep.subr.mxu0 0.0
    %456 = vmatpush1.msra.mxu0 0.0
    %457 = vmatprep.subr.mxu0 0.0
    %458 = vmatpush1.msra.mxu0 0.0
    %459 = vmatprep.subr.mxu0 0.0
    %460 = vmatpush1.msra.mxu0 0.0
    %461 = vmatprep.subr.mxu0 0.0
    %462 = vmatpush1.msra.mxu0 0.0
    %463 = vmatprep.subr.mxu0 0.0
    %464 = vmatpush1.msra.mxu0 0.0
    %465 = vmatprep.subr.mxu0 0.0
    %466 = vmatpush1.msra.mxu0 0.0
    %467 = vmatprep.subr.mxu0 0.0
    %468 = vmatpush1.msra.mxu0 0.0
    %469 = vmatprep.subr.mxu0 0.0
    %470 = vmatpush1.msra.mxu0 0.0
    %471 = vmatprep.subr.mxu0 0.0
    %472 = vmatpush1.msra.mxu0 0.0
    %473 = vmatprep.subr.mxu0 0.0
    %474 = vmatpush1.msra.mxu0 0.0
    %475 = vmatprep.subr.mxu0 0.0
    %476 = vmatpush1.msra.mxu0 0.0
    %477 = vmatprep.subr.mxu0 0.0
    %478 = vmatpush1.msra.mxu0 0.0
    %479 = vmatprep.subr.mxu0 0.0
    %480 = vmatpush1.msra.mxu0 0.0
    %481 = vmatprep.subr.mxu0 0.0
    %482 = vmatpush1.msra.mxu0 0.0
    %483 = vmatprep.subr.mxu0 0.0
    %484 = vmatpush1.msra.mxu0 0.0
    %485 = vmatprep.mubr.f32.mxu0 0.0
    %486 = vmatmul.mubr.f32.gmra.mrb[0].mxu0 %v409
    %v487 = vpop.f32.mrb[0].mxu0
    %v488 = vadd.f32 %v395, %v487
    %v489 = vpop.f32.mrb[0].mxu0
    %v490 = vadd.f32 %v399, %v489
    %491 = vdwg.mxu0
    %492 = vmatprep.subr.mxu0 0.0
    %493 = vmatpush1.msra.mxu0 %v386
    %494 = vmatprep.subr.mxu0 0.0
    %495 = vmatpush1.msra.mxu0 %v419
    %496 = vmatprep.subr.mxu0 0.0
    %497 = vmatpush1.msra.mxu0 0.0
    %498 = vmatprep.subr.mxu0 0.0
    %499 = vmatpush1.msra.mxu0 0.0
    %500 = vmatprep.subr.mxu0 0.0
    %501 = vmatpush1.msra.mxu0 0.0
    %502 = vmatprep.subr.mxu0 0.0
    %503 = vmatpush1.msra.mxu0 0.0
    %504 = vmatprep.subr.mxu0 0.0
    %505 = vmatpush1.msra.mxu0 0.0
    %506 = vmatprep.subr.mxu0 0.0
    %507 = vmatpush1.msra.mxu0 0.0
    %508 = vmatprep.subr.mxu0 0.0
    %509 = vmatpush1.msra.mxu0 0.0
    %510 = vmatprep.subr.mxu0 0.0
    %511 = vmatpush1.msra.mxu0 0.0
    %512 = vmatprep.subr.mxu0 0.0
    %513 = vmatpush1.msra.mxu0 0.0
    %514 = vmatprep.subr.mxu0 0.0
    %515 = vmatpush1.msra.mxu0 0.0
    %516 = vmatprep.subr.mxu0 0.0
    %517 = vmatpush1.msra.mxu0 0.0
    %518 = vmatprep.subr.mxu0 0.0
    %519 = vmatpush1.msra.mxu0 0.0
    %520 = vmatprep.subr.mxu0 0.0
    %521 = vmatpush1.msra.mxu0 0.0
    %522 = vmatprep.subr.mxu0 0.0
    %523 = vmatpush1.msra.mxu0 0.0
    %524 = vmatprep.subr.mxu0 0.0
    %525 = vmatpush1.msra.mxu0 0.0
    %526 = vmatprep.subr.mxu0 0.0
    %527 = vmatpush1.msra.mxu0 0.0
    %528 = vmatprep.subr.mxu0 0.0
    %529 = vmatpush1.msra.mxu0 0.0
    %530 = vmatprep.subr.mxu0 0.0
    %531 = vmatpush1.msra.mxu0 0.0
    %532 = vmatprep.subr.mxu0 0.0
    %533 = vmatpush1.msra.mxu0 0.0
    %534 = vmatprep.subr.mxu0 0.0
    %535 = vmatpush1.msra.mxu0 0.0
    %536 = vmatprep.subr.mxu0 0.0
    %537 = vmatpush1.msra.mxu0 0.0
    %538 = vmatprep.subr.mxu0 0.0
    %539 = vmatpush1.msra.mxu0 0.0
    %540 = vmatprep.subr.mxu0 0.0
    %541 = vmatpush1.msra.mxu0 0.0
    %542 = vmatprep.subr.mxu0 0.0
    %543 = vmatpush1.msra.mxu0 0.0
    %544 = vmatprep.subr.mxu0 0.0
    %545 = vmatpush1.msra.mxu0 0.0
    %546 = vmatprep.subr.mxu0 0.0
    %547 = vmatpush1.msra.mxu0 0.0
    %548 = vmatprep.subr.mxu0 0.0
    %549 = vmatpush1.msra.mxu0 0.0
    %550 = vmatprep.subr.mxu0 0.0
    %551 = vmatpush1.msra.mxu0 0.0
    %552 = vmatprep.subr.mxu0 0.0
    %553 = vmatpush1.msra.mxu0 0.0
    %554 = vmatprep.subr.mxu0 0.0
    %555 = vmatpush1.msra.mxu0 0.0
    %556 = vmatprep.mubr.f32.mxu0 0.0
    %557 = vmatmul.mubr.f32.gmra.mrb[0].mxu0 %v409
    %v558 = vpop.f32.mrb[0].mxu0
    %v559 = vadd.f32 %v403, %v558
    %v560 = vpop.f32.mrb[0].mxu0
    %561 = vdwg.mxu0
    %v562 = vxor.u32 %v490, 2147483648
    %v563 = vxor.u32 %v559, 2147483648
    %v564 = vmul.f32 %v562, 1.442695
    %v565 = vpow.pop %v564
    %v566 = vmul.f32 %v563, 1.442695
    %v567 = vpow.pop %v566
    %v568 = vadd.f32 %v565, 1.0
    %v569 = vadd.f32 %v567, 1.0
    %v570 = vrcp.pop %v568
    %v571 = vmul.f32 1.0, %v570
    %v572 = vrcp.pop %v569
    %v573 = vmul.f32 1.0, %v572
    %576 = vrot.lane.b32.xlu0 %v571, 112
    %v577 = vpop.permute.xlu0 %576
    %578 = vrot.lane.b32.xlu0 %v573, 112
    %v579 = vpop.permute.xlu0 %578
    %vm580 = vcmask 916480
    %v581 = vsel %vm580, %v577, %v579
    %v584 = vmul.f32 %v488, %v581
    %v585 = vmul.f32 %v490, %v579
    %v586 = vld [vmem:[#allocation12] sm:$0x3]
    %v588 = vlaneseq
    %v589 = vshrl.u32 %v588, 7
    %v590 = vsub.s32 0, %v589
    %v591 = vrot.slane %v586, %v590
    %v592 = vlaneseq
    %v593 = vshrl.u32 %v592, 7
    %v594 = vsub.s32 1, %v593
    %v595 = vrot.slane %v586, %v594
    %v598 = vadd.f32 %v584, %v591
    %v599 = vadd.f32 %v585, %v595
    %v600 = vld [vmem:[#allocation14] sm:$0xff]
    %v601 = vld [vmem:[#allocation14 + $0x8] sm:$0xff]
    %v602 = vld [vmem:[#allocation14 + $0x10] sm:$0x1]
    %v603 = vld [vmem:[#allocation14 + $0x18] sm:$0x1]
    %v604 = vld [vmem:[#allocation15] sm:$0x3]
    %v606 = vlaneseq
    %v607 = vshrl.u32 %v606, 7
    %v608 = vsub.s32 0, %v607
    %v609 = vrot.slane %v604, %v608
    %v610 = vlaneseq
    %v611 = vshrl.u32 %v610, 7
    %v612 = vsub.s32 1, %v611
    %v613 = vrot.slane %v604, %v612
    %v617 = vsel %vm411, %v602, 0
    %v620 = vsel %vm411, %v603, 0
    %622 = vmatprep.subr.mxu0 %v601
    %623 = vmatpush1.msra.mxu0 %v600
    %624 = vmatprep.subr.mxu0 %v620
    %625 = vmatpush1.msra.mxu0 %v617
    %626 = vmatprep.subr.mxu0 0.0
    %627 = vmatpush1.msra.mxu0 0.0
    %628 = vmatprep.subr.mxu0 0.0
    %629 = vmatpush1.msra.mxu0 0.0
    %630 = vmatprep.subr.mxu0 0.0
    %631 = vmatpush1.msra.mxu0 0.0
    %632 = vmatprep.subr.mxu0 0.0
    %633 = vmatpush1.msra.mxu0 0.0
    %634 = vmatprep.subr.mxu0 0.0
    %635 = vmatpush1.msra.mxu0 0.0
    %636 = vmatprep.subr.mxu0 0.0
    %637 = vmatpush1.msra.mxu0 0.0
    %638 = vmatprep.subr.mxu0 0.0
    %639 = vmatpush1.msra.mxu0 0.0
    %640 = vmatprep.subr.mxu0 0.0
    %641 = vmatpush1.msra.mxu0 0.0
    %642 = vmatprep.subr.mxu0 0.0
    %643 = vmatpush1.msra.mxu0 0.0
    %644 = vmatprep.subr.mxu0 0.0
    %645 = vmatpush1.msra.mxu0 0.0
    %646 = vmatprep.subr.mxu0 0.0
    %647 = vmatpush1.msra.mxu0 0.0
    %648 = vmatprep.subr.mxu0 0.0
    %649 = vmatpush1.msra.mxu0 0.0
    %650 = vmatprep.subr.mxu0 0.0
    %651 = vmatpush1.msra.mxu0 0.0
    %652 = vmatprep.subr.mxu0 0.0
    %653 = vmatpush1.msra.mxu0 0.0
    %654 = vmatprep.subr.mxu0 0.0
    %655 = vmatpush1.msra.mxu0 0.0
    %656 = vmatprep.subr.mxu0 0.0
    %657 = vmatpush1.msra.mxu0 0.0
    %658 = vmatprep.subr.mxu0 0.0
    %659 = vmatpush1.msra.mxu0 0.0
    %660 = vmatprep.subr.mxu0 0.0
    %661 = vmatpush1.msra.mxu0 0.0
    %662 = vmatprep.subr.mxu0 0.0
    %663 = vmatpush1.msra.mxu0 0.0
    %664 = vmatprep.subr.mxu0 0.0
    %665 = vmatpush1.msra.mxu0 0.0
    %666 = vmatprep.subr.mxu0 0.0
    %667 = vmatpush1.msra.mxu0 0.0
    %668 = vmatprep.subr.mxu0 0.0
    %669 = vmatpush1.msra.mxu0 0.0
    %670 = vmatprep.subr.mxu0 0.0
    %671 = vmatpush1.msra.mxu0 0.0
    %672 = vmatprep.subr.mxu0 0.0
    %673 = vmatpush1.msra.mxu0 0.0
    %674 = vmatprep.subr.mxu0 0.0
    %675 = vmatpush1.msra.mxu0 0.0
    %676 = vmatprep.subr.mxu0 0.0
    %677 = vmatpush1.msra.mxu0 0.0
    %678 = vmatprep.subr.mxu0 0.0
    %679 = vmatpush1.msra.mxu0 0.0
    %680 = vmatprep.subr.mxu0 0.0
    %681 = vmatpush1.msra.mxu0 0.0
    %682 = vmatprep.subr.mxu0 0.0
    %683 = vmatpush1.msra.mxu0 0.0
    %684 = vmatprep.subr.mxu0 0.0
    %685 = vmatpush1.msra.mxu0 0.0
    %686 = vmatprep.mubr.f32.mxu0 0.0
    %687 = vmatmul.mubr.f32.gmra.mrb[0].mxu0 %v409
    %v688 = vpop.f32.mrb[0].mxu0
    %v689 = vadd.f32 %v609, %v688
    %v690 = vpop.f32.mrb[0].mxu0
    %v691 = vadd.f32 %v613, %v690
    %692 = vdwg.mxu0
    %vm693 = vcmask 130048
    %694 = vst.msk [vmem:[#allocation2] sm:$0xff] %vm693, %v598
    %696 = vrot.lane.b32.xlu0 %v598, 112
    %v697 = vpop.permute.xlu0 %696
    %699 = vst.msk [vmem:[#allocation2 + $0x8] sm:$0xff] %vm693, %v697
    %700 = vrot.lane.b32.xlu0 %v598, 96
    %v701 = vpop.permute.xlu0 %700
    %703 = vst.msk [vmem:[#allocation2 + $0x10] sm:$0xff] %vm693, %v701
    %704 = vrot.lane.b32.xlu0 %v598, 80
    %v705 = vpop.permute.xlu0 %704
    %707 = vst.msk [vmem:[#allocation2 + $0x18] sm:$0xff] %vm693, %v705
    %708 = vrot.lane.b32.xlu0 %v598, 64
    %v709 = vpop.permute.xlu0 %708
    %711 = vst.msk [vmem:[#allocation2 + $0x20] sm:$0xff] %vm693, %v709
    %712 = vrot.lane.b32.xlu0 %v598, 48
    %v713 = vpop.permute.xlu0 %712
    %715 = vst.msk [vmem:[#allocation2 + $0x28] sm:$0xff] %vm693, %v713
    %716 = vrot.lane.b32.xlu0 %v598, 32
    %v717 = vpop.permute.xlu0 %716
    %719 = vst.msk [vmem:[#allocation2 + $0x30] sm:$0xff] %vm693, %v717
    %720 = vrot.lane.b32.xlu0 %v598, 16
    %v721 = vpop.permute.xlu0 %720
    %723 = vst.msk [vmem:[#allocation2 + $0x38] sm:$0xff] %vm693, %v721
    %724 = vst.msk [vmem:[#allocation2 + $0x40] sm:$0xff] %vm693, %v599
    %v725 = vld [vmem:[#allocation2] sm:$0xff]
    %v726 = vld [vmem:[#allocation2 + $0x8] sm:$0xff]
    %v727 = vld [vmem:[#allocation2 + $0x10] sm:$0xff]
    %v728 = vld [vmem:[#allocation2 + $0x18] sm:$0xff]
    %v729 = vld [vmem:[#allocation2 + $0x20] sm:$0xff]
    %v730 = vld [vmem:[#allocation2 + $0x28] sm:$0xff]
    %v731 = vld [vmem:[#allocation2 + $0x30] sm:$0xff]
    %v732 = vld [vmem:[#allocation2 + $0x38] sm:$0xff]
    %v733 = vld [vmem:[#allocation2 + $0x40] sm:$0xff]
    %v734 = vld [vmem:[#allocation17] sm:$0xff]
    %v735 = vld [vmem:[#allocation17 + $0x8] sm:$0xff]
    %v737 = vsel %vm693, %v725, 0
    %v740 = vsel %vm693, %v726, 0
    %v743 = vsel %vm693, %v727, 0
    %v746 = vsel %vm693, %v728, 0
    %v749 = vsel %vm693, %v729, 0
    %v752 = vsel %vm693, %v730, 0
    %v755 = vsel %vm693, %v731, 0
    %v758 = vsel %vm693, %v732, 0
    %v761 = vsel %vm693, %v733, 0
    %763 = vmatprep.subr.mxu0 0.0
    %764 = vmatpush1.msra.mxu0 %v734
    %765 = vmatprep.subr.mxu0 0.0
    %766 = vmatpush1.msra.mxu0 %v735
    %767 = vmatprep.subr.mxu0 0.0
    %768 = vmatpush1.msra.mxu0 0.0
    %769 = vmatprep.subr.mxu0 0.0
    %770 = vmatpush1.msra.mxu0 0.0
    %771 = vmatprep.subr.mxu0 0.0
    %772 = vmatpush1.msra.mxu0 0.0
    %773 = vmatprep.subr.mxu0 0.0
    %774 = vmatpush1.msra.mxu0 0.0
    %775 = vmatprep.subr.mxu0 0.0
    %776 = vmatpush1.msra.mxu0 0.0
    %777 = vmatprep.subr.mxu0 0.0
    %778 = vmatpush1.msra.mxu0 0.0
    %779 = vmatprep.subr.mxu0 0.0
    %780 = vmatpush1.msra.mxu0 0.0
    %781 = vmatprep.subr.mxu0 0.0
    %782 = vmatpush1.msra.mxu0 0.0
    %783 = vmatprep.subr.mxu0 0.0
    %784 = vmatpush1.msra.mxu0 0.0
    %785 = vmatprep.subr.mxu0 0.0
    %786 = vmatpush1.msra.mxu0 0.0
    %787 = vmatprep.subr.mxu0 0.0
    %788 = vmatpush1.msra.mxu0 0.0
    %789 = vmatprep.subr.mxu0 0.0
    %790 = vmatpush1.msra.mxu0 0.0
    %791 = vmatprep.subr.mxu0 0.0
    %792 = vmatpush1.msra.mxu0 0.0
    %793 = vmatprep.subr.mxu0 0.0
    %794 = vmatpush1.msra.mxu0 0.0
    %795 = vmatprep.subr.mxu0 0.0
    %796 = vmatpush1.msra.mxu0 0.0
    %797 = vmatprep.subr.mxu0 0.0
    %798 = vmatpush1.msra.mxu0 0.0
    %799 = vmatprep.subr.mxu0 0.0
    %800 = vmatpush1.msra.mxu0 0.0
    %801 = vmatprep.subr.mxu0 0.0
    %802 = vmatpush1.msra.mxu0 0.0
    %803 = vmatprep.subr.mxu0 0.0
    %804 = vmatpush1.msra.mxu0 0.0
    %805 = vmatprep.subr.mxu0 0.0
    %806 = vmatpush1.msra.mxu0 0.0
    %807 = vmatprep.subr.mxu0 0.0
    %808 = vmatpush1.msra.mxu0 0.0
    %809 = vmatprep.subr.mxu0 0.0
    %810 = vmatpush1.msra.mxu0 0.0
    %811 = vmatprep.subr.mxu0 0.0
    %812 = vmatpush1.msra.mxu0 0.0
    %813 = vmatprep.subr.mxu0 0.0
    %814 = vmatpush1.msra.mxu0 0.0
    %815 = vmatprep.subr.mxu0 0.0
    %816 = vmatpush1.msra.mxu0 0.0
    %817 = vmatprep.subr.mxu0 0.0
    %818 = vmatpush1.msra.mxu0 0.0
    %819 = vmatprep.subr.mxu0 0.0
    %820 = vmatpush1.msra.mxu0 0.0
    %821 = vmatprep.subr.mxu0 0.0
    %822 = vmatpush1.msra.mxu0 0.0
    %823 = vmatprep.subr.mxu0 0.0
    %824 = vmatpush1.msra.mxu0 0.0
    %825 = vmatprep.subr.mxu0 0.0
    %826 = vmatpush1.msra.mxu0 0.0
    %827 = vmatprep.mubr.f32.mxu0 0.0
    %828 = vmatmul.mubr.f32.gmra.mrb[0].mxu0 %v737
    %v829 = vpop.f32.mrb[0].mxu0
    %v830 = vadd.f32 0.0, %v829
    %v831 = vpop.f32.mrb[0].mxu0
    %832 = vmatprep.mubr.f32.mxu0 0.0
    %833 = vmatmul.mubr.f32.gmra.mrb[0].mxu0 %v740
    %v834 = vpop.f32.mrb[0].mxu0
    %v835 = vadd.f32 0.0, %v834
    %v836 = vpop.f32.mrb[0].mxu0
    %837 = vmatprep.mubr.f32.mxu0 0.0
    %838 = vmatmul.mubr.f32.gmra.mrb[0].mxu0 %v743
    %v839 = vpop.f32.mrb[0].mxu0
    %v840 = vadd.f32 0.0, %v839
    %v841 = vpop.f32.mrb[0].mxu0
    %842 = vmatprep.mubr.f32.mxu0 0.0
    %843 = vmatmul.mubr.f32.gmra.mrb[0].mxu0 %v746
    %v844 = vpop.f32.mrb[0].mxu0
    %v845 = vadd.f32 0.0, %v844
    %v846 = vpop.f32.mrb[0].mxu0
    %847 = vmatprep.mubr.f32.mxu0 0.0
    %848 = vmatmul.mubr.f32.gmra.mrb[0].mxu0 %v749
    %v849 = vpop.f32.mrb[0].mxu0
    %v850 = vadd.f32 0.0, %v849
    %v851 = vpop.f32.mrb[0].mxu0
    %852 = vmatprep.mubr.f32.mxu0 0.0
    %853 = vmatmul.mubr.f32.gmra.mrb[0].mxu0 %v752
    %v854 = vpop.f32.mrb[0].mxu0
    %v855 = vadd.f32 0.0, %v854
    %v856 = vpop.f32.mrb[0].mxu0
    %857 = vmatprep.mubr.f32.mxu0 0.0
    %858 = vmatmul.mubr.f32.gmra.mrb[0].mxu0 %v755
    %v859 = vpop.f32.mrb[0].mxu0
    %v860 = vadd.f32 0.0, %v859
    %v861 = vpop.f32.mrb[0].mxu0
    %862 = vmatprep.mubr.f32.mxu0 0.0
    %863 = vmatmul.mubr.f32.gmra.mrb[0].mxu0 %v758
    %v864 = vpop.f32.mrb[0].mxu0
    %v865 = vadd.f32 0.0, %v864
    %v866 = vpop.f32.mrb[0].mxu0
    %867 = vmatprep.mubr.f32.mxu0 0.0
    %868 = vmatmul.mubr.f32.gmra.mrb[0].mxu0 %v761
    %v869 = vpop.f32.mrb[0].mxu0
    %v870 = vadd.f32 0.0, %v869
    %v871 = vpop.f32.mrb[0].mxu0
    %872 = vdwg.mxu0
    %882 = vrot.lane.b32.xlu0 %v830, 112
    %v883 = vpop.permute.xlu0 %882
    %884 = vrot.lane.b32.xlu0 %v835, 112
    %v885 = vpop.permute.xlu0 %884
    %886 = vrot.lane.b32.xlu0 %v840, 112
    %v887 = vpop.permute.xlu0 %886
    %888 = vrot.lane.b32.xlu0 %v845, 112
    %v889 = vpop.permute.xlu0 %888
    %890 = vrot.lane.b32.xlu0 %v850, 112
    %v891 = vpop.permute.xlu0 %890
    %892 = vrot.lane.b32.xlu0 %v855, 112
    %v893 = vpop.permute.xlu0 %892
    %894 = vrot.lane.b32.xlu0 %v860, 112
    %v895 = vpop.permute.xlu0 %894
    %896 = vrot.lane.b32.xlu0 %v865, 112
    %v897 = vpop.permute.xlu0 %896
    %898 = vrot.lane.b32.xlu0 %v870, 112
    %v899 = vpop.permute.xlu0 %898
    %vm909 = vcmask 588800
    %v911 = vsel %vm909, %v374, 0
    %v914 = vsel %vm909, %v375, 0
    %v917 = vsel %vm909, %v376, 0
    %v920 = vsel %vm909, %v377, 0
    %v923 = vsel %vm909, %v378, 0
    %v926 = vsel %vm909, %v379, 0
    %v929 = vsel %vm909, %v380, 0
    %v932 = vsel %vm909, %v381, 0
    %v935 = vsel %vm909, %v382, 0
    %937 = vmatprep.subr.mxu0 0.0
    %938 = vmatpush1.msra.mxu0 %v830
    %939 = vmatprep.subr.mxu0 0.0
    %940 = vmatpush1.msra.mxu0 %v835
    %941 = vmatprep.subr.mxu0 0.0
    %942 = vmatpush1.msra.mxu0 %v840
    %943 = vmatprep.subr.mxu0 0.0
    %944 = vmatpush1.msra.mxu0 %v845
    %945 = vmatprep.subr.mxu0 0.0
    %946 = vmatpush1.msra.mxu0 %v850
    %947 = vmatprep.subr.mxu0 0.0
    %948 = vmatpush1.msra.mxu0 %v855
    %949 = vmatprep.subr.mxu0 0.0
    %950 = vmatpush1.msra.mxu0 %v860
    %951 = vmatprep.subr.mxu0 0.0
    %952 = vmatpush1.msra.mxu0 %v865
    %953 = vmatprep.subr.mxu0 0.0
    %954 = vmatpush1.msra.mxu0 %v870
    %955 = vmatprep.subr.mxu0 0.0
    %956 = vmatpush1.msra.mxu0 0.0
    %957 = vmatprep.subr.mxu0 0.0
    %958 = vmatpush1.msra.mxu0 0.0
    %959 = vmatprep.subr.mxu0 0.0
    %960 = vmatpush1.msra.mxu0 0.0
    %961 = vmatprep.subr.mxu0 0.0
    %962 = vmatpush1.msra.mxu0 0.0
    %963 = vmatprep.subr.mxu0 0.0
    %964 = vmatpush1.msra.mxu0 0.0
    %965 = vmatprep.subr.mxu0 0.0
    %966 = vmatpush1.msra.mxu0 0.0
    %967 = vmatprep.subr.mxu0 0.0
    %968 = vmatpush1.msra.mxu0 0.0
    %969 = vmatprep.subr.mxu0 0.0
    %970 = vmatpush1.msra.mxu0 0.0
    %971 = vmatprep.subr.mxu0 0.0
    %972 = vmatpush1.msra.mxu0 0.0
    %973 = vmatprep.subr.mxu0 0.0
    %974 = vmatpush1.msra.mxu0 0.0
    %975 = vmatprep.subr.mxu0 0.0
    %976 = vmatpush1.msra.mxu0 0.0
    %977 = vmatprep.subr.mxu0 0.0
    %978 = vmatpush1.msra.mxu0 0.0
    %979 = vmatprep.subr.mxu0 0.0
    %980 = vmatpush1.msra.mxu0 0.0
    %981 = vmatprep.subr.mxu0 0.0
    %982 = vmatpush1.msra.mxu0 0.0
    %983 = vmatprep.subr.mxu0 0.0
    %984 = vmatpush1.msra.mxu0 0.0
    %985 = vmatprep.subr.mxu0 0.0
    %986 = vmatpush1.msra.mxu0 0.0
    %987 = vmatprep.subr.mxu0 0.0
    %988 = vmatpush1.msra.mxu0 0.0
    %989 = vmatprep.subr.mxu0 0.0
    %990 = vmatpush1.msra.mxu0 0.0
    %991 = vmatprep.subr.mxu0 0.0
    %992 = vmatpush1.msra.mxu0 0.0
    %993 = vmatprep.subr.mxu0 0.0
    %994 = vmatpush1.msra.mxu0 0.0
    %995 = vmatprep.subr.mxu0 0.0
    %996 = vmatpush1.msra.mxu0 0.0
    %997 = vmatprep.subr.mxu0 0.0
    %998 = vmatpush1.msra.mxu0 0.0
    %999 = vmatprep.subr.mxu0 0.0
    %1000 = vmatpush1.msra.mxu0 0.0
    %1001 = vmatprep.mubr.f32.mxu0 0.0
    %1002 = vmatmul.mubr.f32.gmra.mrb[0].mxu0 %v911
    %v1003 = vpop.f32.mrb[0].mxu0
    %v1004 = vadd.f32 %v883, %v1003
    %v1005 = vpop.f32.mrb[0].mxu0
    %1006 = vmatprep.mubr.f32.mxu0 0.0
    %1007 = vmatmul.mubr.f32.gmra.mrb[0].mxu0 %v914
    %v1008 = vpop.f32.mrb[0].mxu0
    %v1009 = vadd.f32 %v885, %v1008
    %v1010 = vpop.f32.mrb[0].mxu0
    %1011 = vmatprep.mubr.f32.mxu0 0.0
    %1012 = vmatmul.mubr.f32.gmra.mrb[0].mxu0 %v917
    %v1013 = vpop.f32.mrb[0].mxu0
    %v1014 = vadd.f32 %v887, %v1013
    %v1015 = vpop.f32.mrb[0].mxu0
    %1016 = vmatprep.mubr.f32.mxu0 0.0
    %1017 = vmatmul.mubr.f32.gmra.mrb[0].mxu0 %v920
    %v1018 = vpop.f32.mrb[0].mxu0
    %v1019 = vadd.f32 %v889, %v1018
    %v1020 = vpop.f32.mrb[0].mxu0
    %1021 = vmatprep.mubr.f32.mxu0 0.0
    %1022 = vmatmul.mubr.f32.gmra.mrb[0].mxu0 %v923
    %v1023 = vpop.f32.mrb[0].mxu0
    %v1024 = vadd.f32 %v891, %v1023
    %v1025 = vpop.f32.mrb[0].mxu0
    %1026 = vmatprep.mubr.f32.mxu0 0.0
    %1027 = vmatmul.mubr.f32.gmra.mrb[0].mxu0 %v926
    %v1028 = vpop.f32.mrb[0].mxu0
    %v1029 = vadd.f32 %v893, %v1028
    %v1030 = vpop.f32.mrb[0].mxu0
    %1031 = vmatprep.mubr.f32.mxu0 0.0
    %1032 = vmatmul.mubr.f32.gmra.mrb[0].mxu0 %v929
    %v1033 = vpop.f32.mrb[0].mxu0
    %v1034 = vadd.f32 %v895, %v1033
    %v1035 = vpop.f32.mrb[0].mxu0
    %1036 = vmatprep.mubr.f32.mxu0 0.0
    %1037 = vmatmul.mubr.f32.gmra.mrb[0].mxu0 %v932
    %v1038 = vpop.f32.mrb[0].mxu0
    %v1039 = vadd.f32 %v897, %v1038
    %v1040 = vpop.f32.mrb[0].mxu0
    %1041 = vmatprep.mubr.f32.mxu0 0.0
    %1042 = vmatmul.mubr.f32.gmra.mrb[0].mxu0 %v935
    %v1043 = vpop.f32.mrb[0].mxu0
    %v1044 = vadd.f32 %v899, %v1043
    %v1045 = vpop.f32.mrb[0].mxu0
    %1046 = vdwg.mxu0
    %v1047 = vld [vmem:[#allocation18] sm:$0x1]
    %v1049 = vlaneseq
    %v1050 = vshrl.u32 %v1049, 7
    %v1051 = vsub.s32 0, %v1050
    %v1052 = vrot.slane %v1047, %v1051
    %v1054 = vadd.f32 %v1004, %v1052
    %v1055 = vadd.f32 %v1009, %v1052
    %v1056 = vadd.f32 %v1014, %v1052
    %v1057 = vadd.f32 %v1019, %v1052
    %v1058 = vadd.f32 %v1024, %v1052
    %v1059 = vadd.f32 %v1029, %v1052
    %v1060 = vadd.f32 %v1034, %v1052
    %v1061 = vadd.f32 %v1039, %v1052
    %v1062 = vadd.f32 %v1044, %v1052
    %v1063 = vmul.f32 %v1054, %v1054
    %v1064 = vmul.f32 %v1055, %v1055
    %v1065 = vmul.f32 %v1056, %v1056
    %v1066 = vmul.f32 %v1057, %v1057
    %v1067 = vmul.f32 %v1058, %v1058
    %v1068 = vmul.f32 %v1059, %v1059
    %v1069 = vmul.f32 %v1060, %v1060
    %v1070 = vmul.f32 %v1061, %v1061
    %v1071 = vmul.f32 %v1062, %v1062
    %v1072 = vmul.f32 %v1054, %v1063
    %v1073 = vmul.f32 %v1055, %v1064
    %v1074 = vmul.f32 %v1056, %v1065
    %v1075 = vmul.f32 %v1057, %v1066
    %v1076 = vmul.f32 %v1058, %v1067
    %v1077 = vmul.f32 %v1059, %v1068
    %v1078 = vmul.f32 %v1060, %v1069
    %v1079 = vmul.f32 %v1061, %v1070
    %v1080 = vmul.f32 %v1062, %v1071
    %v1081 = vmul.f32 %v1072, 0.044715
    %v1082 = vmul.f32 %v1073, 0.044715
    %v1083 = vmul.f32 %v1074, 0.044715
    %v1084 = vmul.f32 %v1075, 0.044715
    %v1085 = vmul.f32 %v1076, 0.044715
    %v1086 = vmul.f32 %v1077, 0.044715
    %v1087 = vmul.f32 %v1078, 0.044715
    %v1088 = vmul.f32 %v1079, 0.044715
    %v1089 = vmul.f32 %v1080, 0.044715
    %v1090 = vadd.f32 %v1054, %v1081
    %v1091 = vadd.f32 %v1055, %v1082
    %v1092 = vadd.f32 %v1056, %v1083
    %v1093 = vadd.f32 %v1057, %v1084
    %v1094 = vadd.f32 %v1058, %v1085
    %v1095 = vadd.f32 %v1059, %v1086
    %v1096 = vadd.f32 %v1060, %v1087
    %v1097 = vadd.f32 %v1061, %v1088
    %v1098 = vadd.f32 %v1062, %v1089
    %v1099 = vmul.f32 %v1090, 0.7978846
    %v1100 = vmul.f32 %v1091, 0.7978846
    %v1101 = vmul.f32 %v1092, 0.7978846
    %v1102 = vmul.f32 %v1093, 0.7978846
    %v1103 = vmul.f32 %v1094, 0.7978846
    %v1104 = vmul.f32 %v1095, 0.7978846
    %v1105 = vmul.f32 %v1096, 0.7978846
    %v1106 = vmul.f32 %v1097, 0.7978846
    %v1107 = vmul.f32 %v1098, 0.7978846
    %v1108 = vtanh.pop %v1099
    %v1109 = vtanh.pop %v1100
    %v1110 = vtanh.pop %v1101
    %v1111 = vtanh.pop %v1102
    %v1112 = vtanh.pop %v1103
    %v1113 = vtanh.pop %v1104
    %v1114 = vtanh.pop %v1105
    %v1115 = vtanh.pop %v1106
    %v1116 = vtanh.pop %v1107
    %v1117 = vadd.f32 %v1108, 1.0
    %v1118 = vadd.f32 %v1109, 1.0
    %v1119 = vadd.f32 %v1110, 1.0
    %v1120 = vadd.f32 %v1111, 1.0
    %v1121 = vadd.f32 %v1112, 1.0
    %v1122 = vadd.f32 %v1113, 1.0
    %v1123 = vadd.f32 %v1114, 1.0
    %v1124 = vadd.f32 %v1115, 1.0
    %v1125 = vadd.f32 %v1116, 1.0
    %v1126 = vmul.f32 %v1117, 0.5
    %v1127 = vmul.f32 %v1118, 0.5
    %v1128 = vmul.f32 %v1119, 0.5
    %v1129 = vmul.f32 %v1120, 0.5
    %v1130 = vmul.f32 %v1121, 0.5
    %v1131 = vmul.f32 %v1122, 0.5
    %v1132 = vmul.f32 %v1123, 0.5
    %v1133 = vmul.f32 %v1124, 0.5
    %v1134 = vmul.f32 %v1125, 0.5
    %v1135 = vmul.f32 %v1054, %v1126
    %v1136 = vmul.f32 %v1055, %v1127
    %v1137 = vmul.f32 %v1056, %v1128
    %v1138 = vmul.f32 %v1057, %v1129
    %v1139 = vmul.f32 %v1058, %v1130
    %v1140 = vmul.f32 %v1059, %v1131
    %v1141 = vmul.f32 %v1060, %v1132
    %v1142 = vmul.f32 %v1061, %v1133
    %v1143 = vmul.f32 %v1062, %v1134
    %1144 = vst.msk [vmem:[#allocation3] sm:$0xff] %vm693, %v1135
    %1146 = vrot.lane.b32.xlu0 %v1136, 16
    %v1147 = vpop.permute.xlu0 %1146
    %vm1149 = vcmask 261248
    %1150 = vst.msk [vmem:[#allocation3] sm:$0xff] %vm1149, %v1147
    %1152 = vrot.lane.b32.xlu0 %v1137, 32
    %v1153 = vpop.permute.xlu0 %1152
    %vm1155 = vcmask 392448
    %1156 = vst.msk [vmem:[#allocation3] sm:$0xff] %vm1155, %v1153
    %1158 = vrot.lane.b32.xlu0 %v1138, 48
    %v1159 = vpop.permute.xlu0 %1158
    %vm1161 = vcmask 523648
    %1162 = vst.msk [vmem:[#allocation3] sm:$0xff] %vm1161, %v1159
    %1164 = vrot.lane.b32.xlu0 %v1139, 64
    %v1165 = vpop.permute.xlu0 %1164
    %vm1167 = vcmask 654848
    %1168 = vst.msk [vmem:[#allocation3] sm:$0xff] %vm1167, %v1165
    %1170 = vrot.lane.b32.xlu0 %v1140, 80
    %v1171 = vpop.permute.xlu0 %1170
    %vm1173 = vcmask 786048
    %1174 = vst.msk [vmem:[#allocation3] sm:$0xff] %vm1173, %v1171
    %1176 = vrot.lane.b32.xlu0 %v1141, 96
    %v1177 = vpop.permute.xlu0 %1176
    %vm1179 = vcmask 917248
    %1180 = vst.msk [vmem:[#allocation3] sm:$0xff] %vm1179, %v1177
    %1182 = vrot.lane.b32.xlu0 %v1142, 112
    %v1183 = vpop.permute.xlu0 %1182
    %vm1185 = vcmask 1048448
    %1186 = vst.msk [vmem:[#allocation3] sm:$0xff] %vm1185, %v1183
    %1187 = vst.msk [vmem:[#allocation3 + $0x8] sm:$0xff] %vm693, %v1143
    %v1188 = vld [vmem:[#allocation3] sm:$0xff]
    %v1189 = vld [vmem:[#allocation3 + $0x8] sm:$0xff]
    %v1190 = vadd.f32 %v1188, %v689
    %v1191 = vadd.f32 %v1189, %v691
    %v1192 = vsel %vm693, %v1191, 0.0
    %v1193 = vadd.f32 %v1190, %v1192
    %1194 = vadd.xlane.f32.xlu0 %v1193
    %v1195 = vpop.xlane.xlu0 %1194
    %v1196 = vrcp.pop 144.0
    %v1197 = vmul.f32 %v1195, %v1196
    %v1198 = vsub.f32 %v1190, %v1197
    %v1199 = vsub.f32 %v1191, %v1197
    %v1200 = vmul.f32 %v1198, %v1198
    %v1201 = vmul.f32 %v1199, %v1199
    %v1202 = vsel %vm693, %v1201, 0.0
    %v1203 = vadd.f32 %v1200, %v1202
    %1204 = vadd.xlane.f32.xlu0 %v1203
    %v1205 = vpop.xlane.xlu0 %1204
    %v1206 = vmul.f32 %v1205, %v1196
    %v1207 = vadd.f32 %v1206, 1e-05
    %v1208 = vrsqrt.pop %v1207
    %v1209 = vmul.f32 %v1198, %v1208
    %v1210 = vmul.f32 %v1199, %v1208
    %v1211 = vld [vmem:[#allocation20] sm:$0xff]
    %v1212 = vld [vmem:[#allocation20 + $0x8] sm:$0xff]
    %v1213 = vld [vmem:[#allocation20 + $0x10] sm:$0xff]
    %v1214 = vld [vmem:[#allocation20 + $0x18] sm:$0xff]
    %v1215 = vld [vmem:[#allocation20 + $0x20] sm:$0xff]
    %v1216 = vld [vmem:[#allocation20 + $0x28] sm:$0xff]
    %v1217 = vld [vmem:[#allocation20 + $0x30] sm:$0xff]
    %v1218 = vld [vmem:[#allocation20 + $0x38] sm:$0xff]
    %v1219 = vld [vmem:[#allocation20 + $0x40] sm:$0xff]
    %v1220 = vld [vmem:[#allocation20 + $0x48] sm:$0xff]
    %v1221 = vld [vmem:[#allocation20 + $0x50] sm:$0xff]
    %v1222 = vld [vmem:[#allocation20 + $0x58] sm:$0xff]
    %v1223 = vld [vmem:[#allocation20 + $0x60] sm:$0xff]
    %v1224 = vld [vmem:[#allocation20 + $0x68] sm:$0xff]
    %v1225 = vld [vmem:[#allocation20 + $0x70] sm:$0xff]
    %v1226 = vld [vmem:[#allocation20 + $0x78] sm:$0xff]
    %v1227 = vld [vmem:[#allocation20 + $0x80] sm:$0xff]
    %v1228 = vld [vmem:[#allocation20 + $0x88] sm:$0xff]
    %v1229 = vld [vmem:[#allocation20 + $0x90] sm:$0xff]
    %v1230 = vld [vmem:[#allocation20 + $0x98] sm:$0xff]
    %v1231 = vld [vmem:[#allocation20 + $0xa0] sm:$0xff]
    %v1232 = vld [vmem:[#allocation20 + $0xa8] sm:$0xff]
    %v1233 = vld [vmem:[#allocation20 + $0xb0] sm:$0xff]
    %v1234 = vld [vmem:[#allocation20 + $0xb8] sm:$0xff]
    %v1235 = vld [vmem:[#allocation20 + $0xc0] sm:$0xff]
    %v1236 = vld [vmem:[#allocation20 + $0xc8] sm:$0xff]
    %v1237 = vld [vmem:[#allocation20 + $0xd0] sm:$0xff]
    %v1238 = vld [vmem:[#allocation20 + $0xd8] sm:$0xff]
    %v1239 = vld [vmem:[#allocation20 + $0xe0] sm:$0xff]
    %v1240 = vld [vmem:[#allocation20 + $0xe8] sm:$0xff]
    %v1241 = vld [vmem:[#allocation20 + $0xf0] sm:$0xff]
    %v1242 = vld [vmem:[#allocation20 + $0xf8] sm:$0xff]
    %v1243 = vld [vmem:[#allocation20 + $0x100] sm:$0xff]
    %v1244 = vld [vmem:[#allocation20 + $0x108] sm:$0xff]
    %v1245 = vld [vmem:[#allocation20 + $0x110] sm:$0xff]
    %v1246 = vld [vmem:[#allocation20 + $0x118] sm:$0xff]
    %v1247 = vld [vmem:[#allocation20 + $0x120] sm:$0xff]
    %v1248 = vld [vmem:[#allocation20 + $0x128] sm:$0xff]
    %v1249 = vld [vmem:[#allocation20 + $0x130] sm:$0xff]
    %v1250 = vld [vmem:[#allocation20 + $0x138] sm:$0xff]
    %v1251 = vld [vmem:[#allocation20 + $0x140] sm:$0xff]
    %v1252 = vld [vmem:[#allocation20 + $0x148] sm:$0xff]
    %v1253 = vld [vmem:[#allocation20 + $0x150] sm:$0xff]
    %v1254 = vld [vmem:[#allocation20 + $0x158] sm:$0xff]
    %v1255 = vld [vmem:[#allocation20 + $0x160] sm:$0xff]
    %v1256 = vld [vmem:[#allocation20 + $0x168] sm:$0xff]
    %v1257 = vld [vmem:[#allocation20 + $0x170] sm:$0xff]
    %v1258 = vld [vmem:[#allocation20 + $0x178] sm:$0xff]
    %v1259 = vld [vmem:[#allocation20 + $0x180] sm:$0xff]
    %v1260 = vld [vmem:[#allocation20 + $0x188] sm:$0xff]
    %v1261 = vld [vmem:[#allocation20 + $0x190] sm:$0xff]
    %v1262 = vld [vmem:[#allocation20 + $0x198] sm:$0xff]
    %v1263 = vld [vmem:[#allocation20 + $0x1a0] sm:$0xff]
    %v1264 = vld [vmem:[#allocation20 + $0x1a8] sm:$0xff]
    %v1265 = vld [vmem:[#allocation20 + $0x1b0] sm:$0xff]
    %v1266 = vld [vmem:[#allocation20 + $0x1b8] sm:$0xff]
    %v1267 = vld [vmem:[#allocation20 + $0x1c0] sm:$0xff]
    %v1268 = vld [vmem:[#allocation20 + $0x1c8] sm:$0xff]
    %v1269 = vld [vmem:[#allocation20 + $0x1d0] sm:$0xff]
    %v1270 = vld [vmem:[#allocation20 + $0x1d8] sm:$0xff]
    %v1271 = vld [vmem:[#allocation20 + $0x1e0] sm:$0xff]
    %v1272 = vld [vmem:[#allocation20 + $0x1e8] sm:$0xff]
    %v1273 = vld [vmem:[#allocation20 + $0x1f0] sm:$0xff]
    %v1274 = vld [vmem:[#allocation20 + $0x1f8] sm:$0xff]
    %v1275 = vld [vmem:[#allocation20 + $0x200] sm:$0xff]
    %v1276 = vld [vmem:[#allocation20 + $0x208] sm:$0xff]
    %v1277 = vld [vmem:[#allocation20 + $0x210] sm:$0xff]
    %v1278 = vld [vmem:[#allocation20 + $0x218] sm:$0xff]
    %v1279 = vld [vmem:[#allocation20 + $0x220] sm:$0xff]
    %v1280 = vld [vmem:[#allocation20 + $0x228] sm:$0xff]
    %v1281 = vld [vmem:[#allocation20 + $0x230] sm:$0xff]
    %v1282 = vld [vmem:[#allocation20 + $0x238] sm:$0xff]
    %v1283 = vld [vmem:[#allocation20 + $0x240] sm:$0xff]
    %v1284 = vld [vmem:[#allocation20 + $0x248] sm:$0xff]
    %v1285 = vld [vmem:[#allocation20 + $0x250] sm:$0xff]
    %v1286 = vld [vmem:[#allocation20 + $0x258] sm:$0xff]
    %v1287 = vld [vmem:[#allocation20 + $0x260] sm:$0xff]
    %v1288 = vld [vmem:[#allocation20 + $0x268] sm:$0xff]
    %v1289 = vld [vmem:[#allocation20 + $0x270] sm:$0xff]
    %v1290 = vld [vmem:[#allocation20 + $0x278] sm:$0xff]
    %v1291 = vld [vmem:[#allocation20 + $0x280] sm:$0xff]
    %v1292 = vld [vmem:[#allocation20 + $0x288] sm:$0xff]
    %v1293 = vld [vmem:[#allocation20 + $0x290] sm:$0xff]
    %v1294 = vld [vmem:[#allocation20 + $0x298] sm:$0xff]
    %v1295 = vld [vmem:[#allocation20 + $0x2a0] sm:$0xff]
    %v1296 = vld [vmem:[#allocation20 + $0x2a8] sm:$0xff]
    %v1297 = vld [vmem:[#allocation20 + $0x2b0] sm:$0xff]
    %v1298 = vld [vmem:[#allocation20 + $0x2b8] sm:$0xff]
    %v1299 = vld [vmem:[#allocation20 + $0x2c0] sm:$0xff]
    %v1300 = vld [vmem:[#allocation20 + $0x2c8] sm:$0xff]
    %v1301 = vld [vmem:[#allocation21] sm:$0x1f]
    %v1303 = vlaneseq
    %v1304 = vshrl.u32 %v1303, 7
    %v1305 = vsub.s32 0, %v1304
    %v1306 = vrot.slane %v1301, %v1305
    %v1307 = vlaneseq
    %v1308 = vshrl.u32 %v1307, 7
    %v1309 = vsub.s32 1, %v1308
    %v1310 = vrot.slane %v1301, %v1309
    %v1311 = vlaneseq
    %v1312 = vshrl.u32 %v1311, 7
    %v1313 = vsub.s32 2, %v1312
    %v1314 = vrot.slane %v1301, %v1313
    %v1315 = vlaneseq
    %v1316 = vshrl.u32 %v1315, 7
    %v1317 = vsub.s32 3, %v1316
    %v1318 = vrot.slane %v1301, %v1317
    %v1319 = vlaneseq
    %v1320 = vshrl.u32 %v1319, 7
    %v1321 = vsub.s32 4, %v1320
    %v1322 = vrot.slane %v1301, %v1321
    %v1329 = vsel %vm693, %v1210, 0
    %1331 = vmatprep.subr.mxu0 %v1212
    %1332 = vmatpush1.msra.mxu0 %v1211
    %1333 = vmatprep.subr.mxu0 %v1217
    %1334 = vmatpush1.msra.mxu0 %v1216
    %1335 = vmatprep.subr.mxu0 %v1222
    %1336 = vmatpush1.msra.mxu0 %v1221
    %1337 = vmatprep.subr.mxu0 %v1227
    %1338 = vmatpush1.msra.mxu0 %v1226
    %1339 = vmatprep.subr.mxu0 %v1232
    %1340 = vmatpush1.msra.mxu0 %v1231
    %1341 = vmatprep.subr.mxu0 %v1237
    %1342 = vmatpush1.msra.mxu0 %v1236
    %1343 = vmatprep.subr.mxu0 %v1242
    %1344 = vmatpush1.msra.mxu0 %v1241
    %1345 = vmatprep.subr.mxu0 %v1247
    %1346 = vmatpush1.msra.mxu0 %v1246
    %1347 = vmatprep.subr.mxu0 %v1252
    %1348 = vmatpush1.msra.mxu0 %v1251
    %1349 = vmatprep.subr.mxu0 %v1257
    %1350 = vmatpush1.msra.mxu0 %v1256
    %1351 = vmatprep.subr.mxu0 %v1262
    %1352 = vmatpush1.msra.mxu0 %v1261
    %1353 = vmatprep.subr.mxu0 %v1267
    %1354 = vmatpush1.msra.mxu0 %v1266
    %1355 = vmatprep.subr.mxu0 %v1272
    %1356 = vmatpush1.msra.mxu0 %v1271
    %1357 = vmatprep.subr.mxu0 %v1277
    %1358 = vmatpush1.msra.mxu0 %v1276
    %1359 = vmatprep.subr.mxu0 %v1282
    %1360 = vmatpush1.msra.mxu0 %v1281
    %1361 = vmatprep.subr.mxu0 %v1287
    %1362 = vmatpush1.msra.mxu0 %v1286
    %1363 = vmatprep.subr.mxu0 %v1292
    %1364 = vmatpush1.msra.mxu0 %v1291
    %1365 = vmatprep.subr.mxu0 %v1297
    %1366 = vmatpush1.msra.mxu0 %v1296
    %1367 = vmatprep.subr.mxu0 0.0
    %1368 = vmatpush1.msra.mxu0 0.0
    %1369 = vmatprep.subr.mxu0 0.0
    %1370 = vmatpush1.msra.mxu0 0.0
    %1371 = vmatprep.subr.mxu0 0.0
    %1372 = vmatpush1.msra.mxu0 0.0
    %1373 = vmatprep.subr.mxu0 0.0
    %1374 = vmatpush1.msra.mxu0 0.0
    %1375 = vmatprep.subr.mxu0 0.0
    %1376 = vmatpush1.msra.mxu0 0.0
    %1377 = vmatprep.subr.mxu0 0.0
    %1378 = vmatpush1.msra.mxu0 0.0
    %1379 = vmatprep.subr.mxu0 0.0
    %1380 = vmatpush1.msra.mxu0 0.0
    %1381 = vmatprep.subr.mxu0 0.0
    %1382 = vmatpush1.msra.mxu0 0.0
    %1383 = vmatprep.subr.mxu0 0.0
    %1384 = vmatpush1.msra.mxu0 0.0
    %1385 = vmatprep.subr.mxu0 0.0
    %1386 = vmatpush1.msra.mxu0 0.0
    %1387 = vmatprep.subr.mxu0 0.0
    %1388 = vmatpush1.msra.mxu0 0.0
    %1389 = vmatprep.subr.mxu0 0.0
    %1390 = vmatpush1.msra.mxu0 0.0
    %1391 = vmatprep.subr.mxu0 0.0
    %1392 = vmatpush1.msra.mxu0 0.0
    %1393 = vmatprep.subr.mxu0 0.0
    %1394 = vmatpush1.msra.mxu0 0.0
    %1395 = vmatprep.mubr.f32.mxu0 %v1329
    %1396 = vmatmul.mubr.f32.gmra.mrb[0].mxu0 %v1209
    %v1397 = vpop.f32.mrb[0].mxu0
    %v1398 = vadd.f32 %v1306, %v1397
    %v1399 = vpop.f32.mrb[0].mxu0
    %v1400 = vadd.f32 %v1310, %v1399
    %1401 = vdwg.mxu0
    %1402 = vmatprep.subr.mxu0 %v1214
    %1403 = vmatpush1.msra.mxu0 %v1213
    %1404 = vmatprep.subr.mxu0 %v1219
    %1405 = vmatpush1.msra.mxu0 %v1218
    %1406 = vmatprep.subr.mxu0 %v1224
    %1407 = vmatpush1.msra.mxu0 %v1223
    %1408 = vmatprep.subr.mxu0 %v1229
    %1409 = vmatpush1.msra.mxu0 %v1228
    %1410 = vmatprep.subr.mxu0 %v1234
    %1411 = vmatpush1.msra.mxu0 %v1233
    %1412 = vmatprep.subr.mxu0 %v1239
    %1413 = vmatpush1.msra.mxu0 %v1238
    %1414 = vmatprep.subr.mxu0 %v1244
    %1415 = vmatpush1.msra.mxu0 %v1243
    %1416 = vmatprep.subr.mxu0 %v1249
    %1417 = vmatpush1.msra.mxu0 %v1248
    %1418 = vmatprep.subr.mxu0 %v1254
    %1419 = vmatpush1.msra.mxu0 %v1253
    %1420 = vmatprep.subr.mxu0 %v1259
    %1421 = vmatpush1.msra.mxu0 %v1258
    %1422 = vmatprep.subr.mxu0 %v1264
    %1423 = vmatpush1.msra.mxu0 %v1263
    %1424 = vmatprep.subr.mxu0 %v1269
    %1425 = vmatpush1.msra.mxu0 %v1268
    %1426 = vmatprep.subr.mxu0 %v1274
    %1427 = vmatpush1.msra.mxu0 %v1273
    %1428 = vmatprep.subr.mxu0 %v1279
    %1429 = vmatpush1.msra.mxu0 %v1278
    %1430 = vmatprep.subr.mxu0 %v1284
    %1431 = vmatpush1.msra.mxu0 %v1283
    %1432 = vmatprep.subr.mxu0 %v1289
    %1433 = vmatpush1.msra.mxu0 %v1288
    %1434 = vmatprep.subr.mxu0 %v1294
    %1435 = vmatpush1.msra.mxu0 %v1293
    %1436 = vmatprep.subr.mxu0 %v1299
    %1437 = vmatpush1.msra.mxu0 %v1298
    %1438 = vmatprep.subr.mxu0 0.0
    %1439 = vmatpush1.msra.mxu0 0.0
    %1440 = vmatprep.subr.mxu0 0.0
    %1441 = vmatpush1.msra.mxu0 0.0
    %1442 = vmatprep.subr.mxu0 0.0
    %1443 = vmatpush1.msra.mxu0 0.0
    %1444 = vmatprep.subr.mxu0 0.0
    %1445 = vmatpush1.msra.mxu0 0.0
    %1446 = vmatprep.subr.mxu0 0.0
    %1447 = vmatpush1.msra.mxu0 0.0
    %1448 = vmatprep.subr.mxu0 0.0
    %1449 = vmatpush1.msra.mxu0 0.0
    %1450 = vmatprep.subr.mxu0 0.0
    %1451 = vmatpush1.msra.mxu0 0.0
    %1452 = vmatprep.subr.mxu0 0.0
    %1453 = vmatpush1.msra.mxu0 0.0
    %1454 = vmatprep.subr.mxu0 0.0
    %1455 = vmatpush1.msra.mxu0 0.0
    %1456 = vmatprep.subr.mxu0 0.0
    %1457 = vmatpush1.msra.mxu0 0.0
    %1458 = vmatprep.subr.mxu0 0.0
    %1459 = vmatpush1.msra.mxu0 0.0
    %1460 = vmatprep.subr.mxu0 0.0
    %1461 = vmatpush1.msra.mxu0 0.0
    %1462 = vmatprep.subr.mxu0 0.0
    %1463 = vmatpush1.msra.mxu0 0.0
    %1464 = vmatprep.subr.mxu0 0.0
    %1465 = vmatpush1.msra.mxu0 0.0
    %1466 = vmatprep.mubr.f32.mxu0 %v1329
    %1467 = vmatmul.mubr.f32.gmra.mrb[0].mxu0 %v1209
    %v1468 = vpop.f32.mrb[0].mxu0
    %v1469 = vadd.f32 %v1314, %v1468
    %v1470 = vpop.f32.mrb[0].mxu0
    %v1471 = vadd.f32 %v1318, %v1470
    %1472 = vdwg.mxu0
    %1473 = vmatprep.subr.mxu0 0.0
    %1474 = vmatpush1.msra.mxu0 %v1215
    %1475 = vmatprep.subr.mxu0 0.0
    %1476 = vmatpush1.msra.mxu0 %v1220
    %1477 = vmatprep.subr.mxu0 0.0
    %1478 = vmatpush1.msra.mxu0 %v1225
    %1479 = vmatprep.subr.mxu0 0.0
    %1480 = vmatpush1.msra.mxu0 %v1230
    %1481 = vmatprep.subr.mxu0 0.0
    %1482 = vmatpush1.msra.mxu0 %v1235
    %1483 = vmatprep.subr.mxu0 0.0
    %1484 = vmatpush1.msra.mxu0 %v1240
    %1485 = vmatprep.subr.mxu0 0.0
    %1486 = vmatpush1.msra.mxu0 %v1245
    %1487 = vmatprep.subr.mxu0 0.0
    %1488 = vmatpush1.msra.mxu0 %v1250
    %1489 = vmatprep.subr.mxu0 0.0
    %1490 = vmatpush1.msra.mxu0 %v1255
    %1491 = vmatprep.subr.mxu0 0.0
    %1492 = vmatpush1.msra.mxu0 %v1260
    %1493 = vmatprep.subr.mxu0 0.0
    %1494 = vmatpush1.msra.mxu0 %v1265
    %1495 = vmatprep.subr.mxu0 0.0
    %1496 = vmatpush1.msra.mxu0 %v1270
    %1497 = vmatprep.subr.mxu0 0.0
    %1498 = vmatpush1.msra.mxu0 %v1275
    %1499 = vmatprep.subr.mxu0 0.0
    %1500 = vmatpush1.msra.mxu0 %v1280
    %1501 = vmatprep.subr.mxu0 0.0
    %1502 = vmatpush1.msra.mxu0 %v1285
    %1503 = vmatprep.subr.mxu0 0.0
    %1504 = vmatpush1.msra.mxu0 %v1290
    %1505 = vmatprep.subr.mxu0 0.0
    %1506 = vmatpush1.msra.mxu0 %v1295
    %1507 = vmatprep.subr.mxu0 0.0
    %1508 = vmatpush1.msra.mxu0 %v1300
    %1509 = vmatprep.subr.mxu0 0.0
    %1510 = vmatpush1.msra.mxu0 0.0
    %1511 = vmatprep.subr.mxu0 0.0
    %1512 = vmatpush1.msra.mxu0 0.0
    %1513 = vmatprep.subr.mxu0 0.0
    %1514 = vmatpush1.msra.mxu0 0.0
    %1515 = vmatprep.subr.mxu0 0.0
    %1516 = vmatpush1.msra.mxu0 0.0
    %1517 = vmatprep.subr.mxu0 0.0
    %1518 = vmatpush1.msra.mxu0 0.0
    %1519 = vmatprep.subr.mxu0 0.0
    %1520 = vmatpush1.msra.mxu0 0.0
    %1521 = vmatprep.subr.mxu0 0.0
    %1522 = vmatpush1.msra.mxu0 0.0
    %1523 = vmatprep.subr.mxu0 0.0
    %1524 = vmatpush1.msra.mxu0 0.0
    %1525 = vmatprep.subr.mxu0 0.0
    %1526 = vmatpush1.msra.mxu0 0.0
    %1527 = vmatprep.subr.mxu0 0.0
    %1528 = vmatpush1.msra.mxu0 0.0
    %1529 = vmatprep.subr.mxu0 0.0
    %1530 = vmatpush1.msra.mxu0 0.0
    %1531 = vmatprep.subr.mxu0 0.0
    %1532 = vmatpush1.msra.mxu0 0.0
    %1533 = vmatprep.subr.mxu0 0.0
    %1534 = vmatpush1.msra.mxu0 0.0
    %1535 = vmatprep.subr.mxu0 0.0
    %1536 = vmatpush1.msra.mxu0 0.0
    %1537 = vmatprep.mubr.f32.mxu0 %v1329
    %1538 = vmatmul.mubr.f32.gmra.mrb[0].mxu0 %v1209
    %v1539 = vpop.f32.mrb[0].mxu0
    %v1540 = vadd.f32 %v1322, %v1539
    %v1541 = vpop.f32.mrb[0].mxu0
    %1542 = vdwg.mxu0
    %v1543 = vxor.u32 %v1469, 2147483648
    %v1544 = vxor.u32 %v1471, 2147483648
    %v1545 = vxor.u32 %v1540, 2147483648
    %v1546 = vmul.f32 %v1543, 1.442695
    %v1547 = vpow.pop %v1546
    %v1548 = vmul.f32 %v1544, 1.442695
    %v1549 = vpow.pop %v1548
    %v1550 = vmul.f32 %v1545, 1.442695
    %v1551 = vpow.pop %v1550
    %v1552 = vadd.f32 %v1547, 1.0
    %v1553 = vadd.f32 %v1549, 1.0
    %v1554 = vadd.f32 %v1551, 1.0
    %v1555 = vrcp.pop %v1552
    %v1556 = vmul.f32 1.0, %v1555
    %v1557 = vrcp.pop %v1553
    %v1558 = vmul.f32 1.0, %v1557
    %v1559 = vrcp.pop %v1554
    %v1560 = vmul.f32 1.0, %v1559
    %1564 = vrot.lane.b32.xlu0 %v1556, 96
    %v1565 = vpop.permute.xlu0 %1564
    %1566 = vrot.lane.b32.xlu0 %v1558, 96
    %v1567 = vpop.permute.xlu0 %1566
    %1568 = vrot.lane.b32.xlu0 %v1560, 96
    %v1569 = vpop.permute.xlu0 %1568
    %vm1570 = vcmask 785408
    %v1571 = vsel %vm1570, %v1565, %v1567
    %v1572 = vsel %vm1570, %v1567, %v1569
    %v1576 = vmul.f32 %v1398, %v1571
    %v1577 = vmul.f32 %v1400, %v1572
    %v1578 = vmul.f32 %v1469, %v1569
    %v1579 = vld [vmem:[#allocation23] sm:$0x7]
    %v1581 = vlaneseq
    %v1582 = vshrl.u32 %v1581, 7
    %v1583 = vsub.s32 0, %v1582
    %v1584 = vrot.slane %v1579, %v1583
    %v1585 = vlaneseq
    %v1586 = vshrl.u32 %v1585, 7
    %v1587 = vsub.s32 1, %v1586
    %v1588 = vrot.slane %v1579, %v1587
    %v1589 = vlaneseq
    %v1590 = vshrl.u32 %v1589, 7
    %v1591 = vsub.s32 2, %v1590
    %v1592 = vrot.slane %v1579, %v1591
    %v1596 = vadd.f32 %v1576, %v1584
    %v1597 = vadd.f32 %v1577, %v1588
    %v1598 = vadd.f32 %v1578, %v1592
    %v1599 = vld [vmem:[#allocation24] sm:$0xff]
    %v1600 = vld [vmem:[#allocation24 + $0x8] sm:$0xff]
    %v1601 = vld [vmem:[#allocation24 + $0x10] sm:$0xff]
    %v1602 = vld [vmem:[#allocation24 + $0x18] sm:$0xff]
    %v1603 = vld [vmem:[#allocation24 + $0x20] sm:$0xff]
    %v1604 = vld [vmem:[#allocation24 + $0x28] sm:$0xff]
    %v1605 = vld [vmem:[#allocation24 + $0x30] sm:$0xff]
    %v1606 = vld [vmem:[#allocation24 + $0x38] sm:$0xff]
    %v1607 = vld [vmem:[#allocation24 + $0x40] sm:$0xff]
    %v1608 = vld [vmem:[#allocation24 + $0x48] sm:$0xff]
    %v1609 = vld [vmem:[#allocation24 + $0x50] sm:$0xff]
    %v1610 = vld [vmem:[#allocation24 + $0x58] sm:$0xff]
    %v1611 = vld [vmem:[#allocation24 + $0x60] sm:$0xff]
    %v1612 = vld [vmem:[#allocation24 + $0x68] sm:$0xff]
    %v1613 = vld [vmem:[#allocation24 + $0x70] sm:$0xff]
    %v1614 = vld [vmem:[#allocation24 + $0x78] sm:$0xff]
    %v1615 = vld [vmem:[#allocation24 + $0x80] sm:$0xff]
    %v1616 = vld [vmem:[#allocation24 + $0x88] sm:$0xff]
    %v1617 = vld [vmem:[#allocation24 + $0x90] sm:$0xff]
    %v1618 = vld [vmem:[#allocation24 + $0x98] sm:$0xff]
    %v1619 = vld [vmem:[#allocation24 + $0xa0] sm:$0xff]
    %v1620 = vld [vmem:[#allocation24 + $0xa8] sm:$0xff]
    %v1621 = vld [vmem:[#allocation24 + $0xb0] sm:$0xff]
    %v1622 = vld [vmem:[#allocation24 + $0xb8] sm:$0xff]
    %v1623 = vld [vmem:[#allocation24 + $0xc0] sm:$0xff]
    %v1624 = vld [vmem:[#allocation24 + $0xc8] sm:$0xff]
    %v1625 = vld [vmem:[#allocation24 + $0xd0] sm:$0xff]
    %v1626 = vld [vmem:[#allocation24 + $0xd8] sm:$0xff]
    %v1627 = vld [vmem:[#allocation24 + $0xe0] sm:$0xff]
    %v1628 = vld [vmem:[#allocation24 + $0xe8] sm:$0xff]
    %v1629 = vld [vmem:[#allocation24 + $0xf0] sm:$0xff]
    %v1630 = vld [vmem:[#allocation24 + $0xf8] sm:$0xff]
    %v1631 = vld [vmem:[#allocation24 + $0x100] sm:$0xff]
    %v1632 = vld [vmem:[#allocation24 + $0x108] sm:$0xff]
    %v1633 = vld [vmem:[#allocation24 + $0x110] sm:$0xff]
    %v1634 = vld [vmem:[#allocation24 + $0x118] sm:$0xff]
    %v1635 = vld [vmem:[#allocation24 + $0x120] sm:$0xff]
    %v1636 = vld [vmem:[#allocation24 + $0x128] sm:$0xff]
    %v1637 = vld [vmem:[#allocation24 + $0x130] sm:$0xff]
    %v1638 = vld [vmem:[#allocation24 + $0x138] sm:$0xff]
    %v1639 = vld [vmem:[#allocation24 + $0x140] sm:$0xff]
    %v1640 = vld [vmem:[#allocation24 + $0x148] sm:$0xff]
    %v1641 = vld [vmem:[#allocation24 + $0x150] sm:$0xff]
    %v1642 = vld [vmem:[#allocation24 + $0x158] sm:$0xff]
    %v1643 = vld [vmem:[#allocation24 + $0x160] sm:$0xff]
    %v1644 = vld [vmem:[#allocation24 + $0x168] sm:$0xff]
    %v1645 = vld [vmem:[#allocation24 + $0x170] sm:$0xff]
    %v1646 = vld [vmem:[#allocation24 + $0x178] sm:$0xff]
    %v1647 = vld [vmem:[#allocation24 + $0x180] sm:$0xff]
    %v1648 = vld [vmem:[#allocation24 + $0x188] sm:$0xff]
    %v1649 = vld [vmem:[#allocation24 + $0x190] sm:$0xff]
    %v1650 = vld [vmem:[#allocation24 + $0x198] sm:$0xff]
    %v1651 = vld [vmem:[#allocation24 + $0x1a0] sm:$0xff]
    %v1652 = vld [vmem:[#allocation24 + $0x1a8] sm:$0xff]
    %v1653 = vld [vmem:[#allocation26] sm:$0x7]
    %v1655 = vlaneseq
    %v1656 = vshrl.u32 %v1655, 7
    %v1657 = vsub.s32 0, %v1656
    %v1658 = vrot.slane %v1653, %v1657
    %v1659 = vlaneseq
    %v1660 = vshrl.u32 %v1659, 7
    %v1661 = vsub.s32 1, %v1660
    %v1662 = vrot.slane %v1653, %v1661
    %v1663 = vlaneseq
    %v1664 = vshrl.u32 %v1663, 7
    %v1665 = vsub.s32 2, %v1664
    %v1666 = vrot.slane %v1653, %v1665
    %1670 = vmatprep.subr.mxu0 %v1600
    %1671 = vmatpush1.msra.mxu0 %v1599
    %1672 = vmatprep.subr.mxu0 %v1603
    %1673 = vmatpush1.msra.mxu0 %v1602
    %1674 = vmatprep.subr.mxu0 %v1606
    %1675 = vmatpush1.msra.mxu0 %v1605
    %1676 = vmatprep.subr.mxu0 %v1609
    %1677 = vmatpush1.msra.mxu0 %v1608
    %1678 = vmatprep.subr.mxu0 %v1612
    %1679 = vmatpush1.msra.mxu0 %v1611
    %1680 = vmatprep.subr.mxu0 %v1615
    %1681 = vmatpush1.msra.mxu0 %v1614
    %1682 = vmatprep.subr.mxu0 %v1618
    %1683 = vmatpush1.msra.mxu0 %v1617
    %1684 = vmatprep.subr.mxu0 %v1621
    %1685 = vmatpush1.msra.mxu0 %v1620
    %1686 = vmatprep.subr.mxu0 %v1624
    %1687 = vmatpush1.msra.mxu0 %v1623
    %1688 = vmatprep.subr.mxu0 %v1627
    %1689 = vmatpush1.msra.mxu0 %v1626
    %1690 = vmatprep.subr.mxu0 %v1630
    %1691 = vmatpush1.msra.mxu0 %v1629
    %1692 = vmatprep.subr.mxu0 %v1633
    %1693 = vmatpush1.msra.mxu0 %v1632
    %1694 = vmatprep.subr.mxu0 %v1636
    %1695 = vmatpush1.msra.mxu0 %v1635
    %1696 = vmatprep.subr.mxu0 %v1639
    %1697 = vmatpush1.msra.mxu0 %v1638
    %1698 = vmatprep.subr.mxu0 %v1642
    %1699 = vmatpush1.msra.mxu0 %v1641
    %1700 = vmatprep.subr.mxu0 %v1645
    %1701 = vmatpush1.msra.mxu0 %v1644
    %1702 = vmatprep.subr.mxu0 %v1648
    %1703 = vmatpush1.msra.mxu0 %v1647
    %1704 = vmatprep.subr.mxu0 %v1651
    %1705 = vmatpush1.msra.mxu0 %v1650
    %1706 = vmatprep.subr.mxu0 0.0
    %1707 = vmatpush1.msra.mxu0 0.0
    %1708 = vmatprep.subr.mxu0 0.0
    %1709 = vmatpush1.msra.mxu0 0.0
    %1710 = vmatprep.subr.mxu0 0.0
    %1711 = vmatpush1.msra.mxu0 0.0
    %1712 = vmatprep.subr.mxu0 0.0
    %1713 = vmatpush1.msra.mxu0 0.0
    %1714 = vmatprep.subr.mxu0 0.0
    %1715 = vmatpush1.msra.mxu0 0.0
    %1716 = vmatprep.subr.mxu0 0.0
    %1717 = vmatpush1.msra.mxu0 0.0
    %1718 = vmatprep.subr.mxu0 0.0
    %1719 = vmatpush1.msra.mxu0 0.0
    %1720 = vmatprep.subr.mxu0 0.0
    %1721 = vmatpush1.msra.mxu0 0.0
    %1722 = vmatprep.subr.mxu0 0.0
    %1723 = vmatpush1.msra.mxu0 0.0
    %1724 = vmatprep.subr.mxu0 0.0
    %1725 = vmatpush1.msra.mxu0 0.0
    %1726 = vmatprep.subr.mxu0 0.0
    %1727 = vmatpush1.msra.mxu0 0.0
    %1728 = vmatprep.subr.mxu0 0.0
    %1729 = vmatpush1.msra.mxu0 0.0
    %1730 = vmatprep.subr.mxu0 0.0
    %1731 = vmatpush1.msra.mxu0 0.0
    %1732 = vmatprep.subr.mxu0 0.0
    %1733 = vmatpush1.msra.mxu0 0.0
    %1734 = vmatprep.mubr.f32.mxu0 %v1329
    %1735 = vmatmul.mubr.f32.gmra.mrb[0].mxu0 %v1209
    %v1736 = vpop.f32.mrb[0].mxu0
    %v1737 = vadd.f32 %v1658, %v1736
    %v1738 = vpop.f32.mrb[0].mxu0
    %v1739 = vadd.f32 %v1662, %v1738
    %1740 = vdwg.mxu0
    %1741 = vmatprep.subr.mxu0 0.0
    %1742 = vmatpush1.msra.mxu0 %v1601
    %1743 = vmatprep.subr.mxu0 0.0
    %1744 = vmatpush1.msra.mxu0 %v1604
    %1745 = vmatprep.subr.mxu0 0.0
    %1746 = vmatpush1.msra.mxu0 %v1607
    %1747 = vmatprep.subr.mxu0 0.0
    %1748 = vmatpush1.msra.mxu0 %v1610
    %1749 = vmatprep.subr.mxu0 0.0
    %1750 = vmatpush1.msra.mxu0 %v1613
    %1751 = vmatprep.subr.mxu0 0.0
    %1752 = vmatpush1.msra.mxu0 %v1616
    %1753 = vmatprep.subr.mxu0 0.0
    %1754 = vmatpush1.msra.mxu0 %v1619
    %1755 = vmatprep.subr.mxu0 0.0
    %1756 = vmatpush1.msra.mxu0 %v1622
    %1757 = vmatprep.subr.mxu0 0.0
    %1758 = vmatpush1.msra.mxu0 %v1625
    %1759 = vmatprep.subr.mxu0 0.0
    %1760 = vmatpush1.msra.mxu0 %v1628
    %1761 = vmatprep.subr.mxu0 0.0
    %1762 = vmatpush1.msra.mxu0 %v1631
    %1763 = vmatprep.subr.mxu0 0.0
    %1764 = vmatpush1.msra.mxu0 %v1634
    %1765 = vmatprep.subr.mxu0 0.0
    %1766 = vmatpush1.msra.mxu0 %v1637
    %1767 = vmatprep.subr.mxu0 0.0
    %1768 = vmatpush1.msra.mxu0 %v1640
    %1769 = vmatprep.subr.mxu0 0.0
    %1770 = vmatpush1.msra.mxu0 %v1643
    %1771 = vmatprep.subr.mxu0 0.0
    %1772 = vmatpush1.msra.mxu0 %v1646
    %1773 = vmatprep.subr.mxu0 0.0
    %1774 = vmatpush1.msra.mxu0 %v1649
    %1775 = vmatprep.subr.mxu0 0.0
    %1776 = vmatpush1.msra.mxu0 %v1652
    %1777 = vmatprep.subr.mxu0 0.0
    %1778 = vmatpush1.msra.mxu0 0.0
    %1779 = vmatprep.subr.mxu0 0.0
    %1780 = vmatpush1.msra.mxu0 0.0
    %1781 = vmatprep.subr.mxu0 0.0
    %1782 = vmatpush1.msra.mxu0 0.0
    %1783 = vmatprep.subr.mxu0 0.0
    %1784 = vmatpush1.msra.mxu0 0.0
    %1785 = vmatprep.subr.mxu0 0.0
    %1786 = vmatpush1.msra.mxu0 0.0
    %1787 = vmatprep.subr.mxu0 0.0
    %1788 = vmatpush1.msra.mxu0 0.0
    %1789 = vmatprep.subr.mxu0 0.0
    %1790 = vmatpush1.msra.mxu0 0.0
    %1791 = vmatprep.subr.mxu0 0.0
    %1792 = vmatpush1.msra.mxu0 0.0
    %1793 = vmatprep.subr.mxu0 0.0
    %1794 = vmatpush1.msra.mxu0 0.0
    %1795 = vmatprep.subr.mxu0 0.0
    %1796 = vmatpush1.msra.mxu0 0.0
    %1797 = vmatprep.subr.mxu0 0.0
    %1798 = vmatpush1.msra.mxu0 0.0
    %1799 = vmatprep.subr.mxu0 0.0
    %1800 = vmatpush1.msra.mxu0 0.0
    %1801 = vmatprep.subr.mxu0 0.0
    %1802 = vmatpush1.msra.mxu0 0.0
    %1803 = vmatprep.subr.mxu0 0.0
    %1804 = vmatpush1.msra.mxu0 0.0
    %1805 = vmatprep.mubr.f32.mxu0 %v1329
    %1806 = vmatmul.mubr.f32.gmra.mrb[0].mxu0 %v1209
    %v1807 = vpop.f32.mrb[0].mxu0
    %v1808 = vadd.f32 %v1666, %v1807
    %v1809 = vpop.f32.mrb[0].mxu0
    %1810 = vdwg.mxu0
    %vm1811 = vcmask 261120
    %1812 = vst.msk [vmem:[#allocation2] sm:$0xff] %vm1811, %v1596
    %1814 = vrot.lane.b32.xlu0 %v1596, 96
    %v1815 = vpop.permute.xlu0 %1814
    %1817 = vst.msk [vmem:[#allocation2 + $0x8] sm:$0xff] %vm1811, %v1815
    %1818 = vrot.lane.b32.xlu0 %v1596, 64
    %v1819 = vpop.permute.xlu0 %1818
    %1821 = vst.msk [vmem:[#allocation2 + $0x10] sm:$0xff] %vm1811, %v1819
    %1822 = vrot.lane.b32.xlu0 %v1596, 32
    %v1823 = vpop.permute.xlu0 %1822
    %1825 = vst.msk [vmem:[#allocation2 + $0x18] sm:$0xff] %vm1811, %v1823
    %1826 = vst.msk [vmem:[#allocation2 + $0x20] sm:$0xff] %vm1811, %v1597
    %1828 = vrot.lane.b32.xlu0 %v1597, 96
    %v1829 = vpop.permute.xlu0 %1828
    %1831 = vst.msk [vmem:[#allocation2 + $0x28] sm:$0xff] %vm1811, %v1829
    %1832 = vrot.lane.b32.xlu0 %v1597, 64
    %v1833 = vpop.permute.xlu0 %1832
    %1835 = vst.msk [vmem:[#allocation2 + $0x30] sm:$0xff] %vm1811, %v1833
    %1836 = vrot.lane.b32.xlu0 %v1597, 32
    %v1837 = vpop.permute.xlu0 %1836
    %1839 = vst.msk [vmem:[#allocation2 + $0x38] sm:$0xff] %vm1811, %v1837
    %1840 = vst.msk [vmem:[#allocation2 + $0x40] sm:$0xff] %vm1811, %v1598
    %v1841 = vld [vmem:[#allocation2] sm:$0xff]
    %v1842 = vld [vmem:[#allocation2 + $0x8] sm:$0xff]
    %v1843 = vld [vmem:[#allocation2 + $0x10] sm:$0xff]
    %v1844 = vld [vmem:[#allocation2 + $0x18] sm:$0xff]
    %v1845 = vld [vmem:[#allocation2 + $0x20] sm:$0xff]
    %v1846 = vld [vmem:[#allocation2 + $0x28] sm:$0xff]
    %v1847 = vld [vmem:[#allocation2 + $0x30] sm:$0xff]
    %v1848 = vld [vmem:[#allocation2 + $0x38] sm:$0xff]
    %v1849 = vld [vmem:[#allocation2 + $0x40] sm:$0xff]
    %v1850 = vld [vmem:[#allocation27] sm:$0xff]
    %v1851 = vld [vmem:[#allocation27 + $0x8] sm:$0xff]
    %v1852 = vld [vmem:[#allocation27 + $0x10] sm:$0xff]
    %v1853 = vld [vmem:[#allocation27 + $0x18] sm:$0xff]
    %v1855 = vsel %vm1811, %v1841, 0
    %v1858 = vsel %vm1811, %v1842, 0
    %v1861 = vsel %vm1811, %v1843, 0
    %v1864 = vsel %vm1811, %v1844, 0
    %v1867 = vsel %vm1811, %v1845, 0
    %v1870 = vsel %vm1811, %v1846, 0
    %v1873 = vsel %vm1811, %v1847, 0
    %v1876 = vsel %vm1811, %v1848, 0
    %v1879 = vsel %vm1811, %v1849, 0
    %1881 = vmatprep.subr.mxu0 0.0
    %1882 = vmatpush1.msra.mxu0 %v1850
    %1883 = vmatprep.subr.mxu0 0.0
    %1884 = vmatpush1.msra.mxu0 %v1851
    %1885 = vmatprep.subr.mxu0 0.0
    %1886 = vmatpush1.msra.mxu0 %v1852
    %1887 = vmatprep.subr.mxu0 0.0
    %1888 = vmatpush1.msra.mxu0 %v1853
    %1889 = vmatprep.subr.mxu0 0.0
    %1890 = vmatpush1.msra.mxu0 0.0
    %1891 = vmatprep.subr.mxu0 0.0
    %1892 = vmatpush1.msra.mxu0 0.0
    %1893 = vmatprep.subr.mxu0 0.0
    %1894 = vmatpush1.msra.mxu0 0.0
    %1895 = vmatprep.subr.mxu0 0.0
    %1896 = vmatpush1.msra.mxu0 0.0
    %1897 = vmatprep.subr.mxu0 0.0
    %1898 = vmatpush1.msra.mxu0 0.0
    %1899 = vmatprep.subr.mxu0 0.0
    %1900 = vmatpush1.msra.mxu0 0.0
    %1901 = vmatprep.subr.mxu0 0.0
    %1902 = vmatpush1.msra.mxu0 0.0
    %1903 = vmatprep.subr.mxu0 0.0
    %1904 = vmatpush1.msra.mxu0 0.0
    %1905 = vmatprep.subr.mxu0 0.0
    %1906 = vmatpush1.msra.mxu0 0.0
    %1907 = vmatprep.subr.mxu0 0.0
    %1908 = vmatpush1.msra.mxu0 0.0
    %1909 = vmatprep.subr.mxu0 0.0
    %1910 = vmatpush1.msra.mxu0 0.0
    %1911 = vmatprep.subr.mxu0 0.0
    %1912 = vmatpush1.msra.mxu0 0.0
    %1913 = vmatprep.subr.mxu0 0.0
    %1914 = vmatpush1.msra.mxu0 0.0
    %1915 = vmatprep.subr.mxu0 0.0
    %1916 = vmatpush1.msra.mxu0 0.0
    %1917 = vmatprep.subr.mxu0 0.0
    %1918 = vmatpush1.msra.mxu0 0.0
    %1919 = vmatprep.subr.mxu0 0.0
    %1920 = vmatpush1.msra.mxu0 0.0
    %1921 = vmatprep.subr.mxu0 0.0
    %1922 = vmatpush1.msra.mxu0 0.0
    %1923 = vmatprep.subr.mxu0 0.0
    %1924 = vmatpush1.msra.mxu0 0.0
    %1925 = vmatprep.subr.mxu0 0.0
    %1926 = vmatpush1.msra.mxu0 0.0
    %1927 = vmatprep.subr.mxu0 0.0
    %1928 = vmatpush1.msra.mxu0 0.0
    %1929 = vmatprep.subr.mxu0 0.0
    %1930 = vmatpush1.msra.mxu0 0.0
    %1931 = vmatprep.subr.mxu0 0.0
    %1932 = vmatpush1.msra.mxu0 0.0
    %1933 = vmatprep.subr.mxu0 0.0
    %1934 = vmatpush1.msra.mxu0 0.0
    %1935 = vmatprep.subr.mxu0 0.0
    %1936 = vmatpush1.msra.mxu0 0.0
    %1937 = vmatprep.subr.mxu0 0.0
    %1938 = vmatpush1.msra.mxu0 0.0
    %1939 = vmatprep.subr.mxu0 0.0
    %1940 = vmatpush1.msra.mxu0 0.0
    %1941 = vmatprep.subr.mxu0 0.0
    %1942 = vmatpush1.msra.mxu0 0.0
    %1943 = vmatprep.subr.mxu0 0.0
    %1944 = vmatpush1.msra.mxu0 0.0
    %1945 = vmatprep.mubr.f32.mxu0 0.0
    %1946 = vmatmul.mubr.f32.gmra.mrb[0].mxu0 %v1855
    %v1947 = vpop.f32.mrb[0].mxu0
    %v1948 = vadd.f32 0.0, %v1947
    %v1949 = vpop.f32.mrb[0].mxu0
    %1950 = vmatprep.mubr.f32.mxu0 0.0
    %1951 = vmatmul.mubr.f32.gmra.mrb[0].mxu0 %v1858
    %v1952 = vpop.f32.mrb[0].mxu0
    %v1953 = vadd.f32 0.0, %v1952
    %v1954 = vpop.f32.mrb[0].mxu0
    %1955 = vmatprep.mubr.f32.mxu0 0.0
    %1956 = vmatmul.mubr.f32.gmra.mrb[0].mxu0 %v1861
    %v1957 = vpop.f32.mrb[0].mxu0
    %v1958 = vadd.f32 0.0, %v1957
    %v1959 = vpop.f32.mrb[0].mxu0
    %1960 = vmatprep.mubr.f32.mxu0 0.0
    %1961 = vmatmul.mubr.f32.gmra.mrb[0].mxu0 %v1864
    %v1962 = vpop.f32.mrb[0].mxu0
    %v1963 = vadd.f32 0.0, %v1962
    %v1964 = vpop.f32.mrb[0].mxu0
    %1965 = vmatprep.mubr.f32.mxu0 0.0
    %1966 = vmatmul.mubr.f32.gmra.mrb[0].mxu0 %v1867
    %v1967 = vpop.f32.mrb[0].mxu0
    %v1968 = vadd.f32 0.0, %v1967
    %v1969 = vpop.f32.mrb[0].mxu0
    %1970 = vmatprep.mubr.f32.mxu0 0.0
    %1971 = vmatmul.mubr.f32.gmra.mrb[0].mxu0 %v1870
    %v1972 = vpop.f32.mrb[0].mxu0
    %v1973 = vadd.f32 0.0, %v1972
    %v1974 = vpop.f32.mrb[0].mxu0
    %1975 = vmatprep.mubr.f32.mxu0 0.0
    %1976 = vmatmul.mubr.f32.gmra.mrb[0].mxu0 %v1873
    %v1977 = vpop.f32.mrb[0].mxu0
    %v1978 = vadd.f32 0.0, %v1977
    %v1979 = vpop.f32.mrb[0].mxu0
    %1980 = vmatprep.mubr.f32.mxu0 0.0
    %1981 = vmatmul.mubr.f32.gmra.mrb[0].mxu0 %v1876
    %v1982 = vpop.f32.mrb[0].mxu0
    %v1983 = vadd.f32 0.0, %v1982
    %v1984 = vpop.f32.mrb[0].mxu0
    %1985 = vmatprep.mubr.f32.mxu0 0.0
    %1986 = vmatmul.mubr.f32.gmra.mrb[0].mxu0 %v1879
    %v1987 = vpop.f32.mrb[0].mxu0
    %v1988 = vadd.f32 0.0, %v1987
    %v1989 = vpop.f32.mrb[0].mxu0
    %1990 = vdwg.mxu0
    %2000 = vrot.lane.b32.xlu0 %v1948, 96
    %v2001 = vpop.permute.xlu0 %2000
    %2002 = vrot.lane.b32.xlu0 %v1953, 96
    %v2003 = vpop.permute.xlu0 %2002
    %2004 = vrot.lane.b32.xlu0 %v1958, 96
    %v2005 = vpop.permute.xlu0 %2004
    %2006 = vrot.lane.b32.xlu0 %v1963, 96
    %v2007 = vpop.permute.xlu0 %2006
    %2008 = vrot.lane.b32.xlu0 %v1968, 96
    %v2009 = vpop.permute.xlu0 %2008
    %2010 = vrot.lane.b32.xlu0 %v1973, 96
    %v2011 = vpop.permute.xlu0 %2010
    %2012 = vrot.lane.b32.xlu0 %v1978, 96
    %v2013 = vpop.permute.xlu0 %2012
    %2014 = vrot.lane.b32.xlu0 %v1983, 96
    %v2015 = vpop.permute.xlu0 %2014
    %2016 = vrot.lane.b32.xlu0 %v1988, 96
    %v2017 = vpop.permute.xlu0 %2016
    %2027 = vmatprep.subr.mxu0 0.0
    %2028 = vmatpush1.msra.mxu0 %v1948
    %2029 = vmatprep.subr.mxu0 0.0
    %2030 = vmatpush1.msra.mxu0 %v1953
    %2031 = vmatprep.subr.mxu0 0.0
    %2032 = vmatpush1.msra.mxu0 %v1958
    %2033 = vmatprep.subr.mxu0 0.0
    %2034 = vmatpush1.msra.mxu0 %v1963
    %2035 = vmatprep.subr.mxu0 0.0
    %2036 = vmatpush1.msra.mxu0 %v1968
    %2037 = vmatprep.subr.mxu0 0.0
    %2038 = vmatpush1.msra.mxu0 %v1973
    %2039 = vmatprep.subr.mxu0 0.0
    %2040 = vmatpush1.msra.mxu0 %v1978
    %2041 = vmatprep.subr.mxu0 0.0
    %2042 = vmatpush1.msra.mxu0 %v1983
    %2043 = vmatprep.subr.mxu0 0.0
    %2044 = vmatpush1.msra.mxu0 %v1988
    %2045 = vmatprep.subr.mxu0 0.0
    %2046 = vmatpush1.msra.mxu0 0.0
    %2047 = vmatprep.subr.mxu0 0.0
    %2048 = vmatpush1.msra.mxu0 0.0
    %2049 = vmatprep.subr.mxu0 0.0
    %2050 = vmatpush1.msra.mxu0 0.0
    %2051 = vmatprep.subr.mxu0 0.0
    %2052 = vmatpush1.msra.mxu0 0.0
    %2053 = vmatprep.subr.mxu0 0.0
    %2054 = vmatpush1.msra.mxu0 0.0
    %2055 = vmatprep.subr.mxu0 0.0
    %2056 = vmatpush1.msra.mxu0 0.0
    %2057 = vmatprep.subr.mxu0 0.0
    %2058 = vmatpush1.msra.mxu0 0.0
    %2059 = vmatprep.subr.mxu0 0.0
    %2060 = vmatpush1.msra.mxu0 0.0
    %2061 = vmatprep.subr.mxu0 0.0
    %2062 = vmatpush1.msra.mxu0 0.0
    %2063 = vmatprep.subr.mxu0 0.0
    %2064 = vmatpush1.msra.mxu0 0.0
    %2065 = vmatprep.subr.mxu0 0.0
    %2066 = vmatpush1.msra.mxu0 0.0
    %2067 = vmatprep.subr.mxu0 0.0
    %2068 = vmatpush1.msra.mxu0 0.0
    %2069 = vmatprep.subr.mxu0 0.0
    %2070 = vmatpush1.msra.mxu0 0.0
    %2071 = vmatprep.subr.mxu0 0.0
    %2072 = vmatpush1.msra.mxu0 0.0
    %2073 = vmatprep.subr.mxu0 0.0
    %2074 = vmatpush1.msra.mxu0 0.0
    %2075 = vmatprep.subr.mxu0 0.0
    %2076 = vmatpush1.msra.mxu0 0.0
    %2077 = vmatprep.subr.mxu0 0.0
    %2078 = vmatpush1.msra.mxu0 0.0
    %2079 = vmatprep.subr.mxu0 0.0
    %2080 = vmatpush1.msra.mxu0 0.0
    %2081 = vmatprep.subr.mxu0 0.0
    %2082 = vmatpush1.msra.mxu0 0.0
    %2083 = vmatprep.subr.mxu0 0.0
    %2084 = vmatpush1.msra.mxu0 0.0
    %2085 = vmatprep.subr.mxu0 0.0
    %2086 = vmatpush1.msra.mxu0 0.0
    %2087 = vmatprep.subr.mxu0 0.0
    %2088 = vmatpush1.msra.mxu0 0.0
    %2089 = vmatprep.subr.mxu0 0.0
    %2090 = vmatpush1.msra.mxu0 0.0
    %2091 = vmatprep.mubr.f32.mxu0 0.0
    %2092 = vmatmul.mubr.f32.gmra.mrb[0].mxu0 %v911
    %v2093 = vpop.f32.mrb[0].mxu0
    %v2094 = vadd.f32 %v2001, %v2093
    %v2095 = vpop.f32.mrb[0].mxu0
    %2096 = vmatprep.mubr.f32.mxu0 0.0
    %2097 = vmatmul.mubr.f32.gmra.mrb[0].mxu0 %v914
    %v2098 = vpop.f32.mrb[0].mxu0
    %v2099 = vadd.f32 %v2003, %v2098
    %v2100 = vpop.f32.mrb[0].mxu0
    %2101 = vmatprep.mubr.f32.mxu0 0.0
    %2102 = vmatmul.mubr.f32.gmra.mrb[0].mxu0 %v917
    %v2103 = vpop.f32.mrb[0].mxu0
    %v2104 = vadd.f32 %v2005, %v2103
    %v2105 = vpop.f32.mrb[0].mxu0
    %2106 = vmatprep.mubr.f32.mxu0 0.0
    %2107 = vmatmul.mubr.f32.gmra.mrb[0].mxu0 %v920
    %v2108 = vpop.f32.mrb[0].mxu0
    %v2109 = vadd.f32 %v2007, %v2108
    %v2110 = vpop.f32.mrb[0].mxu0
    %2111 = vmatprep.mubr.f32.mxu0 0.0
    %2112 = vmatmul.mubr.f32.gmra.mrb[0].mxu0 %v923
    %v2113 = vpop.f32.mrb[0].mxu0
    %v2114 = vadd.f32 %v2009, %v2113
    %v2115 = vpop.f32.mrb[0].mxu0
    %2116 = vmatprep.mubr.f32.mxu0 0.0
    %2117 = vmatmul.mubr.f32.gmra.mrb[0].mxu0 %v926
    %v2118 = vpop.f32.mrb[0].mxu0
    %v2119 = vadd.f32 %v2011, %v2118
    %v2120 = vpop.f32.mrb[0].mxu0
    %2121 = vmatprep.mubr.f32.mxu0 0.0
    %2122 = vmatmul.mubr.f32.gmra.mrb[0].mxu0 %v929
    %v2123 = vpop.f32.mrb[0].mxu0
    %v2124 = vadd.f32 %v2013, %v2123
    %v2125 = vpop.f32.mrb[0].mxu0
    %2126 = vmatprep.mubr.f32.mxu0 0.0
    %2127 = vmatmul.mubr.f32.gmra.mrb[0].mxu0 %v932
    %v2128 = vpop.f32.mrb[0].mxu0
    %v2129 = vadd.f32 %v2015, %v2128
    %v2130 = vpop.f32.mrb[0].mxu0
    %2131 = vmatprep.mubr.f32.mxu0 0.0
    %2132 = vmatmul.mubr.f32.gmra.mrb[0].mxu0 %v935
    %v2133 = vpop.f32.mrb[0].mxu0
    %v2134 = vadd.f32 %v2017, %v2133
    %v2135 = vpop.f32.mrb[0].mxu0
    %2136 = vdwg.mxu0
    %v2137 = vld [vmem:[#allocation29] sm:$0x1]
    %v2139 = vlaneseq
    %v2140 = vshrl.u32 %v2139, 7
    %v2141 = vsub.s32 0, %v2140
    %v2142 = vrot.slane %v2137, %v2141
    %v2144 = vadd.f32 %v2094, %v2142
    %v2145 = vadd.f32 %v2099, %v2142
    %v2146 = vadd.f32 %v2104, %v2142
    %v2147 = vadd.f32 %v2109, %v2142
    %v2148 = vadd.f32 %v2114, %v2142
    %v2149 = vadd.f32 %v2119, %v2142
    %v2150 = vadd.f32 %v2124, %v2142
    %v2151 = vadd.f32 %v2129, %v2142
    %v2152 = vadd.f32 %v2134, %v2142
    %v2153 = vmul.f32 %v2144, %v2144
    %v2154 = vmul.f32 %v2145, %v2145
    %v2155 = vmul.f32 %v2146, %v2146
    %v2156 = vmul.f32 %v2147, %v2147
    %v2157 = vmul.f32 %v2148, %v2148
    %v2158 = vmul.f32 %v2149, %v2149
    %v2159 = vmul.f32 %v2150, %v2150
    %v2160 = vmul.f32 %v2151, %v2151
    %v2161 = vmul.f32 %v2152, %v2152
    %v2162 = vmul.f32 %v2144, %v2153
    %v2163 = vmul.f32 %v2145, %v2154
    %v2164 = vmul.f32 %v2146, %v2155
    %v2165 = vmul.f32 %v2147, %v2156
    %v2166 = vmul.f32 %v2148, %v2157
    %v2167 = vmul.f32 %v2149, %v2158
    %v2168 = vmul.f32 %v2150, %v2159
    %v2169 = vmul.f32 %v2151, %v2160
    %v2170 = vmul.f32 %v2152, %v2161
    %v2171 = vmul.f32 %v2162, 0.044715
    %v2172 = vmul.f32 %v2163, 0.044715
    %v2173 = vmul.f32 %v2164, 0.044715
    %v2174 = vmul.f32 %v2165, 0.044715
    %v2175 = vmul.f32 %v2166, 0.044715
    %v2176 = vmul.f32 %v2167, 0.044715
    %v2177 = vmul.f32 %v2168, 0.044715
    %v2178 = vmul.f32 %v2169, 0.044715
    %v2179 = vmul.f32 %v2170, 0.044715
    %v2180 = vadd.f32 %v2144, %v2171
    %v2181 = vadd.f32 %v2145, %v2172
    %v2182 = vadd.f32 %v2146, %v2173
    %v2183 = vadd.f32 %v2147, %v2174
    %v2184 = vadd.f32 %v2148, %v2175
    %v2185 = vadd.f32 %v2149, %v2176
    %v2186 = vadd.f32 %v2150, %v2177
    %v2187 = vadd.f32 %v2151, %v2178
    %v2188 = vadd.f32 %v2152, %v2179
    %v2189 = vmul.f32 %v2180, 0.7978846
    %v2190 = vmul.f32 %v2181, 0.7978846
    %v2191 = vmul.f32 %v2182, 0.7978846
    %v2192 = vmul.f32 %v2183, 0.7978846
    %v2193 = vmul.f32 %v2184, 0.7978846
    %v2194 = vmul.f32 %v2185, 0.7978846
    %v2195 = vmul.f32 %v2186, 0.7978846
    %v2196 = vmul.f32 %v2187, 0.7978846
    %v2197 = vmul.f32 %v2188, 0.7978846
    %v2198 = vtanh.pop %v2189
    %v2199 = vtanh.pop %v2190
    %v2200 = vtanh.pop %v2191
    %v2201 = vtanh.pop %v2192
    %v2202 = vtanh.pop %v2193
    %v2203 = vtanh.pop %v2194
    %v2204 = vtanh.pop %v2195
    %v2205 = vtanh.pop %v2196
    %v2206 = vtanh.pop %v2197
    %v2207 = vadd.f32 %v2198, 1.0
    %v2208 = vadd.f32 %v2199, 1.0
    %v2209 = vadd.f32 %v2200, 1.0
    %v2210 = vadd.f32 %v2201, 1.0
    %v2211 = vadd.f32 %v2202, 1.0
    %v2212 = vadd.f32 %v2203, 1.0
    %v2213 = vadd.f32 %v2204, 1.0
    %v2214 = vadd.f32 %v2205, 1.0
    %v2215 = vadd.f32 %v2206, 1.0
    %v2216 = vmul.f32 %v2207, 0.5
    %v2217 = vmul.f32 %v2208, 0.5
    %v2218 = vmul.f32 %v2209, 0.5
    %v2219 = vmul.f32 %v2210, 0.5
    %v2220 = vmul.f32 %v2211, 0.5
    %v2221 = vmul.f32 %v2212, 0.5
    %v2222 = vmul.f32 %v2213, 0.5
    %v2223 = vmul.f32 %v2214, 0.5
    %v2224 = vmul.f32 %v2215, 0.5
    %v2225 = vmul.f32 %v2144, %v2216
    %v2226 = vmul.f32 %v2145, %v2217
    %v2227 = vmul.f32 %v2146, %v2218
    %v2228 = vmul.f32 %v2147, %v2219
    %v2229 = vmul.f32 %v2148, %v2220
    %v2230 = vmul.f32 %v2149, %v2221
    %v2231 = vmul.f32 %v2150, %v2222
    %v2232 = vmul.f32 %v2151, %v2223
    %v2233 = vmul.f32 %v2152, %v2224
    %2234 = vst.msk [vmem:[#allocation3] sm:$0xff] %vm1811, %v2225
    %2236 = vrot.lane.b32.xlu0 %v2226, 32
    %v2237 = vpop.permute.xlu0 %2236
    %vm2239 = vcmask 523520
    %2240 = vst.msk [vmem:[#allocation3] sm:$0xff] %vm2239, %v2237
    %2242 = vrot.lane.b32.xlu0 %v2227, 64
    %v2243 = vpop.permute.xlu0 %2242
    %vm2245 = vcmask 785920
    %2246 = vst.msk [vmem:[#allocation3] sm:$0xff] %vm2245, %v2243
    %2248 = vrot.lane.b32.xlu0 %v2228, 96
    %v2249 = vpop.permute.xlu0 %2248
    %vm2251 = vcmask 1048320
    %2252 = vst.msk [vmem:[#allocation3] sm:$0xff] %vm2251, %v2249
    %2253 = vst.msk [vmem:[#allocation3 + $0x8] sm:$0xff] %vm1811, %v2229
    %2255 = vrot.lane.b32.xlu0 %v2230, 32
    %v2256 = vpop.permute.xlu0 %2255
    %2258 = vst.msk [vmem:[#allocation3 + $0x8] sm:$0xff] %vm2239, %v2256
    %2260 = vrot.lane.b32.xlu0 %v2231, 64
    %v2261 = vpop.permute.xlu0 %2260
    %2263 = vst.msk [vmem:[#allocation3 + $0x8] sm:$0xff] %vm2245, %v2261
    %2265 = vrot.lane.b32.xlu0 %v2232, 96
    %v2266 = vpop.permute.xlu0 %2265
    %2268 = vst.msk [vmem:[#allocation3 + $0x8] sm:$0xff] %vm2251, %v2266
    %2269 = vst.msk [vmem:[#allocation3 + $0x10] sm:$0xff] %vm1811, %v2233
    %v2270 = vld [vmem:[#allocation3] sm:$0xff]
    %v2271 = vld [vmem:[#allocation3 + $0x8] sm:$0xff]
    %v2272 = vld [vmem:[#allocation3 + $0x10] sm:$0xff]
    %v2273 = vadd.f32 %v2270, %v1737
    %v2274 = vadd.f32 %v2271, %v1739
    %v2275 = vadd.f32 %v2272, %v1808
    %v2276 = vadd.f32 %v2273, %v2274
    %v2277 = vsel %vm1811, %v2275, 0.0
    %v2278 = vadd.f32 %v2276, %v2277
    %2279 = vadd.xlane.f32.xlu0 %v2278
    %v2280 = vpop.xlane.xlu0 %2279
    %v2281 = vrcp.pop 288.0
    %v2282 = vmul.f32 %v2280, %v2281
    %v2283 = vsub.f32 %v2273, %v2282
    %v2284 = vsub.f32 %v2274, %v2282
    %v2285 = vsub.f32 %v2275, %v2282
    %v2286 = vmul.f32 %v2283, %v2283
    %v2287 = vmul.f32 %v2284, %v2284
    %v2288 = vmul.f32 %v2285, %v2285
    %v2289 = vadd.f32 %v2286, %v2287
    %v2290 = vsel %vm1811, %v2288, 0.0
    %v2291 = vadd.f32 %v2289, %v2290
    %2292 = vadd.xlane.f32.xlu0 %v2291
    %v2293 = vpop.xlane.xlu0 %2292
    %v2294 = vmul.f32 %v2293, %v2281
    %v2295 = vadd.f32 %v2294, 1e-05
    %v2296 = vrsqrt.pop %v2295
    %v2297 = vmul.f32 %v2283, %v2296
    %v2298 = vmul.f32 %v2284, %v2296
    %v2299 = vmul.f32 %v2285, %v2296
    %v2300 = vld [vmem:[#allocation30] sm:$0xff]
    %v2301 = vld [vmem:[#allocation30 + $0x8] sm:$0xff]
    %v2302 = vld [vmem:[#allocation30 + $0x10] sm:$0xff]
    %v2303 = vld [vmem:[#allocation30 + $0x18] sm:$0xff]
    %v2304 = vld [vmem:[#allocation30 + $0x20] sm:$0xff]
    %v2305 = vld [vmem:[#allocation30 + $0x28] sm:$0xff]
    %v2306 = vld [vmem:[#allocation30 + $0x30] sm:$0xff]
    %v2307 = vld [vmem:[#allocation30 + $0x38] sm:$0xff]
    %v2308 = vld [vmem:[#allocation30 + $0x40] sm:$0xff]
    %v2309 = vld [vmem:[#allocation30 + $0x48] sm:$0xff]
    %v2310 = vld [vmem:[#allocation30 + $0x50] sm:$0xff]
    %v2311 = vld [vmem:[#allocation30 + $0x58] sm:$0xff]
    %v2312 = vld [vmem:[#allocation30 + $0x60] sm:$0xff]
    %v2313 = vld [vmem:[#allocation30 + $0x68] sm:$0xff]
    %v2314 = vld [vmem:[#allocation30 + $0x70] sm:$0xff]
    %v2315 = vld [vmem:[#allocation30 + $0x78] sm:$0xff]
    %v2316 = vld [vmem:[#allocation30 + $0x80] sm:$0xff]
    %v2317 = vld [vmem:[#allocation30 + $0x88] sm:$0xff]
    %v2318 = vld [vmem:[#allocation30 + $0x90] sm:$0xff]
    %v2319 = vld [vmem:[#allocation30 + $0x98] sm:$0xff]
    %v2320 = vld [vmem:[#allocation30 + $0xa0] sm:$0xff]
    %v2321 = vld [vmem:[#allocation30 + $0xa8] sm:$0xff]
    %v2322 = vld [vmem:[#allocation30 + $0xb0] sm:$0xff]
    %v2323 = vld [vmem:[#allocation30 + $0xb8] sm:$0xff]
    %v2324 = vld [vmem:[#allocation30 + $0xc0] sm:$0xff]
    %v2325 = vld [vmem:[#allocation30 + $0xc8] sm:$0xff]
    %v2326 = vld [vmem:[#allocation30 + $0xd0] sm:$0xff]
    %v2327 = vld [vmem:[#allocation30 + $0xd8] sm:$0xff]
    %v2328 = vld [vmem:[#allocation30 + $0xe0] sm:$0xff]
    %v2329 = vld [vmem:[#allocation30 + $0xe8] sm:$0xff]
    %v2330 = vld [vmem:[#allocation30 + $0xf0] sm:$0xff]
    %v2331 = vld [vmem:[#allocation30 + $0xf8] sm:$0xff]
    %v2332 = vld [vmem:[#allocation30 + $0x100] sm:$0xff]
    %v2333 = vld [vmem:[#allocation30 + $0x108] sm:$0xff]
    %v2334 = vld [vmem:[#allocation30 + $0x110] sm:$0xff]
    %v2335 = vld [vmem:[#allocation30 + $0x118] sm:$0xff]
    %v2336 = vld [vmem:[#allocation30 + $0x120] sm:$0xff]
    %v2337 = vld [vmem:[#allocation30 + $0x128] sm:$0xff]
    %v2338 = vld [vmem:[#allocation30 + $0x130] sm:$0xff]
    %v2339 = vld [vmem:[#allocation30 + $0x138] sm:$0xff]
    %v2340 = vld [vmem:[#allocation30 + $0x140] sm:$0xff]
    %v2341 = vld [vmem:[#allocation30 + $0x148] sm:$0xff]
    %v2342 = vld [vmem:[#allocation30 + $0x150] sm:$0xff]
    %v2343 = vld [vmem:[#allocation30 + $0x158] sm:$0xff]
    %v2344 = vld [vmem:[#allocation30 + $0x160] sm:$0xff]
    %v2345 = vld [vmem:[#allocation30 + $0x168] sm:$0xff]
    %v2346 = vld [vmem:[#allocation30 + $0x170] sm:$0xff]
    %v2347 = vld [vmem:[#allocation30 + $0x178] sm:$0xff]
    %v2348 = vld [vmem:[#allocation30 + $0x180] sm:$0xff]
    %v2349 = vld [vmem:[#allocation30 + $0x188] sm:$0xff]
    %v2350 = vld [vmem:[#allocation30 + $0x190] sm:$0xff]
    %v2351 = vld [vmem:[#allocation30 + $0x198] sm:$0xff]
    %v2352 = vld [vmem:[#allocation30 + $0x1a0] sm:$0xff]
    %v2353 = vld [vmem:[#allocation30 + $0x1a8] sm:$0xff]
    %v2354 = vld [vmem:[#allocation30 + $0x1b0] sm:$0xff]
    %v2355 = vld [vmem:[#allocation30 + $0x1b8] sm:$0xff]
    %v2356 = vld [vmem:[#allocation30 + $0x1c0] sm:$0xff]
    %v2357 = vld [vmem:[#allocation30 + $0x1c8] sm:$0xff]
    %v2358 = vld [vmem:[#allocation30 + $0x1d0] sm:$0xff]
    %v2359 = vld [vmem:[#allocation30 + $0x1d8] sm:$0xff]
    %v2360 = vld [vmem:[#allocation30 + $0x1e0] sm:$0xff]
    %v2361 = vld [vmem:[#allocation30 + $0x1e8] sm:$0xff]
    %v2362 = vld [vmem:[#allocation30 + $0x1f0] sm:$0xff]
    %v2363 = vld [vmem:[#allocation30 + $0x1f8] sm:$0xff]
    %v2364 = vld [vmem:[#allocation30 + $0x200] sm:$0xff]
    %v2365 = vld [vmem:[#allocation30 + $0x208] sm:$0xff]
    %v2366 = vld [vmem:[#allocation30 + $0x210] sm:$0xff]
    %v2367 = vld [vmem:[#allocation30 + $0x218] sm:$0xff]
    %v2368 = vld [vmem:[#allocation30 + $0x220] sm:$0xff]
    %v2369 = vld [vmem:[#allocation30 + $0x228] sm:$0xff]
    %v2370 = vld [vmem:[#allocation30 + $0x230] sm:$0xff]
    %v2371 = vld [vmem:[#allocation30 + $0x238] sm:$0xff]
    %v2372 = vld [vmem:[#allocation30 + $0x240] sm:$0xff]
    %v2373 = vld [vmem:[#allocation30 + $0x248] sm:$0xff]
    %v2374 = vld [vmem:[#allocation30 + $0x250] sm:$0xff]
    %v2375 = vld [vmem:[#allocation30 + $0x258] sm:$0xff]
    %v2376 = vld [vmem:[#allocation30 + $0x260] sm:$0xff]
    %v2377 = vld [vmem:[#allocation30 + $0x268] sm:$0xff]
    %v2378 = vld [vmem:[#allocation30 + $0x270] sm:$0xff]
    %v2379 = vld [vmem:[#allocation30 + $0x278] sm:$0xff]
    %v2380 = vld [vmem:[#allocation30 + $0x280] sm:$0xff]
    %v2381 = vld [vmem:[#allocation30 + $0x288] sm:$0xff]
    %v2382 = vld [vmem:[#allocation30 + $0x290] sm:$0xff]
    %v2383 = vld [vmem:[#allocation30 + $0x298] sm:$0xff]
    %v2384 = vld [vmem:[#allocation30 + $0x2a0] sm:$0xff]
    %v2385 = vld [vmem:[#allocation30 + $0x2a8] sm:$0xff]
    %v2386 = vld [vmem:[#allocation30 + $0x2b0] sm:$0xff]
    %v2387 = vld [vmem:[#allocation30 + $0x2b8] sm:$0xff]
    %v2388 = vld [vmem:[#allocation30 + $0x2c0] sm:$0xff]
    %v2389 = vld [vmem:[#allocation30 + $0x2c8] sm:$0xff]
    %v2390 = vld [vmem:[#allocation30 + $0x2d0] sm:$0xff]
    %v2391 = vld [vmem:[#allocation30 + $0x2d8] sm:$0xff]
    %v2392 = vld [vmem:[#allocation30 + $0x2e0] sm:$0xff]
    %v2393 = vld [vmem:[#allocation30 + $0x2e8] sm:$0xff]
    %v2394 = vld [vmem:[#allocation30 + $0x2f0] sm:$0xff]
    %v2395 = vld [vmem:[#allocation30 + $0x2f8] sm:$0xff]
    %v2396 = vld [vmem:[#allocation30 + $0x300] sm:$0xff]
    %v2397 = vld [vmem:[#allocation30 + $0x308] sm:$0xff]
    %v2398 = vld [vmem:[#allocation30 + $0x310] sm:$0xff]
    %v2399 = vld [vmem:[#allocation30 + $0x318] sm:$0xff]
    %v2400 = vld [vmem:[#allocation30 + $0x320] sm:$0xff]
    %v2401 = vld [vmem:[#allocation30 + $0x328] sm:$0xff]
    %v2402 = vld [vmem:[#allocation30 + $0x330] sm:$0xff]
    %v2403 = vld [vmem:[#allocation30 + $0x338] sm:$0xff]
    %v2404 = vld [vmem:[#allocation30 + $0x340] sm:$0xff]
    %v2405 = vld [vmem:[#allocation30 + $0x348] sm:$0xff]
    %v2406 = vld [vmem:[#allocation30 + $0x350] sm:$0xff]
    %v2407 = vld [vmem:[#allocation30 + $0x358] sm:$0xff]
    %v2408 = vld [vmem:[#allocation30 + $0x360] sm:$0xff]
    %v2409 = vld [vmem:[#allocation30 + $0x368] sm:$0xff]
    %v2410 = vld [vmem:[#allocation30 + $0x370] sm:$0xff]
    %v2411 = vld [vmem:[#allocation30 + $0x378] sm:$0xff]
    %v2412 = vld [vmem:[#allocation30 + $0x380] sm:$0xff]
    %v2413 = vld [vmem:[#allocation30 + $0x388] sm:$0xff]
    %v2414 = vld [vmem:[#allocation30 + $0x390] sm:$0xff]
    %v2415 = vld [vmem:[#allocation30 + $0x398] sm:$0xff]
    %v2416 = vld [vmem:[#allocation30 + $0x3a0] sm:$0xff]
    %v2417 = vld [vmem:[#allocation30 + $0x3a8] sm:$0xff]
    %v2418 = vld [vmem:[#allocation30 + $0x3b0] sm:$0xff]
    %v2419 = vld [vmem:[#allocation30 + $0x3b8] sm:$0xff]
    %v2420 = vld [vmem:[#allocation30 + $0x3c0] sm:$0xff]
    %v2421 = vld [vmem:[#allocation30 + $0x3c8] sm:$0xff]
    %v2422 = vld [vmem:[#allocation30 + $0x3d0] sm:$0xff]
    %v2423 = vld [vmem:[#allocation30 + $0x3d8] sm:$0xff]
    %v2424 = vld [vmem:[#allocation30 + $0x3e0] sm:$0xff]
    %v2425 = vld [vmem:[#allocation30 + $0x3e8] sm:$0xff]
    %v2426 = vld [vmem:[#allocation30 + $0x3f0] sm:$0xff]
    %v2427 = vld [vmem:[#allocation30 + $0x3f8] sm:$0xff]
    %v2428 = vld [vmem:[#allocation30 + $0x400] sm:$0xff]
    %v2429 = vld [vmem:[#allocation30 + $0x408] sm:$0xff]
    %v2430 = vld [vmem:[#allocation30 + $0x410] sm:$0xff]
    %v2431 = vld [vmem:[#allocation30 + $0x418] sm:$0xff]
    %v2432 = vld [vmem:[#allocation30 + $0x420] sm:$0xff]
    %v2433 = vld [vmem:[#allocation30 + $0x428] sm:$0xff]
    %v2434 = vld [vmem:[#allocation30 + $0x430] sm:$0xff]
    %v2435 = vld [vmem:[#allocation30 + $0x438] sm:$0xff]
    %v2436 = vld [vmem:[#allocation30 + $0x440] sm:$0xff]
    %v2437 = vld [vmem:[#allocation30 + $0x448] sm:$0xff]
    %v2438 = vld [vmem:[#allocation30 + $0x450] sm:$0xff]
    %v2439 = vld [vmem:[#allocation30 + $0x458] sm:$0xff]
    %v2440 = vld [vmem:[#allocation30 + $0x460] sm:$0xff]
    %v2441 = vld [vmem:[#allocation30 + $0x468] sm:$0xff]
    %v2442 = vld [vmem:[#allocation30 + $0x470] sm:$0xff]
    %v2443 = vld [vmem:[#allocation30 + $0x478] sm:$0xff]
    %v2444 = vld [vmem:[#allocation30 + $0x480] sm:$0xff]
    %v2445 = vld [vmem:[#allocation30 + $0x488] sm:$0xff]
    %v2446 = vld [vmem:[#allocation30 + $0x490] sm:$0xff]
    %v2447 = vld [vmem:[#allocation30 + $0x498] sm:$0xff]
    %v2448 = vld [vmem:[#allocation30 + $0x4a0] sm:$0xff]
    %v2449 = vld [vmem:[#allocation30 + $0x4a8] sm:$0xff]
    %v2450 = vld [vmem:[#allocation30 + $0x4b0] sm:$0xff]
    %v2451 = vld [vmem:[#allocation30 + $0x4b8] sm:$0xff]
    %v2452 = vld [vmem:[#allocation30 + $0x4c0] sm:$0xff]
    %v2453 = vld [vmem:[#allocation30 + $0x4c8] sm:$0xff]
    %v2454 = vld [vmem:[#allocation30 + $0x4d0] sm:$0xff]
    %v2455 = vld [vmem:[#allocation30 + $0x4d8] sm:$0xff]
    %v2456 = vld [vmem:[#allocation30 + $0x4e0] sm:$0xff]
    %v2457 = vld [vmem:[#allocation30 + $0x4e8] sm:$0xff]
    %v2458 = vld [vmem:[#allocation30 + $0x4f0] sm:$0xff]
    %v2459 = vld [vmem:[#allocation30 + $0x4f8] sm:$0xff]
    %v2460 = vld [vmem:[#allocation30 + $0x500] sm:$0xff]
    %v2461 = vld [vmem:[#allocation30 + $0x508] sm:$0xff]
    %v2462 = vld [vmem:[#allocation30 + $0x510] sm:$0xff]
    %v2463 = vld [vmem:[#allocation30 + $0x518] sm:$0xff]
    %v2464 = vld [vmem:[#allocation30 + $0x520] sm:$0xff]
    %v2465 = vld [vmem:[#allocation30 + $0x528] sm:$0xff]
    %v2466 = vld [vmem:[#allocation30 + $0x530] sm:$0xff]
    %v2467 = vld [vmem:[#allocation30 + $0x538] sm:$0xff]
    %v2468 = vld [vmem:[#allocation30 + $0x540] sm:$0xff]
    %v2469 = vld [vmem:[#allocation30 + $0x548] sm:$0xff]
    %v2470 = vld [vmem:[#allocation30 + $0x550] sm:$0xff]
    %v2471 = vld [vmem:[#allocation30 + $0x558] sm:$0xff]
    %v2472 = vld [vmem:[#allocation30 + $0x560] sm:$0xff]
    %v2473 = vld [vmem:[#allocation30 + $0x568] sm:$0xff]
    %v2474 = vld [vmem:[#allocation30 + $0x570] sm:$0xff]
    %v2475 = vld [vmem:[#allocation30 + $0x578] sm:$0xff]
    %v2476 = vld [vmem:[#allocation30 + $0x580] sm:$0xff]
    %v2477 = vld [vmem:[#allocation30 + $0x588] sm:$0xff]
    %v2478 = vld [vmem:[#allocation30 + $0x590] sm:$0xff]
    %v2479 = vld [vmem:[#allocation30 + $0x598] sm:$0xff]
    %v2480 = vld [vmem:[#allocation30 + $0x5a0] sm:$0xff]
    %v2481 = vld [vmem:[#allocation30 + $0x5a8] sm:$0xff]
    %v2482 = vld [vmem:[#allocation30 + $0x5b0] sm:$0xff]
    %v2483 = vld [vmem:[#allocation30 + $0x5b8] sm:$0xff]
    %v2484 = vld [vmem:[#allocation30 + $0x5c0] sm:$0xff]
    %v2485 = vld [vmem:[#allocation30 + $0x5c8] sm:$0xff]
    %v2486 = vld [vmem:[#allocation30 + $0x5d0] sm:$0xff]
    %v2487 = vld [vmem:[#allocation30 + $0x5d8] sm:$0xff]
    %v2488 = vld [vmem:[#allocation30 + $0x5e0] sm:$0xff]
    %v2489 = vld [vmem:[#allocation30 + $0x5e8] sm:$0xff]
    %v2490 = vld [vmem:[#allocation30 + $0x5f0] sm:$0xff]
    %v2491 = vld [vmem:[#allocation30 + $0x5f8] sm:$0xff]
    %v2492 = vld [vmem:[#allocation30 + $0x600] sm:$0xff]
    %v2493 = vld [vmem:[#allocation30 + $0x608] sm:$0xff]
    %v2494 = vld [vmem:[#allocation30 + $0x610] sm:$0xff]
    %v2495 = vld [vmem:[#allocation30 + $0x618] sm:$0xff]
    %v2496 = vld [vmem:[#allocation30 + $0x620] sm:$0xff]
    %v2497 = vld [vmem:[#allocation30 + $0x628] sm:$0xff]
    %v2498 = vld [vmem:[#allocation30 + $0x630] sm:$0xff]
    %v2499 = vld [vmem:[#allocation30 + $0x638] sm:$0xff]
    %v2500 = vld [vmem:[#allocation30 + $0x640] sm:$0xff]
    %v2501 = vld [vmem:[#allocation30 + $0x648] sm:$0xff]
    %v2502 = vld [vmem:[#allocation30 + $0x650] sm:$0xff]
    %v2503 = vld [vmem:[#allocation30 + $0x658] sm:$0xff]
    %v2504 = vld [vmem:[#allocation30 + $0x660] sm:$0xff]
    %v2505 = vld [vmem:[#allocation30 + $0x668] sm:$0xff]
    %v2506 = vld [vmem:[#allocation30 + $0x670] sm:$0xff]
    %v2507 = vld [vmem:[#allocation30 + $0x678] sm:$0xff]
    %v2508 = vld [vmem:[#allocation30 + $0x680] sm:$0xff]
    %v2509 = vld [vmem:[#allocation30 + $0x688] sm:$0xff]
    %v2510 = vld [vmem:[#allocation30 + $0x690] sm:$0xff]
    %v2511 = vld [vmem:[#allocation30 + $0x698] sm:$0xff]
    %v2512 = vld [vmem:[#allocation30 + $0x6a0] sm:$0xff]
    %v2513 = vld [vmem:[#allocation30 + $0x6a8] sm:$0xff]
    %v2514 = vld [vmem:[#allocation30 + $0x6b0] sm:$0xff]
    %v2515 = vld [vmem:[#allocation30 + $0x6b8] sm:$0xff]
    %v2516 = vld [vmem:[#allocation30 + $0x6c0] sm:$0xff]
    %v2517 = vld [vmem:[#allocation30 + $0x6c8] sm:$0xff]
    %v2518 = vld [vmem:[#allocation30 + $0x6d0] sm:$0xff]
    %v2519 = vld [vmem:[#allocation30 + $0x6d8] sm:$0xff]
    %v2520 = vld [vmem:[#allocation30 + $0x6e0] sm:$0xff]
    %v2521 = vld [vmem:[#allocation30 + $0x6e8] sm:$0xff]
    %v2522 = vld [vmem:[#allocation30 + $0x6f0] sm:$0xff]
    %v2523 = vld [vmem:[#allocation30 + $0x6f8] sm:$0xff]
    %v2524 = vld [vmem:[#allocation30 + $0x700] sm:$0xff]
    %v2525 = vld [vmem:[#allocation30 + $0x708] sm:$0xff]
    %v2526 = vld [vmem:[#allocation30 + $0x710] sm:$0xff]
    %v2527 = vld [vmem:[#allocation30 + $0x718] sm:$0xff]
    %v2528 = vld [vmem:[#allocation30 + $0x720] sm:$0xff]
    %v2529 = vld [vmem:[#allocation30 + $0x728] sm:$0xff]
    %v2530 = vld [vmem:[#allocation30 + $0x730] sm:$0xff]
    %v2531 = vld [vmem:[#allocation30 + $0x738] sm:$0xff]
    %v2532 = vld [vmem:[#allocation30 + $0x740] sm:$0xff]
    %v2533 = vld [vmem:[#allocation30 + $0x748] sm:$0xff]
    %v2534 = vld [vmem:[#allocation30 + $0x750] sm:$0xff]
    %v2535 = vld [vmem:[#allocation30 + $0x758] sm:$0xff]
    %v2536 = vld [vmem:[#allocation30 + $0x760] sm:$0xff]
    %v2537 = vld [vmem:[#allocation30 + $0x768] sm:$0xff]
    %v2538 = vld [vmem:[#allocation30 + $0x770] sm:$0xff]
    %v2539 = vld [vmem:[#allocation30 + $0x778] sm:$0xff]
    %v2540 = vld [vmem:[#allocation30 + $0x780] sm:$0xff]
    %v2541 = vld [vmem:[#allocation30 + $0x788] sm:$0xff]
    %v2542 = vld [vmem:[#allocation30 + $0x790] sm:$0xff]
    %v2543 = vld [vmem:[#allocation30 + $0x798] sm:$0xff]
    %v2544 = vld [vmem:[#allocation30 + $0x7a0] sm:$0xff]
    %v2545 = vld [vmem:[#allocation30 + $0x7a8] sm:$0xff]
    %v2546 = vld [vmem:[#allocation30 + $0x7b0] sm:$0xff]
    %v2547 = vld [vmem:[#allocation30 + $0x7b8] sm:$0xff]
    %v2548 = vld [vmem:[#allocation30 + $0x7c0] sm:$0xff]
    %v2549 = vld [vmem:[#allocation30 + $0x7c8] sm:$0xff]
    %v2550 = vld [vmem:[#allocation30 + $0x7d0] sm:$0xff]
    %v2551 = vld [vmem:[#allocation30 + $0x7d8] sm:$0xff]
    %v2552 = vld [vmem:[#allocation30 + $0x7e0] sm:$0xff]
    %v2553 = vld [vmem:[#allocation30 + $0x7e8] sm:$0xff]
    %v2554 = vld [vmem:[#allocation30 + $0x7f0] sm:$0xff]
    %v2555 = vld [vmem:[#allocation30 + $0x7f8] sm:$0xff]
    %v2556 = vld [vmem:[#allocation30 + $0x800] sm:$0xff]
    %v2557 = vld [vmem:[#allocation30 + $0x808] sm:$0xff]
    %v2558 = vld [vmem:[#allocation30 + $0x810] sm:$0xff]
    %v2559 = vld [vmem:[#allocation30 + $0x818] sm:$0xff]
    %v2560 = vld [vmem:[#allocation30 + $0x820] sm:$0xff]
    %v2561 = vld [vmem:[#allocation30 + $0x828] sm:$0xff]
    %v2562 = vld [vmem:[#allocation30 + $0x830] sm:$0xff]
    %v2563 = vld [vmem:[#allocation30 + $0x838] sm:$0xff]
    %v2564 = vld [vmem:[#allocation30 + $0x840] sm:$0xff]
    %v2565 = vld [vmem:[#allocation30 + $0x848] sm:$0xff]
    %v2566 = vld [vmem:[#allocation30 + $0x850] sm:$0xff]
    %v2567 = vld [vmem:[#allocation30 + $0x858] sm:$0xff]
    %v2568 = vld [vmem:[#allocation30 + $0x860] sm:$0xff]
    %v2569 = vld [vmem:[#allocation30 + $0x868] sm:$0xff]
    %v2570 = vld [vmem:[#allocation30 + $0x870] sm:$0xff]
    %v2571 = vld [vmem:[#allocation30 + $0x878] sm:$0xff]
    %v2572 = vld [vmem:[#allocation30 + $0x880] sm:$0xff]
    %v2573 = vld [vmem:[#allocation30 + $0x888] sm:$0xff]
    %v2574 = vld [vmem:[#allocation30 + $0x890] sm:$0xff]
    %v2575 = vld [vmem:[#allocation30 + $0x898] sm:$0xff]
    %v2576 = vld [vmem:[#allocation30 + $0x8a0] sm:$0xff]
    %v2577 = vld [vmem:[#allocation30 + $0x8a8] sm:$0xff]
    %v2578 = vld [vmem:[#allocation30 + $0x8b0] sm:$0xff]
    %v2579 = vld [vmem:[#allocation30 + $0x8b8] sm:$0xff]
    %v2580 = vld [vmem:[#allocation30 + $0x8c0] sm:$0xff]
    %v2581 = vld [vmem:[#allocation30 + $0x8c8] sm:$0xff]
    %v2582 = vld [vmem:[#allocation30 + $0x8d0] sm:$0xff]
    %v2583 = vld [vmem:[#allocation30 + $0x8d8] sm:$0xff]
    %v2584 = vld [vmem:[#allocation30 + $0x8e0] sm:$0xff]
    %v2585 = vld [vmem:[#allocation30 + $0x8e8] sm:$0xff]
    %v2586 = vld [vmem:[#allocation30 + $0x8f0] sm:$0xff]
    %v2587 = vld [vmem:[#allocation30 + $0x8f8] sm:$0xff]
    %v2588 = vld [vmem:[#allocation30 + $0x900] sm:$0xff]
    %v2589 = vld [vmem:[#allocation30 + $0x908] sm:$0xff]
    %v2590 = vld [vmem:[#allocation30 + $0x910] sm:$0xff]
    %v2591 = vld [vmem:[#allocation30 + $0x918] sm:$0xff]
    %v2592 = vld [vmem:[#allocation30 + $0x920] sm:$0xff]
    %v2593 = vld [vmem:[#allocation30 + $0x928] sm:$0xff]
    %v2594 = vld [vmem:[#allocation30 + $0x930] sm:$0xff]
    %v2595 = vld [vmem:[#allocation30 + $0x938] sm:$0xff]
    %v2596 = vld [vmem:[#allocation30 + $0x940] sm:$0xff]
    %v2597 = vld [vmem:[#allocation30 + $0x948] sm:$0xff]
    %v2598 = vld [vmem:[#allocation30 + $0x950] sm:$0xff]
    %v2599 = vld [vmem:[#allocation30 + $0x958] sm:$0xff]
    %v2600 = vld [vmem:[#allocation30 + $0x960] sm:$0xff]
    %v2601 = vld [vmem:[#allocation30 + $0x968] sm:$0xff]
    %v2602 = vld [vmem:[#allocation30 + $0x970] sm:$0xff]
    %v2603 = vld [vmem:[#allocation30 + $0x978] sm:$0xff]
    %v2604 = vld [vmem:[#allocation30 + $0x980] sm:$0xff]
    %v2605 = vld [vmem:[#allocation30 + $0x988] sm:$0xff]
    %v2606 = vld [vmem:[#allocation30 + $0x990] sm:$0xff]
    %v2607 = vld [vmem:[#allocation30 + $0x998] sm:$0xff]
    %v2608 = vld [vmem:[#allocation30 + $0x9a0] sm:$0xff]
    %v2609 = vld [vmem:[#allocation30 + $0x9a8] sm:$0xff]
    %v2610 = vld [vmem:[#allocation30 + $0x9b0] sm:$0xff]
    %v2611 = vld [vmem:[#allocation30 + $0x9b8] sm:$0xff]
    %v2612 = vld [vmem:[#allocation30 + $0x9c0] sm:$0xff]
    %v2613 = vld [vmem:[#allocation30 + $0x9c8] sm:$0xff]
    %v2614 = vld [vmem:[#allocation30 + $0x9d0] sm:$0xff]
    %v2615 = vld [vmem:[#allocation30 + $0x9d8] sm:$0xff]
    %v2616 = vld [vmem:[#allocation30 + $0x9e0] sm:$0xff]
    %v2617 = vld [vmem:[#allocation30 + $0x9e8] sm:$0xff]
    %v2618 = vld [vmem:[#allocation30 + $0x9f0] sm:$0xff]
    %v2619 = vld [vmem:[#allocation30 + $0x9f8] sm:$0xff]
    %v2620 = vld [vmem:[#allocation30 + $0xa00] sm:$0xff]
    %v2621 = vld [vmem:[#allocation30 + $0xa08] sm:$0xff]
    %v2622 = vld [vmem:[#allocation30 + $0xa10] sm:$0xff]
    %v2623 = vld [vmem:[#allocation30 + $0xa18] sm:$0xff]
    %v2624 = vld [vmem:[#allocation32] sm:$0xff]
    %v2625 = vld [vmem:[#allocation32 + $0x8] sm:$0x1]
    %v2628 = vlaneseq
    %v2629 = vshrl.u32 %v2628, 7
    %v2630 = vsub.s32 0, %v2629
    %v2631 = vrot.slane %v2624, %v2630
    %v2632 = vlaneseq
    %v2633 = vshrl.u32 %v2632, 7
    %v2634 = vsub.s32 1, %v2633
    %v2635 = vrot.slane %v2624, %v2634
    %v2636 = vlaneseq
    %v2637 = vshrl.u32 %v2636, 7
    %v2638 = vsub.s32 2, %v2637
    %v2639 = vrot.slane %v2624, %v2638
    %v2640 = vlaneseq
    %v2641 = vshrl.u32 %v2640, 7
    %v2642 = vsub.s32 3, %v2641
    %v2643 = vrot.slane %v2624, %v2642
    %v2644 = vlaneseq
    %v2645 = vshrl.u32 %v2644, 7
    %v2646 = vsub.s32 4, %v2645
    %v2647 = vrot.slane %v2624, %v2646
    %v2648 = vlaneseq
    %v2649 = vshrl.u32 %v2648, 7
    %v2650 = vsub.s32 5, %v2649
    %v2651 = vrot.slane %v2624, %v2650
    %v2652 = vlaneseq
    %v2653 = vshrl.u32 %v2652, 7
    %v2654 = vsub.s32 6, %v2653
    %v2655 = vrot.slane %v2624, %v2654
    %v2656 = vlaneseq
    %v2657 = vshrl.u32 %v2656, 7
    %v2658 = vsub.s32 7, %v2657
    %v2659 = vrot.slane %v2624, %v2658
    %v2660 = vlaneseq
    %v2661 = vshrl.u32 %v2660, 7
    %v2662 = vsub.s32 0, %v2661
    %v2663 = vrot.slane %v2625, %v2662
    %v2674 = vsel %vm1811, %v2299, 0
    %2676 = vmatprep.subr.mxu0 %v2301
    %2677 = vmatpush1.msra.mxu0 %v2300
    %2678 = vmatprep.subr.mxu0 %v2310
    %2679 = vmatpush1.msra.mxu0 %v2309
    %2680 = vmatprep.subr.mxu0 %v2319
    %2681 = vmatpush1.msra.mxu0 %v2318
    %2682 = vmatprep.subr.mxu0 %v2328
    %2683 = vmatpush1.msra.mxu0 %v2327
    %2684 = vmatprep.subr.mxu0 %v2337
    %2685 = vmatpush1.msra.mxu0 %v2336
    %2686 = vmatprep.subr.mxu0 %v2346
    %2687 = vmatpush1.msra.mxu0 %v2345
    %2688 = vmatprep.subr.mxu0 %v2355
    %2689 = vmatpush1.msra.mxu0 %v2354
    %2690 = vmatprep.subr.mxu0 %v2364
    %2691 = vmatpush1.msra.mxu0 %v2363
    %2692 = vmatprep.subr.mxu0 %v2373
    %2693 = vmatpush1.msra.mxu0 %v2372
    %2694 = vmatprep.subr.mxu0 %v2382
    %2695 = vmatpush1.msra.mxu0 %v2381
    %2696 = vmatprep.subr.mxu0 %v2391
    %2697 = vmatpush1.msra.mxu0 %v2390
    %2698 = vmatprep.subr.mxu0 %v2400
    %2699 = vmatpush1.msra.mxu0 %v2399
    %2700 = vmatprep.subr.mxu0 %v2409
    %2701 = vmatpush1.msra.mxu0 %v2408
    %2702 = vmatprep.subr.mxu0 %v2418
    %2703 = vmatpush1.msra.mxu0 %v2417
    %2704 = vmatprep.subr.mxu0 %v2427
    %2705 = vmatpush1.msra.mxu0 %v2426
    %2706 = vmatprep.subr.mxu0 %v2436
    %2707 = vmatpush1.msra.mxu0 %v2435
    %2708 = vmatprep.subr.mxu0 %v2445
    %2709 = vmatpush1.msra.mxu0 %v2444
    %2710 = vmatprep.subr.mxu0 %v2454
    %2711 = vmatpush1.msra.mxu0 %v2453
    %2712 = vmatprep.subr.mxu0 %v2463
    %2713 = vmatpush1.msra.mxu0 %v2462
    %2714 = vmatprep.subr.mxu0 %v2472
    %2715 = vmatpush1.msra.mxu0 %v2471
    %2716 = vmatprep.subr.mxu0 %v2481
    %2717 = vmatpush1.msra.mxu0 %v2480
    %2718 = vmatprep.subr.mxu0 %v2490
    %2719 = vmatpush1.msra.mxu0 %v2489
    %2720 = vmatprep.subr.mxu0 %v2499
    %2721 = vmatpush1.msra.mxu0 %v2498
    %2722 = vmatprep.subr.mxu0 %v2508
    %2723 = vmatpush1.msra.mxu0 %v2507
    %2724 = vmatprep.subr.mxu0 %v2517
    %2725 = vmatpush1.msra.mxu0 %v2516
    %2726 = vmatprep.subr.mxu0 %v2526
    %2727 = vmatpush1.msra.mxu0 %v2525
    %2728 = vmatprep.subr.mxu0 %v2535
    %2729 = vmatpush1.msra.mxu0 %v2534
    %2730 = vmatprep.subr.mxu0 %v2544
    %2731 = vmatpush1.msra.mxu0 %v2543
    %2732 = vmatprep.subr.mxu0 %v2553
    %2733 = vmatpush1.msra.mxu0 %v2552
    %2734 = vmatprep.subr.mxu0 %v2562
    %2735 = vmatpush1.msra.mxu0 %v2561
    %2736 = vmatprep.subr.mxu0 %v2571
    %2737 = vmatpush1.msra.mxu0 %v2570
    %2738 = vmatprep.subr.mxu0 %v2580
    %2739 = vmatpush1.msra.mxu0 %v2579
    %2740 = vmatprep.mubr.f32.mxu0 %v2298
    %2741 = vmatmul.mubr.f32.gmra.mrb[0].mxu0 %v2297
    %v2742 = vpop.f32.mrb[0].mxu0
    %v2743 = vadd.f32 %v2631, %v2742
    %v2744 = vpop.f32.mrb[0].mxu0
    %v2745 = vadd.f32 %v2635, %v2744
    %2746 = vdwg.mxu0
    %2747 = vmatprep.subr.mxu0 %v2589
    %2748 = vmatpush1.msra.mxu0 %v2588
    %2749 = vmatprep.subr.mxu0 %v2598
    %2750 = vmatpush1.msra.mxu0 %v2597
    %2751 = vmatprep.subr.mxu0 %v2607
    %2752 = vmatpush1.msra.mxu0 %v2606
    %2753 = vmatprep.subr.mxu0 %v2616
    %2754 = vmatpush1.msra.mxu0 %v2615
    %2755 = vmatprep.subr.mxu0 0.0
    %2756 = vmatpush1.msra.mxu0 0.0
    %2757 = vmatprep.subr.mxu0 0.0
    %2758 = vmatpush1.msra.mxu0 0.0
    %2759 = vmatprep.subr.mxu0 0.0
    %2760 = vmatpush1.msra.mxu0 0.0
    %2761 = vmatprep.subr.mxu0 0.0
    %2762 = vmatpush1.msra.mxu0 0.0
    %2763 = vmatprep.subr.mxu0 0.0
    %2764 = vmatpush1.msra.mxu0 0.0
    %2765 = vmatprep.subr.mxu0 0.0
    %2766 = vmatpush1.msra.mxu0 0.0
    %2767 = vmatprep.subr.mxu0 0.0
    %2768 = vmatpush1.msra.mxu0 0.0
    %2769 = vmatprep.subr.mxu0 0.0
    %2770 = vmatpush1.msra.mxu0 0.0
    %2771 = vmatprep.subr.mxu0 0.0
    %2772 = vmatpush1.msra.mxu0 0.0
    %2773 = vmatprep.subr.mxu0 0.0
    %2774 = vmatpush1.msra.mxu0 0.0
    %2775 = vmatprep.subr.mxu0 0.0
    %2776 = vmatpush1.msra.mxu0 0.0
    %2777 = vmatprep.subr.mxu0 0.0
    %2778 = vmatpush1.msra.mxu0 0.0
    %2779 = vmatprep.subr.mxu0 0.0
    %2780 = vmatpush1.msra.mxu0 0.0
    %2781 = vmatprep.subr.mxu0 0.0
    %2782 = vmatpush1.msra.mxu0 0.0
    %2783 = vmatprep.subr.mxu0 0.0
    %2784 = vmatpush1.msra.mxu0 0.0
    %2785 = vmatprep.subr.mxu0 0.0
    %2786 = vmatpush1.msra.mxu0 0.0
    %2787 = vmatprep.subr.mxu0 0.0
    %2788 = vmatpush1.msra.mxu0 0.0
    %2789 = vmatprep.subr.mxu0 0.0
    %2790 = vmatpush1.msra.mxu0 0.0
    %2791 = vmatprep.subr.mxu0 0.0
    %2792 = vmatpush1.msra.mxu0 0.0
    %2793 = vmatprep.subr.mxu0 0.0
    %2794 = vmatpush1.msra.mxu0 0.0
    %2795 = vmatprep.subr.mxu0 0.0
    %2796 = vmatpush1.msra.mxu0 0.0
    %2797 = vmatprep.subr.mxu0 0.0
    %2798 = vmatpush1.msra.mxu0 0.0
    %2799 = vmatprep.subr.mxu0 0.0
    %2800 = vmatpush1.msra.mxu0 0.0
    %2801 = vmatprep.subr.mxu0 0.0
    %2802 = vmatpush1.msra.mxu0 0.0
    %2803 = vmatprep.subr.mxu0 0.0
    %2804 = vmatpush1.msra.mxu0 0.0
    %2805 = vmatprep.subr.mxu0 0.0
    %2806 = vmatpush1.msra.mxu0 0.0
    %2807 = vmatprep.subr.mxu0 0.0
    %2808 = vmatpush1.msra.mxu0 0.0
    %2809 = vmatprep.subr.mxu0 0.0
    %2810 = vmatpush1.msra.mxu0 0.0
    %2811 = vmatprep.mubr.f32.mxu0 0.0
    %2812 = vmatmul.mubr.f32.gmra.mrb[0].mxu0 %v2674
    %v2813 = vpop.f32.mrb[0].mxu0
    %v2814 = vadd.f32 %v2743, %v2813
    %v2815 = vpop.f32.mrb[0].mxu0
    %v2816 = vadd.f32 %v2745, %v2815
    %2817 = vdwg.mxu0
    %2818 = vmatprep.subr.mxu0 %v2303
    %2819 = vmatpush1.msra.mxu0 %v2302
    %2820 = vmatprep.subr.mxu0 %v2312
    %2821 = vmatpush1.msra.mxu0 %v2311
    %2822 = vmatprep.subr.mxu0 %v2321
    %2823 = vmatpush1.msra.mxu0 %v2320
    %2824 = vmatprep.subr.mxu0 %v2330
    %2825 = vmatpush1.msra.mxu0 %v2329
    %2826 = vmatprep.subr.mxu0 %v2339
    %2827 = vmatpush1.msra.mxu0 %v2338
    %2828 = vmatprep.subr.mxu0 %v2348
    %2829 = vmatpush1.msra.mxu0 %v2347
    %2830 = vmatprep.subr.mxu0 %v2357
    %2831 = vmatpush1.msra.mxu0 %v2356
    %2832 = vmatprep.subr.mxu0 %v2366
    %2833 = vmatpush1.msra.mxu0 %v2365
    %2834 = vmatprep.subr.mxu0 %v2375
    %2835 = vmatpush1.msra.mxu0 %v2374
    %2836 = vmatprep.subr.mxu0 %v2384
    %2837 = vmatpush1.msra.mxu0 %v2383
    %2838 = vmatprep.subr.mxu0 %v2393
    %2839 = vmatpush1.msra.mxu0 %v2392
    %2840 = vmatprep.subr.mxu0 %v2402
    %2841 = vmatpush1.msra.mxu0 %v2401
    %2842 = vmatprep.subr.mxu0 %v2411
    %2843 = vmatpush1.msra.mxu0 %v2410
    %2844 = vmatprep.subr.mxu0 %v2420
    %2845 = vmatpush1.msra.mxu0 %v2419
    %2846 = vmatprep.subr.mxu0 %v2429
    %2847 = vmatpush1.msra.mxu0 %v2428
    %2848 = vmatprep.subr.mxu0 %v2438
    %2849 = vmatpush1.msra.mxu0 %v2437
    %2850 = vmatprep.subr.mxu0 %v2447
    %2851 = vmatpush1.msra.mxu0 %v2446
    %2852 = vmatprep.subr.mxu0 %v2456
    %2853 = vmatpush1.msra.mxu0 %v2455
    %2854 = vmatprep.subr.mxu0 %v2465
    %2855 = vmatpush1.msra.mxu0 %v2464
    %2856 = vmatprep.subr.mxu0 %v2474
    %2857 = vmatpush1.msra.mxu0 %v2473
    %2858 = vmatprep.subr.mxu0 %v2483
    %2859 = vmatpush1.msra.mxu0 %v2482
    %2860 = vmatprep.subr.mxu0 %v2492
    %2861 = vmatpush1.msra.mxu0 %v2491
    %2862 = vmatprep.subr.mxu0 %v2501
    %2863 = vmatpush1.msra.mxu0 %v2500
    %2864 = vmatprep.subr.mxu0 %v2510
    %2865 = vmatpush1.msra.mxu0 %v2509
    %2866 = vmatprep.subr.mxu0 %v2519
    %2867 = vmatpush1.msra.mxu0 %v2518
    %2868 = vmatprep.subr.mxu0 %v2528
    %2869 = vmatpush1.msra.mxu0 %v2527
    %2870 = vmatprep.subr.mxu0 %v2537
    %2871 = vmatpush1.msra.mxu0 %v2536
    %2872 = vmatprep.subr.mxu0 %v2546
    %2873 = vmatpush1.msra.mxu0 %v2545
    %2874 = vmatprep.subr.mxu0 %v2555
    %2875 = vmatpush1.msra.mxu0 %v2554
    %2876 = vmatprep.subr.mxu0 %v2564
    %2877 = vmatpush1.msra.mxu0 %v2563
    %2878 = vmatprep.subr.mxu0 %v2573
    %2879 = vmatpush1.msra.mxu0 %v2572
    %2880 = vmatprep.subr.mxu0 %v2582
    %2881 = vmatpush1.msra.mxu0 %v2581
    %2882 = vmatprep.mubr.f32.mxu0 %v2298
    %2883 = vmatmul.mubr.f32.gmra.mrb[0].mxu0 %v2297
    %v2884 = vpop.f32.mrb[0].mxu0
    %v2885 = vadd.f32 %v2639, %v2884
    %v2886 = vpop.f32.mrb[0].mxu0
    %v2887 = vadd.f32 %v2643, %v2886
    %2888 = vdwg.mxu0
    %2889 = vmatprep.subr.mxu0 %v2591
    %2890 = vmatpush1.msra.mxu0 %v2590
    %2891 = vmatprep.subr.mxu0 %v2600
    %2892 = vmatpush1.msra.mxu0 %v2599
    %2893 = vmatprep.subr.mxu0 %v2609
    %2894 = vmatpush1.msra.mxu0 %v2608
    %2895 = vmatprep.subr.mxu0 %v2618
    %2896 = vmatpush1.msra.mxu0 %v2617
    %2897 = vmatprep.subr.mxu0 0.0
    %2898 = vmatpush1.msra.mxu0 0.0
    %2899 = vmatprep.subr.mxu0 0.0
    %2900 = vmatpush1.msra.mxu0 0.0
    %2901 = vmatprep.subr.mxu0 0.0
    %2902 = vmatpush1.msra.mxu0 0.0
    %2903 = vmatprep.subr.mxu0 0.0
    %2904 = vmatpush1.msra.mxu0 0.0
    %2905 = vmatprep.subr.mxu0 0.0
    %2906 = vmatpush1.msra.mxu0 0.0
    %2907 = vmatprep.subr.mxu0 0.0
    %2908 = vmatpush1.msra.mxu0 0.0
    %2909 = vmatprep.subr.mxu0 0.0
    %2910 = vmatpush1.msra.mxu0 0.0
    %2911 = vmatprep.subr.mxu0 0.0
    %2912 = vmatpush1.msra.mxu0 0.0
    %2913 = vmatprep.subr.mxu0 0.0
    %2914 = vmatpush1.msra.mxu0 0.0
    %2915 = vmatprep.subr.mxu0 0.0
    %2916 = vmatpush1.msra.mxu0 0.0
    %2917 = vmatprep.subr.mxu0 0.0
    %2918 = vmatpush1.msra.mxu0 0.0
    %2919 = vmatprep.subr.mxu0 0.0
    %2920 = vmatpush1.msra.mxu0 0.0
    %2921 = vmatprep.subr.mxu0 0.0
    %2922 = vmatpush1.msra.mxu0 0.0
    %2923 = vmatprep.subr.mxu0 0.0
    %2924 = vmatpush1.msra.mxu0 0.0
    %2925 = vmatprep.subr.mxu0 0.0
    %2926 = vmatpush1.msra.mxu0 0.0
    %2927 = vmatprep.subr.mxu0 0.0
    %2928 = vmatpush1.msra.mxu0 0.0
    %2929 = vmatprep.subr.mxu0 0.0
    %2930 = vmatpush1.msra.mxu0 0.0
    %2931 = vmatprep.subr.mxu0 0.0
    %2932 = vmatpush1.msra.mxu0 0.0
    %2933 = vmatprep.subr.mxu0 0.0
    %2934 = vmatpush1.msra.mxu0 0.0
    %2935 = vmatprep.subr.mxu0 0.0
    %2936 = vmatpush1.msra.mxu0 0.0
    %2937 = vmatprep.subr.mxu0 0.0
    %2938 = vmatpush1.msra.mxu0 0.0
    %2939 = vmatprep.subr.mxu0 0.0
    %2940 = vmatpush1.msra.mxu0 0.0
    %2941 = vmatprep.subr.mxu0 0.0
    %2942 = vmatpush1.msra.mxu0 0.0
    %2943 = vmatprep.subr.mxu0 0.0
    %2944 = vmatpush1.msra.mxu0 0.0
    %2945 = vmatprep.subr.mxu0 0.0
    %2946 = vmatpush1.msra.mxu0 0.0
    %2947 = vmatprep.subr.mxu0 0.0
    %2948 = vmatpush1.msra.mxu0 0.0
    %2949 = vmatprep.subr.mxu0 0.0
    %2950 = vmatpush1.msra.mxu0 0.0
    %2951 = vmatprep.subr.mxu0 0.0
    %2952 = vmatpush1.msra.mxu0 0.0
    %2953 = vmatprep.mubr.f32.mxu0 0.0
    %2954 = vmatmul.mubr.f32.gmra.mrb[0].mxu0 %v2674
    %v2955 = vpop.f32.mrb[0].mxu0
    %v2956 = vadd.f32 %v2885, %v2955
    %v2957 = vpop.f32.mrb[0].mxu0
    %v2958 = vadd.f32 %v2887, %v2957
    %2959 = vdwg.mxu0
    %2960 = vmatprep.subr.mxu0 %v2305
    %2961 = vmatpush1.msra.mxu0 %v2304
    %2962 = vmatprep.subr.mxu0 %v2314
    %2963 = vmatpush1.msra.mxu0 %v2313
    %2964 = vmatprep.subr.mxu0 %v2323
    %2965 = vmatpush1.msra.mxu0 %v2322
    %2966 = vmatprep.subr.mxu0 %v2332
    %2967 = vmatpush1.msra.mxu0 %v2331
    %2968 = vmatprep.subr.mxu0 %v2341
    %2969 = vmatpush1.msra.mxu0 %v2340
    %2970 = vmatprep.subr.mxu0 %v2350
    %2971 = vmatpush1.msra.mxu0 %v2349
    %2972 = vmatprep.subr.mxu0 %v2359
    %2973 = vmatpush1.msra.mxu0 %v2358
    %2974 = vmatprep.subr.mxu0 %v2368
    %2975 = vmatpush1.msra.mxu0 %v2367
    %2976 = vmatprep.subr.mxu0 %v2377
    %2977 = vmatpush1.msra.mxu0 %v2376
    %2978 = vmatprep.subr.mxu0 %v2386
    %2979 = vmatpush1.msra.mxu0 %v2385
    %2980 = vmatprep.subr.mxu0 %v2395
    %2981 = vmatpush1.msra.mxu0 %v2394
    %2982 = vmatprep.subr.mxu0 %v2404
    %2983 = vmatpush1.msra.mxu0 %v2403
    %2984 = vmatprep.subr.mxu0 %v2413
    %2985 = vmatpush1.msra.mxu0 %v2412
    %2986 = vmatprep.subr.mxu0 %v2422
    %2987 = vmatpush1.msra.mxu0 %v2421
    %2988 = vmatprep.subr.mxu0 %v2431
    %2989 = vmatpush1.msra.mxu0 %v2430
    %2990 = vmatprep.subr.mxu0 %v2440
    %2991 = vmatpush1.msra.mxu0 %v2439
    %2992 = vmatprep.subr.mxu0 %v2449
    %2993 = vmatpush1.msra.mxu0 %v2448
    %2994 = vmatprep.subr.mxu0 %v2458
    %2995 = vmatpush1.msra.mxu0 %v2457
    %2996 = vmatprep.subr.mxu0 %v2467
    %2997 = vmatpush1.msra.mxu0 %v2466
    %2998 = vmatprep.subr.mxu0 %v2476
    %2999 = vmatpush1.msra.mxu0 %v2475
    %3000 = vmatprep.subr.mxu0 %v2485
    %3001 = vmatpush1.msra.mxu0 %v2484
    %3002 = vmatprep.subr.mxu0 %v2494
    %3003 = vmatpush1.msra.mxu0 %v2493
    %3004 = vmatprep.subr.mxu0 %v2503
    %3005 = vmatpush1.msra.mxu0 %v2502
    %3006 = vmatprep.subr.mxu0 %v2512
    %3007 = vmatpush1.msra.mxu0 %v2511
    %3008 = vmatprep.subr.mxu0 %v2521
    %3009 = vmatpush1.msra.mxu0 %v2520
    %3010 = vmatprep.subr.mxu0 %v2530
    %3011 = vmatpush1.msra.mxu0 %v2529
    %3012 = vmatprep.subr.mxu0 %v2539
    %3013 = vmatpush1.msra.mxu0 %v2538
    %3014 = vmatprep.subr.mxu0 %v2548
    %3015 = vmatpush1.msra.mxu0 %v2547
    %3016 = vmatprep.subr.mxu0 %v2557
    %3017 = vmatpush1.msra.mxu0 %v2556
    %3018 = vmatprep.subr.mxu0 %v2566
    %3019 = vmatpush1.msra.mxu0 %v2565
    %3020 = vmatprep.subr.mxu0 %v2575
    %3021 = vmatpush1.msra.mxu0 %v2574
    %3022 = vmatprep.subr.mxu0 %v2584
    %3023 = vmatpush1.msra.mxu0 %v2583
    %3024 = vmatprep.mubr.f32.mxu0 %v2298
    %3025 = vmatmul.mubr.f32.gmra.mrb[0].mxu0 %v2297
    %v3026 = vpop.f32.mrb[0].mxu0
    %v3027 = vadd.f32 %v2647, %v3026
    %v3028 = vpop.f32.mrb[0].mxu0
    %v3029 = vadd.f32 %v2651, %v3028
    %3030 = vdwg.mxu0
    %3031 = vmatprep.subr.mxu0 %v2593
    %3032 = vmatpush1.msra.mxu0 %v2592
    %3033 = vmatprep.subr.mxu0 %v2602
    %3034 = vmatpush1.msra.mxu0 %v2601
    %3035 = vmatprep.subr.mxu0 %v2611
    %3036 = vmatpush1.msra.mxu0 %v2610
    %3037 = vmatprep.subr.mxu0 %v2620
    %3038 = vmatpush1.msra.mxu0 %v2619
    %3039 = vmatprep.subr.mxu0 0.0
    %3040 = vmatpush1.msra.mxu0 0.0
    %3041 = vmatprep.subr.mxu0 0.0
    %3042 = vmatpush1.msra.mxu0 0.0
    %3043 = vmatprep.subr.mxu0 0.0
    %3044 = vmatpush1.msra.mxu0 0.0
    %3045 = vmatprep.subr.mxu0 0.0
    %3046 = vmatpush1.msra.mxu0 0.0
    %3047 = vmatprep.subr.mxu0 0.0
    %3048 = vmatpush1.msra.mxu0 0.0
    %3049 = vmatprep.subr.mxu0 0.0
    %3050 = vmatpush1.msra.mxu0 0.0
    %3051 = vmatprep.subr.mxu0 0.0
    %3052 = vmatpush1.msra.mxu0 0.0
    %3053 = vmatprep.subr.mxu0 0.0
    %3054 = vmatpush1.msra.mxu0 0.0
    %3055 = vmatprep.subr.mxu0 0.0
    %3056 = vmatpush1.msra.mxu0 0.0
    %3057 = vmatprep.subr.mxu0 0.0
    %3058 = vmatpush1.msra.mxu0 0.0
    %3059 = vmatprep.subr.mxu0 0.0
    %3060 = vmatpush1.msra.mxu0 0.0
    %3061 = vmatprep.subr.mxu0 0.0
    %3062 = vmatpush1.msra.mxu0 0.0
    %3063 = vmatprep.subr.mxu0 0.0
    %3064 = vmatpush1.msra.mxu0 0.0
    %3065 = vmatprep.subr.mxu0 0.0
    %3066 = vmatpush1.msra.mxu0 0.0
    %3067 = vmatprep.subr.mxu0 0.0
    %3068 = vmatpush1.msra.mxu0 0.0
    %3069 = vmatprep.subr.mxu0 0.0
    %3070 = vmatpush1.msra.mxu0 0.0
    %3071 = vmatprep.subr.mxu0 0.0
    %3072 = vmatpush1.msra.mxu0 0.0
    %3073 = vmatprep.subr.mxu0 0.0
    %3074 = vmatpush1.msra.mxu0 0.0
    %3075 = vmatprep.subr.mxu0 0.0
    %3076 = vmatpush1.msra.mxu0 0.0
    %3077 = vmatprep.subr.mxu0 0.0
    %3078 = vmatpush1.msra.mxu0 0.0
    %3079 = vmatprep.subr.mxu0 0.0
    %3080 = vmatpush1.msra.mxu0 0.0
    %3081 = vmatprep.subr.mxu0 0.0
    %3082 = vmatpush1.msra.mxu0 0.0
    %3083 = vmatprep.subr.mxu0 0.0
    %3084 = vmatpush1.msra.mxu0 0.0
    %3085 = vmatprep.subr.mxu0 0.0
    %3086 = vmatpush1.msra.mxu0 0.0
    %3087 = vmatprep.subr.mxu0 0.0
    %3088 = vmatpush1.msra.mxu0 0.0
    %3089 = vmatprep.subr.mxu0 0.0
    %3090 = vmatpush1.msra.mxu0 0.0
    %3091 = vmatprep.subr.mxu0 0.0
    %3092 = vmatpush1.msra.mxu0 0.0
    %3093 = vmatprep.subr.mxu0 0.0
    %3094 = vmatpush1.msra.mxu0 0.0
    %3095 = vmatprep.mubr.f32.mxu0 0.0
    %3096 = vmatmul.mubr.f32.gmra.mrb[0].mxu0 %v2674
    %v3097 = vpop.f32.mrb[0].mxu0
    %v3098 = vadd.f32 %v3027, %v3097
    %v3099 = vpop.f32.mrb[0].mxu0
    %v3100 = vadd.f32 %v3029, %v3099
    %3101 = vdwg.mxu0
    %3102 = vmatprep.subr.mxu0 %v2307
    %3103 = vmatpush1.msra.mxu0 %v2306
    %3104 = vmatprep.subr.mxu0 %v2316
    %3105 = vmatpush1.msra.mxu0 %v2315
    %3106 = vmatprep.subr.mxu0 %v2325
    %3107 = vmatpush1.msra.mxu0 %v2324
    %3108 = vmatprep.subr.mxu0 %v2334
    %3109 = vmatpush1.msra.mxu0 %v2333
    %3110 = vmatprep.subr.mxu0 %v2343
    %3111 = vmatpush1.msra.mxu0 %v2342
    %3112 = vmatprep.subr.mxu0 %v2352
    %3113 = vmatpush1.msra.mxu0 %v2351
    %3114 = vmatprep.subr.mxu0 %v2361
    %3115 = vmatpush1.msra.mxu0 %v2360
    %3116 = vmatprep.subr.mxu0 %v2370
    %3117 = vmatpush1.msra.mxu0 %v2369
    %3118 = vmatprep.subr.mxu0 %v2379
    %3119 = vmatpush1.msra.mxu0 %v2378
    %3120 = vmatprep.subr.mxu0 %v2388
    %3121 = vmatpush1.msra.mxu0 %v2387
    %3122 = vmatprep.subr.mxu0 %v2397
    %3123 = vmatpush1.msra.mxu0 %v2396
    %3124 = vmatprep.subr.mxu0 %v2406
    %3125 = vmatpush1.msra.mxu0 %v2405
    %3126 = vmatprep.subr.mxu0 %v2415
    %3127 = vmatpush1.msra.mxu0 %v2414
    %3128 = vmatprep.subr.mxu0 %v2424
    %3129 = vmatpush1.msra.mxu0 %v2423
    %3130 = vmatprep.subr.mxu0 %v2433
    %3131 = vmatpush1.msra.mxu0 %v2432
    %3132 = vmatprep.subr.mxu0 %v2442
    %3133 = vmatpush1.msra.mxu0 %v2441
    %3134 = vmatprep.subr.mxu0 %v2451
    %3135 = vmatpush1.msra.mxu0 %v2450
    %3136 = vmatprep.subr.mxu0 %v2460
    %3137 = vmatpush1.msra.mxu0 %v2459
    %3138 = vmatprep.subr.mxu0 %v2469
    %3139 = vmatpush1.msra.mxu0 %v2468
    %3140 = vmatprep.subr.mxu0 %v2478
    %3141 = vmatpush1.msra.mxu0 %v2477
    %3142 = vmatprep.subr.mxu0 %v2487
    %3143 = vmatpush1.msra.mxu0 %v2486
    %3144 = vmatprep.subr.mxu0 %v2496
    %3145 = vmatpush1.msra.mxu0 %v2495
    %3146 = vmatprep.subr.mxu0 %v2505
    %3147 = vmatpush1.msra.mxu0 %v2504
    %3148 = vmatprep.subr.mxu0 %v2514
    %3149 = vmatpush1.msra.mxu0 %v2513
    %3150 = vmatprep.subr.mxu0 %v2523
    %3151 = vmatpush1.msra.mxu0 %v2522
    %3152 = vmatprep.subr.mxu0 %v2532
    %3153 = vmatpush1.msra.mxu0 %v2531
    %3154 = vmatprep.subr.mxu0 %v2541
    %3155 = vmatpush1.msra.mxu0 %v2540
    %3156 = vmatprep.subr.mxu0 %v2550
    %3157 = vmatpush1.msra.mxu0 %v2549
    %3158 = vmatprep.subr.mxu0 %v2559
    %3159 = vmatpush1.msra.mxu0 %v2558
    %3160 = vmatprep.subr.mxu0 %v2568
    %3161 = vmatpush1.msra.mxu0 %v2567
    %3162 = vmatprep.subr.mxu0 %v2577
    %3163 = vmatpush1.msra.mxu0 %v2576
    %3164 = vmatprep.subr.mxu0 %v2586
    %3165 = vmatpush1.msra.mxu0 %v2585
    %3166 = vmatprep.mubr.f32.mxu0 %v2298
    %3167 = vmatmul.mubr.f32.gmra.mrb[0].mxu0 %v2297
    %v3168 = vpop.f32.mrb[0].mxu0
    %v3169 = vadd.f32 %v2655, %v3168
    %v3170 = vpop.f32.mrb[0].mxu0
    %v3171 = vadd.f32 %v2659, %v3170
    %3172 = vdwg.mxu0
    %3173 = vmatprep.subr.mxu0 %v2595
    %3174 = vmatpush1.msra.mxu0 %v2594
    %3175 = vmatprep.subr.mxu0 %v2604
    %3176 = vmatpush1.msra.mxu0 %v2603
    %3177 = vmatprep.subr.mxu0 %v2613
    %3178 = vmatpush1.msra.mxu0 %v2612
    %3179 = vmatprep.subr.mxu0 %v2622
    %3180 = vmatpush1.msra.mxu0 %v2621
    %3181 = vmatprep.subr.mxu0 0.0
    %3182 = vmatpush1.msra.mxu0 0.0
    %3183 = vmatprep.subr.mxu0 0.0
    %3184 = vmatpush1.msra.mxu0 0.0
    %3185 = vmatprep.subr.mxu0 0.0
    %3186 = vmatpush1.msra.mxu0 0.0
    %3187 = vmatprep.subr.mxu0 0.0
    %3188 = vmatpush1.msra.mxu0 0.0
    %3189 = vmatprep.subr.mxu0 0.0
    %3190 = vmatpush1.msra.mxu0 0.0
    %3191 = vmatprep.subr.mxu0 0.0
    %3192 = vmatpush1.msra.mxu0 0.0
    %3193 = vmatprep.subr.mxu0 0.0
    %3194 = vmatpush1.msra.mxu0 0.0
    %3195 = vmatprep.subr.mxu0 0.0
    %3196 = vmatpush1.msra.mxu0 0.0
    %3197 = vmatprep.subr.mxu0 0.0
    %3198 = vmatpush1.msra.mxu0 0.0
    %3199 = vmatprep.subr.mxu0 0.0
    %3200 = vmatpush1.msra.mxu0 0.0
    %3201 = vmatprep.subr.mxu0 0.0
    %3202 = vmatpush1.msra.mxu0 0.0
    %3203 = vmatprep.subr.mxu0 0.0
    %3204 = vmatpush1.msra.mxu0 0.0
    %3205 = vmatprep.subr.mxu0 0.0
    %3206 = vmatpush1.msra.mxu0 0.0
    %3207 = vmatprep.subr.mxu0 0.0
    %3208 = vmatpush1.msra.mxu0 0.0
    %3209 = vmatprep.subr.mxu0 0.0
    %3210 = vmatpush1.msra.mxu0 0.0
    %3211 = vmatprep.subr.mxu0 0.0
    %3212 = vmatpush1.msra.mxu0 0.0
    %3213 = vmatprep.subr.mxu0 0.0
    %3214 = vmatpush1.msra.mxu0 0.0
    %3215 = vmatprep.subr.mxu0 0.0
    %3216 = vmatpush1.msra.mxu0 0.0
    %3217 = vmatprep.subr.mxu0 0.0
    %3218 = vmatpush1.msra.mxu0 0.0
    %3219 = vmatprep.subr.mxu0 0.0
    %3220 = vmatpush1.msra.mxu0 0.0
    %3221 = vmatprep.subr.mxu0 0.0
    %3222 = vmatpush1.msra.mxu0 0.0
    %3223 = vmatprep.subr.mxu0 0.0
    %3224 = vmatpush1.msra.mxu0 0.0
    %3225 = vmatprep.subr.mxu0 0.0
    %3226 = vmatpush1.msra.mxu0 0.0
    %3227 = vmatprep.subr.mxu0 0.0
    %3228 = vmatpush1.msra.mxu0 0.0
    %3229 = vmatprep.subr.mxu0 0.0
    %3230 = vmatpush1.msra.mxu0 0.0
    %3231 = vmatprep.subr.mxu0 0.0
    %3232 = vmatpush1.msra.mxu0 0.0
    %3233 = vmatprep.subr.mxu0 0.0
    %3234 = vmatpush1.msra.mxu0 0.0
    %3235 = vmatprep.subr.mxu0 0.0
    %3236 = vmatpush1.msra.mxu0 0.0
    %3237 = vmatprep.mubr.f32.mxu0 0.0
    %3238 = vmatmul.mubr.f32.gmra.mrb[0].mxu0 %v2674
    %v3239 = vpop.f32.mrb[0].mxu0
    %v3240 = vadd.f32 %v3169, %v3239
    %v3241 = vpop.f32.mrb[0].mxu0
    %v3242 = vadd.f32 %v3171, %v3241
    %3243 = vdwg.mxu0
    %3244 = vmatprep.subr.mxu0 0.0
    %3245 = vmatpush1.msra.mxu0 %v2308
    %3246 = vmatprep.subr.mxu0 0.0
    %3247 = vmatpush1.msra.mxu0 %v2317
    %3248 = vmatprep.subr.mxu0 0.0
    %3249 = vmatpush1.msra.mxu0 %v2326
    %3250 = vmatprep.subr.mxu0 0.0
    %3251 = vmatpush1.msra.mxu0 %v2335
    %3252 = vmatprep.subr.mxu0 0.0
    %3253 = vmatpush1.msra.mxu0 %v2344
    %3254 = vmatprep.subr.mxu0 0.0
    %3255 = vmatpush1.msra.mxu0 %v2353
    %3256 = vmatprep.subr.mxu0 0.0
    %3257 = vmatpush1.msra.mxu0 %v2362
    %3258 = vmatprep.subr.mxu0 0.0
    %3259 = vmatpush1.msra.mxu0 %v2371
    %3260 = vmatprep.subr.mxu0 0.0
    %3261 = vmatpush1.msra.mxu0 %v2380
    %3262 = vmatprep.subr.mxu0 0.0
    %3263 = vmatpush1.msra.mxu0 %v2389
    %3264 = vmatprep.subr.mxu0 0.0
    %3265 = vmatpush1.msra.mxu0 %v2398
    %3266 = vmatprep.subr.mxu0 0.0
    %3267 = vmatpush1.msra.mxu0 %v2407
    %3268 = vmatprep.subr.mxu0 0.0
    %3269 = vmatpush1.msra.mxu0 %v2416
    %3270 = vmatprep.subr.mxu0 0.0
    %3271 = vmatpush1.msra.mxu0 %v2425
    %3272 = vmatprep.subr.mxu0 0.0
    %3273 = vmatpush1.msra.mxu0 %v2434
    %3274 = vmatprep.subr.mxu0 0.0
    %3275 = vmatpush1.msra.mxu0 %v2443
    %3276 = vmatprep.subr.mxu0 0.0
    %3277 = vmatpush1.msra.mxu0 %v2452
    %3278 = vmatprep.subr.mxu0 0.0
    %3279 = vmatpush1.msra.mxu0 %v2461
    %3280 = vmatprep.subr.mxu0 0.0
    %3281 = vmatpush1.msra.mxu0 %v2470
    %3282 = vmatprep.subr.mxu0 0.0
    %3283 = vmatpush1.msra.mxu0 %v2479
    %3284 = vmatprep.subr.mxu0 0.0
    %3285 = vmatpush1.msra.mxu0 %v2488
    %3286 = vmatprep.subr.mxu0 0.0
    %3287 = vmatpush1.msra.mxu0 %v2497
    %3288 = vmatprep.subr.mxu0 0.0
    %3289 = vmatpush1.msra.mxu0 %v2506
    %3290 = vmatprep.subr.mxu0 0.0
    %3291 = vmatpush1.msra.mxu0 %v2515
    %3292 = vmatprep.subr.mxu0 0.0
    %3293 = vmatpush1.msra.mxu0 %v2524
    %3294 = vmatprep.subr.mxu0 0.0
    %3295 = vmatpush1.msra.mxu0 %v2533
    %3296 = vmatprep.subr.mxu0 0.0
    %3297 = vmatpush1.msra.mxu0 %v2542
    %3298 = vmatprep.subr.mxu0 0.0
    %3299 = vmatpush1.msra.mxu0 %v2551
    %3300 = vmatprep.subr.mxu0 0.0
    %3301 = vmatpush1.msra.mxu0 %v2560
    %3302 = vmatprep.subr.mxu0 0.0
    %3303 = vmatpush1.msra.mxu0 %v2569
    %3304 = vmatprep.subr.mxu0 0.0
    %3305 = vmatpush1.msra.mxu0 %v2578
    %3306 = vmatprep.subr.mxu0 0.0
    %3307 = vmatpush1.msra.mxu0 %v2587
    %3308 = vmatprep.mubr.f32.mxu0 %v2298
    %3309 = vmatmul.mubr.f32.gmra.mrb[0].mxu0 %v2297
    %v3310 = vpop.f32.mrb[0].mxu0
    %v3311 = vadd.f32 %v2663, %v3310
    %v3312 = vpop.f32.mrb[0].mxu0
    %3313 = vdwg.mxu0
    %3314 = vmatprep.subr.mxu0 0.0
    %3315 = vmatpush1.msra.mxu0 %v2596
    %3316 = vmatprep.subr.mxu0 0.0
    %3317 = vmatpush1.msra.mxu0 %v2605
    %3318 = vmatprep.subr.mxu0 0.0
    %3319 = vmatpush1.msra.mxu0 %v2614
    %3320 = vmatprep.subr.mxu0 0.0
    %3321 = vmatpush1.msra.mxu0 %v2623
    %3322 = vmatprep.subr.mxu0 0.0
    %3323 = vmatpush1.msra.mxu0 0.0
    %3324 = vmatprep.subr.mxu0 0.0
    %3325 = vmatpush1.msra.mxu0 0.0
    %3326 = vmatprep.subr.mxu0 0.0
    %3327 = vmatpush1.msra.mxu0 0.0
    %3328 = vmatprep.subr.mxu0 0.0
    %3329 = vmatpush1.msra.mxu0 0.0
    %3330 = vmatprep.subr.mxu0 0.0
    %3331 = vmatpush1.msra.mxu0 0.0
    %3332 = vmatprep.subr.mxu0 0.0
    %3333 = vmatpush1.msra.mxu0 0.0
    %3334 = vmatprep.subr.mxu0 0.0
    %3335 = vmatpush1.msra.mxu0 0.0
    %3336 = vmatprep.subr.mxu0 0.0
    %3337 = vmatpush1.msra.mxu0 0.0
    %3338 = vmatprep.subr.mxu0 0.0
    %3339 = vmatpush1.msra.mxu0 0.0
    %3340 = vmatprep.subr.mxu0 0.0
    %3341 = vmatpush1.msra.mxu0 0.0
    %3342 = vmatprep.subr.mxu0 0.0
    %3343 = vmatpush1.msra.mxu0 0.0
    %3344 = vmatprep.subr.mxu0 0.0
    %3345 = vmatpush1.msra.mxu0 0.0
    %3346 = vmatprep.subr.mxu0 0.0
    %3347 = vmatpush1.msra.mxu0 0.0
    %3348 = vmatprep.subr.mxu0 0.0
    %3349 = vmatpush1.msra.mxu0 0.0
    %3350 = vmatprep.subr.mxu0 0.0
    %3351 = vmatpush1.msra.mxu0 0.0
    %3352 = vmatprep.subr.mxu0 0.0
    %3353 = vmatpush1.msra.mxu0 0.0
    %3354 = vmatprep.subr.mxu0 0.0
    %3355 = vmatpush1.msra.mxu0 0.0
    %3356 = vmatprep.subr.mxu0 0.0
    %3357 = vmatpush1.msra.mxu0 0.0
    %3358 = vmatprep.subr.mxu0 0.0
    %3359 = vmatpush1.msra.mxu0 0.0
    %3360 = vmatprep.subr.mxu0 0.0
    %3361 = vmatpush1.msra.mxu0 0.0
    %3362 = vmatprep.subr.mxu0 0.0
    %3363 = vmatpush1.msra.mxu0 0.0
    %3364 = vmatprep.subr.mxu0 0.0
    %3365 = vmatpush1.msra.mxu0 0.0
    %3366 = vmatprep.subr.mxu0 0.0
    %3367 = vmatpush1.msra.mxu0 0.0
    %3368 = vmatprep.subr.mxu0 0.0
    %3369 = vmatpush1.msra.mxu0 0.0
    %3370 = vmatprep.subr.mxu0 0.0
    %3371 = vmatpush1.msra.mxu0 0.0
    %3372 = vmatprep.subr.mxu0 0.0
    %3373 = vmatpush1.msra.mxu0 0.0
    %3374 = vmatprep.subr.mxu0 0.0
    %3375 = vmatpush1.msra.mxu0 0.0
    %3376 = vmatprep.subr.mxu0 0.0
    %3377 = vmatpush1.msra.mxu0 0.0
    %3378 = vmatprep.mubr.f32.mxu0 0.0
    %3379 = vmatmul.mubr.f32.gmra.mrb[0].mxu0 %v2674
    %v3380 = vpop.f32.mrb[0].mxu0
    %v3381 = vadd.f32 %v3311, %v3380
    %v3382 = vpop.f32.mrb[0].mxu0
    %3383 = vdwg.mxu0
    %v3384 = vxor.u32 %v3098, 2147483648
    %v3385 = vxor.u32 %v3100, 2147483648
    %v3386 = vxor.u32 %v3240, 2147483648
    %v3387 = vxor.u32 %v3242, 2147483648
    %v3388 = vxor.u32 %v3381, 2147483648
    %v3389 = vmul.f32 %v3384, 1.442695
    %v3390 = vpow.pop %v3389
    %v3391 = vmul.f32 %v3385, 1.442695
    %v3392 = vpow.pop %v3391
    %v3393 = vmul.f32 %v3386, 1.442695
    %v3394 = vpow.pop %v3393
    %v3395 = vmul.f32 %v3387, 1.442695
    %v3396 = vpow.pop %v3395
    %v3397 = vmul.f32 %v3388, 1.442695
    %v3398 = vpow.pop %v3397
    %v3399 = vadd.f32 %v3390, 1.0
    %v3400 = vadd.f32 %v3392, 1.0
    %v3401 = vadd.f32 %v3394, 1.0
    %v3402 = vadd.f32 %v3396, 1.0
    %v3403 = vadd.f32 %v3398, 1.0
    %v3404 = vrcp.pop %v3399
    %v3405 = vmul.f32 1.0, %v3404
    %v3406 = vrcp.pop %v3400
    %v3407 = vmul.f32 1.0, %v3406
    %v3408 = vrcp.pop %v3401
    %v3409 = vmul.f32 1.0, %v3408
    %v3410 = vrcp.pop %v3402
    %v3411 = vmul.f32 1.0, %v3410
    %v3412 = vrcp.pop %v3403
    %v3413 = vmul.f32 1.0, %v3412
    %3419 = vrot.lane.b32.xlu0 %v3405, 64
    %v3420 = vpop.permute.xlu0 %3419
    %3421 = vrot.lane.b32.xlu0 %v3407, 64
    %v3422 = vpop.permute.xlu0 %3421
    %3423 = vrot.lane.b32.xlu0 %v3409, 64
    %v3424 = vpop.permute.xlu0 %3423
    %3425 = vrot.lane.b32.xlu0 %v3411, 64
    %v3426 = vpop.permute.xlu0 %3425
    %3427 = vrot.lane.b32.xlu0 %v3413, 64
    %v3428 = vpop.permute.xlu0 %3427
    %vm3429 = vcmask 523264
    %v3430 = vsel %vm3429, %v3420, %v3422
    %v3431 = vsel %vm3429, %v3422, %v3424
    %v3432 = vsel %vm3429, %v3424, %v3426
    %v3433 = vsel %vm3429, %v3426, %v3428
    %v3439 = vmul.f32 %v2814, %v3430
    %v3440 = vmul.f32 %v2816, %v3431
    %v3441 = vmul.f32 %v2956, %v3432
    %v3442 = vmul.f32 %v2958, %v3433
    %v3443 = vmul.f32 %v3098, %v3428
    %v3444 = vld [vmem:[#allocation33] sm:$0x1f]
    %v3446 = vlaneseq
    %v3447 = vshrl.u32 %v3446, 7
    %v3448 = vsub.s32 0, %v3447
    %v3449 = vrot.slane %v3444, %v3448
    %v3450 = vlaneseq
    %v3451 = vshrl.u32 %v3450, 7
    %v3452 = vsub.s32 1, %v3451
    %v3453 = vrot.slane %v3444, %v3452
    %v3454 = vlaneseq
    %v3455 = vshrl.u32 %v3454, 7
    %v3456 = vsub.s32 2, %v3455
    %v3457 = vrot.slane %v3444, %v3456
    %v3458 = vlaneseq
    %v3459 = vshrl.u32 %v3458, 7
    %v3460 = vsub.s32 3, %v3459
    %v3461 = vrot.slane %v3444, %v3460
    %v3462 = vlaneseq
    %v3463 = vshrl.u32 %v3462, 7
    %v3464 = vsub.s32 4, %v3463
    %v3465 = vrot.slane %v3444, %v3464
    %v3471 = vadd.f32 %v3439, %v3449
    %v3472 = vadd.f32 %v3440, %v3453
    %v3473 = vadd.f32 %v3441, %v3457
    %v3474 = vadd.f32 %v3442, %v3461
    %v3475 = vadd.f32 %v3443, %v3465
    %v3476 = vld [vmem:[#allocation35] sm:$0xff]
    %v3477 = vld [vmem:[#allocation35 + $0x8] sm:$0xff]
    %v3478 = vld [vmem:[#allocation35 + $0x10] sm:$0xff]
    %v3479 = vld [vmem:[#allocation35 + $0x18] sm:$0xff]
    %v3480 = vld [vmem:[#allocation35 + $0x20] sm:$0xff]
    %v3481 = vld [vmem:[#allocation35 + $0x28] sm:$0xff]
    %v3482 = vld [vmem:[#allocation35 + $0x30] sm:$0xff]
    %v3483 = vld [vmem:[#allocation35 + $0x38] sm:$0xff]
    %v3484 = vld [vmem:[#allocation35 + $0x40] sm:$0xff]
    %v3485 = vld [vmem:[#allocation35 + $0x48] sm:$0xff]
    %v3486 = vld [vmem:[#allocation35 + $0x50] sm:$0xff]
    %v3487 = vld [vmem:[#allocation35 + $0x58] sm:$0xff]
    %v3488 = vld [vmem:[#allocation35 + $0x60] sm:$0xff]
    %v3489 = vld [vmem:[#allocation35 + $0x68] sm:$0xff]
    %v3490 = vld [vmem:[#allocation35 + $0x70] sm:$0xff]
    %v3491 = vld [vmem:[#allocation35 + $0x78] sm:$0xff]
    %v3492 = vld [vmem:[#allocation35 + $0x80] sm:$0xff]
    %v3493 = vld [vmem:[#allocation35 + $0x88] sm:$0xff]
    %v3494 = vld [vmem:[#allocation35 + $0x90] sm:$0xff]
    %v3495 = vld [vmem:[#allocation35 + $0x98] sm:$0xff]
    %v3496 = vld [vmem:[#allocation35 + $0xa0] sm:$0xff]
    %v3497 = vld [vmem:[#allocation35 + $0xa8] sm:$0xff]
    %v3498 = vld [vmem:[#allocation35 + $0xb0] sm:$0xff]
    %v3499 = vld [vmem:[#allocation35 + $0xb8] sm:$0xff]
    %v3500 = vld [vmem:[#allocation35 + $0xc0] sm:$0xff]
    %v3501 = vld [vmem:[#allocation35 + $0xc8] sm:$0xff]
    %v3502 = vld [vmem:[#allocation35 + $0xd0] sm:$0xff]
    %v3503 = vld [vmem:[#allocation35 + $0xd8] sm:$0xff]
    %v3504 = vld [vmem:[#allocation35 + $0xe0] sm:$0xff]
    %v3505 = vld [vmem:[#allocation35 + $0xe8] sm:$0xff]
    %v3506 = vld [vmem:[#allocation35 + $0xf0] sm:$0xff]
    %v3507 = vld [vmem:[#allocation35 + $0xf8] sm:$0xff]
    %v3508 = vld [vmem:[#allocation35 + $0x100] sm:$0xff]
    %v3509 = vld [vmem:[#allocation35 + $0x108] sm:$0xff]
    %v3510 = vld [vmem:[#allocation35 + $0x110] sm:$0xff]
    %v3511 = vld [vmem:[#allocation35 + $0x118] sm:$0xff]
    %v3512 = vld [vmem:[#allocation35 + $0x120] sm:$0xff]
    %v3513 = vld [vmem:[#allocation35 + $0x128] sm:$0xff]
    %v3514 = vld [vmem:[#allocation35 + $0x130] sm:$0xff]
    %v3515 = vld [vmem:[#allocation35 + $0x138] sm:$0xff]
    %v3516 = vld [vmem:[#allocation35 + $0x140] sm:$0xff]
    %v3517 = vld [vmem:[#allocation35 + $0x148] sm:$0xff]
    %v3518 = vld [vmem:[#allocation35 + $0x150] sm:$0xff]
    %v3519 = vld [vmem:[#allocation35 + $0x158] sm:$0xff]
    %v3520 = vld [vmem:[#allocation35 + $0x160] sm:$0xff]
    %v3521 = vld [vmem:[#allocation35 + $0x168] sm:$0xff]
    %v3522 = vld [vmem:[#allocation35 + $0x170] sm:$0xff]
    %v3523 = vld [vmem:[#allocation35 + $0x178] sm:$0xff]
    %v3524 = vld [vmem:[#allocation35 + $0x180] sm:$0xff]
    %v3525 = vld [vmem:[#allocation35 + $0x188] sm:$0xff]
    %v3526 = vld [vmem:[#allocation35 + $0x190] sm:$0xff]
    %v3527 = vld [vmem:[#allocation35 + $0x198] sm:$0xff]
    %v3528 = vld [vmem:[#allocation35 + $0x1a0] sm:$0xff]
    %v3529 = vld [vmem:[#allocation35 + $0x1a8] sm:$0xff]
    %v3530 = vld [vmem:[#allocation35 + $0x1b0] sm:$0xff]
    %v3531 = vld [vmem:[#allocation35 + $0x1b8] sm:$0xff]
    %v3532 = vld [vmem:[#allocation35 + $0x1c0] sm:$0xff]
    %v3533 = vld [vmem:[#allocation35 + $0x1c8] sm:$0xff]
    %v3534 = vld [vmem:[#allocation35 + $0x1d0] sm:$0xff]
    %v3535 = vld [vmem:[#allocation35 + $0x1d8] sm:$0xff]
    %v3536 = vld [vmem:[#allocation35 + $0x1e0] sm:$0xff]
    %v3537 = vld [vmem:[#allocation35 + $0x1e8] sm:$0xff]
    %v3538 = vld [vmem:[#allocation35 + $0x1f0] sm:$0xff]
    %v3539 = vld [vmem:[#allocation35 + $0x1f8] sm:$0xff]
    %v3540 = vld [vmem:[#allocation35 + $0x200] sm:$0xff]
    %v3541 = vld [vmem:[#allocation35 + $0x208] sm:$0xff]
    %v3542 = vld [vmem:[#allocation35 + $0x210] sm:$0xff]
    %v3543 = vld [vmem:[#allocation35 + $0x218] sm:$0xff]
    %v3544 = vld [vmem:[#allocation35 + $0x220] sm:$0xff]
    %v3545 = vld [vmem:[#allocation35 + $0x228] sm:$0xff]
    %v3546 = vld [vmem:[#allocation35 + $0x230] sm:$0xff]
    %v3547 = vld [vmem:[#allocation35 + $0x238] sm:$0xff]
    %v3548 = vld [vmem:[#allocation35 + $0x240] sm:$0xff]
    %v3549 = vld [vmem:[#allocation35 + $0x248] sm:$0xff]
    %v3550 = vld [vmem:[#allocation35 + $0x250] sm:$0xff]
    %v3551 = vld [vmem:[#allocation35 + $0x258] sm:$0xff]
    %v3552 = vld [vmem:[#allocation35 + $0x260] sm:$0xff]
    %v3553 = vld [vmem:[#allocation35 + $0x268] sm:$0xff]
    %v3554 = vld [vmem:[#allocation35 + $0x270] sm:$0xff]
    %v3555 = vld [vmem:[#allocation35 + $0x278] sm:$0xff]
    %v3556 = vld [vmem:[#allocation35 + $0x280] sm:$0xff]
    %v3557 = vld [vmem:[#allocation35 + $0x288] sm:$0xff]
    %v3558 = vld [vmem:[#allocation35 + $0x290] sm:$0xff]
    %v3559 = vld [vmem:[#allocation35 + $0x298] sm:$0xff]
    %v3560 = vld [vmem:[#allocation35 + $0x2a0] sm:$0xff]
    %v3561 = vld [vmem:[#allocation35 + $0x2a8] sm:$0xff]
    %v3562 = vld [vmem:[#allocation35 + $0x2b0] sm:$0xff]
    %v3563 = vld [vmem:[#allocation35 + $0x2b8] sm:$0xff]
    %v3564 = vld [vmem:[#allocation35 + $0x2c0] sm:$0xff]
    %v3565 = vld [vmem:[#allocation35 + $0x2c8] sm:$0xff]
    %v3566 = vld [vmem:[#allocation35 + $0x2d0] sm:$0xff]
    %v3567 = vld [vmem:[#allocation35 + $0x2d8] sm:$0xff]
    %v3568 = vld [vmem:[#allocation35 + $0x2e0] sm:$0xff]
    %v3569 = vld [vmem:[#allocation35 + $0x2e8] sm:$0xff]
    %v3570 = vld [vmem:[#allocation35 + $0x2f0] sm:$0xff]
    %v3571 = vld [vmem:[#allocation35 + $0x2f8] sm:$0xff]
    %v3572 = vld [vmem:[#allocation35 + $0x300] sm:$0xff]
    %v3573 = vld [vmem:[#allocation35 + $0x308] sm:$0xff]
    %v3574 = vld [vmem:[#allocation35 + $0x310] sm:$0xff]
    %v3575 = vld [vmem:[#allocation35 + $0x318] sm:$0xff]
    %v3576 = vld [vmem:[#allocation35 + $0x320] sm:$0xff]
    %v3577 = vld [vmem:[#allocation35 + $0x328] sm:$0xff]
    %v3578 = vld [vmem:[#allocation35 + $0x330] sm:$0xff]
    %v3579 = vld [vmem:[#allocation35 + $0x338] sm:$0xff]
    %v3580 = vld [vmem:[#allocation35 + $0x340] sm:$0xff]
    %v3581 = vld [vmem:[#allocation35 + $0x348] sm:$0xff]
    %v3582 = vld [vmem:[#allocation35 + $0x350] sm:$0xff]
    %v3583 = vld [vmem:[#allocation35 + $0x358] sm:$0xff]
    %v3584 = vld [vmem:[#allocation35 + $0x360] sm:$0xff]
    %v3585 = vld [vmem:[#allocation35 + $0x368] sm:$0xff]
    %v3586 = vld [vmem:[#allocation35 + $0x370] sm:$0xff]
    %v3587 = vld [vmem:[#allocation35 + $0x378] sm:$0xff]
    %v3588 = vld [vmem:[#allocation35 + $0x380] sm:$0xff]
    %v3589 = vld [vmem:[#allocation35 + $0x388] sm:$0xff]
    %v3590 = vld [vmem:[#allocation35 + $0x390] sm:$0xff]
    %v3591 = vld [vmem:[#allocation35 + $0x398] sm:$0xff]
    %v3592 = vld [vmem:[#allocation35 + $0x3a0] sm:$0xff]
    %v3593 = vld [vmem:[#allocation35 + $0x3a8] sm:$0xff]
    %v3594 = vld [vmem:[#allocation35 + $0x3b0] sm:$0xff]
    %v3595 = vld [vmem:[#allocation35 + $0x3b8] sm:$0xff]
    %v3596 = vld [vmem:[#allocation35 + $0x3c0] sm:$0xff]
    %v3597 = vld [vmem:[#allocation35 + $0x3c8] sm:$0xff]
    %v3598 = vld [vmem:[#allocation35 + $0x3d0] sm:$0xff]
    %v3599 = vld [vmem:[#allocation35 + $0x3d8] sm:$0xff]
    %v3600 = vld [vmem:[#allocation35 + $0x3e0] sm:$0xff]
    %v3601 = vld [vmem:[#allocation35 + $0x3e8] sm:$0xff]
    %v3602 = vld [vmem:[#allocation35 + $0x3f0] sm:$0xff]
    %v3603 = vld [vmem:[#allocation35 + $0x3f8] sm:$0xff]
    %v3604 = vld [vmem:[#allocation35 + $0x400] sm:$0xff]
    %v3605 = vld [vmem:[#allocation35 + $0x408] sm:$0xff]
    %v3606 = vld [vmem:[#allocation35 + $0x410] sm:$0xff]
    %v3607 = vld [vmem:[#allocation35 + $0x418] sm:$0xff]
    %v3608 = vld [vmem:[#allocation35 + $0x420] sm:$0xff]
    %v3609 = vld [vmem:[#allocation35 + $0x428] sm:$0xff]
    %v3610 = vld [vmem:[#allocation35 + $0x430] sm:$0xff]
    %v3611 = vld [vmem:[#allocation35 + $0x438] sm:$0xff]
    %v3612 = vld [vmem:[#allocation35 + $0x440] sm:$0xff]
    %v3613 = vld [vmem:[#allocation35 + $0x448] sm:$0xff]
    %v3614 = vld [vmem:[#allocation35 + $0x450] sm:$0xff]
    %v3615 = vld [vmem:[#allocation35 + $0x458] sm:$0xff]
    %v3616 = vld [vmem:[#allocation35 + $0x460] sm:$0xff]
    %v3617 = vld [vmem:[#allocation35 + $0x468] sm:$0xff]
    %v3618 = vld [vmem:[#allocation35 + $0x470] sm:$0xff]
    %v3619 = vld [vmem:[#allocation35 + $0x478] sm:$0xff]
    %v3620 = vld [vmem:[#allocation35 + $0x480] sm:$0xff]
    %v3621 = vld [vmem:[#allocation35 + $0x488] sm:$0xff]
    %v3622 = vld [vmem:[#allocation35 + $0x490] sm:$0xff]
    %v3623 = vld [vmem:[#allocation35 + $0x498] sm:$0xff]
    %v3624 = vld [vmem:[#allocation35 + $0x4a0] sm:$0xff]
    %v3625 = vld [vmem:[#allocation35 + $0x4a8] sm:$0xff]
    %v3626 = vld [vmem:[#allocation35 + $0x4b0] sm:$0xff]
    %v3627 = vld [vmem:[#allocation35 + $0x4b8] sm:$0xff]
    %v3628 = vld [vmem:[#allocation35 + $0x4c0] sm:$0xff]
    %v3629 = vld [vmem:[#allocation35 + $0x4c8] sm:$0xff]
    %v3630 = vld [vmem:[#allocation35 + $0x4d0] sm:$0xff]
    %v3631 = vld [vmem:[#allocation35 + $0x4d8] sm:$0xff]
    %v3632 = vld [vmem:[#allocation35 + $0x4e0] sm:$0xff]
    %v3633 = vld [vmem:[#allocation35 + $0x4e8] sm:$0xff]
    %v3634 = vld [vmem:[#allocation35 + $0x4f0] sm:$0xff]
    %v3635 = vld [vmem:[#allocation35 + $0x4f8] sm:$0xff]
    %v3636 = vld [vmem:[#allocation35 + $0x500] sm:$0xff]
    %v3637 = vld [vmem:[#allocation35 + $0x508] sm:$0xff]
    %v3638 = vld [vmem:[#allocation35 + $0x510] sm:$0xff]
    %v3639 = vld [vmem:[#allocation35 + $0x518] sm:$0xff]
    %v3640 = vld [vmem:[#allocation35 + $0x520] sm:$0xff]
    %v3641 = vld [vmem:[#allocation35 + $0x528] sm:$0xff]
    %v3642 = vld [vmem:[#allocation35 + $0x530] sm:$0xff]
    %v3643 = vld [vmem:[#allocation35 + $0x538] sm:$0xff]
    %v3644 = vld [vmem:[#allocation35 + $0x540] sm:$0xff]
    %v3645 = vld [vmem:[#allocation35 + $0x548] sm:$0xff]
    %v3646 = vld [vmem:[#allocation35 + $0x550] sm:$0xff]
    %v3647 = vld [vmem:[#allocation35 + $0x558] sm:$0xff]
    %v3648 = vld [vmem:[#allocation35 + $0x560] sm:$0xff]
    %v3649 = vld [vmem:[#allocation35 + $0x568] sm:$0xff]
    %v3650 = vld [vmem:[#allocation35 + $0x570] sm:$0xff]
    %v3651 = vld [vmem:[#allocation35 + $0x578] sm:$0xff]
    %v3652 = vld [vmem:[#allocation35 + $0x580] sm:$0xff]
    %v3653 = vld [vmem:[#allocation35 + $0x588] sm:$0xff]
    %v3654 = vld [vmem:[#allocation35 + $0x590] sm:$0xff]
    %v3655 = vld [vmem:[#allocation35 + $0x598] sm:$0xff]
    %v3656 = vld [vmem:[#allocation36] sm:$0x1f]
    %v3658 = vlaneseq
    %v3659 = vshrl.u32 %v3658, 7
    %v3660 = vsub.s32 0, %v3659
    %v3661 = vrot.slane %v3656, %v3660
    %v3662 = vlaneseq
    %v3663 = vshrl.u32 %v3662, 7
    %v3664 = vsub.s32 1, %v3663
    %v3665 = vrot.slane %v3656, %v3664
    %v3666 = vlaneseq
    %v3667 = vshrl.u32 %v3666, 7
    %v3668 = vsub.s32 2, %v3667
    %v3669 = vrot.slane %v3656, %v3668
    %v3670 = vlaneseq
    %v3671 = vshrl.u32 %v3670, 7
    %v3672 = vsub.s32 3, %v3671
    %v3673 = vrot.slane %v3656, %v3672
    %v3674 = vlaneseq
    %v3675 = vshrl.u32 %v3674, 7
    %v3676 = vsub.s32 4, %v3675
    %v3677 = vrot.slane %v3656, %v3676
    %3683 = vmatprep.subr.mxu0 %v3477
    %3684 = vmatpush1.msra.mxu0 %v3476
    %3685 = vmatprep.subr.mxu0 %v3482
    %3686 = vmatpush1.msra.mxu0 %v3481
    %3687 = vmatprep.subr.mxu0 %v3487
    %3688 = vmatpush1.msra.mxu0 %v3486
    %3689 = vmatprep.subr.mxu0 %v3492
    %3690 = vmatpush1.msra.mxu0 %v3491
    %3691 = vmatprep.subr.mxu0 %v3497
    %3692 = vmatpush1.msra.mxu0 %v3496
    %3693 = vmatprep.subr.mxu0 %v3502
    %3694 = vmatpush1.msra.mxu0 %v3501
    %3695 = vmatprep.subr.mxu0 %v3507
    %3696 = vmatpush1.msra.mxu0 %v3506
    %3697 = vmatprep.subr.mxu0 %v3512
    %3698 = vmatpush1.msra.mxu0 %v3511
    %3699 = vmatprep.subr.mxu0 %v3517
    %3700 = vmatpush1.msra.mxu0 %v3516
    %3701 = vmatprep.subr.mxu0 %v3522
    %3702 = vmatpush1.msra.mxu0 %v3521
    %3703 = vmatprep.subr.mxu0 %v3527
    %3704 = vmatpush1.msra.mxu0 %v3526
    %3705 = vmatprep.subr.mxu0 %v3532
    %3706 = vmatpush1.msra.mxu0 %v3531
    %3707 = vmatprep.subr.mxu0 %v3537
    %3708 = vmatpush1.msra.mxu0 %v3536
    %3709 = vmatprep.subr.mxu0 %v3542
    %3710 = vmatpush1.msra.mxu0 %v3541
    %3711 = vmatprep.subr.mxu0 %v3547
    %3712 = vmatpush1.msra.mxu0 %v3546
    %3713 = vmatprep.subr.mxu0 %v3552
    %3714 = vmatpush1.msra.mxu0 %v3551
    %3715 = vmatprep.subr.mxu0 %v3557
    %3716 = vmatpush1.msra.mxu0 %v3556
    %3717 = vmatprep.subr.mxu0 %v3562
    %3718 = vmatpush1.msra.mxu0 %v3561
    %3719 = vmatprep.subr.mxu0 %v3567
    %3720 = vmatpush1.msra.mxu0 %v3566
    %3721 = vmatprep.subr.mxu0 %v3572
    %3722 = vmatpush1.msra.mxu0 %v3571
    %3723 = vmatprep.subr.mxu0 %v3577
    %3724 = vmatpush1.msra.mxu0 %v3576
    %3725 = vmatprep.subr.mxu0 %v3582
    %3726 = vmatpush1.msra.mxu0 %v3581
    %3727 = vmatprep.subr.mxu0 %v3587
    %3728 = vmatpush1.msra.mxu0 %v3586
    %3729 = vmatprep.subr.mxu0 %v3592
    %3730 = vmatpush1.msra.mxu0 %v3591
    %3731 = vmatprep.subr.mxu0 %v3597
    %3732 = vmatpush1.msra.mxu0 %v3596
    %3733 = vmatprep.subr.mxu0 %v3602
    %3734 = vmatpush1.msra.mxu0 %v3601
    %3735 = vmatprep.subr.mxu0 %v3607
    %3736 = vmatpush1.msra.mxu0 %v3606
    %3737 = vmatprep.subr.mxu0 %v3612
    %3738 = vmatpush1.msra.mxu0 %v3611
    %3739 = vmatprep.subr.mxu0 %v3617
    %3740 = vmatpush1.msra.mxu0 %v3616
    %3741 = vmatprep.subr.mxu0 %v3622
    %3742 = vmatpush1.msra.mxu0 %v3621
    %3743 = vmatprep.subr.mxu0 %v3627
    %3744 = vmatpush1.msra.mxu0 %v3626
    %3745 = vmatprep.subr.mxu0 %v3632
    %3746 = vmatpush1.msra.mxu0 %v3631
    %3747 = vmatprep.mubr.f32.mxu0 %v2298
    %3748 = vmatmul.mubr.f32.gmra.mrb[0].mxu0 %v2297
    %v3749 = vpop.f32.mrb[0].mxu0
    %v3750 = vadd.f32 %v3661, %v3749
    %v3751 = vpop.f32.mrb[0].mxu0
    %v3752 = vadd.f32 %v3665, %v3751
    %3753 = vdwg.mxu0
    %3754 = vmatprep.subr.mxu0 %v3637
    %3755 = vmatpush1.msra.mxu0 %v3636
    %3756 = vmatprep.subr.mxu0 %v3642
    %3757 = vmatpush1.msra.mxu0 %v3641
    %3758 = vmatprep.subr.mxu0 %v3647
    %3759 = vmatpush1.msra.mxu0 %v3646
    %3760 = vmatprep.subr.mxu0 %v3652
    %3761 = vmatpush1.msra.mxu0 %v3651
    %3762 = vmatprep.subr.mxu0 0.0
    %3763 = vmatpush1.msra.mxu0 0.0
    %3764 = vmatprep.subr.mxu0 0.0
    %3765 = vmatpush1.msra.mxu0 0.0
    %3766 = vmatprep.subr.mxu0 0.0
    %3767 = vmatpush1.msra.mxu0 0.0
    %3768 = vmatprep.subr.mxu0 0.0
    %3769 = vmatpush1.msra.mxu0 0.0
    %3770 = vmatprep.subr.mxu0 0.0
    %3771 = vmatpush1.msra.mxu0 0.0
    %3772 = vmatprep.subr.mxu0 0.0
    %3773 = vmatpush1.msra.mxu0 0.0
    %3774 = vmatprep.subr.mxu0 0.0
    %3775 = vmatpush1.msra.mxu0 0.0
    %3776 = vmatprep.subr.mxu0 0.0
    %3777 = vmatpush1.msra.mxu0 0.0
    %3778 = vmatprep.subr.mxu0 0.0
    %3779 = vmatpush1.msra.mxu0 0.0
    %3780 = vmatprep.subr.mxu0 0.0
    %3781 = vmatpush1.msra.mxu0 0.0
    %3782 = vmatprep.subr.mxu0 0.0
    %3783 = vmatpush1.msra.mxu0 0.0
    %3784 = vmatprep.subr.mxu0 0.0
    %3785 = vmatpush1.msra.mxu0 0.0
    %3786 = vmatprep.subr.mxu0 0.0
    %3787 = vmatpush1.msra.mxu0 0.0
    %3788 = vmatprep.subr.mxu0 0.0
    %3789 = vmatpush1.msra.mxu0 0.0
    %3790 = vmatprep.subr.mxu0 0.0
    %3791 = vmatpush1.msra.mxu0 0.0
    %3792 = vmatprep.subr.mxu0 0.0
    %3793 = vmatpush1.msra.mxu0 0.0
    %3794 = vmatprep.subr.mxu0 0.0
    %3795 = vmatpush1.msra.mxu0 0.0
    %3796 = vmatprep.subr.mxu0 0.0
    %3797 = vmatpush1.msra.mxu0 0.0
    %3798 = vmatprep.subr.mxu0 0.0
    %3799 = vmatpush1.msra.mxu0 0.0
    %3800 = vmatprep.subr.mxu0 0.0
    %3801 = vmatpush1.msra.mxu0 0.0
    %3802 = vmatprep.subr.mxu0 0.0
    %3803 = vmatpush1.msra.mxu0 0.0
    %3804 = vmatprep.subr.mxu0 0.0
    %3805 = vmatpush1.msra.mxu0 0.0
    %3806 = vmatprep.subr.mxu0 0.0
    %3807 = vmatpush1.msra.mxu0 0.0
    %3808 = vmatprep.subr.mxu0 0.0
    %3809 = vmatpush1.msra.mxu0 0.0
    %3810 = vmatprep.subr.mxu0 0.0
    %3811 = vmatpush1.msra.mxu0 0.0
    %3812 = vmatprep.subr.mxu0 0.0
    %3813 = vmatpush1.msra.mxu0 0.0
    %3814 = vmatprep.subr.mxu0 0.0
    %3815 = vmatpush1.msra.mxu0 0.0
    %3816 = vmatprep.subr.mxu0 0.0
    %3817 = vmatpush1.msra.mxu0 0.0
    %3818 = vmatprep.mubr.f32.mxu0 0.0
    %3819 = vmatmul.mubr.f32.gmra.mrb[0].mxu0 %v2674
    %v3820 = vpop.f32.mrb[0].mxu0
    %v3821 = vadd.f32 %v3750, %v3820
    %v3822 = vpop.f32.mrb[0].mxu0
    %v3823 = vadd.f32 %v3752, %v3822
    %3824 = vdwg.mxu0
    %3825 = vmatprep.subr.mxu0 %v3479
    %3826 = vmatpush1.msra.mxu0 %v3478
    %3827 = vmatprep.subr.mxu0 %v3484
    %3828 = vmatpush1.msra.mxu0 %v3483
    %3829 = vmatprep.subr.mxu0 %v3489
    %3830 = vmatpush1.msra.mxu0 %v3488
    %3831 = vmatprep.subr.mxu0 %v3494
    %3832 = vmatpush1.msra.mxu0 %v3493
    %3833 = vmatprep.subr.mxu0 %v3499
    %3834 = vmatpush1.msra.mxu0 %v3498
    %3835 = vmatprep.subr.mxu0 %v3504
    %3836 = vmatpush1.msra.mxu0 %v3503
    %3837 = vmatprep.subr.mxu0 %v3509
    %3838 = vmatpush1.msra.mxu0 %v3508
    %3839 = vmatprep.subr.mxu0 %v3514
    %3840 = vmatpush1.msra.mxu0 %v3513
    %3841 = vmatprep.subr.mxu0 %v3519
    %3842 = vmatpush1.msra.mxu0 %v3518
    %3843 = vmatprep.subr.mxu0 %v3524
    %3844 = vmatpush1.msra.mxu0 %v3523
    %3845 = vmatprep.subr.mxu0 %v3529
    %3846 = vmatpush1.msra.mxu0 %v3528
    %3847 = vmatprep.subr.mxu0 %v3534
    %3848 = vmatpush1.msra.mxu0 %v3533
    %3849 = vmatprep.subr.mxu0 %v3539
    %3850 = vmatpush1.msra.mxu0 %v3538
    %3851 = vmatprep.subr.mxu0 %v3544
    %3852 = vmatpush1.msra.mxu0 %v3543
    %3853 = vmatprep.subr.mxu0 %v3549
    %3854 = vmatpush1.msra.mxu0 %v3548
    %3855 = vmatprep.subr.mxu0 %v3554
    %3856 = vmatpush1.msra.mxu0 %v3553
    %3857 = vmatprep.subr.mxu0 %v3559
    %3858 = vmatpush1.msra.mxu0 %v3558
    %3859 = vmatprep.subr.mxu0 %v3564
    %3860 = vmatpush1.msra.mxu0 %v3563
    %3861 = vmatprep.subr.mxu0 %v3569
    %3862 = vmatpush1.msra.mxu0 %v3568
    %3863 = vmatprep.subr.mxu0 %v3574
    %3864 = vmatpush1.msra.mxu0 %v3573
    %3865 = vmatprep.subr.mxu0 %v3579
    %3866 = vmatpush1.msra.mxu0 %v3578
    %3867 = vmatprep.subr.mxu0 %v3584
    %3868 = vmatpush1.msra.mxu0 %v3583
    %3869 = vmatprep.subr.mxu0 %v3589
    %3870 = vmatpush1.msra.mxu0 %v3588
    %3871 = vmatprep.subr.mxu0 %v3594
    %3872 = vmatpush1.msra.mxu0 %v3593
    %3873 = vmatprep.subr.mxu0 %v3599
    %3874 = vmatpush1.msra.mxu0 %v3598
    %3875 = vmatprep.subr.mxu0 %v3604
    %3876 = vmatpush1.msra.mxu0 %v3603
    %3877 = vmatprep.subr.mxu0 %v3609
    %3878 = vmatpush1.msra.mxu0 %v3608
    %3879 = vmatprep.subr.mxu0 %v3614
    %3880 = vmatpush1.msra.mxu0 %v3613
    %3881 = vmatprep.subr.mxu0 %v3619
    %3882 = vmatpush1.msra.mxu0 %v3618
    %3883 = vmatprep.subr.mxu0 %v3624
    %3884 = vmatpush1.msra.mxu0 %v3623
    %3885 = vmatprep.subr.mxu0 %v3629
    %3886 = vmatpush1.msra.mxu0 %v3628
    %3887 = vmatprep.subr.mxu0 %v3634
    %3888 = vmatpush1.msra.mxu0 %v3633
    %3889 = vmatprep.mubr.f32.mxu0 %v2298
    %3890 = vmatmul.mubr.f32.gmra.mrb[0].mxu0 %v2297
    %v3891 = vpop.f32.mrb[0].mxu0
    %v3892 = vadd.f32 %v3669, %v3891
    %v3893 = vpop.f32.mrb[0].mxu0
    %v3894 = vadd.f32 %v3673, %v3893
    %3895 = vdwg.mxu0
    %3896 = vmatprep.subr.mxu0 %v3639
    %3897 = vmatpush1.msra.mxu0 %v3638
    %3898 = vmatprep.subr.mxu0 %v3644
    %3899 = vmatpush1.msra.mxu0 %v3643
    %3900 = vmatprep.subr.mxu0 %v3649
    %3901 = vmatpush1.msra.mxu0 %v3648
    %3902 = vmatprep.subr.mxu0 %v3654
    %3903 = vmatpush1.msra.mxu0 %v3653
    %3904 = vmatprep.subr.mxu0 0.0
    %3905 = vmatpush1.msra.mxu0 0.0
    %3906 = vmatprep.subr.mxu0 0.0
    %3907 = vmatpush1.msra.mxu0 0.0
    %3908 = vmatprep.subr.mxu0 0.0
    %3909 = vmatpush1.msra.mxu0 0.0
    %3910 = vmatprep.subr.mxu0 0.0
    %3911 = vmatpush1.msra.mxu0 0.0
    %3912 = vmatprep.subr.mxu0 0.0
    %3913 = vmatpush1.msra.mxu0 0.0
    %3914 = vmatprep.subr.mxu0 0.0
    %3915 = vmatpush1.msra.mxu0 0.0
    %3916 = vmatprep.subr.mxu0 0.0
    %3917 = vmatpush1.msra.mxu0 0.0
    %3918 = vmatprep.subr.mxu0 0.0
    %3919 = vmatpush1.msra.mxu0 0.0
    %3920 = vmatprep.subr.mxu0 0.0
    %3921 = vmatpush1.msra.mxu0 0.0
    %3922 = vmatprep.subr.mxu0 0.0
    %3923 = vmatpush1.msra.mxu0 0.0
    %3924 = vmatprep.subr.mxu0 0.0
    %3925 = vmatpush1.msra.mxu0 0.0
    %3926 = vmatprep.subr.mxu0 0.0
    %3927 = vmatpush1.msra.mxu0 0.0
    %3928 = vmatprep.subr.mxu0 0.0
    %3929 = vmatpush1.msra.mxu0 0.0
    %3930 = vmatprep.subr.mxu0 0.0
    %3931 = vmatpush1.msra.mxu0 0.0
    %3932 = vmatprep.subr.mxu0 0.0
    %3933 = vmatpush1.msra.mxu0 0.0
    %3934 = vmatprep.subr.mxu0 0.0
    %3935 = vmatpush1.msra.mxu0 0.0
    %3936 = vmatprep.subr.mxu0 0.0
    %3937 = vmatpush1.msra.mxu0 0.0
    %3938 = vmatprep.subr.mxu0 0.0
    %3939 = vmatpush1.msra.mxu0 0.0
    %3940 = vmatprep.subr.mxu0 0.0
    %3941 = vmatpush1.msra.mxu0 0.0
    %3942 = vmatprep.subr.mxu0 0.0
    %3943 = vmatpush1.msra.mxu0 0.0
    %3944 = vmatprep.subr.mxu0 0.0
    %3945 = vmatpush1.msra.mxu0 0.0
    %3946 = vmatprep.subr.mxu0 0.0
    %3947 = vmatpush1.msra.mxu0 0.0
    %3948 = vmatprep.subr.mxu0 0.0
    %3949 = vmatpush1.msra.mxu0 0.0
    %3950 = vmatprep.subr.mxu0 0.0
    %3951 = vmatpush1.msra.mxu0 0.0
    %3952 = vmatprep.subr.mxu0 0.0
    %3953 = vmatpush1.msra.mxu0 0.0
    %3954 = vmatprep.subr.mxu0 0.0
    %3955 = vmatpush1.msra.mxu0 0.0
    %3956 = vmatprep.subr.mxu0 0.0
    %3957 = vmatpush1.msra.mxu0 0.0
    %3958 = vmatprep.subr.mxu0 0.0
    %3959 = vmatpush1.msra.mxu0 0.0
    %3960 = vmatprep.mubr.f32.mxu0 0.0
    %3961 = vmatmul.mubr.f32.gmra.mrb[0].mxu0 %v2674
    %v3962 = vpop.f32.mrb[0].mxu0
    %v3963 = vadd.f32 %v3892, %v3962
    %v3964 = vpop.f32.mrb[0].mxu0
    %v3965 = vadd.f32 %v3894, %v3964
    %3966 = vdwg.mxu0
    %3967 = vmatprep.subr.mxu0 0.0
    %3968 = vmatpush1.msra.mxu0 %v3480
    %3969 = vmatprep.subr.mxu0 0.0
    %3970 = vmatpush1.msra.mxu0 %v3485
    %3971 = vmatprep.subr.mxu0 0.0
    %3972 = vmatpush1.msra.mxu0 %v3490
    %3973 = vmatprep.subr.mxu0 0.0
    %3974 = vmatpush1.msra.mxu0 %v3495
    %3975 = vmatprep.subr.mxu0 0.0
    %3976 = vmatpush1.msra.mxu0 %v3500
    %3977 = vmatprep.subr.mxu0 0.0
    %3978 = vmatpush1.msra.mxu0 %v3505
    %3979 = vmatprep.subr.mxu0 0.0
    %3980 = vmatpush1.msra.mxu0 %v3510
    %3981 = vmatprep.subr.mxu0 0.0
    %3982 = vmatpush1.msra.mxu0 %v3515
    %3983 = vmatprep.subr.mxu0 0.0
    %3984 = vmatpush1.msra.mxu0 %v3520
    %3985 = vmatprep.subr.mxu0 0.0
    %3986 = vmatpush1.msra.mxu0 %v3525
    %3987 = vmatprep.subr.mxu0 0.0
    %3988 = vmatpush1.msra.mxu0 %v3530
    %3989 = vmatprep.subr.mxu0 0.0
    %3990 = vmatpush1.msra.mxu0 %v3535
    %3991 = vmatprep.subr.mxu0 0.0
    %3992 = vmatpush1.msra.mxu0 %v3540
    %3993 = vmatprep.subr.mxu0 0.0
    %3994 = vmatpush1.msra.mxu0 %v3545
    %3995 = vmatprep.subr.mxu0 0.0
    %3996 = vmatpush1.msra.mxu0 %v3550
    %3997 = vmatprep.subr.mxu0 0.0
    %3998 = vmatpush1.msra.mxu0 %v3555
    %3999 = vmatprep.subr.mxu0 0.0
    %4000 = vmatpush1.msra.mxu0 %v3560
    %4001 = vmatprep.subr.mxu0 0.0
    %4002 = vmatpush1.msra.mxu0 %v3565
    %4003 = vmatprep.subr.mxu0 0.0
    %4004 = vmatpush1.msra.mxu0 %v3570
    %4005 = vmatprep.subr.mxu0 0.0
    %4006 = vmatpush1.msra.mxu0 %v3575
    %4007 = vmatprep.subr.mxu0 0.0
    %4008 = vmatpush1.msra.mxu0 %v3580
    %4009 = vmatprep.subr.mxu0 0.0
    %4010 = vmatpush1.msra.mxu0 %v3585
    %4011 = vmatprep.subr.mxu0 0.0
    %4012 = vmatpush1.msra.mxu0 %v3590
    %4013 = vmatprep.subr.mxu0 0.0
    %4014 = vmatpush1.msra.mxu0 %v3595
    %4015 = vmatprep.subr.mxu0 0.0
    %4016 = vmatpush1.msra.mxu0 %v3600
    %4017 = vmatprep.subr.mxu0 0.0
    %4018 = vmatpush1.msra.mxu0 %v3605
    %4019 = vmatprep.subr.mxu0 0.0
    %4020 = vmatpush1.msra.mxu0 %v3610
    %4021 = vmatprep.subr.mxu0 0.0
    %4022 = vmatpush1.msra.mxu0 %v3615
    %4023 = vmatprep.subr.mxu0 0.0
    %4024 = vmatpush1.msra.mxu0 %v3620
    %4025 = vmatprep.subr.mxu0 0.0
    %4026 = vmatpush1.msra.mxu0 %v3625
    %4027 = vmatprep.subr.mxu0 0.0
    %4028 = vmatpush1.msra.mxu0 %v3630
    %4029 = vmatprep.subr.mxu0 0.0
    %4030 = vmatpush1.msra.mxu0 %v3635
    %4031 = vmatprep.mubr.f32.mxu0 %v2298
    %4032 = vmatmul.mubr.f32.gmra.mrb[0].mxu0 %v2297
    %v4033 = vpop.f32.mrb[0].mxu0
    %v4034 = vadd.f32 %v3677, %v4033
    %v4035 = vpop.f32.mrb[0].mxu0
    %4036 = vdwg.mxu0
    %4037 = vmatprep.subr.mxu0 0.0
    %4038 = vmatpush1.msra.mxu0 %v3640
    %4039 = vmatprep.subr.mxu0 0.0
    %4040 = vmatpush1.msra.mxu0 %v3645
    %4041 = vmatprep.subr.mxu0 0.0
    %4042 = vmatpush1.msra.mxu0 %v3650
    %4043 = vmatprep.subr.mxu0 0.0
    %4044 = vmatpush1.msra.mxu0 %v3655
    %4045 = vmatprep.subr.mxu0 0.0
    %4046 = vmatpush1.msra.mxu0 0.0
    %4047 = vmatprep.subr.mxu0 0.0
    %4048 = vmatpush1.msra.mxu0 0.0
    %4049 = vmatprep.subr.mxu0 0.0
    %4050 = vmatpush1.msra.mxu0 0.0
    %4051 = vmatprep.subr.mxu0 0.0
    %4052 = vmatpush1.msra.mxu0 0.0
    %4053 = vmatprep.subr.mxu0 0.0
    %4054 = vmatpush1.msra.mxu0 0.0
    %4055 = vmatprep.subr.mxu0 0.0
    %4056 = vmatpush1.msra.mxu0 0.0
    %4057 = vmatprep.subr.mxu0 0.0
    %4058 = vmatpush1.msra.mxu0 0.0
    %4059 = vmatprep.subr.mxu0 0.0
    %4060 = vmatpush1.msra.mxu0 0.0
    %4061 = vmatprep.subr.mxu0 0.0
    %4062 = vmatpush1.msra.mxu0 0.0
    %4063 = vmatprep.subr.mxu0 0.0
    %4064 = vmatpush1.msra.mxu0 0.0
    %4065 = vmatprep.subr.mxu0 0.0
    %4066 = vmatpush1.msra.mxu0 0.0
    %4067 = vmatprep.subr.mxu0 0.0
    %4068 = vmatpush1.msra.mxu0 0.0
    %4069 = vmatprep.subr.mxu0 0.0
    %4070 = vmatpush1.msra.mxu0 0.0
    %4071 = vmatprep.subr.mxu0 0.0
    %4072 = vmatpush1.msra.mxu0 0.0
    %4073 = vmatprep.subr.mxu0 0.0
    %4074 = vmatpush1.msra.mxu0 0.0
    %4075 = vmatprep.subr.mxu0 0.0
    %4076 = vmatpush1.msra.mxu0 0.0
    %4077 = vmatprep.subr.mxu0 0.0
    %4078 = vmatpush1.msra.mxu0 0.0
    %4079 = vmatprep.subr.mxu0 0.0
    %4080 = vmatpush1.msra.mxu0 0.0
    %4081 = vmatprep.subr.mxu0 0.0
    %4082 = vmatpush1.msra.mxu0 0.0
    %4083 = vmatprep.subr.mxu0 0.0
    %4084 = vmatpush1.msra.mxu0 0.0
    %4085 = vmatprep.subr.mxu0 0.0
    %4086 = vmatpush1.msra.mxu0 0.0
    %4087 = vmatprep.subr.mxu0 0.0
    %4088 = vmatpush1.msra.mxu0 0.0
    %4089 = vmatprep.subr.mxu0 0.0
    %4090 = vmatpush1.msra.mxu0 0.0
    %4091 = vmatprep.subr.mxu0 0.0
    %4092 = vmatpush1.msra.mxu0 0.0
    %4093 = vmatprep.subr.mxu0 0.0
    %4094 = vmatpush1.msra.mxu0 0.0
    %4095 = vmatprep.subr.mxu0 0.0
    %4096 = vmatpush1.msra.mxu0 0.0
    %4097 = vmatprep.subr.mxu0 0.0
    %4098 = vmatpush1.msra.mxu0 0.0
    %4099 = vmatprep.subr.mxu0 0.0
    %4100 = vmatpush1.msra.mxu0 0.0
    %4101 = vmatprep.mubr.f32.mxu0 0.0
    %4102 = vmatmul.mubr.f32.gmra.mrb[0].mxu0 %v2674
    %v4103 = vpop.f32.mrb[0].mxu0
    %v4104 = vadd.f32 %v4034, %v4103
    %v4105 = vpop.f32.mrb[0].mxu0
    %4106 = vdwg.mxu0
    %4107 = vst.msk [vmem:[#allocation2] sm:$0xff] %vm3429, %v3471
    %4109 = vrot.lane.b32.xlu0 %v3471, 64
    %v4110 = vpop.permute.xlu0 %4109
    %4112 = vst.msk [vmem:[#allocation2 + $0x8] sm:$0xff] %vm3429, %v4110
    %4113 = vst.msk [vmem:[#allocation2 + $0x10] sm:$0xff] %vm3429, %v3472
    %4115 = vrot.lane.b32.xlu0 %v3472, 64
    %v4116 = vpop.permute.xlu0 %4115
    %4118 = vst.msk [vmem:[#allocation2 + $0x18] sm:$0xff] %vm3429, %v4116
    %4119 = vst.msk [vmem:[#allocation2 + $0x20] sm:$0xff] %vm3429, %v3473
    %4121 = vrot.lane.b32.xlu0 %v3473, 64
    %v4122 = vpop.permute.xlu0 %4121
    %4124 = vst.msk [vmem:[#allocation2 + $0x28] sm:$0xff] %vm3429, %v4122
    %4125 = vst.msk [vmem:[#allocation2 + $0x30] sm:$0xff] %vm3429, %v3474
    %4127 = vrot.lane.b32.xlu0 %v3474, 64
    %v4128 = vpop.permute.xlu0 %4127
    %4130 = vst.msk [vmem:[#allocation2 + $0x38] sm:$0xff] %vm3429, %v4128
    %4131 = vst.msk [vmem:[#allocation2 + $0x40] sm:$0xff] %vm3429, %v3475
    %v4132 = vld [vmem:[#allocation2] sm:$0xff]
    %v4133 = vld [vmem:[#allocation2 + $0x8] sm:$0xff]
    %v4134 = vld [vmem:[#allocation2 + $0x10] sm:$0xff]
    %v4135 = vld [vmem:[#allocation2 + $0x18] sm:$0xff]
    %v4136 = vld [vmem:[#allocation2 + $0x20] sm:$0xff]
    %v4137 = vld [vmem:[#allocation2 + $0x28] sm:$0xff]
    %v4138 = vld [vmem:[#allocation2 + $0x30] sm:$0xff]
    %v4139 = vld [vmem:[#allocation2 + $0x38] sm:$0xff]
    %v4140 = vld [vmem:[#allocation2 + $0x40] sm:$0xff]
    %v4141 = vld [vmem:[#allocation38] sm:$0xff]
    %v4142 = vld [vmem:[#allocation38 + $0x8] sm:$0xff]
    %v4143 = vld [vmem:[#allocation38 + $0x10] sm:$0xff]
    %v4144 = vld [vmem:[#allocation38 + $0x18] sm:$0xff]
    %v4145 = vld [vmem:[#allocation38 + $0x20] sm:$0xff]
    %v4146 = vld [vmem:[#allocation38 + $0x28] sm:$0xff]
    %v4147 = vld [vmem:[#allocation38 + $0x30] sm:$0xff]
    %v4148 = vld [vmem:[#allocation38 + $0x38] sm:$0xff]
    %v4150 = vsel %vm3429, %v4132, 0
    %v4153 = vsel %vm3429, %v4133, 0
    %v4156 = vsel %vm3429, %v4134, 0
    %v4159 = vsel %vm3429, %v4135, 0
    %v4162 = vsel %vm3429, %v4136, 0
    %v4165 = vsel %vm3429, %v4137, 0
    %v4168 = vsel %vm3429, %v4138, 0
    %v4171 = vsel %vm3429, %v4139, 0
    %v4174 = vsel %vm3429, %v4140, 0
    %4176 = vmatprep.subr.mxu0 0.0
    %4177 = vmatpush1.msra.mxu0 %v4141
    %4178 = vmatprep.subr.mxu0 0.0
    %4179 = vmatpush1.msra.mxu0 %v4142
    %4180 = vmatprep.subr.mxu0 0.0
    %4181 = vmatpush1.msra.mxu0 %v4143
    %4182 = vmatprep.subr.mxu0 0.0
    %4183 = vmatpush1.msra.mxu0 %v4144
    %4184 = vmatprep.subr.mxu0 0.0
    %4185 = vmatpush1.msra.mxu0 %v4145
    %4186 = vmatprep.subr.mxu0 0.0
    %4187 = vmatpush1.msra.mxu0 %v4146
    %4188 = vmatprep.subr.mxu0 0.0
    %4189 = vmatpush1.msra.mxu0 %v4147
    %4190 = vmatprep.subr.mxu0 0.0
    %4191 = vmatpush1.msra.mxu0 %v4148
    %4192 = vmatprep.subr.mxu0 0.0
    %4193 = vmatpush1.msra.mxu0 0.0
    %4194 = vmatprep.subr.mxu0 0.0
    %4195 = vmatpush1.msra.mxu0 0.0
    %4196 = vmatprep.subr.mxu0 0.0
    %4197 = vmatpush1.msra.mxu0 0.0
    %4198 = vmatprep.subr.mxu0 0.0
    %4199 = vmatpush1.msra.mxu0 0.0
    %4200 = vmatprep.subr.mxu0 0.0
    %4201 = vmatpush1.msra.mxu0 0.0
    %4202 = vmatprep.subr.mxu0 0.0
    %4203 = vmatpush1.msra.mxu0 0.0
    %4204 = vmatprep.subr.mxu0 0.0
    %4205 = vmatpush1.msra.mxu0 0.0
    %4206 = vmatprep.subr.mxu0 0.0
    %4207 = vmatpush1.msra.mxu0 0.0
    %4208 = vmatprep.subr.mxu0 0.0
    %4209 = vmatpush1.msra.mxu0 0.0
    %4210 = vmatprep.subr.mxu0 0.0
    %4211 = vmatpush1.msra.mxu0 0.0
    %4212 = vmatprep.subr.mxu0 0.0
    %4213 = vmatpush1.msra.mxu0 0.0
    %4214 = vmatprep.subr.mxu0 0.0
    %4215 = vmatpush1.msra.mxu0 0.0
    %4216 = vmatprep.subr.mxu0 0.0
    %4217 = vmatpush1.msra.mxu0 0.0
    %4218 = vmatprep.subr.mxu0 0.0
    %4219 = vmatpush1.msra.mxu0 0.0
    %4220 = vmatprep.subr.mxu0 0.0
    %4221 = vmatpush1.msra.mxu0 0.0
    %4222 = vmatprep.subr.mxu0 0.0
    %4223 = vmatpush1.msra.mxu0 0.0
    %4224 = vmatprep.subr.mxu0 0.0
    %4225 = vmatpush1.msra.mxu0 0.0
    %4226 = vmatprep.subr.mxu0 0.0
    %4227 = vmatpush1.msra.mxu0 0.0
    %4228 = vmatprep.subr.mxu0 0.0
    %4229 = vmatpush1.msra.mxu0 0.0
    %4230 = vmatprep.subr.mxu0 0.0
    %4231 = vmatpush1.msra.mxu0 0.0
    %4232 = vmatprep.subr.mxu0 0.0
    %4233 = vmatpush1.msra.mxu0 0.0
    %4234 = vmatprep.subr.mxu0 0.0
    %4235 = vmatpush1.msra.mxu0 0.0
    %4236 = vmatprep.subr.mxu0 0.0
    %4237 = vmatpush1.msra.mxu0 0.0
    %4238 = vmatprep.subr.mxu0 0.0
    %4239 = vmatpush1.msra.mxu0 0.0
    %4240 = vmatprep.mubr.f32.mxu0 0.0
    %4241 = vmatmul.mubr.f32.gmra.mrb[0].mxu0 %v4150
    %v4242 = vpop.f32.mrb[0].mxu0
    %v4243 = vadd.f32 0.0, %v4242
    %v4244 = vpop.f32.mrb[0].mxu0
    %4245 = vmatprep.mubr.f32.mxu0 0.0
    %4246 = vmatmul.mubr.f32.gmra.mrb[0].mxu0 %v4153
    %v4247 = vpop.f32.mrb[0].mxu0
    %v4248 = vadd.f32 0.0, %v4247
    %v4249 = vpop.f32.mrb[0].mxu0
    %4250 = vmatprep.mubr.f32.mxu0 0.0
    %4251 = vmatmul.mubr.f32.gmra.mrb[0].mxu0 %v4156
    %v4252 = vpop.f32.mrb[0].mxu0
    %v4253 = vadd.f32 0.0, %v4252
    %v4254 = vpop.f32.mrb[0].mxu0
    %4255 = vmatprep.mubr.f32.mxu0 0.0
    %4256 = vmatmul.mubr.f32.gmra.mrb[0].mxu0 %v4159
    %v4257 = vpop.f32.mrb[0].mxu0
    %v4258 = vadd.f32 0.0, %v4257
    %v4259 = vpop.f32.mrb[0].mxu0
    %4260 = vmatprep.mubr.f32.mxu0 0.0
    %4261 = vmatmul.mubr.f32.gmra.mrb[0].mxu0 %v4162
    %v4262 = vpop.f32.mrb[0].mxu0
    %v4263 = vadd.f32 0.0, %v4262
    %v4264 = vpop.f32.mrb[0].mxu0
    %4265 = vmatprep.mubr.f32.mxu0 0.0
    %4266 = vmatmul.mubr.f32.gmra.mrb[0].mxu0 %v4165
    %v4267 = vpop.f32.mrb[0].mxu0
    %v4268 = vadd.f32 0.0, %v4267
    %v4269 = vpop.f32.mrb[0].mxu0
    %4270 = vmatprep.mubr.f32.mxu0 0.0
    %4271 = vmatmul.mubr.f32.gmra.mrb[0].mxu0 %v4168
    %v4272 = vpop.f32.mrb[0].mxu0
    %v4273 = vadd.f32 0.0, %v4272
    %v4274 = vpop.f32.mrb[0].mxu0
    %4275 = vmatprep.mubr.f32.mxu0 0.0
    %4276 = vmatmul.mubr.f32.gmra.mrb[0].mxu0 %v4171
    %v4277 = vpop.f32.mrb[0].mxu0
    %v4278 = vadd.f32 0.0, %v4277
    %v4279 = vpop.f32.mrb[0].mxu0
    %4280 = vmatprep.mubr.f32.mxu0 0.0
    %4281 = vmatmul.mubr.f32.gmra.mrb[0].mxu0 %v4174
    %v4282 = vpop.f32.mrb[0].mxu0
    %v4283 = vadd.f32 0.0, %v4282
    %v4284 = vpop.f32.mrb[0].mxu0
    %4285 = vdwg.mxu0
    %4295 = vrot.lane.b32.xlu0 %v4243, 64
    %v4296 = vpop.permute.xlu0 %4295
    %4297 = vrot.lane.b32.xlu0 %v4248, 64
    %v4298 = vpop.permute.xlu0 %4297
    %4299 = vrot.lane.b32.xlu0 %v4253, 64
    %v4300 = vpop.permute.xlu0 %4299
    %4301 = vrot.lane.b32.xlu0 %v4258, 64
    %v4302 = vpop.permute.xlu0 %4301
    %4303 = vrot.lane.b32.xlu0 %v4263, 64
    %v4304 = vpop.permute.xlu0 %4303
    %4305 = vrot.lane.b32.xlu0 %v4268, 64
    %v4306 = vpop.permute.xlu0 %4305
    %4307 = vrot.lane.b32.xlu0 %v4273, 64
    %v4308 = vpop.permute.xlu0 %4307
    %4309 = vrot.lane.b32.xlu0 %v4278, 64
    %v4310 = vpop.permute.xlu0 %4309
    %4311 = vrot.lane.b32.xlu0 %v4283, 64
    %v4312 = vpop.permute.xlu0 %4311
    %4322 = vmatprep.subr.mxu0 0.0
    %4323 = vmatpush1.msra.mxu0 %v4243
    %4324 = vmatprep.subr.mxu0 0.0
    %4325 = vmatpush1.msra.mxu0 %v4248
    %4326 = vmatprep.subr.mxu0 0.0
    %4327 = vmatpush1.msra.mxu0 %v4253
    %4328 = vmatprep.subr.mxu0 0.0
    %4329 = vmatpush1.msra.mxu0 %v4258
    %4330 = vmatprep.subr.mxu0 0.0
    %4331 = vmatpush1.msra.mxu0 %v4263
    %4332 = vmatprep.subr.mxu0 0.0
    %4333 = vmatpush1.msra.mxu0 %v4268
    %4334 = vmatprep.subr.mxu0 0.0
    %4335 = vmatpush1.msra.mxu0 %v4273
    %4336 = vmatprep.subr.mxu0 0.0
    %4337 = vmatpush1.msra.mxu0 %v4278
    %4338 = vmatprep.subr.mxu0 0.0
    %4339 = vmatpush1.msra.mxu0 %v4283
    %4340 = vmatprep.subr.mxu0 0.0
    %4341 = vmatpush1.msra.mxu0 0.0
    %4342 = vmatprep.subr.mxu0 0.0
    %4343 = vmatpush1.msra.mxu0 0.0
    %4344 = vmatprep.subr.mxu0 0.0
    %4345 = vmatpush1.msra.mxu0 0.0
    %4346 = vmatprep.subr.mxu0 0.0
    %4347 = vmatpush1.msra.mxu0 0.0
    %4348 = vmatprep.subr.mxu0 0.0
    %4349 = vmatpush1.msra.mxu0 0.0
    %4350 = vmatprep.subr.mxu0 0.0
    %4351 = vmatpush1.msra.mxu0 0.0
    %4352 = vmatprep.subr.mxu0 0.0
    %4353 = vmatpush1.msra.mxu0 0.0
    %4354 = vmatprep.subr.mxu0 0.0
    %4355 = vmatpush1.msra.mxu0 0.0
    %4356 = vmatprep.subr.mxu0 0.0
    %4357 = vmatpush1.msra.mxu0 0.0
    %4358 = vmatprep.subr.mxu0 0.0
    %4359 = vmatpush1.msra.mxu0 0.0
    %4360 = vmatprep.subr.mxu0 0.0
    %4361 = vmatpush1.msra.mxu0 0.0
    %4362 = vmatprep.subr.mxu0 0.0
    %4363 = vmatpush1.msra.mxu0 0.0
    %4364 = vmatprep.subr.mxu0 0.0
    %4365 = vmatpush1.msra.mxu0 0.0
    %4366 = vmatprep.subr.mxu0 0.0
    %4367 = vmatpush1.msra.mxu0 0.0
    %4368 = vmatprep.subr.mxu0 0.0
    %4369 = vmatpush1.msra.mxu0 0.0
    %4370 = vmatprep.subr.mxu0 0.0
    %4371 = vmatpush1.msra.mxu0 0.0
    %4372 = vmatprep.subr.mxu0 0.0
    %4373 = vmatpush1.msra.mxu0 0.0
    %4374 = vmatprep.subr.mxu0 0.0
    %4375 = vmatpush1.msra.mxu0 0.0
    %4376 = vmatprep.subr.mxu0 0.0
    %4377 = vmatpush1.msra.mxu0 0.0
    %4378 = vmatprep.subr.mxu0 0.0
    %4379 = vmatpush1.msra.mxu0 0.0
    %4380 = vmatprep.subr.mxu0 0.0
    %4381 = vmatpush1.msra.mxu0 0.0
    %4382 = vmatprep.subr.mxu0 0.0
    %4383 = vmatpush1.msra.mxu0 0.0
    %4384 = vmatprep.subr.mxu0 0.0
    %4385 = vmatpush1.msra.mxu0 0.0
    %4386 = vmatprep.mubr.f32.mxu0 0.0
    %4387 = vmatmul.mubr.f32.gmra.mrb[0].mxu0 %v911
    %v4388 = vpop.f32.mrb[0].mxu0
    %v4389 = vadd.f32 %v4296, %v4388
    %v4390 = vpop.f32.mrb[0].mxu0
    %4391 = vmatprep.mubr.f32.mxu0 0.0
    %4392 = vmatmul.mubr.f32.gmra.mrb[0].mxu0 %v914
    %v4393 = vpop.f32.mrb[0].mxu0
    %v4394 = vadd.f32 %v4298, %v4393
    %v4395 = vpop.f32.mrb[0].mxu0
    %4396 = vmatprep.mubr.f32.mxu0 0.0
    %4397 = vmatmul.mubr.f32.gmra.mrb[0].mxu0 %v917
    %v4398 = vpop.f32.mrb[0].mxu0
    %v4399 = vadd.f32 %v4300, %v4398
    %v4400 = vpop.f32.mrb[0].mxu0
    %4401 = vmatprep.mubr.f32.mxu0 0.0
    %4402 = vmatmul.mubr.f32.gmra.mrb[0].mxu0 %v920
    %v4403 = vpop.f32.mrb[0].mxu0
    %v4404 = vadd.f32 %v4302, %v4403
    %v4405 = vpop.f32.mrb[0].mxu0
    %4406 = vmatprep.mubr.f32.mxu0 0.0
    %4407 = vmatmul.mubr.f32.gmra.mrb[0].mxu0 %v923
    %v4408 = vpop.f32.mrb[0].mxu0
    %v4409 = vadd.f32 %v4304, %v4408
    %v4410 = vpop.f32.mrb[0].mxu0
    %4411 = vmatprep.mubr.f32.mxu0 0.0
    %4412 = vmatmul.mubr.f32.gmra.mrb[0].mxu0 %v926
    %v4413 = vpop.f32.mrb[0].mxu0
    %v4414 = vadd.f32 %v4306, %v4413
    %v4415 = vpop.f32.mrb[0].mxu0
    %4416 = vmatprep.mubr.f32.mxu0 0.0
    %4417 = vmatmul.mubr.f32.gmra.mrb[0].mxu0 %v929
    %v4418 = vpop.f32.mrb[0].mxu0
    %v4419 = vadd.f32 %v4308, %v4418
    %v4420 = vpop.f32.mrb[0].mxu0
    %4421 = vmatprep.mubr.f32.mxu0 0.0
    %4422 = vmatmul.mubr.f32.gmra.mrb[0].mxu0 %v932
    %v4423 = vpop.f32.mrb[0].mxu0
    %v4424 = vadd.f32 %v4310, %v4423
    %v4425 = vpop.f32.mrb[0].mxu0
    %4426 = vmatprep.mubr.f32.mxu0 0.0
    %4427 = vmatmul.mubr.f32.gmra.mrb[0].mxu0 %v935
    %v4428 = vpop.f32.mrb[0].mxu0
    %v4429 = vadd.f32 %v4312, %v4428
    %v4430 = vpop.f32.mrb[0].mxu0
    %4431 = vdwg.mxu0
    %v4432 = vld [vmem:[#allocation39] sm:$0x1]
    %v4434 = vlaneseq
    %v4435 = vshrl.u32 %v4434, 7
    %v4436 = vsub.s32 0, %v4435
    %v4437 = vrot.slane %v4432, %v4436
    %v4439 = vadd.f32 %v4389, %v4437
    %v4440 = vadd.f32 %v4394, %v4437
    %v4441 = vadd.f32 %v4399, %v4437
    %v4442 = vadd.f32 %v4404, %v4437
    %v4443 = vadd.f32 %v4409, %v4437
    %v4444 = vadd.f32 %v4414, %v4437
    %v4445 = vadd.f32 %v4419, %v4437
    %v4446 = vadd.f32 %v4424, %v4437
    %v4447 = vadd.f32 %v4429, %v4437
    %v4448 = vmul.f32 %v4439, %v4439
    %v4449 = vmul.f32 %v4440, %v4440
    %v4450 = vmul.f32 %v4441, %v4441
    %v4451 = vmul.f32 %v4442, %v4442
    %v4452 = vmul.f32 %v4443, %v4443
    %v4453 = vmul.f32 %v4444, %v4444
    %v4454 = vmul.f32 %v4445, %v4445
    %v4455 = vmul.f32 %v4446, %v4446
    %v4456 = vmul.f32 %v4447, %v4447
    %v4457 = vmul.f32 %v4439, %v4448
    %v4458 = vmul.f32 %v4440, %v4449
    %v4459 = vmul.f32 %v4441, %v4450
    %v4460 = vmul.f32 %v4442, %v4451
    %v4461 = vmul.f32 %v4443, %v4452
    %v4462 = vmul.f32 %v4444, %v4453
    %v4463 = vmul.f32 %v4445, %v4454
    %v4464 = vmul.f32 %v4446, %v4455
    %v4465 = vmul.f32 %v4447, %v4456
    %v4466 = vmul.f32 %v4457, 0.044715
    %v4467 = vmul.f32 %v4458, 0.044715
    %v4468 = vmul.f32 %v4459, 0.044715
    %v4469 = vmul.f32 %v4460, 0.044715
    %v4470 = vmul.f32 %v4461, 0.044715
    %v4471 = vmul.f32 %v4462, 0.044715
    %v4472 = vmul.f32 %v4463, 0.044715
    %v4473 = vmul.f32 %v4464, 0.044715
    %v4474 = vmul.f32 %v4465, 0.044715
    %v4475 = vadd.f32 %v4439, %v4466
    %v4476 = vadd.f32 %v4440, %v4467
    %v4477 = vadd.f32 %v4441, %v4468
    %v4478 = vadd.f32 %v4442, %v4469
    %v4479 = vadd.f32 %v4443, %v4470
    %v4480 = vadd.f32 %v4444, %v4471
    %v4481 = vadd.f32 %v4445, %v4472
    %v4482 = vadd.f32 %v4446, %v4473
    %v4483 = vadd.f32 %v4447, %v4474
    %v4484 = vmul.f32 %v4475, 0.7978846
    %v4485 = vmul.f32 %v4476, 0.7978846
    %v4486 = vmul.f32 %v4477, 0.7978846
    %v4487 = vmul.f32 %v4478, 0.7978846
    %v4488 = vmul.f32 %v4479, 0.7978846
    %v4489 = vmul.f32 %v4480, 0.7978846
    %v4490 = vmul.f32 %v4481, 0.7978846
    %v4491 = vmul.f32 %v4482, 0.7978846
    %v4492 = vmul.f32 %v4483, 0.7978846
    %v4493 = vtanh.pop %v4484
    %v4494 = vtanh.pop %v4485
    %v4495 = vtanh.pop %v4486
    %v4496 = vtanh.pop %v4487
    %v4497 = vtanh.pop %v4488
    %v4498 = vtanh.pop %v4489
    %v4499 = vtanh.pop %v4490
    %v4500 = vtanh.pop %v4491
    %v4501 = vtanh.pop %v4492
    %v4502 = vadd.f32 %v4493, 1.0
    %v4503 = vadd.f32 %v4494, 1.0
    %v4504 = vadd.f32 %v4495, 1.0
    %v4505 = vadd.f32 %v4496, 1.0
    %v4506 = vadd.f32 %v4497, 1.0
    %v4507 = vadd.f32 %v4498, 1.0
    %v4508 = vadd.f32 %v4499, 1.0
    %v4509 = vadd.f32 %v4500, 1.0
    %v4510 = vadd.f32 %v4501, 1.0
    %v4511 = vmul.f32 %v4502, 0.5
    %v4512 = vmul.f32 %v4503, 0.5
    %v4513 = vmul.f32 %v4504, 0.5
    %v4514 = vmul.f32 %v4505, 0.5
    %v4515 = vmul.f32 %v4506, 0.5
    %v4516 = vmul.f32 %v4507, 0.5
    %v4517 = vmul.f32 %v4508, 0.5
    %v4518 = vmul.f32 %v4509, 0.5
    %v4519 = vmul.f32 %v4510, 0.5
    %v4520 = vmul.f32 %v4439, %v4511
    %v4521 = vmul.f32 %v4440, %v4512
    %v4522 = vmul.f32 %v4441, %v4513
    %v4523 = vmul.f32 %v4442, %v4514
    %v4524 = vmul.f32 %v4443, %v4515
    %v4525 = vmul.f32 %v4444, %v4516
    %v4526 = vmul.f32 %v4445, %v4517
    %v4527 = vmul.f32 %v4446, %v4518
    %v4528 = vmul.f32 %v4447, %v4519
    %4529 = vst.msk [vmem:[#allocation3] sm:$0xff] %vm3429, %v4520
    %4531 = vrot.lane.b32.xlu0 %v4521, 64
    %v4532 = vpop.permute.xlu0 %4531
    %vm4534 = vcmask 1048064
    %4535 = vst.msk [vmem:[#allocation3] sm:$0xff] %vm4534, %v4532
    %4536 = vst.msk [vmem:[#allocation3 + $0x8] sm:$0xff] %vm3429, %v4522
    %4538 = vrot.lane.b32.xlu0 %v4523, 64
    %v4539 = vpop.permute.xlu0 %4538
    %4541 = vst.msk [vmem:[#allocation3 + $0x8] sm:$0xff] %vm4534, %v4539
    %4542 = vst.msk [vmem:[#allocation3 + $0x10] sm:$0xff] %vm3429, %v4524
    %4544 = vrot.lane.b32.xlu0 %v4525, 64
    %v4545 = vpop.permute.xlu0 %4544
    %4547 = vst.msk [vmem:[#allocation3 + $0x10] sm:$0xff] %vm4534, %v4545
    %4548 = vst.msk [vmem:[#allocation3 + $0x18] sm:$0xff] %vm3429, %v4526
    %4550 = vrot.lane.b32.xlu0 %v4527, 64
    %v4551 = vpop.permute.xlu0 %4550
    %4553 = vst.msk [vmem:[#allocation3 + $0x18] sm:$0xff] %vm4534, %v4551
    %4554 = vst.msk [vmem:[#allocation3 + $0x20] sm:$0xff] %vm3429, %v4528
    %v4555 = vld [vmem:[#allocation3] sm:$0xff]
    %v4556 = vld [vmem:[#allocation3 + $0x8] sm:$0xff]
    %v4557 = vld [vmem:[#allocation3 + $0x10] sm:$0xff]
    %v4558 = vld [vmem:[#allocation3 + $0x18] sm:$0xff]
    %v4559 = vld [vmem:[#allocation3 + $0x20] sm:$0xff]
    %v4560 = vadd.f32 %v4555, %v3821
    %v4561 = vadd.f32 %v4556, %v3823
    %v4562 = vadd.f32 %v4557, %v3963
    %v4563 = vadd.f32 %v4558, %v3965
    %v4564 = vadd.f32 %v4559, %v4104
    %v4565 = vadd.f32 %v4560, %v4561
    %v4566 = vadd.f32 %v4565, %v4562
    %v4567 = vadd.f32 %v4566, %v4563
    %v4568 = vsel %vm3429, %v4564, 0.0
    %v4569 = vadd.f32 %v4567, %v4568
    %4570 = vadd.xlane.f32.xlu0 %v4569
    %v4571 = vpop.xlane.xlu0 %4570
    %v4572 = vrcp.pop 576.0
    %v4573 = vmul.f32 %v4571, %v4572
    %v4574 = vsub.f32 %v4560, %v4573
    %v4575 = vsub.f32 %v4561, %v4573
    %v4576 = vsub.f32 %v4562, %v4573
    %v4577 = vsub.f32 %v4563, %v4573
    %v4578 = vsub.f32 %v4564, %v4573
    %v4579 = vmul.f32 %v4574, %v4574
    %v4580 = vmul.f32 %v4575, %v4575
    %v4581 = vmul.f32 %v4576, %v4576
    %v4582 = vmul.f32 %v4577, %v4577
    %v4583 = vmul.f32 %v4578, %v4578
    %v4584 = vadd.f32 %v4579, %v4580
    %v4585 = vadd.f32 %v4584, %v4581
    %v4586 = vadd.f32 %v4585, %v4582
    %v4587 = vsel %vm3429, %v4583, 0.0
    %v4588 = vadd.f32 %v4586, %v4587
    %4589 = vadd.xlane.f32.xlu0 %v4588
    %v4590 = vpop.xlane.xlu0 %4589
    %v4591 = vmul.f32 %v4590, %v4572
    %v4592 = vadd.f32 %v4591, 1e-05
    %v4593 = vrsqrt.pop %v4592
    %v4594 = vmul.f32 %v4574, %v4593
    %v4595 = vmul.f32 %v4575, %v4593
    %v4596 = vmul.f32 %v4576, %v4593
    %v4597 = vmul.f32 %v4577, %v4593
    %v4598 = vmul.f32 %v4578, %v4593
    %v4599 = vld [vmem:[#allocation8] sm:$0x1f]
    %v4601 = vlaneseq
    %v4602 = vshrl.u32 %v4601, 7
    %v4603 = vsub.s32 0, %v4602
    %v4604 = vrot.slane %v4599, %v4603
    %v4605 = vlaneseq
    %v4606 = vshrl.u32 %v4605, 7
    %v4607 = vsub.s32 1, %v4606
    %v4608 = vrot.slane %v4599, %v4607
    %v4609 = vlaneseq
    %v4610 = vshrl.u32 %v4609, 7
    %v4611 = vsub.s32 2, %v4610
    %v4612 = vrot.slane %v4599, %v4611
    %v4613 = vlaneseq
    %v4614 = vshrl.u32 %v4613, 7
    %v4615 = vsub.s32 3, %v4614
    %v4616 = vrot.slane %v4599, %v4615
    %v4617 = vlaneseq
    %v4618 = vshrl.u32 %v4617, 7
    %v4619 = vsub.s32 4, %v4618
    %v4620 = vrot.slane %v4599, %v4619
    %v4626 = vadd.f32 %v4594, %v4604
    %v4627 = vadd.f32 %v4595, %v4608
    %v4628 = vadd.f32 %v4596, %v4612
    %v4629 = vadd.f32 %v4597, %v4616
    %v4630 = vadd.f32 %v4598, %v4620
    %4631 = vst [vmem:[%s24] sm:$0xff] %v4626
    %4632 = vst [vmem:[%s24 + $0x8] sm:$0xff] %v4627
    %4633 = vst [vmem:[%s24 + $0x10] sm:$0xff] %v4628
    %4634 = vst [vmem:[%s24 + $0x18] sm:$0xff] %v4629
    %4635 = vst.msk [vmem:[%s24 + $0x20] sm:$0xff] %vm3429, %v4630
    // Predicated region
    $region194: #{_lambda_.2} parent=1 // pred_check
      _
    $region195: #{_lambda_.2} parent=1 // pred_check_branch
      %4637 = sbr.rel (0) target = $region197
    $region196: #{_lambda_.2} parent=1 // pred_region
      _
    $region197: #{_lambda_.2} parent=1 // pred_fallthru
      _
    // Predicated region
    $region198: #{_lambda_.2} parent=1 // pred_check
      _
    $region199: #{_lambda_.2} parent=1 // pred_check_branch
      %4639 = sbr.rel (0) target = $region201
    $region200: #{_lambda_.2} parent=1 // pred_region
      _
    $region201: #{_lambda_.2} parent=1 // pred_fallthru
      _
    %4640 = vsyncpa [#allocation5], 1
    %4641 = vsyncpa [#allocation7], 1
    %4642 = vsyncpa [#allocation10], 1
    %4643 = vsyncpa [#allocation13], 1
    %4644 = vsyncpa [#allocation16], 1
    %4645 = vsyncpa [#allocation19], 1
    %4646 = vsyncpa [#allocation22], 1
    %4647 = vsyncpa [#allocation25], 1
    %4648 = vsyncpa [#allocation28], 1
    %4649 = vsyncpa [#allocation31], 1
    %4650 = vsyncpa [#allocation34], 1
    %4651 = vsyncpa [#allocation37], 1
    %4652 = vsyncpa [#allocation40], 1

</llo_original>
